<compile_context>
chip_gen: v7x
topology: tpu7x:2x2x1
jax: 0.10.0
libtpu: 0.0.40
codegen_flags: <defaults>
</compile_context>

<pallas_src>
import jax
import jax.numpy as jnp
from jax import lax
from jax.experimental import pallas as pl
from jax.experimental.pallas import tpu as pltpu

EPS = 1e-5

LATENT_DIM = 32
N_LAYER = 6
N_FILTER = 16
RESOLUTION = 16
CHANNELS = 3
INIT_RES = RESOLUTION // 2 ** (N_LAYER - 3)   # 2
BATCH = 2
K = 3                                         # ConvTranspose2d kernel size


def _conv_specs():
    """(cin, cout, stride, use_bn, activation) per ConvTranspose2dBlock,
    reproducing the module constructor's layer list."""
    specs = []
    for _ in range(2):
        specs.append((N_FILTER, N_FILTER, 2, True, "relu"))   # 'same' => 2x upsample
        specs.append((N_FILTER, N_FILTER, 1, True, "relu"))
    out_ch = N_FILTER
    for i in range(N_LAYER - 5):
        in_ch = N_FILTER if i == 0 else out_ch
        out_ch = N_FILTER // 2 if i == 0 else max(out_ch // 2, CHANNELS)
        specs.append((in_ch, out_ch, 2, True, "relu"))
    specs.append((out_ch, CHANNELS, 1, False, "tanh"))         # last layer: no norm
    return tuple(specs)


def _vmem_spec():
    return pl.BlockSpec(memory_space=pltpu.MemorySpace.VMEM)


# ---------------------------------------------------------------------------
# In-kernel helpers (operate on traced jnp values; all static shapes)
# ---------------------------------------------------------------------------
def _batchnorm(x, gamma, beta):
    """Train-mode batch norm over axis 0 of an (m, C) matrix (one-pass stats,
    biased variance like torch)."""
    inv_m = 1.0 / x.shape[0]
    mean = jnp.sum(x, axis=0, keepdims=True) * inv_m
    ex2 = jnp.sum(x * x, axis=0, keepdims=True) * inv_m
    var = ex2 - mean * mean
    scale = gamma * lax.rsqrt(var + EPS)
    return (x - mean) * scale + beta


def _zero_insert_pad(x, stride):
    """ConvTranspose2d(k=3, padding=1, output_padding=stride-1) input prep:
    interior zero-insertion (stride-1 zeros) + lo/hi edge padding (1, stride),
    built purely from static slices + concatenations (stays in VMEM)."""
    n, h, w, c = x.shape
    zrow = jnp.zeros((n, 1, w, c), x.dtype)
    if stride == 1:
        xh = jnp.concatenate([zrow, x, zrow], axis=1)
    else:
        rows = []
        for i in range(h):
            rows.append(zrow)
            rows.append(x[:, i:i + 1, :, :])
        rows.extend([zrow, zrow])
        xh = jnp.concatenate(rows, axis=1)
    hp = xh.shape[1]
    zcol = jnp.zeros((n, hp, 1, c), x.dtype)
    if stride == 1:
        xp = jnp.concatenate([zcol, xh, zcol], axis=2)
    else:
        cols = []
        for j in range(w):
            cols.append(zcol)
            cols.append(xh[:, :, j:j + 1, :])
        cols.extend([zcol, zcol])
        xp = jnp.concatenate(cols, axis=2)
    return xp


def _convt_block(x, w_mat, bias, gamma, beta, *, stride, act):
    """Transposed conv (correlation over the zero-inserted input realized as a
    single im2col matmul) + bias (+ train-mode BN) + activation. NHWC layout."""
    n, _, _, cin = x.shape
    cout = w_mat.shape[1]
    xp = _zero_insert_pad(x, stride)
    ho = xp.shape[1] - (K - 1)
    wo = xp.shape[2] - (K - 1)
    m = n * ho * wo
    pieces = []
    for kh in range(K):
        for kw in range(K):
            pieces.append(xp[:, kh:kh + ho, kw:kw + wo, :].reshape(m, cin))
    patches = jnp.concatenate(pieces, axis=1)             # (m, 9*cin) im2col
    acc = jnp.dot(patches, w_mat, preferred_element_type=jnp.float32) + bias
    if gamma is not None:
        acc = _batchnorm(acc, gamma, beta)
    if act == "relu":
        acc = jnp.maximum(acc, 0.0)
    else:                                                  # "tanh"
        acc = jnp.tanh(acc)
    return acc.reshape(n, ho, wo, cout)


# ---------------------------------------------------------------------------
# Fused generator kernel
# ---------------------------------------------------------------------------
def _make_generator_kernel(n, conv_specs):
    def kernel(*refs):
        z_ref = refs[0]
        lw_ref, lb_ref, lg_ref, lbe_ref = refs[1:5]
        conv_refs = refs[5:-1]
        o_ref = refs[-1]

        # ---- LinearBlock: Linear + BN1d(train) + ReLU ---------------------
        # (output features were pre-permuted to NHWC-flattened order)
        y = jnp.dot(z_ref[...], lw_ref[...], preferred_element_type=jnp.float32)
        y = y + lb_ref[...]
        y = _batchnorm(y, lg_ref[...], lbe_ref[...])
        y = jnp.maximum(y, 0.0)                            # (n, r*r*n_filter)

        # ---- Reshape(n_filter, r, r) -> NHWC (n, r, r, n_filter) ----------
        rows = []
        for hh in range(INIT_RES):
            cols = []
            for ww in range(INIT_RES):
                d0 = (hh * INIT_RES + ww) * N_FILTER
                cols.append(y[:, d0:d0 + N_FILTER].reshape(n, 1, 1, N_FILTER))
            rows.append(jnp.concatenate(cols, axis=2))
        x = jnp.concatenate(rows, axis=1)

        # ---- ConvTranspose2dBlock stack (all activations stay on-chip) ----
        ri = 0
        for (_cin, _cout, stride, use_bn, act) in conv_specs:
            w_mat = conv_refs[ri][...]
            bias = conv_refs[ri + 1][...]
            if use_bn:
                gamma = conv_refs[ri + 2][...]
                beta = conv_refs[ri + 3][...]
                ri += 4
            else:
                gamma = beta = None
                ri += 2
            x = _convt_block(x, w_mat, bias, gamma, beta, stride=stride, act=act)

        # ---- NHWC -> lane-dense (n, C, H*W) output ------------------------
        hh, ww, cc = x.shape[1], x.shape[2], x.shape[3]
        hw = hh * ww
        flat = x.reshape(n * hw, cc)                       # rows ordered (n, h, w)
        pad_cols = (-cc) % 128
        if pad_cols:                                       # pad lanes so the transpose
            flat = jnp.concatenate(                        # is the fully aligned case
                [flat, jnp.zeros((n * hw, pad_cols), flat.dtype)], axis=1)
        flat_t = jnp.transpose(flat, (1, 0))               # (128, n*hw), lane-dense
        for nn in range(n):
            o_ref[nn, :, :] = flat_t[:cc, nn * hw:(nn + 1) * hw]

    return kernel


def generator_forward(z, params):
    n = z.shape[0]
    conv_specs = _conv_specs()
    flat = [z, params["lin_w"], params["lin_b"], params["lin_g"], params["lin_be"]]
    for blk, (_, _, _, use_bn, _) in zip(params["convs"], conv_specs):
        flat.extend([blk["w"], blk["b"]])
        if use_bn:
            flat.extend([blk["g"], blk["be"]])
    hw = RESOLUTION * RESOLUTION
    out = pl.pallas_call(
        _make_generator_kernel(n, conv_specs),
        out_shape=jax.ShapeDtypeStruct((n, CHANNELS, hw), jnp.float32),
        in_specs=[_vmem_spec()] * len(flat),
        out_specs=_vmem_spec(),
    )(*flat)
    # Free contiguous view back to NCHW.
    return out.reshape(n, CHANNELS, RESOLUTION, RESOLUTION)


# ---------------------------------------------------------------------------
# Parameter construction (deterministic, synthetic). All layout work
# (transpose/flip/reshape/feature-permutation) is hoisted here, once.
# ---------------------------------------------------------------------------
def build_params(key):
    conv_specs = _conv_specs()
    keys = jax.random.split(key, 2 + 2 * len(conv_specs))
    ki = 0

    def nxt():
        nonlocal ki
        k = keys[ki]
        ki += 1
        return k

    dout = N_FILTER * INIT_RES ** 2
    # torch-layout Linear params
    lin_w_t = 0.1 * jax.random.normal(nxt(), (dout, LATENT_DIM), jnp.float32)  # (Dout, Din)
    lin_b_t = 0.1 * jax.random.normal(nxt(), (dout,), jnp.float32)
    lin_g_t = jnp.ones((dout,), jnp.float32)
    lin_be_t = jnp.zeros((dout,), jnp.float32)

    # Hoisted layout: (Din, Dout) weight, output features permuted from torch
    # Reshape order (C, H0, W0) to NHWC order (H0, W0, C) so the kernel can use
    # the Linear output directly as an NHWC feature map (BN1d is per-feature,
    # so permuting W, b, gamma, beta consistently is exact).
    def perm_feat(v):
        return v.reshape(N_FILTER, INIT_RES, INIT_RES).transpose(1, 2, 0).reshape(1, dout)

    lin_w = (lin_w_t.T.reshape(LATENT_DIM, N_FILTER, INIT_RES, INIT_RES)
             .transpose(0, 2, 3, 1).reshape(LATENT_DIM, dout))

    params = dict(lin_w=lin_w, lin_b=perm_feat(lin_b_t),
                  lin_g=perm_feat(lin_g_t), lin_be=perm_feat(lin_be_t))

    convs = []
    for (cin, cout, _stride, use_bn, _act) in conv_specs:
        w_t = 0.1 * jax.random.normal(nxt(), (cin, cout, K, K), jnp.float32)  # torch layout
        b_t = 0.1 * jax.random.normal(nxt(), (cout,), jnp.float32)
        # Transposed conv == correlation of the flipped/transposed kernel over the
        # zero-inserted/padded input; flatten to the (K*K*Cin, Cout) im2col matrix
        # with row order (kh, kw, cin), matching the kernel's patch concat order.
        w_corr = jnp.transpose(jnp.flip(w_t, axis=(2, 3)), (2, 3, 0, 1))       # (K,K,Cin,Cout)
        blk = dict(w=w_corr.reshape(K * K * cin, cout), b=b_t.reshape(1, cout))
        if use_bn:
            blk["g"] = jnp.ones((1, cout), jnp.float32)
            blk["be"] = jnp.zeros((1, cout), jnp.float32)
        convs.append(blk)
    params["convs"] = convs
    return params


if __name__ == "__main__":
    key = jax.random.PRNGKey(0)
    k_param, k_z = jax.random.split(key)
    params = build_params(k_param)
    z = jax.random.normal(k_z, (BATCH, LATENT_DIM), jnp.float32)

    fwd = jax.jit(generator_forward)
    out = jax.block_until_ready(fwd(z, params))

    assert out.shape == (BATCH, CHANNELS, RESOLUTION, RESOLUTION), out.shape
    assert bool(jnp.all(jnp.isfinite(out)))
    # tanh output range check
    assert bool(jnp.all(jnp.abs(out) <= 1.0 + 1e-6))
    print("KERNEL_OK")
</pallas_src>

<mosaic_0001>
module attributes {stable_mosaic.version = 11 : i64} {
  func.func @kernel(%arg0: memref<2x32xf32, #tpu.memory_space<vmem>>, %arg1: memref<32x64xf32, #tpu.memory_space<vmem>>, %arg2: memref<1x64xf32, #tpu.memory_space<vmem>>, %arg3: memref<1x64xf32, #tpu.memory_space<vmem>>, %arg4: memref<1x64xf32, #tpu.memory_space<vmem>>, %arg5: memref<144x16xf32, #tpu.memory_space<vmem>>, %arg6: memref<1x16xf32, #tpu.memory_space<vmem>>, %arg7: memref<1x16xf32, #tpu.memory_space<vmem>>, %arg8: memref<1x16xf32, #tpu.memory_space<vmem>>, %arg9: memref<144x16xf32, #tpu.memory_space<vmem>>, %arg10: memref<1x16xf32, #tpu.memory_space<vmem>>, %arg11: memref<1x16xf32, #tpu.memory_space<vmem>>, %arg12: memref<1x16xf32, #tpu.memory_space<vmem>>, %arg13: memref<144x16xf32, #tpu.memory_space<vmem>>, %arg14: memref<1x16xf32, #tpu.memory_space<vmem>>, %arg15: memref<1x16xf32, #tpu.memory_space<vmem>>, %arg16: memref<1x16xf32, #tpu.memory_space<vmem>>, %arg17: memref<144x16xf32, #tpu.memory_space<vmem>>, %arg18: memref<1x16xf32, #tpu.memory_space<vmem>>, %arg19: memref<1x16xf32, #tpu.memory_space<vmem>>, %arg20: memref<1x16xf32, #tpu.memory_space<vmem>>, %arg21: memref<144x8xf32, #tpu.memory_space<vmem>>, %arg22: memref<1x8xf32, #tpu.memory_space<vmem>>, %arg23: memref<1x8xf32, #tpu.memory_space<vmem>>, %arg24: memref<1x8xf32, #tpu.memory_space<vmem>>, %arg25: memref<72x3xf32, #tpu.memory_space<vmem>>, %arg26: memref<1x3xf32, #tpu.memory_space<vmem>>, %arg27: memref<2x3x256xf32, #tpu.memory_space<vmem>>) attributes {dimension_semantics = [], scalar_prefetch = 0 : i64, scratch_operands = 0 : i64, tpu.core_type = #tpu.core_type<tc>} {
    %c0 = arith.constant 0 : index
    %c0_0 = arith.constant 0 : index
    %0 = vector.load %arg0[%c0, %c0_0] : memref<2x32xf32, #tpu.memory_space<vmem>>, vector<2x32xf32>
    %c0_1 = arith.constant 0 : index
    %c0_2 = arith.constant 0 : index
    %1 = vector.load %arg1[%c0_1, %c0_2] : memref<32x64xf32, #tpu.memory_space<vmem>>, vector<32x64xf32>
    %cst = arith.constant dense<0.000000e+00> : vector<2x64xf32>
    %2 = tpu.matmul %0, %1, %cst {dimension_numbers = #tpu.dot_dimension_numbers<[1], [0], [0], [1], [0, 0, 1, 1], [], []>} : vector<2x32xf32>, vector<32x64xf32>, vector<2x64xf32> -> vector<2x64xf32>
    %c0_3 = arith.constant 0 : index
    %c0_4 = arith.constant 0 : index
    %3 = vector.load %arg2[%c0_3, %c0_4] : memref<1x64xf32, #tpu.memory_space<vmem>>, vector<1x64xf32>
    %4 = vector.broadcast %3 : vector<1x64xf32> to vector<2x64xf32>
    %5 = arith.addf %2, %4 : vector<2x64xf32>
    %c0_5 = arith.constant 0 : index
    %c0_6 = arith.constant 0 : index
    %6 = vector.load %arg3[%c0_5, %c0_6] : memref<1x64xf32, #tpu.memory_space<vmem>>, vector<1x64xf32>
    %c0_7 = arith.constant 0 : index
    %c0_8 = arith.constant 0 : index
    %7 = vector.load %arg4[%c0_7, %c0_8] : memref<1x64xf32, #tpu.memory_space<vmem>>, vector<1x64xf32>
    %cst_9 = arith.constant dense<0.000000e+00> : vector<64xf32>
    %8 = vector.multi_reduction <add>, %5, %cst_9 [0] : vector<2x64xf32> to vector<64xf32>
    %9 = vector.shape_cast %8 : vector<64xf32> to vector<1x64xf32>
    %cst_10 = arith.constant 5.000000e-01 : f32
    %10 = vector.broadcast %cst_10 : f32 to vector<1x64xf32>
    %11 = arith.mulf %9, %10 : vector<1x64xf32>
    %12 = arith.mulf %5, %5 : vector<2x64xf32>
    %cst_11 = arith.constant dense<0.000000e+00> : vector<64xf32>
    %13 = vector.multi_reduction <add>, %12, %cst_11 [0] : vector<2x64xf32> to vector<64xf32>
    %14 = vector.shape_cast %13 : vector<64xf32> to vector<1x64xf32>
    %cst_12 = arith.constant 5.000000e-01 : f32
    %15 = vector.broadcast %cst_12 : f32 to vector<1x64xf32>
    %16 = arith.mulf %14, %15 : vector<1x64xf32>
    %17 = arith.mulf %11, %11 : vector<1x64xf32>
    %18 = arith.subf %16, %17 : vector<1x64xf32>
    %cst_13 = arith.constant 9.99999974E-6 : f32
    %19 = vector.broadcast %cst_13 : f32 to vector<1x64xf32>
    %20 = arith.addf %18, %19 : vector<1x64xf32>
    %21 = math.rsqrt %20 : vector<1x64xf32>
    %22 = arith.mulf %6, %21 : vector<1x64xf32>
    %23 = vector.broadcast %11 : vector<1x64xf32> to vector<2x64xf32>
    %24 = arith.subf %5, %23 : vector<2x64xf32>
    %25 = vector.broadcast %22 : vector<1x64xf32> to vector<2x64xf32>
    %26 = arith.mulf %24, %25 : vector<2x64xf32>
    %27 = vector.broadcast %7 : vector<1x64xf32> to vector<2x64xf32>
    %28 = arith.addf %26, %27 : vector<2x64xf32>
    %cst_14 = arith.constant 0.000000e+00 : f32
    %29 = vector.broadcast %cst_14 : f32 to vector<2x64xf32>
    %30 = arith.maximumf %28, %29 : vector<2x64xf32>
    %31 = vector.extract_strided_slice %30 {offsets = [0, 0], sizes = [2, 16], strides = [1, 1]} : vector<2x64xf32> to vector<2x16xf32>
    %32 = vector.shape_cast %31 : vector<2x16xf32> to vector<2x1x1x16xf32>
    %33 = vector.extract_strided_slice %30 {offsets = [0, 16], sizes = [2, 16], strides = [1, 1]} : vector<2x64xf32> to vector<2x16xf32>
    %34 = vector.shape_cast %33 : vector<2x16xf32> to vector<2x1x1x16xf32>
    %35 = tpu.concatenate %32, %34 in 2 : vector<2x1x1x16xf32>, vector<2x1x1x16xf32> -> vector<2x1x2x16xf32>
    %36 = vector.extract_strided_slice %30 {offsets = [0, 32], sizes = [2, 16], strides = [1, 1]} : vector<2x64xf32> to vector<2x16xf32>
    %37 = vector.shape_cast %36 : vector<2x16xf32> to vector<2x1x1x16xf32>
    %38 = vector.extract_strided_slice %30 {offsets = [0, 48], sizes = [2, 16], strides = [1, 1]} : vector<2x64xf32> to vector<2x16xf32>
    %39 = vector.shape_cast %38 : vector<2x16xf32> to vector<2x1x1x16xf32>
    %40 = tpu.concatenate %37, %39 in 2 : vector<2x1x1x16xf32>, vector<2x1x1x16xf32> -> vector<2x1x2x16xf32>
    %41 = tpu.concatenate %35, %40 in 1 : vector<2x1x2x16xf32>, vector<2x1x2x16xf32> -> vector<2x2x2x16xf32>
    %c0_15 = arith.constant 0 : index
    %c0_16 = arith.constant 0 : index
    %42 = vector.load %arg5[%c0_15, %c0_16] : memref<144x16xf32, #tpu.memory_space<vmem>>, vector<144x16xf32>
    %c0_17 = arith.constant 0 : index
    %c0_18 = arith.constant 0 : index
    %43 = vector.load %arg6[%c0_17, %c0_18] : memref<1x16xf32, #tpu.memory_space<vmem>>, vector<1x16xf32>
    %c0_19 = arith.constant 0 : index
    %c0_20 = arith.constant 0 : index
    %44 = vector.load %arg7[%c0_19, %c0_20] : memref<1x16xf32, #tpu.memory_space<vmem>>, vector<1x16xf32>
    %c0_21 = arith.constant 0 : index
    %c0_22 = arith.constant 0 : index
    %45 = vector.load %arg8[%c0_21, %c0_22] : memref<1x16xf32, #tpu.memory_space<vmem>>, vector<1x16xf32>
    %cst_23 = arith.constant 0.000000e+00 : f32
    %46 = vector.broadcast %cst_23 : f32 to vector<2x1x2x16xf32>
    %47 = vector.extract_strided_slice %41 {offsets = [0, 0, 0, 0], sizes = [2, 1, 2, 16], strides = [1, 1, 1, 1]} : vector<2x2x2x16xf32> to vector<2x1x2x16xf32>
    %48 = vector.extract_strided_slice %41 {offsets = [0, 1, 0, 0], sizes = [2, 1, 2, 16], strides = [1, 1, 1, 1]} : vector<2x2x2x16xf32> to vector<2x1x2x16xf32>
    %49 = tpu.concatenate %46, %47, %46, %48, %46, %46 in 1 : vector<2x1x2x16xf32>, vector<2x1x2x16xf32>, vector<2x1x2x16xf32>, vector<2x1x2x16xf32>, vector<2x1x2x16xf32>, vector<2x1x2x16xf32> -> vector<2x6x2x16xf32>
    %cst_24 = arith.constant 0.000000e+00 : f32
    %50 = vector.broadcast %cst_24 : f32 to vector<2x6x1x16xf32>
    %51 = vector.extract_strided_slice %49 {offsets = [0, 0, 0, 0], sizes = [2, 6, 1, 16], strides = [1, 1, 1, 1]} : vector<2x6x2x16xf32> to vector<2x6x1x16xf32>
    %52 = vector.extract_strided_slice %49 {offsets = [0, 0, 1, 0], sizes = [2, 6, 1, 16], strides = [1, 1, 1, 1]} : vector<2x6x2x16xf32> to vector<2x6x1x16xf32>
    %53 = tpu.concatenate %50, %51, %50, %52, %50, %50 in 2 : vector<2x6x1x16xf32>, vector<2x6x1x16xf32>, vector<2x6x1x16xf32>, vector<2x6x1x16xf32>, vector<2x6x1x16xf32>, vector<2x6x1x16xf32> -> vector<2x6x6x16xf32>
    %54 = vector.extract_strided_slice %53 {offsets = [0, 0, 0, 0], sizes = [2, 4, 4, 16], strides = [1, 1, 1, 1]} : vector<2x6x6x16xf32> to vector<2x4x4x16xf32>
    %55 = vector.shape_cast %54 : vector<2x4x4x16xf32> to vector<32x16xf32>
    %56 = vector.extract_strided_slice %53 {offsets = [0, 0, 1, 0], sizes = [2, 4, 4, 16], strides = [1, 1, 1, 1]} : vector<2x6x6x16xf32> to vector<2x4x4x16xf32>
    %57 = vector.shape_cast %56 : vector<2x4x4x16xf32> to vector<32x16xf32>
    %58 = vector.extract_strided_slice %53 {offsets = [0, 0, 2, 0], sizes = [2, 4, 4, 16], strides = [1, 1, 1, 1]} : vector<2x6x6x16xf32> to vector<2x4x4x16xf32>
    %59 = vector.shape_cast %58 : vector<2x4x4x16xf32> to vector<32x16xf32>
    %60 = vector.extract_strided_slice %53 {offsets = [0, 1, 0, 0], sizes = [2, 4, 4, 16], strides = [1, 1, 1, 1]} : vector<2x6x6x16xf32> to vector<2x4x4x16xf32>
    %61 = vector.shape_cast %60 : vector<2x4x4x16xf32> to vector<32x16xf32>
    %62 = vector.extract_strided_slice %53 {offsets = [0, 1, 1, 0], sizes = [2, 4, 4, 16], strides = [1, 1, 1, 1]} : vector<2x6x6x16xf32> to vector<2x4x4x16xf32>
    %63 = vector.shape_cast %62 : vector<2x4x4x16xf32> to vector<32x16xf32>
    %64 = vector.extract_strided_slice %53 {offsets = [0, 1, 2, 0], sizes = [2, 4, 4, 16], strides = [1, 1, 1, 1]} : vector<2x6x6x16xf32> to vector<2x4x4x16xf32>
    %65 = vector.shape_cast %64 : vector<2x4x4x16xf32> to vector<32x16xf32>
    %66 = vector.extract_strided_slice %53 {offsets = [0, 2, 0, 0], sizes = [2, 4, 4, 16], strides = [1, 1, 1, 1]} : vector<2x6x6x16xf32> to vector<2x4x4x16xf32>
    %67 = vector.shape_cast %66 : vector<2x4x4x16xf32> to vector<32x16xf32>
    %68 = vector.extract_strided_slice %53 {offsets = [0, 2, 1, 0], sizes = [2, 4, 4, 16], strides = [1, 1, 1, 1]} : vector<2x6x6x16xf32> to vector<2x4x4x16xf32>
    %69 = vector.shape_cast %68 : vector<2x4x4x16xf32> to vector<32x16xf32>
    %70 = vector.extract_strided_slice %53 {offsets = [0, 2, 2, 0], sizes = [2, 4, 4, 16], strides = [1, 1, 1, 1]} : vector<2x6x6x16xf32> to vector<2x4x4x16xf32>
    %71 = vector.shape_cast %70 : vector<2x4x4x16xf32> to vector<32x16xf32>
    %72 = tpu.concatenate %55, %57, %59, %61, %63, %65, %67, %69, %71 in 1 : vector<32x16xf32>, vector<32x16xf32>, vector<32x16xf32>, vector<32x16xf32>, vector<32x16xf32>, vector<32x16xf32>, vector<32x16xf32>, vector<32x16xf32>, vector<32x16xf32> -> vector<32x144xf32>
    %cst_25 = arith.constant dense<0.000000e+00> : vector<32x16xf32>
    %73 = tpu.matmul %72, %42, %cst_25 {dimension_numbers = #tpu.dot_dimension_numbers<[1], [0], [0], [1], [0, 0, 1, 1], [], []>} : vector<32x144xf32>, vector<144x16xf32>, vector<32x16xf32> -> vector<32x16xf32>
    %74 = vector.broadcast %43 : vector<1x16xf32> to vector<32x16xf32>
    %75 = arith.addf %73, %74 : vector<32x16xf32>
    %cst_26 = arith.constant dense<0.000000e+00> : vector<16xf32>
    %76 = vector.multi_reduction <add>, %75, %cst_26 [0] : vector<32x16xf32> to vector<16xf32>
    %77 = vector.shape_cast %76 : vector<16xf32> to vector<1x16xf32>
    %cst_27 = arith.constant 3.125000e-02 : f32
    %78 = vector.broadcast %cst_27 : f32 to vector<1x16xf32>
    %79 = arith.mulf %77, %78 : vector<1x16xf32>
    %80 = arith.mulf %75, %75 : vector<32x16xf32>
    %cst_28 = arith.constant dense<0.000000e+00> : vector<16xf32>
    %81 = vector.multi_reduction <add>, %80, %cst_28 [0] : vector<32x16xf32> to vector<16xf32>
    %82 = vector.shape_cast %81 : vector<16xf32> to vector<1x16xf32>
    %cst_29 = arith.constant 3.125000e-02 : f32
    %83 = vector.broadcast %cst_29 : f32 to vector<1x16xf32>
    %84 = arith.mulf %82, %83 : vector<1x16xf32>
    %85 = arith.mulf %79, %79 : vector<1x16xf32>
    %86 = arith.subf %84, %85 : vector<1x16xf32>
    %cst_30 = arith.constant 9.99999974E-6 : f32
    %87 = vector.broadcast %cst_30 : f32 to vector<1x16xf32>
    %88 = arith.addf %86, %87 : vector<1x16xf32>
    %89 = math.rsqrt %88 : vector<1x16xf32>
    %90 = arith.mulf %44, %89 : vector<1x16xf32>
    %91 = vector.broadcast %79 : vector<1x16xf32> to vector<32x16xf32>
    %92 = arith.subf %75, %91 : vector<32x16xf32>
    %93 = vector.broadcast %90 : vector<1x16xf32> to vector<32x16xf32>
    %94 = arith.mulf %92, %93 : vector<32x16xf32>
    %95 = vector.broadcast %45 : vector<1x16xf32> to vector<32x16xf32>
    %96 = arith.addf %94, %95 : vector<32x16xf32>
    %cst_31 = arith.constant 0.000000e+00 : f32
    %97 = vector.broadcast %cst_31 : f32 to vector<32x16xf32>
    %98 = arith.maximumf %96, %97 : vector<32x16xf32>
    %99 = vector.shape_cast %98 : vector<32x16xf32> to vector<2x4x4x16xf32>
    %c0_32 = arith.constant 0 : index
    %c0_33 = arith.constant 0 : index
    %100 = vector.load %arg9[%c0_32, %c0_33] : memref<144x16xf32, #tpu.memory_space<vmem>>, vector<144x16xf32>
    %c0_34 = arith.constant 0 : index
    %c0_35 = arith.constant 0 : index
    %101 = vector.load %arg10[%c0_34, %c0_35] : memref<1x16xf32, #tpu.memory_space<vmem>>, vector<1x16xf32>
    %c0_36 = arith.constant 0 : index
    %c0_37 = arith.constant 0 : index
    %102 = vector.load %arg11[%c0_36, %c0_37] : memref<1x16xf32, #tpu.memory_space<vmem>>, vector<1x16xf32>
    %c0_38 = arith.constant 0 : index
    %c0_39 = arith.constant 0 : index
    %103 = vector.load %arg12[%c0_38, %c0_39] : memref<1x16xf32, #tpu.memory_space<vmem>>, vector<1x16xf32>
    %cst_40 = arith.constant 0.000000e+00 : f32
    %104 = vector.broadcast %cst_40 : f32 to vector<2x1x4x16xf32>
    %105 = tpu.concatenate %104, %99, %104 in 1 : vector<2x1x4x16xf32>, vector<2x4x4x16xf32>, vector<2x1x4x16xf32> -> vector<2x6x4x16xf32>
    %cst_41 = arith.constant 0.000000e+00 : f32
    %106 = vector.broadcast %cst_41 : f32 to vector<2x6x1x16xf32>
    %107 = tpu.concatenate %106, %105, %106 in 2 : vector<2x6x1x16xf32>, vector<2x6x4x16xf32>, vector<2x6x1x16xf32> -> vector<2x6x6x16xf32>
    %108 = vector.extract_strided_slice %107 {offsets = [0, 0, 0, 0], sizes = [2, 4, 4, 16], strides = [1, 1, 1, 1]} : vector<2x6x6x16xf32> to vector<2x4x4x16xf32>
    %109 = vector.shape_cast %108 : vector<2x4x4x16xf32> to vector<32x16xf32>
    %110 = vector.extract_strided_slice %107 {offsets = [0, 0, 1, 0], sizes = [2, 4, 4, 16], strides = [1, 1, 1, 1]} : vector<2x6x6x16xf32> to vector<2x4x4x16xf32>
    %111 = vector.shape_cast %110 : vector<2x4x4x16xf32> to vector<32x16xf32>
    %112 = vector.extract_strided_slice %107 {offsets = [0, 0, 2, 0], sizes = [2, 4, 4, 16], strides = [1, 1, 1, 1]} : vector<2x6x6x16xf32> to vector<2x4x4x16xf32>
    %113 = vector.shape_cast %112 : vector<2x4x4x16xf32> to vector<32x16xf32>
    %114 = vector.extract_strided_slice %107 {offsets = [0, 1, 0, 0], sizes = [2, 4, 4, 16], strides = [1, 1, 1, 1]} : vector<2x6x6x16xf32> to vector<2x4x4x16xf32>
    %115 = vector.shape_cast %114 : vector<2x4x4x16xf32> to vector<32x16xf32>
    %116 = vector.extract_strided_slice %107 {offsets = [0, 1, 1, 0], sizes = [2, 4, 4, 16], strides = [1, 1, 1, 1]} : vector<2x6x6x16xf32> to vector<2x4x4x16xf32>
    %117 = vector.shape_cast %116 : vector<2x4x4x16xf32> to vector<32x16xf32>
    %118 = vector.extract_strided_slice %107 {offsets = [0, 1, 2, 0], sizes = [2, 4, 4, 16], strides = [1, 1, 1, 1]} : vector<2x6x6x16xf32> to vector<2x4x4x16xf32>
    %119 = vector.shape_cast %118 : vector<2x4x4x16xf32> to vector<32x16xf32>
    %120 = vector.extract_strided_slice %107 {offsets = [0, 2, 0, 0], sizes = [2, 4, 4, 16], strides = [1, 1, 1, 1]} : vector<2x6x6x16xf32> to vector<2x4x4x16xf32>
    %121 = vector.shape_cast %120 : vector<2x4x4x16xf32> to vector<32x16xf32>
    %122 = vector.extract_strided_slice %107 {offsets = [0, 2, 1, 0], sizes = [2, 4, 4, 16], strides = [1, 1, 1, 1]} : vector<2x6x6x16xf32> to vector<2x4x4x16xf32>
    %123 = vector.shape_cast %122 : vector<2x4x4x16xf32> to vector<32x16xf32>
    %124 = vector.extract_strided_slice %107 {offsets = [0, 2, 2, 0], sizes = [2, 4, 4, 16], strides = [1, 1, 1, 1]} : vector<2x6x6x16xf32> to vector<2x4x4x16xf32>
    %125 = vector.shape_cast %124 : vector<2x4x4x16xf32> to vector<32x16xf32>
    %126 = tpu.concatenate %109, %111, %113, %115, %117, %119, %121, %123, %125 in 1 : vector<32x16xf32>, vector<32x16xf32>, vector<32x16xf32>, vector<32x16xf32>, vector<32x16xf32>, vector<32x16xf32>, vector<32x16xf32>, vector<32x16xf32>, vector<32x16xf32> -> vector<32x144xf32>
    %cst_42 = arith.constant dense<0.000000e+00> : vector<32x16xf32>
    %127 = tpu.matmul %126, %100, %cst_42 {dimension_numbers = #tpu.dot_dimension_numbers<[1], [0], [0], [1], [0, 0, 1, 1], [], []>} : vector<32x144xf32>, vector<144x16xf32>, vector<32x16xf32> -> vector<32x16xf32>
    %128 = vector.broadcast %101 : vector<1x16xf32> to vector<32x16xf32>
    %129 = arith.addf %127, %128 : vector<32x16xf32>
    %cst_43 = arith.constant dense<0.000000e+00> : vector<16xf32>
    %130 = vector.multi_reduction <add>, %129, %cst_43 [0] : vector<32x16xf32> to vector<16xf32>
    %131 = vector.shape_cast %130 : vector<16xf32> to vector<1x16xf32>
    %cst_44 = arith.constant 3.125000e-02 : f32
    %132 = vector.broadcast %cst_44 : f32 to vector<1x16xf32>
    %133 = arith.mulf %131, %132 : vector<1x16xf32>
    %134 = arith.mulf %129, %129 : vector<32x16xf32>
    %cst_45 = arith.constant dense<0.000000e+00> : vector<16xf32>
    %135 = vector.multi_reduction <add>, %134, %cst_45 [0] : vector<32x16xf32> to vector<16xf32>
    %136 = vector.shape_cast %135 : vector<16xf32> to vector<1x16xf32>
    %cst_46 = arith.constant 3.125000e-02 : f32
    %137 = vector.broadcast %cst_46 : f32 to vector<1x16xf32>
    %138 = arith.mulf %136, %137 : vector<1x16xf32>
    %139 = arith.mulf %133, %133 : vector<1x16xf32>
    %140 = arith.subf %138, %139 : vector<1x16xf32>
    %cst_47 = arith.constant 9.99999974E-6 : f32
    %141 = vector.broadcast %cst_47 : f32 to vector<1x16xf32>
    %142 = arith.addf %140, %141 : vector<1x16xf32>
    %143 = math.rsqrt %142 : vector<1x16xf32>
    %144 = arith.mulf %102, %143 : vector<1x16xf32>
    %145 = vector.broadcast %133 : vector<1x16xf32> to vector<32x16xf32>
    %146 = arith.subf %129, %145 : vector<32x16xf32>
    %147 = vector.broadcast %144 : vector<1x16xf32> to vector<32x16xf32>
    %148 = arith.mulf %146, %147 : vector<32x16xf32>
    %149 = vector.broadcast %103 : vector<1x16xf32> to vector<32x16xf32>
    %150 = arith.addf %148, %149 : vector<32x16xf32>
    %cst_48 = arith.constant 0.000000e+00 : f32
    %151 = vector.broadcast %cst_48 : f32 to vector<32x16xf32>
    %152 = arith.maximumf %150, %151 : vector<32x16xf32>
    %153 = vector.shape_cast %152 : vector<32x16xf32> to vector<2x4x4x16xf32>
    %c0_49 = arith.constant 0 : index
    %c0_50 = arith.constant 0 : index
    %154 = vector.load %arg13[%c0_49, %c0_50] : memref<144x16xf32, #tpu.memory_space<vmem>>, vector<144x16xf32>
    %c0_51 = arith.constant 0 : index
    %c0_52 = arith.constant 0 : index
    %155 = vector.load %arg14[%c0_51, %c0_52] : memref<1x16xf32, #tpu.memory_space<vmem>>, vector<1x16xf32>
    %c0_53 = arith.constant 0 : index
    %c0_54 = arith.constant 0 : index
    %156 = vector.load %arg15[%c0_53, %c0_54] : memref<1x16xf32, #tpu.memory_space<vmem>>, vector<1x16xf32>
    %c0_55 = arith.constant 0 : index
    %c0_56 = arith.constant 0 : index
    %157 = vector.load %arg16[%c0_55, %c0_56] : memref<1x16xf32, #tpu.memory_space<vmem>>, vector<1x16xf32>
    %cst_57 = arith.constant 0.000000e+00 : f32
    %158 = vector.broadcast %cst_57 : f32 to vector<2x1x4x16xf32>
    %159 = vector.extract_strided_slice %153 {offsets = [0, 0, 0, 0], sizes = [2, 1, 4, 16], strides = [1, 1, 1, 1]} : vector<2x4x4x16xf32> to vector<2x1x4x16xf32>
    %160 = vector.extract_strided_slice %153 {offsets = [0, 1, 0, 0], sizes = [2, 1, 4, 16], strides = [1, 1, 1, 1]} : vector<2x4x4x16xf32> to vector<2x1x4x16xf32>
    %161 = vector.extract_strided_slice %153 {offsets = [0, 2, 0, 0], sizes = [2, 1, 4, 16], strides = [1, 1, 1, 1]} : vector<2x4x4x16xf32> to vector<2x1x4x16xf32>
    %162 = vector.extract_strided_slice %153 {offsets = [0, 3, 0, 0], sizes = [2, 1, 4, 16], strides = [1, 1, 1, 1]} : vector<2x4x4x16xf32> to vector<2x1x4x16xf32>
    %163 = tpu.concatenate %158, %159, %158, %160, %158, %161, %158, %162, %158, %158 in 1 : vector<2x1x4x16xf32>, vector<2x1x4x16xf32>, vector<2x1x4x16xf32>, vector<2x1x4x16xf32>, vector<2x1x4x16xf32>, vector<2x1x4x16xf32>, vector<2x1x4x16xf32>, vector<2x1x4x16xf32>, vector<2x1x4x16xf32>, vector<2x1x4x16xf32> -> vector<2x10x4x16xf32>
    %cst_58 = arith.constant 0.000000e+00 : f32
    %164 = vector.broadcast %cst_58 : f32 to vector<2x10x1x16xf32>
    %165 = vector.extract_strided_slice %163 {offsets = [0, 0, 0, 0], sizes = [2, 10, 1, 16], strides = [1, 1, 1, 1]} : vector<2x10x4x16xf32> to vector<2x10x1x16xf32>
    %166 = vector.extract_strided_slice %163 {offsets = [0, 0, 1, 0], sizes = [2, 10, 1, 16], strides = [1, 1, 1, 1]} : vector<2x10x4x16xf32> to vector<2x10x1x16xf32>
    %167 = vector.extract_strided_slice %163 {offsets = [0, 0, 2, 0], sizes = [2, 10, 1, 16], strides = [1, 1, 1, 1]} : vector<2x10x4x16xf32> to vector<2x10x1x16xf32>
    %168 = vector.extract_strided_slice %163 {offsets = [0, 0, 3, 0], sizes = [2, 10, 1, 16], strides = [1, 1, 1, 1]} : vector<2x10x4x16xf32> to vector<2x10x1x16xf32>
    %169 = tpu.concatenate %164, %165, %164, %166, %164, %167, %164, %168, %164, %164 in 2 : vector<2x10x1x16xf32>, vector<2x10x1x16xf32>, vector<2x10x1x16xf32>, vector<2x10x1x16xf32>, vector<2x10x1x16xf32>, vector<2x10x1x16xf32>, vector<2x10x1x16xf32>, vector<2x10x1x16xf32>, vector<2x10x1x16xf32>, vector<2x10x1x16xf32> -> vector<2x10x10x16xf32>
    %170 = vector.extract_strided_slice %169 {offsets = [0, 0, 0, 0], sizes = [2, 8, 8, 16], strides = [1, 1, 1, 1]} : vector<2x10x10x16xf32> to vector<2x8x8x16xf32>
    %171 = vector.shape_cast %170 : vector<2x8x8x16xf32> to vector<128x16xf32>
    %172 = vector.extract_strided_slice %169 {offsets = [0, 0, 1, 0], sizes = [2, 8, 8, 16], strides = [1, 1, 1, 1]} : vector<2x10x10x16xf32> to vector<2x8x8x16xf32>
    %173 = vector.shape_cast %172 : vector<2x8x8x16xf32> to vector<128x16xf32>
    %174 = vector.extract_strided_slice %169 {offsets = [0, 0, 2, 0], sizes = [2, 8, 8, 16], strides = [1, 1, 1, 1]} : vector<2x10x10x16xf32> to vector<2x8x8x16xf32>
    %175 = vector.shape_cast %174 : vector<2x8x8x16xf32> to vector<128x16xf32>
    %176 = vector.extract_strided_slice %169 {offsets = [0, 1, 0, 0], sizes = [2, 8, 8, 16], strides = [1, 1, 1, 1]} : vector<2x10x10x16xf32> to vector<2x8x8x16xf32>
    %177 = vector.shape_cast %176 : vector<2x8x8x16xf32> to vector<128x16xf32>
    %178 = vector.extract_strided_slice %169 {offsets = [0, 1, 1, 0], sizes = [2, 8, 8, 16], strides = [1, 1, 1, 1]} : vector<2x10x10x16xf32> to vector<2x8x8x16xf32>
    %179 = vector.shape_cast %178 : vector<2x8x8x16xf32> to vector<128x16xf32>
    %180 = vector.extract_strided_slice %169 {offsets = [0, 1, 2, 0], sizes = [2, 8, 8, 16], strides = [1, 1, 1, 1]} : vector<2x10x10x16xf32> to vector<2x8x8x16xf32>
    %181 = vector.shape_cast %180 : vector<2x8x8x16xf32> to vector<128x16xf32>
    %182 = vector.extract_strided_slice %169 {offsets = [0, 2, 0, 0], sizes = [2, 8, 8, 16], strides = [1, 1, 1, 1]} : vector<2x10x10x16xf32> to vector<2x8x8x16xf32>
    %183 = vector.shape_cast %182 : vector<2x8x8x16xf32> to vector<128x16xf32>
    %184 = vector.extract_strided_slice %169 {offsets = [0, 2, 1, 0], sizes = [2, 8, 8, 16], strides = [1, 1, 1, 1]} : vector<2x10x10x16xf32> to vector<2x8x8x16xf32>
    %185 = vector.shape_cast %184 : vector<2x8x8x16xf32> to vector<128x16xf32>
    %186 = vector.extract_strided_slice %169 {offsets = [0, 2, 2, 0], sizes = [2, 8, 8, 16], strides = [1, 1, 1, 1]} : vector<2x10x10x16xf32> to vector<2x8x8x16xf32>
    %187 = vector.shape_cast %186 : vector<2x8x8x16xf32> to vector<128x16xf32>
    %188 = tpu.concatenate %171, %173, %175, %177, %179, %181, %183, %185, %187 in 1 : vector<128x16xf32>, vector<128x16xf32>, vector<128x16xf32>, vector<128x16xf32>, vector<128x16xf32>, vector<128x16xf32>, vector<128x16xf32>, vector<128x16xf32>, vector<128x16xf32> -> vector<128x144xf32>
    %cst_59 = arith.constant dense<0.000000e+00> : vector<128x16xf32>
    %189 = tpu.matmul %188, %154, %cst_59 {dimension_numbers = #tpu.dot_dimension_numbers<[1], [0], [0], [1], [0, 0, 1, 1], [], []>} : vector<128x144xf32>, vector<144x16xf32>, vector<128x16xf32> -> vector<128x16xf32>
    %190 = vector.broadcast %155 : vector<1x16xf32> to vector<128x16xf32>
    %191 = arith.addf %189, %190 : vector<128x16xf32>
    %cst_60 = arith.constant dense<0.000000e+00> : vector<16xf32>
    %192 = vector.multi_reduction <add>, %191, %cst_60 [0] : vector<128x16xf32> to vector<16xf32>
    %193 = vector.shape_cast %192 : vector<16xf32> to vector<1x16xf32>
    %cst_61 = arith.constant 7.812500e-03 : f32
    %194 = vector.broadcast %cst_61 : f32 to vector<1x16xf32>
    %195 = arith.mulf %193, %194 : vector<1x16xf32>
    %196 = arith.mulf %191, %191 : vector<128x16xf32>
    %cst_62 = arith.constant dense<0.000000e+00> : vector<16xf32>
    %197 = vector.multi_reduction <add>, %196, %cst_62 [0] : vector<128x16xf32> to vector<16xf32>
    %198 = vector.shape_cast %197 : vector<16xf32> to vector<1x16xf32>
    %cst_63 = arith.constant 7.812500e-03 : f32
    %199 = vector.broadcast %cst_63 : f32 to vector<1x16xf32>
    %200 = arith.mulf %198, %199 : vector<1x16xf32>
    %201 = arith.mulf %195, %195 : vector<1x16xf32>
    %202 = arith.subf %200, %201 : vector<1x16xf32>
    %cst_64 = arith.constant 9.99999974E-6 : f32
    %203 = vector.broadcast %cst_64 : f32 to vector<1x16xf32>
    %204 = arith.addf %202, %203 : vector<1x16xf32>
    %205 = math.rsqrt %204 : vector<1x16xf32>
    %206 = arith.mulf %156, %205 : vector<1x16xf32>
    %207 = vector.broadcast %195 : vector<1x16xf32> to vector<128x16xf32>
    %208 = arith.subf %191, %207 : vector<128x16xf32>
    %209 = vector.broadcast %206 : vector<1x16xf32> to vector<128x16xf32>
    %210 = arith.mulf %208, %209 : vector<128x16xf32>
    %211 = vector.broadcast %157 : vector<1x16xf32> to vector<128x16xf32>
    %212 = arith.addf %210, %211 : vector<128x16xf32>
    %cst_65 = arith.constant 0.000000e+00 : f32
    %213 = vector.broadcast %cst_65 : f32 to vector<128x16xf32>
    %214 = arith.maximumf %212, %213 : vector<128x16xf32>
    %215 = vector.shape_cast %214 : vector<128x16xf32> to vector<2x8x8x16xf32>
    %c0_66 = arith.constant 0 : index
    %c0_67 = arith.constant 0 : index
    %216 = vector.load %arg17[%c0_66, %c0_67] : memref<144x16xf32, #tpu.memory_space<vmem>>, vector<144x16xf32>
    %c0_68 = arith.constant 0 : index
    %c0_69 = arith.constant 0 : index
    %217 = vector.load %arg18[%c0_68, %c0_69] : memref<1x16xf32, #tpu.memory_space<vmem>>, vector<1x16xf32>
    %c0_70 = arith.constant 0 : index
    %c0_71 = arith.constant 0 : index
    %218 = vector.load %arg19[%c0_70, %c0_71] : memref<1x16xf32, #tpu.memory_space<vmem>>, vector<1x16xf32>
    %c0_72 = arith.constant 0 : index
    %c0_73 = arith.constant 0 : index
    %219 = vector.load %arg20[%c0_72, %c0_73] : memref<1x16xf32, #tpu.memory_space<vmem>>, vector<1x16xf32>
    %cst_74 = arith.constant 0.000000e+00 : f32
    %220 = vector.broadcast %cst_74 : f32 to vector<2x1x8x16xf32>
    %221 = tpu.concatenate %220, %215, %220 in 1 : vector<2x1x8x16xf32>, vector<2x8x8x16xf32>, vector<2x1x8x16xf32> -> vector<2x10x8x16xf32>
    %cst_75 = arith.constant 0.000000e+00 : f32
    %222 = vector.broadcast %cst_75 : f32 to vector<2x10x1x16xf32>
    %223 = tpu.concatenate %222, %221, %222 in 2 : vector<2x10x1x16xf32>, vector<2x10x8x16xf32>, vector<2x10x1x16xf32> -> vector<2x10x10x16xf32>
    %224 = vector.extract_strided_slice %223 {offsets = [0, 0, 0, 0], sizes = [2, 8, 8, 16], strides = [1, 1, 1, 1]} : vector<2x10x10x16xf32> to vector<2x8x8x16xf32>
    %225 = vector.shape_cast %224 : vector<2x8x8x16xf32> to vector<128x16xf32>
    %226 = vector.extract_strided_slice %223 {offsets = [0, 0, 1, 0], sizes = [2, 8, 8, 16], strides = [1, 1, 1, 1]} : vector<2x10x10x16xf32> to vector<2x8x8x16xf32>
    %227 = vector.shape_cast %226 : vector<2x8x8x16xf32> to vector<128x16xf32>
    %228 = vector.extract_strided_slice %223 {offsets = [0, 0, 2, 0], sizes = [2, 8, 8, 16], strides = [1, 1, 1, 1]} : vector<2x10x10x16xf32> to vector<2x8x8x16xf32>
    %229 = vector.shape_cast %228 : vector<2x8x8x16xf32> to vector<128x16xf32>
    %230 = vector.extract_strided_slice %223 {offsets = [0, 1, 0, 0], sizes = [2, 8, 8, 16], strides = [1, 1, 1, 1]} : vector<2x10x10x16xf32> to vector<2x8x8x16xf32>
    %231 = vector.shape_cast %230 : vector<2x8x8x16xf32> to vector<128x16xf32>
    %232 = vector.extract_strided_slice %223 {offsets = [0, 1, 1, 0], sizes = [2, 8, 8, 16], strides = [1, 1, 1, 1]} : vector<2x10x10x16xf32> to vector<2x8x8x16xf32>
    %233 = vector.shape_cast %232 : vector<2x8x8x16xf32> to vector<128x16xf32>
    %234 = vector.extract_strided_slice %223 {offsets = [0, 1, 2, 0], sizes = [2, 8, 8, 16], strides = [1, 1, 1, 1]} : vector<2x10x10x16xf32> to vector<2x8x8x16xf32>
    %235 = vector.shape_cast %234 : vector<2x8x8x16xf32> to vector<128x16xf32>
    %236 = vector.extract_strided_slice %223 {offsets = [0, 2, 0, 0], sizes = [2, 8, 8, 16], strides = [1, 1, 1, 1]} : vector<2x10x10x16xf32> to vector<2x8x8x16xf32>
    %237 = vector.shape_cast %236 : vector<2x8x8x16xf32> to vector<128x16xf32>
    %238 = vector.extract_strided_slice %223 {offsets = [0, 2, 1, 0], sizes = [2, 8, 8, 16], strides = [1, 1, 1, 1]} : vector<2x10x10x16xf32> to vector<2x8x8x16xf32>
    %239 = vector.shape_cast %238 : vector<2x8x8x16xf32> to vector<128x16xf32>
    %240 = vector.extract_strided_slice %223 {offsets = [0, 2, 2, 0], sizes = [2, 8, 8, 16], strides = [1, 1, 1, 1]} : vector<2x10x10x16xf32> to vector<2x8x8x16xf32>
    %241 = vector.shape_cast %240 : vector<2x8x8x16xf32> to vector<128x16xf32>
    %242 = tpu.concatenate %225, %227, %229, %231, %233, %235, %237, %239, %241 in 1 : vector<128x16xf32>, vector<128x16xf32>, vector<128x16xf32>, vector<128x16xf32>, vector<128x16xf32>, vector<128x16xf32>, vector<128x16xf32>, vector<128x16xf32>, vector<128x16xf32> -> vector<128x144xf32>
    %cst_76 = arith.constant dense<0.000000e+00> : vector<128x16xf32>
    %243 = tpu.matmul %242, %216, %cst_76 {dimension_numbers = #tpu.dot_dimension_numbers<[1], [0], [0], [1], [0, 0, 1, 1], [], []>} : vector<128x144xf32>, vector<144x16xf32>, vector<128x16xf32> -> vector<128x16xf32>
    %244 = vector.broadcast %217 : vector<1x16xf32> to vector<128x16xf32>
    %245 = arith.addf %243, %244 : vector<128x16xf32>
    %cst_77 = arith.constant dense<0.000000e+00> : vector<16xf32>
    %246 = vector.multi_reduction <add>, %245, %cst_77 [0] : vector<128x16xf32> to vector<16xf32>
    %247 = vector.shape_cast %246 : vector<16xf32> to vector<1x16xf32>
    %cst_78 = arith.constant 7.812500e-03 : f32
    %248 = vector.broadcast %cst_78 : f32 to vector<1x16xf32>
    %249 = arith.mulf %247, %248 : vector<1x16xf32>
    %250 = arith.mulf %245, %245 : vector<128x16xf32>
    %cst_79 = arith.constant dense<0.000000e+00> : vector<16xf32>
    %251 = vector.multi_reduction <add>, %250, %cst_79 [0] : vector<128x16xf32> to vector<16xf32>
    %252 = vector.shape_cast %251 : vector<16xf32> to vector<1x16xf32>
    %cst_80 = arith.constant 7.812500e-03 : f32
    %253 = vector.broadcast %cst_80 : f32 to vector<1x16xf32>
    %254 = arith.mulf %252, %253 : vector<1x16xf32>
    %255 = arith.mulf %249, %249 : vector<1x16xf32>
    %256 = arith.subf %254, %255 : vector<1x16xf32>
    %cst_81 = arith.constant 9.99999974E-6 : f32
    %257 = vector.broadcast %cst_81 : f32 to vector<1x16xf32>
    %258 = arith.addf %256, %257 : vector<1x16xf32>
    %259 = math.rsqrt %258 : vector<1x16xf32>
    %260 = arith.mulf %218, %259 : vector<1x16xf32>
    %261 = vector.broadcast %249 : vector<1x16xf32> to vector<128x16xf32>
    %262 = arith.subf %245, %261 : vector<128x16xf32>
    %263 = vector.broadcast %260 : vector<1x16xf32> to vector<128x16xf32>
    %264 = arith.mulf %262, %263 : vector<128x16xf32>
    %265 = vector.broadcast %219 : vector<1x16xf32> to vector<128x16xf32>
    %266 = arith.addf %264, %265 : vector<128x16xf32>
    %cst_82 = arith.constant 0.000000e+00 : f32
    %267 = vector.broadcast %cst_82 : f32 to vector<128x16xf32>
    %268 = arith.maximumf %266, %267 : vector<128x16xf32>
    %269 = vector.shape_cast %268 : vector<128x16xf32> to vector<2x8x8x16xf32>
    %c0_83 = arith.constant 0 : index
    %c0_84 = arith.constant 0 : index
    %270 = vector.load %arg21[%c0_83, %c0_84] : memref<144x8xf32, #tpu.memory_space<vmem>>, vector<144x8xf32>
    %c0_85 = arith.constant 0 : index
    %c0_86 = arith.constant 0 : index
    %271 = vector.load %arg22[%c0_85, %c0_86] : memref<1x8xf32, #tpu.memory_space<vmem>>, vector<1x8xf32>
    %c0_87 = arith.constant 0 : index
    %c0_88 = arith.constant 0 : index
    %272 = vector.load %arg23[%c0_87, %c0_88] : memref<1x8xf32, #tpu.memory_space<vmem>>, vector<1x8xf32>
    %c0_89 = arith.constant 0 : index
    %c0_90 = arith.constant 0 : index
    %273 = vector.load %arg24[%c0_89, %c0_90] : memref<1x8xf32, #tpu.memory_space<vmem>>, vector<1x8xf32>
    %cst_91 = arith.constant 0.000000e+00 : f32
    %274 = vector.broadcast %cst_91 : f32 to vector<2x1x8x16xf32>
    %275 = vector.extract_strided_slice %269 {offsets = [0, 0, 0, 0], sizes = [2, 1, 8, 16], strides = [1, 1, 1, 1]} : vector<2x8x8x16xf32> to vector<2x1x8x16xf32>
    %276 = vector.extract_strided_slice %269 {offsets = [0, 1, 0, 0], sizes = [2, 1, 8, 16], strides = [1, 1, 1, 1]} : vector<2x8x8x16xf32> to vector<2x1x8x16xf32>
    %277 = vector.extract_strided_slice %269 {offsets = [0, 2, 0, 0], sizes = [2, 1, 8, 16], strides = [1, 1, 1, 1]} : vector<2x8x8x16xf32> to vector<2x1x8x16xf32>
    %278 = vector.extract_strided_slice %269 {offsets = [0, 3, 0, 0], sizes = [2, 1, 8, 16], strides = [1, 1, 1, 1]} : vector<2x8x8x16xf32> to vector<2x1x8x16xf32>
    %279 = vector.extract_strided_slice %269 {offsets = [0, 4, 0, 0], sizes = [2, 1, 8, 16], strides = [1, 1, 1, 1]} : vector<2x8x8x16xf32> to vector<2x1x8x16xf32>
    %280 = vector.extract_strided_slice %269 {offsets = [0, 5, 0, 0], sizes = [2, 1, 8, 16], strides = [1, 1, 1, 1]} : vector<2x8x8x16xf32> to vector<2x1x8x16xf32>
    %281 = vector.extract_strided_slice %269 {offsets = [0, 6, 0, 0], sizes = [2, 1, 8, 16], strides = [1, 1, 1, 1]} : vector<2x8x8x16xf32> to vector<2x1x8x16xf32>
    %282 = vector.extract_strided_slice %269 {offsets = [0, 7, 0, 0], sizes = [2, 1, 8, 16], strides = [1, 1, 1, 1]} : vector<2x8x8x16xf32> to vector<2x1x8x16xf32>
    %283 = tpu.concatenate %274, %275, %274, %276, %274, %277, %274, %278, %274, %279, %274, %280, %274, %281, %274, %282 in 1 : vector<2x1x8x16xf32>, vector<2x1x8x16xf32>, vector<2x1x8x16xf32>, vector<2x1x8x16xf32>, vector<2x1x8x16xf32>, vector<2x1x8x16xf32>, vector<2x1x8x16xf32>, vector<2x1x8x16xf32>, vector<2x1x8x16xf32>, vector<2x1x8x16xf32>, vector<2x1x8x16xf32>, vector<2x1x8x16xf32>, vector<2x1x8x16xf32>, vector<2x1x8x16xf32>, vector<2x1x8x16xf32>, vector<2x1x8x16xf32> -> vector<2x16x8x16xf32>
    %284 = tpu.concatenate %274, %274 in 1 : vector<2x1x8x16xf32>, vector<2x1x8x16xf32> -> vector<2x2x8x16xf32>
    %285 = tpu.concatenate %283, %284 in 1 : vector<2x16x8x16xf32>, vector<2x2x8x16xf32> -> vector<2x18x8x16xf32>
    %cst_92 = arith.constant 0.000000e+00 : f32
    %286 = vector.broadcast %cst_92 : f32 to vector<2x18x1x16xf32>
    %287 = vector.extract_strided_slice %285 {offsets = [0, 0, 0, 0], sizes = [2, 18, 1, 16], strides = [1, 1, 1, 1]} : vector<2x18x8x16xf32> to vector<2x18x1x16xf32>
    %288 = vector.extract_strided_slice %285 {offsets = [0, 0, 1, 0], sizes = [2, 18, 1, 16], strides = [1, 1, 1, 1]} : vector<2x18x8x16xf32> to vector<2x18x1x16xf32>
    %289 = vector.extract_strided_slice %285 {offsets = [0, 0, 2, 0], sizes = [2, 18, 1, 16], strides = [1, 1, 1, 1]} : vector<2x18x8x16xf32> to vector<2x18x1x16xf32>
    %290 = vector.extract_strided_slice %285 {offsets = [0, 0, 3, 0], sizes = [2, 18, 1, 16], strides = [1, 1, 1, 1]} : vector<2x18x8x16xf32> to vector<2x18x1x16xf32>
    %291 = vector.extract_strided_slice %285 {offsets = [0, 0, 4, 0], sizes = [2, 18, 1, 16], strides = [1, 1, 1, 1]} : vector<2x18x8x16xf32> to vector<2x18x1x16xf32>
    %292 = vector.extract_strided_slice %285 {offsets = [0, 0, 5, 0], sizes = [2, 18, 1, 16], strides = [1, 1, 1, 1]} : vector<2x18x8x16xf32> to vector<2x18x1x16xf32>
    %293 = vector.extract_strided_slice %285 {offsets = [0, 0, 6, 0], sizes = [2, 18, 1, 16], strides = [1, 1, 1, 1]} : vector<2x18x8x16xf32> to vector<2x18x1x16xf32>
    %294 = vector.extract_strided_slice %285 {offsets = [0, 0, 7, 0], sizes = [2, 18, 1, 16], strides = [1, 1, 1, 1]} : vector<2x18x8x16xf32> to vector<2x18x1x16xf32>
    %295 = tpu.concatenate %286, %287, %286, %288, %286, %289, %286, %290, %286, %291, %286, %292, %286, %293, %286, %294 in 2 : vector<2x18x1x16xf32>, vector<2x18x1x16xf32>, vector<2x18x1x16xf32>, vector<2x18x1x16xf32>, vector<2x18x1x16xf32>, vector<2x18x1x16xf32>, vector<2x18x1x16xf32>, vector<2x18x1x16xf32>, vector<2x18x1x16xf32>, vector<2x18x1x16xf32>, vector<2x18x1x16xf32>, vector<2x18x1x16xf32>, vector<2x18x1x16xf32>, vector<2x18x1x16xf32>, vector<2x18x1x16xf32>, vector<2x18x1x16xf32> -> vector<2x18x16x16xf32>
    %296 = tpu.concatenate %286, %286 in 2 : vector<2x18x1x16xf32>, vector<2x18x1x16xf32> -> vector<2x18x2x16xf32>
    %297 = tpu.concatenate %295, %296 in 2 : vector<2x18x16x16xf32>, vector<2x18x2x16xf32> -> vector<2x18x18x16xf32>
    %298 = vector.extract_strided_slice %297 {offsets = [0, 0, 0, 0], sizes = [2, 16, 16, 16], strides = [1, 1, 1, 1]} : vector<2x18x18x16xf32> to vector<2x16x16x16xf32>
    %299 = vector.shape_cast %298 : vector<2x16x16x16xf32> to vector<512x16xf32>
    %300 = vector.extract_strided_slice %297 {offsets = [0, 0, 1, 0], sizes = [2, 16, 16, 16], strides = [1, 1, 1, 1]} : vector<2x18x18x16xf32> to vector<2x16x16x16xf32>
    %301 = vector.shape_cast %300 : vector<2x16x16x16xf32> to vector<512x16xf32>
    %302 = vector.extract_strided_slice %297 {offsets = [0, 0, 2, 0], sizes = [2, 16, 16, 16], strides = [1, 1, 1, 1]} : vector<2x18x18x16xf32> to vector<2x16x16x16xf32>
    %303 = vector.shape_cast %302 : vector<2x16x16x16xf32> to vector<512x16xf32>
    %304 = vector.extract_strided_slice %297 {offsets = [0, 1, 0, 0], sizes = [2, 16, 16, 16], strides = [1, 1, 1, 1]} : vector<2x18x18x16xf32> to vector<2x16x16x16xf32>
    %305 = vector.shape_cast %304 : vector<2x16x16x16xf32> to vector<512x16xf32>
    %306 = vector.extract_strided_slice %297 {offsets = [0, 1, 1, 0], sizes = [2, 16, 16, 16], strides = [1, 1, 1, 1]} : vector<2x18x18x16xf32> to vector<2x16x16x16xf32>
    %307 = vector.shape_cast %306 : vector<2x16x16x16xf32> to vector<512x16xf32>
    %308 = vector.extract_strided_slice %297 {offsets = [0, 1, 2, 0], sizes = [2, 16, 16, 16], strides = [1, 1, 1, 1]} : vector<2x18x18x16xf32> to vector<2x16x16x16xf32>
    %309 = vector.shape_cast %308 : vector<2x16x16x16xf32> to vector<512x16xf32>
    %310 = vector.extract_strided_slice %297 {offsets = [0, 2, 0, 0], sizes = [2, 16, 16, 16], strides = [1, 1, 1, 1]} : vector<2x18x18x16xf32> to vector<2x16x16x16xf32>
    %311 = vector.shape_cast %310 : vector<2x16x16x16xf32> to vector<512x16xf32>
    %312 = vector.extract_strided_slice %297 {offsets = [0, 2, 1, 0], sizes = [2, 16, 16, 16], strides = [1, 1, 1, 1]} : vector<2x18x18x16xf32> to vector<2x16x16x16xf32>
    %313 = vector.shape_cast %312 : vector<2x16x16x16xf32> to vector<512x16xf32>
    %314 = vector.extract_strided_slice %297 {offsets = [0, 2, 2, 0], sizes = [2, 16, 16, 16], strides = [1, 1, 1, 1]} : vector<2x18x18x16xf32> to vector<2x16x16x16xf32>
    %315 = vector.shape_cast %314 : vector<2x16x16x16xf32> to vector<512x16xf32>
    %316 = tpu.concatenate %299, %301, %303, %305, %307, %309, %311, %313, %315 in 1 : vector<512x16xf32>, vector<512x16xf32>, vector<512x16xf32>, vector<512x16xf32>, vector<512x16xf32>, vector<512x16xf32>, vector<512x16xf32>, vector<512x16xf32>, vector<512x16xf32> -> vector<512x144xf32>
    %cst_93 = arith.constant dense<0.000000e+00> : vector<512x8xf32>
    %317 = tpu.matmul %316, %270, %cst_93 {dimension_numbers = #tpu.dot_dimension_numbers<[1], [0], [0], [1], [0, 0, 1, 1], [], []>} : vector<512x144xf32>, vector<144x8xf32>, vector<512x8xf32> -> vector<512x8xf32>
    %318 = vector.broadcast %271 : vector<1x8xf32> to vector<512x8xf32>
    %319 = arith.addf %317, %318 : vector<512x8xf32>
    %cst_94 = arith.constant dense<0.000000e+00> : vector<8xf32>
    %320 = vector.multi_reduction <add>, %319, %cst_94 [0] : vector<512x8xf32> to vector<8xf32>
    %321 = vector.shape_cast %320 : vector<8xf32> to vector<1x8xf32>
    %cst_95 = arith.constant 0.001953125 : f32
    %322 = vector.broadcast %cst_95 : f32 to vector<1x8xf32>
    %323 = arith.mulf %321, %322 : vector<1x8xf32>
    %324 = arith.mulf %319, %319 : vector<512x8xf32>
    %cst_96 = arith.constant dense<0.000000e+00> : vector<8xf32>
    %325 = vector.multi_reduction <add>, %324, %cst_96 [0] : vector<512x8xf32> to vector<8xf32>
    %326 = vector.shape_cast %325 : vector<8xf32> to vector<1x8xf32>
    %cst_97 = arith.constant 0.001953125 : f32
    %327 = vector.broadcast %cst_97 : f32 to vector<1x8xf32>
    %328 = arith.mulf %326, %327 : vector<1x8xf32>
    %329 = arith.mulf %323, %323 : vector<1x8xf32>
    %330 = arith.subf %328, %329 : vector<1x8xf32>
    %cst_98 = arith.constant 9.99999974E-6 : f32
    %331 = vector.broadcast %cst_98 : f32 to vector<1x8xf32>
    %332 = arith.addf %330, %331 : vector<1x8xf32>
    %333 = math.rsqrt %332 : vector<1x8xf32>
    %334 = arith.mulf %272, %333 : vector<1x8xf32>
    %335 = vector.broadcast %323 : vector<1x8xf32> to vector<512x8xf32>
    %336 = arith.subf %319, %335 : vector<512x8xf32>
    %337 = vector.broadcast %334 : vector<1x8xf32> to vector<512x8xf32>
    %338 = arith.mulf %336, %337 : vector<512x8xf32>
    %339 = vector.broadcast %273 : vector<1x8xf32> to vector<512x8xf32>
    %340 = arith.addf %338, %339 : vector<512x8xf32>
    %cst_99 = arith.constant 0.000000e+00 : f32
    %341 = vector.broadcast %cst_99 : f32 to vector<512x8xf32>
    %342 = arith.maximumf %340, %341 : vector<512x8xf32>
    %343 = vector.shape_cast %342 : vector<512x8xf32> to vector<2x16x16x8xf32>
    %c0_100 = arith.constant 0 : index
    %c0_101 = arith.constant 0 : index
    %344 = vector.load %arg25[%c0_100, %c0_101] : memref<72x3xf32, #tpu.memory_space<vmem>>, vector<72x3xf32>
    %c0_102 = arith.constant 0 : index
    %c0_103 = arith.constant 0 : index
    %345 = vector.load %arg26[%c0_102, %c0_103] : memref<1x3xf32, #tpu.memory_space<vmem>>, vector<1x3xf32>
    %cst_104 = arith.constant 0.000000e+00 : f32
    %346 = vector.broadcast %cst_104 : f32 to vector<2x1x16x8xf32>
    %347 = tpu.concatenate %346, %343, %346 in 1 : vector<2x1x16x8xf32>, vector<2x16x16x8xf32>, vector<2x1x16x8xf32> -> vector<2x18x16x8xf32>
    %cst_105 = arith.constant 0.000000e+00 : f32
    %348 = vector.broadcast %cst_105 : f32 to vector<2x18x1x8xf32>
    %349 = tpu.concatenate %348, %347, %348 in 2 : vector<2x18x1x8xf32>, vector<2x18x16x8xf32>, vector<2x18x1x8xf32> -> vector<2x18x18x8xf32>
    %350 = vector.extract_strided_slice %349 {offsets = [0, 0, 0, 0], sizes = [2, 16, 16, 8], strides = [1, 1, 1, 1]} : vector<2x18x18x8xf32> to vector<2x16x16x8xf32>
    %351 = vector.shape_cast %350 : vector<2x16x16x8xf32> to vector<512x8xf32>
    %352 = vector.extract_strided_slice %349 {offsets = [0, 0, 1, 0], sizes = [2, 16, 16, 8], strides = [1, 1, 1, 1]} : vector<2x18x18x8xf32> to vector<2x16x16x8xf32>
    %353 = vector.shape_cast %352 : vector<2x16x16x8xf32> to vector<512x8xf32>
    %354 = vector.extract_strided_slice %349 {offsets = [0, 0, 2, 0], sizes = [2, 16, 16, 8], strides = [1, 1, 1, 1]} : vector<2x18x18x8xf32> to vector<2x16x16x8xf32>
    %355 = vector.shape_cast %354 : vector<2x16x16x8xf32> to vector<512x8xf32>
    %356 = vector.extract_strided_slice %349 {offsets = [0, 1, 0, 0], sizes = [2, 16, 16, 8], strides = [1, 1, 1, 1]} : vector<2x18x18x8xf32> to vector<2x16x16x8xf32>
    %357 = vector.shape_cast %356 : vector<2x16x16x8xf32> to vector<512x8xf32>
    %358 = vector.extract_strided_slice %349 {offsets = [0, 1, 1, 0], sizes = [2, 16, 16, 8], strides = [1, 1, 1, 1]} : vector<2x18x18x8xf32> to vector<2x16x16x8xf32>
    %359 = vector.shape_cast %358 : vector<2x16x16x8xf32> to vector<512x8xf32>
    %360 = vector.extract_strided_slice %349 {offsets = [0, 1, 2, 0], sizes = [2, 16, 16, 8], strides = [1, 1, 1, 1]} : vector<2x18x18x8xf32> to vector<2x16x16x8xf32>
    %361 = vector.shape_cast %360 : vector<2x16x16x8xf32> to vector<512x8xf32>
    %362 = vector.extract_strided_slice %349 {offsets = [0, 2, 0, 0], sizes = [2, 16, 16, 8], strides = [1, 1, 1, 1]} : vector<2x18x18x8xf32> to vector<2x16x16x8xf32>
    %363 = vector.shape_cast %362 : vector<2x16x16x8xf32> to vector<512x8xf32>
    %364 = vector.extract_strided_slice %349 {offsets = [0, 2, 1, 0], sizes = [2, 16, 16, 8], strides = [1, 1, 1, 1]} : vector<2x18x18x8xf32> to vector<2x16x16x8xf32>
    %365 = vector.shape_cast %364 : vector<2x16x16x8xf32> to vector<512x8xf32>
    %366 = vector.extract_strided_slice %349 {offsets = [0, 2, 2, 0], sizes = [2, 16, 16, 8], strides = [1, 1, 1, 1]} : vector<2x18x18x8xf32> to vector<2x16x16x8xf32>
    %367 = vector.shape_cast %366 : vector<2x16x16x8xf32> to vector<512x8xf32>
    %368 = tpu.concatenate %351, %353, %355, %357, %359, %361, %363, %365, %367 in 1 : vector<512x8xf32>, vector<512x8xf32>, vector<512x8xf32>, vector<512x8xf32>, vector<512x8xf32>, vector<512x8xf32>, vector<512x8xf32>, vector<512x8xf32>, vector<512x8xf32> -> vector<512x72xf32>
    %cst_106 = arith.constant dense<0.000000e+00> : vector<512x3xf32>
    %369 = tpu.matmul %368, %344, %cst_106 {dimension_numbers = #tpu.dot_dimension_numbers<[1], [0], [0], [1], [0, 0, 1, 1], [], []>} : vector<512x72xf32>, vector<72x3xf32>, vector<512x3xf32> -> vector<512x3xf32>
    %370 = vector.broadcast %345 : vector<1x3xf32> to vector<512x3xf32>
    %371 = arith.addf %369, %370 : vector<512x3xf32>
    %372 = math.tanh %371 : vector<512x3xf32>
    %373 = vector.shape_cast %372 : vector<512x3xf32> to vector<2x16x16x3xf32>
    %374 = vector.shape_cast %373 : vector<2x16x16x3xf32> to vector<512x3xf32>
    %cst_107 = arith.constant 0.000000e+00 : f32
    %375 = vector.broadcast %cst_107 : f32 to vector<512x125xf32>
    %376 = tpu.concatenate %374, %375 in 1 : vector<512x3xf32>, vector<512x125xf32> -> vector<512x128xf32>
    %377 = tpu.transpose %376, [1, 0] : vector<512x128xf32> -> vector<128x512xf32>
    %378 = vector.extract_strided_slice %377 {offsets = [0, 0], sizes = [3, 256], strides = [1, 1]} : vector<128x512xf32> to vector<3x256xf32>
    %c0_108 = arith.constant 0 : index
    %c0_109 = arith.constant 0 : index
    %c0_110 = arith.constant 0 : index
    %379 = vector.load %arg27[%c0_108, %c0_109, %c0_110] : memref<2x3x256xf32, #tpu.memory_space<vmem>>, vector<1x3x256xf32>
    %380 = vector.shape_cast %379 : vector<1x3x256xf32> to vector<3x256xf32>
    %381 = vector.shape_cast %378 : vector<3x256xf32> to vector<1x3x256xf32>
    tpu.vector_store %arg27[%c0_108, %c0_109, %c0_110], %381 {strides = array<i32>} : memref<2x3x256xf32, #tpu.memory_space<vmem>>, vector<1x3x256xf32>,
    %382 = vector.extract_strided_slice %377 {offsets = [0, 256], sizes = [3, 256], strides = [1, 1]} : vector<128x512xf32> to vector<3x256xf32>
    %c1 = arith.constant 1 : index
    %c0_111 = arith.constant 0 : index
    %c0_112 = arith.constant 0 : index
    %383 = vector.load %arg27[%c1, %c0_111, %c0_112] : memref<2x3x256xf32, #tpu.memory_space<vmem>>, vector<1x3x256xf32>
    %384 = vector.shape_cast %383 : vector<1x3x256xf32> to vector<3x256xf32>
    %385 = vector.shape_cast %382 : vector<3x256xf32> to vector<1x3x256xf32>
    tpu.vector_store %arg27[%c1, %c0_111, %c0_112], %385 {strides = array<i32>} : memref<2x3x256xf32, #tpu.memory_space<vmem>>, vector<1x3x256xf32>,
    return
  }
}

</mosaic_0001>

<llo_original>
// kernel: generator_forward.1
$region0: #{generator_forward.1}
  #allocation0 [shape = 'u32[]', space=smem, size = 0x4, offset = 0x4, fixed_abs, tag = 'smem constant byte address 0x4 - core index']
  #allocation1 [shape = 'u32[144,128]{1,0:T(1,128)}', space=vmem, size = 0x12000, scoped, tag = 'internal scratch']
  %s0 = inlined_call_operand.vmem [shape: f32[2,32], index: 0, kind: input, shape index: {}]
  %s1 = inlined_call_operand.vmem [shape: f32[32,64], index: 1, kind: input, shape index: {}]
  %s2 = inlined_call_operand.vmem [shape: f32[1,64], index: 2, kind: input, shape index: {}]
  %s3 = inlined_call_operand.vmem [shape: f32[1,64], index: 3, kind: input, shape index: {}]
  %s4 = inlined_call_operand.vmem [shape: f32[1,64], index: 4, kind: input, shape index: {}]
  %s5 = inlined_call_operand.vmem [shape: f32[144,16], index: 5, kind: input, shape index: {}]
  %s6 = inlined_call_operand.vmem [shape: f32[1,16], index: 6, kind: input, shape index: {}]
  %s7 = inlined_call_operand.vmem [shape: f32[1,16], index: 7, kind: input, shape index: {}]
  %s8 = inlined_call_operand.vmem [shape: f32[1,16], index: 8, kind: input, shape index: {}]
  %s9 = inlined_call_operand.vmem [shape: f32[144,16], index: 9, kind: input, shape index: {}]
  %s10 = inlined_call_operand.vmem [shape: f32[1,16], index: 10, kind: input, shape index: {}]
  %s11 = inlined_call_operand.vmem [shape: f32[1,16], index: 11, kind: input, shape index: {}]
  %s12 = inlined_call_operand.vmem [shape: f32[1,16], index: 12, kind: input, shape index: {}]
  %s13 = inlined_call_operand.vmem [shape: f32[144,16], index: 13, kind: input, shape index: {}]
  %s14 = inlined_call_operand.vmem [shape: f32[1,16], index: 14, kind: input, shape index: {}]
  %s15 = inlined_call_operand.vmem [shape: f32[1,16], index: 15, kind: input, shape index: {}]
  %s16 = inlined_call_operand.vmem [shape: f32[1,16], index: 16, kind: input, shape index: {}]
  %s17 = inlined_call_operand.vmem [shape: f32[144,16], index: 17, kind: input, shape index: {}]
  %s18 = inlined_call_operand.vmem [shape: f32[1,16], index: 18, kind: input, shape index: {}]
  %s19 = inlined_call_operand.vmem [shape: f32[1,16], index: 19, kind: input, shape index: {}]
  %s20 = inlined_call_operand.vmem [shape: f32[1,16], index: 20, kind: input, shape index: {}]
  %s21 = inlined_call_operand.vmem [shape: f32[144,8], index: 21, kind: input, shape index: {}]
  %s22 = inlined_call_operand.vmem [shape: f32[1,8], index: 22, kind: input, shape index: {}]
  %s23 = inlined_call_operand.vmem [shape: f32[1,8], index: 23, kind: input, shape index: {}]
  %s24 = inlined_call_operand.vmem [shape: f32[1,8], index: 24, kind: input, shape index: {}]
  %s25 = inlined_call_operand.vmem [shape: f32[72,3], index: 25, kind: input, shape index: {}]
  %s26 = inlined_call_operand.vmem [shape: f32[1,3], index: 26, kind: input, shape index: {}]
  %s27 = inlined_call_operand.vmem [shape: f32[2,3,256], index: 27, kind: output, shape index: {}]
  %s28 = sld [smem:[#allocation0]]
  $region118: #{generator_forward.1} parent=0
    _
  %s30 = ssub.s32 1, %s28
  %s31 = scalar_select 0, %s30, %s28
  // Predicated region
  $region2: #{generator_forward.1} parent=0 // pred_check
    _
  $region3: #{generator_forward.1} parent=0 // pred_check_branch
    %33 = sbr.rel (0) target = $region5
  $region4: #{generator_forward.1} parent=0 // pred_region
    _
  $region5: #{generator_forward.1} parent=0 // pred_fallthru
    _
  // Predicated region
  $region6: #{generator_forward.1} parent=0 // pred_check
    _
  $region7: #{generator_forward.1} parent=0 // pred_check_branch
    %35 = sbr.rel (0) target = $region9
  $region8: #{generator_forward.1} parent=0 // pred_region
    _
  $region9: #{generator_forward.1} parent=0 // pred_fallthru
    _
  // Predicated region
  $region10: #{generator_forward.1} parent=0 // pred_check
    _
  $region11: #{generator_forward.1} parent=0 // pred_check_branch
    %37 = sbr.rel (0) target = $region13
  $region12: #{generator_forward.1} parent=0 // pred_region
    _
  $region13: #{generator_forward.1} parent=0 // pred_fallthru
    _
  // Predicated region
  $region14: #{generator_forward.1} parent=0 // pred_check
    _
  $region15: #{generator_forward.1} parent=0 // pred_check_branch
    %39 = sbr.rel (0) target = $region17
  $region16: #{generator_forward.1} parent=0 // pred_region
    _
  $region17: #{generator_forward.1} parent=0 // pred_fallthru
    _
  // Predicated region
  $region18: #{generator_forward.1} parent=0 // pred_check
    _
  $region19: #{generator_forward.1} parent=0 // pred_check_branch
    %41 = sbr.rel (0) target = $region21
  $region20: #{generator_forward.1} parent=0 // pred_region
    _
  $region21: #{generator_forward.1} parent=0 // pred_fallthru
    _
  // Predicated region
  $region22: #{generator_forward.1} parent=0 // pred_check
    _
  $region23: #{generator_forward.1} parent=0 // pred_check_branch
    %43 = sbr.rel (0) target = $region25
  $region24: #{generator_forward.1} parent=0 // pred_region
    _
  $region25: #{generator_forward.1} parent=0 // pred_fallthru
    _
  // Predicated region
  $region26: #{generator_forward.1} parent=0 // pred_check
    _
  $region27: #{generator_forward.1} parent=0 // pred_check_branch
    %45 = sbr.rel (0) target = $region29
  $region28: #{generator_forward.1} parent=0 // pred_region
    _
  $region29: #{generator_forward.1} parent=0 // pred_fallthru
    _
  // Predicated region
  $region30: #{generator_forward.1} parent=0 // pred_check
    _
  $region31: #{generator_forward.1} parent=0 // pred_check_branch
    %47 = sbr.rel (0) target = $region33
  $region32: #{generator_forward.1} parent=0 // pred_region
    _
  $region33: #{generator_forward.1} parent=0 // pred_fallthru
    _
  // Predicated region
  $region34: #{generator_forward.1} parent=0 // pred_check
    _
  $region35: #{generator_forward.1} parent=0 // pred_check_branch
    %49 = sbr.rel (0) target = $region37
  $region36: #{generator_forward.1} parent=0 // pred_region
    _
  $region37: #{generator_forward.1} parent=0 // pred_fallthru
    _
  // Predicated region
  $region38: #{generator_forward.1} parent=0 // pred_check
    _
  $region39: #{generator_forward.1} parent=0 // pred_check_branch
    %51 = sbr.rel (0) target = $region41
  $region40: #{generator_forward.1} parent=0 // pred_region
    _
  $region41: #{generator_forward.1} parent=0 // pred_fallthru
    _
  // Predicated region
  $region42: #{generator_forward.1} parent=0 // pred_check
    _
  $region43: #{generator_forward.1} parent=0 // pred_check_branch
    %53 = sbr.rel (0) target = $region45
  $region44: #{generator_forward.1} parent=0 // pred_region
    _
  $region45: #{generator_forward.1} parent=0 // pred_fallthru
    _
  // Predicated region
  $region46: #{generator_forward.1} parent=0 // pred_check
    _
  $region47: #{generator_forward.1} parent=0 // pred_check_branch
    %55 = sbr.rel (0) target = $region49
  $region48: #{generator_forward.1} parent=0 // pred_region
    _
  $region49: #{generator_forward.1} parent=0 // pred_fallthru
    _
  // Predicated region
  $region50: #{generator_forward.1} parent=0 // pred_check
    _
  $region51: #{generator_forward.1} parent=0 // pred_check_branch
    %57 = sbr.rel (0) target = $region53
  $region52: #{generator_forward.1} parent=0 // pred_region
    _
  $region53: #{generator_forward.1} parent=0 // pred_fallthru
    _
  // Predicated region
  $region54: #{generator_forward.1} parent=0 // pred_check
    _
  $region55: #{generator_forward.1} parent=0 // pred_check_branch
    %59 = sbr.rel (0) target = $region57
  $region56: #{generator_forward.1} parent=0 // pred_region
    _
  $region57: #{generator_forward.1} parent=0 // pred_fallthru
    _
  // Predicated region
  $region58: #{generator_forward.1} parent=0 // pred_check
    _
  $region59: #{generator_forward.1} parent=0 // pred_check_branch
    %61 = sbr.rel (0) target = $region61
  $region60: #{generator_forward.1} parent=0 // pred_region
    _
  $region61: #{generator_forward.1} parent=0 // pred_fallthru
    _
  // Predicated region
  $region62: #{generator_forward.1} parent=0 // pred_check
    _
  $region63: #{generator_forward.1} parent=0 // pred_check_branch
    %63 = sbr.rel (0) target = $region65
  $region64: #{generator_forward.1} parent=0 // pred_region
    _
  $region65: #{generator_forward.1} parent=0 // pred_fallthru
    _
  // Predicated region
  $region66: #{generator_forward.1} parent=0 // pred_check
    _
  $region67: #{generator_forward.1} parent=0 // pred_check_branch
    %65 = sbr.rel (0) target = $region69
  $region68: #{generator_forward.1} parent=0 // pred_region
    _
  $region69: #{generator_forward.1} parent=0 // pred_fallthru
    _
  // Predicated region
  $region70: #{generator_forward.1} parent=0 // pred_check
    _
  $region71: #{generator_forward.1} parent=0 // pred_check_branch
    %67 = sbr.rel (0) target = $region73
  $region72: #{generator_forward.1} parent=0 // pred_region
    _
  $region73: #{generator_forward.1} parent=0 // pred_fallthru
    _
  // Predicated region
  $region74: #{generator_forward.1} parent=0 // pred_check
    _
  $region75: #{generator_forward.1} parent=0 // pred_check_branch
    %69 = sbr.rel (0) target = $region77
  $region76: #{generator_forward.1} parent=0 // pred_region
    _
  $region77: #{generator_forward.1} parent=0 // pred_fallthru
    _
  // Predicated region
  $region78: #{generator_forward.1} parent=0 // pred_check
    _
  $region79: #{generator_forward.1} parent=0 // pred_check_branch
    %71 = sbr.rel (0) target = $region81
  $region80: #{generator_forward.1} parent=0 // pred_region
    _
  $region81: #{generator_forward.1} parent=0 // pred_fallthru
    _
  // Predicated region
  $region82: #{generator_forward.1} parent=0 // pred_check
    _
  $region83: #{generator_forward.1} parent=0 // pred_check_branch
    %73 = sbr.rel (0) target = $region85
  $region84: #{generator_forward.1} parent=0 // pred_region
    _
  $region85: #{generator_forward.1} parent=0 // pred_fallthru
    _
  // Predicated region
  $region86: #{generator_forward.1} parent=0 // pred_check
    _
  $region87: #{generator_forward.1} parent=0 // pred_check_branch
    %75 = sbr.rel (0) target = $region89
  $region88: #{generator_forward.1} parent=0 // pred_region
    _
  $region89: #{generator_forward.1} parent=0 // pred_fallthru
    _
  // Predicated region
  $region90: #{generator_forward.1} parent=0 // pred_check
    _
  $region91: #{generator_forward.1} parent=0 // pred_check_branch
    %77 = sbr.rel (0) target = $region93
  $region92: #{generator_forward.1} parent=0 // pred_region
    _
  $region93: #{generator_forward.1} parent=0 // pred_fallthru
    _
  // Predicated region
  $region94: #{generator_forward.1} parent=0 // pred_check
    _
  $region95: #{generator_forward.1} parent=0 // pred_check_branch
    %79 = sbr.rel (0) target = $region97
  $region96: #{generator_forward.1} parent=0 // pred_region
    _
  $region97: #{generator_forward.1} parent=0 // pred_fallthru
    _
  // Predicated region
  $region98: #{generator_forward.1} parent=0 // pred_check
    _
  $region99: #{generator_forward.1} parent=0 // pred_check_branch
    %81 = sbr.rel (0) target = $region101
  $region100: #{generator_forward.1} parent=0 // pred_region
    _
  $region101: #{generator_forward.1} parent=0 // pred_fallthru
    _
  // Predicated region
  $region102: #{generator_forward.1} parent=0 // pred_check
    _
  $region103: #{generator_forward.1} parent=0 // pred_check_branch
    %83 = sbr.rel (0) target = $region105
  $region104: #{generator_forward.1} parent=0 // pred_region
    _
  $region105: #{generator_forward.1} parent=0 // pred_fallthru
    _
  // Predicated region
  $region106: #{generator_forward.1} parent=0 // pred_check
    _
  $region107: #{generator_forward.1} parent=0 // pred_check_branch
    %85 = sbr.rel (0) target = $region109
  $region108: #{generator_forward.1} parent=0 // pred_region
    _
  $region109: #{generator_forward.1} parent=0 // pred_fallthru
    _
  %v86 = vld [vmem:[%s0] sm:$0x3]
  %v87 = vld [vmem:[%s1] sm:$0xff]
  %v88 = vld [vmem:[%s1 + $0x8] sm:$0xff]
  %v89 = vld [vmem:[%s1 + $0x10] sm:$0xff]
  %v90 = vld [vmem:[%s1 + $0x18] sm:$0xff]
  %v91 = vld [vmem:[%s2] sm:$0x1]
  %v93 = vlaneseq
  %v94 = vshrl.u32 %v93, 7
  %v95 = vsub.s32 0, %v94
  %v96 = vrot.slane %v91, %v95
  %vm98 = vcmask 261120
  %v100 = vsel %vm98, %v86, 0
  %102 = vmatprep.subr.mxu0 0.0
  %103 = vmatpush1.msra.mxu0 %v87
  %104 = vmatprep.subr.mxu0 0.0
  %105 = vmatpush1.msra.mxu0 %v88
  %106 = vmatprep.subr.mxu0 0.0
  %107 = vmatpush1.msra.mxu0 %v89
  %108 = vmatprep.subr.mxu0 0.0
  %109 = vmatpush1.msra.mxu0 %v90
  %110 = vmatprep.subr.mxu0 0.0
  %111 = vmatpush1.msra.mxu0 0.0
  %112 = vmatprep.subr.mxu0 0.0
  %113 = vmatpush1.msra.mxu0 0.0
  %114 = vmatprep.subr.mxu0 0.0
  %115 = vmatpush1.msra.mxu0 0.0
  %116 = vmatprep.subr.mxu0 0.0
  %117 = vmatpush1.msra.mxu0 0.0
  %118 = vmatprep.subr.mxu0 0.0
  %119 = vmatpush1.msra.mxu0 0.0
  %120 = vmatprep.subr.mxu0 0.0
  %121 = vmatpush1.msra.mxu0 0.0
  %122 = vmatprep.subr.mxu0 0.0
  %123 = vmatpush1.msra.mxu0 0.0
  %124 = vmatprep.subr.mxu0 0.0
  %125 = vmatpush1.msra.mxu0 0.0
  %126 = vmatprep.subr.mxu0 0.0
  %127 = vmatpush1.msra.mxu0 0.0
  %128 = vmatprep.subr.mxu0 0.0
  %129 = vmatpush1.msra.mxu0 0.0
  %130 = vmatprep.subr.mxu0 0.0
  %131 = vmatpush1.msra.mxu0 0.0
  %132 = vmatprep.subr.mxu0 0.0
  %133 = vmatpush1.msra.mxu0 0.0
  %134 = vmatprep.subr.mxu0 0.0
  %135 = vmatpush1.msra.mxu0 0.0
  %136 = vmatprep.subr.mxu0 0.0
  %137 = vmatpush1.msra.mxu0 0.0
  %138 = vmatprep.subr.mxu0 0.0
  %139 = vmatpush1.msra.mxu0 0.0
  %140 = vmatprep.subr.mxu0 0.0
  %141 = vmatpush1.msra.mxu0 0.0
  %142 = vmatprep.subr.mxu0 0.0
  %143 = vmatpush1.msra.mxu0 0.0
  %144 = vmatprep.subr.mxu0 0.0
  %145 = vmatpush1.msra.mxu0 0.0
  %146 = vmatprep.subr.mxu0 0.0
  %147 = vmatpush1.msra.mxu0 0.0
  %148 = vmatprep.subr.mxu0 0.0
  %149 = vmatpush1.msra.mxu0 0.0
  %150 = vmatprep.subr.mxu0 0.0
  %151 = vmatpush1.msra.mxu0 0.0
  %152 = vmatprep.subr.mxu0 0.0
  %153 = vmatpush1.msra.mxu0 0.0
  %154 = vmatprep.subr.mxu0 0.0
  %155 = vmatpush1.msra.mxu0 0.0
  %156 = vmatprep.subr.mxu0 0.0
  %157 = vmatpush1.msra.mxu0 0.0
  %158 = vmatprep.subr.mxu0 0.0
  %159 = vmatpush1.msra.mxu0 0.0
  %160 = vmatprep.subr.mxu0 0.0
  %161 = vmatpush1.msra.mxu0 0.0
  %162 = vmatprep.subr.mxu0 0.0
  %163 = vmatpush1.msra.mxu0 0.0
  %164 = vmatprep.subr.mxu0 0.0
  %165 = vmatpush1.msra.mxu0 0.0
  %166 = vmatprep.mubr.f32.mxu0 0.0
  %167 = vmatmul.mubr.f32.gmra.mrb[0].mxu0 %v100
  %v168 = vpop.f32.mrb[0].mxu0
  %v169 = vadd.f32 %v96, %v168
  %v170 = vpop.f32.mrb[0].mxu0
  %171 = vdwg.mxu0
  %v172 = vld [vmem:[%s3] sm:$0x1]
  %v173 = vld [vmem:[%s4] sm:$0x1]
  %vm174 = vcmask 517120
  %v175 = vsel %vm174, %v169, 0.0
  %v176 = vrot.slane %v175, 4
  %v177 = vadd.f32 %v175, %v176
  %v178 = vrot.slane %v177, 2
  %v179 = vadd.f32 %v177, %v178
  %v180 = vrot.slane %v179, 1
  %v181 = vadd.f32 %v179, %v180
  %v182 = vmul.f32 %v181, 0.5
  %v183 = vmul.f32 %v169, %v169
  %v184 = vsel %vm174, %v183, 0.0
  %v185 = vrot.slane %v184, 4
  %v186 = vadd.f32 %v184, %v185
  %v187 = vrot.slane %v186, 2
  %v188 = vadd.f32 %v186, %v187
  %v189 = vrot.slane %v188, 1
  %v190 = vadd.f32 %v188, %v189
  %v191 = vmul.f32 %v190, 0.5
  %v192 = vmul.f32 %v182, %v182
  %v193 = vsub.f32 %v191, %v192
  %v194 = vadd.f32 %v193, 1e-05
  %v195 = vrsqrt.pop %v194
  %v196 = vmul.f32 %v172, %v195
  %v197 = vsub.f32 %v169, %v182
  %v199 = vlaneseq
  %v200 = vshrl.u32 %v199, 7
  %v201 = vsub.s32 0, %v200
  %v202 = vrot.slane %v196, %v201
  %v204 = vmul.f32 %v197, %v202
  %v206 = vlaneseq
  %v207 = vshrl.u32 %v206, 7
  %v208 = vsub.s32 0, %v207
  %v209 = vrot.slane %v173, %v208
  %v211 = vadd.f32 %v204, %v209
  %v212 = vmax.f32 %v211, 0.0
  %v215 = vunpack.c.l.s4 1966171168
  %v216 = vunpack.c.0.s8 %v215
  %v217 = vlaneseq
  %v218 = vshrl.u32 %v217, 7
  %v219 = vsub.s32 %v216, %v218
  %v220 = vrot.slane %v212, %v219
  %v221 = vcombine.high %v220, %v220
  %v223 = vunpack.c.l.s4 1966171168
  %v224 = vunpack.c.0.s8 %v223
  %v225 = vlaneseq
  %v226 = vshrl.u32 %v225, 7
  %v227 = vsub.s32 %v224, %v226
  %v228 = vrot.slane %v220, %v227
  %v230 = vunpack.c.l.s4 1966171168
  %v231 = vunpack.c.0.s8 %v230
  %v232 = vlaneseq
  %v233 = vshrl.u32 %v232, 7
  %v234 = vsub.s32 %v231, %v233
  %v235 = vrot.slane %v221, %v234
  %v238 = vlaneseq
  %v239 = vshrl.u32 %v238, 7
  %v240 = vsub.s32 0, %v239
  %v241 = vrot.slane %v228, %v240
  %v242 = vlaneseq
  %v243 = vshrl.u32 %v242, 7
  %v244 = vsub.s32 0, %v243
  %v245 = vrot.slane %v235, %v244
  %246 = vrot.lane.b32.xlu0 %v241, 112
  %v247 = vpop.permute.xlu0 %246
  %248 = vrot.lane.b32.xlu0 %v245, 112
  %v249 = vpop.permute.xlu0 %248
  %vm252 = vcmask 1040384
  %v253 = vsel %vm252, %v228, %v247
  %v254 = vsel %vm252, %v235, %v249
  %257 = vrot.lane.b32.xlu0 %v253, 96
  %v258 = vpop.permute.xlu0 %257
  %259 = vrot.lane.b32.xlu0 %v254, 96
  %v260 = vpop.permute.xlu0 %259
  %v261 = vld [vmem:[%s5] sm:$0xff]
  %v262 = vld [vmem:[%s5 + $0x8] sm:$0xff]
  %v263 = vld [vmem:[%s5 + $0x10] sm:$0xff]
  %v264 = vld [vmem:[%s5 + $0x18] sm:$0xff]
  %v265 = vld [vmem:[%s5 + $0x20] sm:$0xff]
  %v266 = vld [vmem:[%s5 + $0x28] sm:$0xff]
  %v267 = vld [vmem:[%s5 + $0x30] sm:$0xff]
  %v268 = vld [vmem:[%s5 + $0x38] sm:$0xff]
  %v269 = vld [vmem:[%s5 + $0x40] sm:$0xff]
  %v270 = vld [vmem:[%s5 + $0x48] sm:$0xff]
  %v271 = vld [vmem:[%s5 + $0x50] sm:$0xff]
  %v272 = vld [vmem:[%s5 + $0x58] sm:$0xff]
  %v273 = vld [vmem:[%s5 + $0x60] sm:$0xff]
  %v274 = vld [vmem:[%s5 + $0x68] sm:$0xff]
  %v275 = vld [vmem:[%s5 + $0x70] sm:$0xff]
  %v276 = vld [vmem:[%s5 + $0x78] sm:$0xff]
  %v277 = vld [vmem:[%s5 + $0x80] sm:$0xff]
  %v278 = vld [vmem:[%s5 + $0x88] sm:$0xff]
  %v279 = vld [vmem:[%s6] sm:$0x1]
  %v280 = vld [vmem:[%s7] sm:$0x1]
  %v281 = vld [vmem:[%s8] sm:$0x1]
  %v283 = vrot.slane 0.0, 7
  %v284 = vrot.slane %v253, 7
  %v285 = vrot.slane %v258, 7
  %v286 = vrot.slane %v254, 7
  %v287 = vrot.slane %v260, 7
  %v293 = vrot.slane 0.0, 6
  %v294 = vrot.slane %v253, 6
  %v295 = vrot.slane %v258, 6
  %v296 = vrot.slane %v254, 6
  %v297 = vrot.slane %v260, 6
  %v303 = vsel %vm252, 0.0, %v283
  %v304 = vsel %vm252, 0.0, %v284
  %v305 = vsel %vm252, 0.0, %v285
  %v306 = vsel %vm252, 0.0, %v286
  %v307 = vsel %vm252, 0.0, %v287
  %vm308 = vcmask 1041408
  %v309 = vsel %vm308, %v303, 0.0
  %v310 = vsel %vm308, %v304, 0.0
  %v311 = vsel %vm308, %v305, 0.0
  %v312 = vsel %vm308, %v306, 0.0
  %v313 = vsel %vm308, %v307, 0.0
  %vm314 = vcmask 1042432
  %v315 = vsel %vm314, %v309, %v293
  %v316 = vsel %vm314, %v310, %v294
  %v317 = vsel %vm314, %v311, %v295
  %v318 = vsel %vm314, %v312, %v296
  %v319 = vsel %vm314, %v313, %v297
  %vm320 = vcmask 1043456
  %v321 = vsel %vm320, %v315, 0.0
  %v322 = vsel %vm320, %v316, 0.0
  %v323 = vsel %vm320, %v317, 0.0
  %v324 = vsel %vm320, %v318, 0.0
  %v325 = vsel %vm320, %v319, 0.0
  %vm326 = vcmask 1044480
  %v327 = vsel %vm326, %v321, 0.0
  %v328 = vsel %vm326, %v322, 0.0
  %v329 = vsel %vm326, %v323, 0.0
  %v330 = vsel %vm326, %v324, 0.0
  %v331 = vsel %vm326, %v325, 0.0
  %v337 = vcombine.high %v327, %v327
  %v338 = vcombine.high %v328, %v328
  %v339 = vcombine.high %v329, %v329
  %v340 = vcombine.high %v330, %v330
  %v341 = vcombine.high %v331, %v331
  %vm342 = vcmask 1046532
  %vm343 = vmor %vm314, %vm342
  %v344 = vrot.slane %v327, 5
  %v345 = vrot.slane %v344, 4
  %v346 = vrot.slane %v337, 5
  %v347 = vsel %vm343, %v345, %v346
  %v348 = vrot.slane %v328, 5
  %v349 = vrot.slane %v348, 4
  %v350 = vrot.slane %v338, 5
  %v351 = vsel %vm343, %v349, %v350
  %v352 = vrot.slane %v329, 5
  %v353 = vrot.slane %v352, 4
  %v354 = vrot.slane %v339, 5
  %v355 = vsel %vm343, %v353, %v354
  %v356 = vrot.slane %v330, 5
  %v357 = vrot.slane %v356, 4
  %v358 = vrot.slane %v340, 5
  %v359 = vsel %vm343, %v357, %v358
  %v360 = vrot.slane %v331, 5
  %v361 = vrot.slane %v360, 4
  %v362 = vrot.slane %v341, 5
  %v363 = vsel %vm343, %v361, %v362
  %vm364 = vcmask 1045508
  %vm365 = vmor %vm308, %vm364
  %v366 = vrot.slane %v327, 6
  %v367 = vrot.slane %v366, 4
  %v368 = vrot.slane %v337, 6
  %v369 = vsel %vm365, %v367, %v368
  %v370 = vrot.slane %v328, 6
  %v371 = vrot.slane %v370, 4
  %v372 = vrot.slane %v338, 6
  %v373 = vsel %vm365, %v371, %v372
  %v374 = vrot.slane %v329, 6
  %v375 = vrot.slane %v374, 4
  %v376 = vrot.slane %v339, 6
  %v377 = vsel %vm365, %v375, %v376
  %v378 = vrot.slane %v330, 6
  %v379 = vrot.slane %v378, 4
  %v380 = vrot.slane %v340, 6
  %v381 = vsel %vm365, %v379, %v380
  %v382 = vrot.slane %v331, 6
  %v383 = vrot.slane %v382, 4
  %v384 = vrot.slane %v341, 6
  %v385 = vsel %vm365, %v383, %v384
  %v386 = vcombine.low %v327, %v328
  %v387 = vcombine.low %v327, %v329
  %v388 = vcombine.low %v327, %v330
  %v389 = vcombine.low %v327, %v331
  %v394 = vcombine.low %v347, %v351
  %v395 = vcombine.low %v347, %v355
  %v396 = vcombine.low %v347, %v359
  %v397 = vcombine.low %v347, %v363
  %398 = vrot.lane.b32.xlu0 %v394, 16
  %v399 = vpop.permute.xlu0 %398
  %400 = vrot.lane.b32.xlu0 %v395, 16
  %v401 = vpop.permute.xlu0 %400
  %402 = vrot.lane.b32.xlu0 %v396, 16
  %v403 = vpop.permute.xlu0 %402
  %404 = vrot.lane.b32.xlu0 %v397, 16
  %v405 = vpop.permute.xlu0 %404
  %v410 = vcombine.low %v369, %v373
  %v411 = vcombine.low %v369, %v377
  %v412 = vcombine.low %v369, %v381
  %v413 = vcombine.low %v369, %v385
  %414 = vrot.lane.b32.xlu0 %v410, 32
  %v415 = vpop.permute.xlu0 %414
  %416 = vrot.lane.b32.xlu0 %v411, 32
  %v417 = vpop.permute.xlu0 %416
  %418 = vrot.lane.b32.xlu0 %v412, 32
  %v419 = vpop.permute.xlu0 %418
  %420 = vrot.lane.b32.xlu0 %v413, 32
  %v421 = vpop.permute.xlu0 %420
  %v426 = vcombine.low %v328, %v327
  %v427 = vcombine.low %v329, %v327
  %v428 = vcombine.low %v330, %v327
  %v429 = vcombine.low %v331, %v327
  %430 = vrot.lane.b32.xlu0 %v426, 48
  %v431 = vpop.permute.xlu0 %430
  %432 = vrot.lane.b32.xlu0 %v427, 48
  %v433 = vpop.permute.xlu0 %432
  %434 = vrot.lane.b32.xlu0 %v428, 48
  %v435 = vpop.permute.xlu0 %434
  %436 = vrot.lane.b32.xlu0 %v429, 48
  %v437 = vpop.permute.xlu0 %436
  %v442 = vcombine.low %v351, %v347
  %v443 = vcombine.low %v355, %v347
  %v444 = vcombine.low %v359, %v347
  %v445 = vcombine.low %v363, %v347
  %446 = vrot.lane.b32.xlu0 %v442, 64
  %v447 = vpop.permute.xlu0 %446
  %448 = vrot.lane.b32.xlu0 %v443, 64
  %v449 = vpop.permute.xlu0 %448
  %450 = vrot.lane.b32.xlu0 %v444, 64
  %v451 = vpop.permute.xlu0 %450
  %452 = vrot.lane.b32.xlu0 %v445, 64
  %v453 = vpop.permute.xlu0 %452
  %v458 = vcombine.low %v373, %v369
  %v459 = vcombine.low %v377, %v369
  %v460 = vcombine.low %v381, %v369
  %v461 = vcombine.low %v385, %v369
  %462 = vrot.lane.b32.xlu0 %v458, 80
  %v463 = vpop.permute.xlu0 %462
  %464 = vrot.lane.b32.xlu0 %v459, 80
  %v465 = vpop.permute.xlu0 %464
  %466 = vrot.lane.b32.xlu0 %v460, 80
  %v467 = vpop.permute.xlu0 %466
  %468 = vrot.lane.b32.xlu0 %v461, 80
  %v469 = vpop.permute.xlu0 %468
  %v474 = vcombine.low %v327, %v327
  %475 = vrot.lane.b32.xlu0 %v387, 96
  %v476 = vpop.permute.xlu0 %475
  %477 = vrot.lane.b32.xlu0 %v474, 96
  %v478 = vpop.permute.xlu0 %477
  %479 = vrot.lane.b32.xlu0 %v389, 96
  %v480 = vpop.permute.xlu0 %479
  %v484 = vcombine.low %v347, %v347
  %485 = vrot.lane.b32.xlu0 %v395, 112
  %v486 = vpop.permute.xlu0 %485
  %487 = vrot.lane.b32.xlu0 %v484, 112
  %v488 = vpop.permute.xlu0 %487
  %489 = vrot.lane.b32.xlu0 %v397, 112
  %v490 = vpop.permute.xlu0 %489
  %v494 = vcombine.low %v369, %v369
  %vm495 = vcmask 130048
  %v496 = vsel %vm495, %v386, %v399
  %v497 = vsel %vm495, %v387, %v401
  %v498 = vsel %vm495, %v388, %v403
  %v499 = vsel %vm495, %v389, %v405
  %v500 = vsel %vm98, %v496, %v415
  %v501 = vsel %vm98, %v497, %v417
  %v502 = vsel %vm98, %v498, %v419
  %v503 = vsel %vm98, %v499, %v421
  %vm504 = vcmask 392192
  %v505 = vsel %vm504, %v500, %v431
  %v506 = vsel %vm504, %v501, %v433
  %v507 = vsel %vm504, %v502, %v435
  %v508 = vsel %vm504, %v503, %v437
  %vm509 = vcmask 523264
  %v510 = vsel %vm509, %v505, %v447
  %v511 = vsel %vm509, %v506, %v449
  %v512 = vsel %vm509, %v507, %v451
  %v513 = vsel %vm509, %v508, %v453
  %vm514 = vcmask 654336
  %v515 = vsel %vm514, %v510, %v463
  %v516 = vsel %vm514, %v511, %v465
  %v517 = vsel %vm514, %v512, %v467
  %v518 = vsel %vm514, %v513, %v469
  %vm519 = vcmask 785408
  %v520 = vsel %vm519, %v515, %v476
  %v521 = vsel %vm519, %v516, %v478
  %v522 = vsel %vm519, %v517, %v480
  %v523 = vsel %vm519, %v518, %v478
  %vm524 = vcmask 916480
  %v525 = vsel %vm524, %v520, %v486
  %v526 = vsel %vm524, %v521, %v488
  %v527 = vsel %vm524, %v522, %v490
  %v528 = vsel %vm524, %v523, %v488
  %v530 = vlaneseq
  %v531 = vshrl.u32 %v530, 7
  %v532 = vsub.s32 0, %v531
  %v533 = vrot.slane %v279, %v532
  %v535 = vsel %vm495, %v411, 0
  %v537 = vsel %vm495, %v494, 0
  %v539 = vsel %vm495, %v413, 0
  %541 = vmatprep.subr.mxu0 0.0
  %542 = vmatpush1.msra.mxu0 %v261
  %543 = vmatprep.subr.mxu0 0.0
  %544 = vmatpush1.msra.mxu0 %v262
  %545 = vmatprep.subr.mxu0 0.0
  %546 = vmatpush1.msra.mxu0 %v263
  %547 = vmatprep.subr.mxu0 0.0
  %548 = vmatpush1.msra.mxu0 %v264
  %549 = vmatprep.subr.mxu0 0.0
  %550 = vmatpush1.msra.mxu0 %v265
  %551 = vmatprep.subr.mxu0 0.0
  %552 = vmatpush1.msra.mxu0 %v266
  %553 = vmatprep.subr.mxu0 0.0
  %554 = vmatpush1.msra.mxu0 %v267
  %555 = vmatprep.subr.mxu0 0.0
  %556 = vmatpush1.msra.mxu0 %v268
  %557 = vmatprep.subr.mxu0 0.0
  %558 = vmatpush1.msra.mxu0 %v269
  %559 = vmatprep.subr.mxu0 0.0
  %560 = vmatpush1.msra.mxu0 %v270
  %561 = vmatprep.subr.mxu0 0.0
  %562 = vmatpush1.msra.mxu0 %v271
  %563 = vmatprep.subr.mxu0 0.0
  %564 = vmatpush1.msra.mxu0 %v272
  %565 = vmatprep.subr.mxu0 0.0
  %566 = vmatpush1.msra.mxu0 %v273
  %567 = vmatprep.subr.mxu0 0.0
  %568 = vmatpush1.msra.mxu0 %v274
  %569 = vmatprep.subr.mxu0 0.0
  %570 = vmatpush1.msra.mxu0 %v275
  %571 = vmatprep.subr.mxu0 0.0
  %572 = vmatpush1.msra.mxu0 %v276
  %573 = vmatprep.subr.mxu0 0.0
  %574 = vmatpush1.msra.mxu0 %v277
  %575 = vmatprep.subr.mxu0 0.0
  %576 = vmatpush1.msra.mxu0 %v278
  %577 = vmatprep.subr.mxu0 0.0
  %578 = vmatpush1.msra.mxu0 0.0
  %579 = vmatprep.subr.mxu0 0.0
  %580 = vmatpush1.msra.mxu0 0.0
  %581 = vmatprep.subr.mxu0 0.0
  %582 = vmatpush1.msra.mxu0 0.0
  %583 = vmatprep.subr.mxu0 0.0
  %584 = vmatpush1.msra.mxu0 0.0
  %585 = vmatprep.subr.mxu0 0.0
  %586 = vmatpush1.msra.mxu0 0.0
  %587 = vmatprep.subr.mxu0 0.0
  %588 = vmatpush1.msra.mxu0 0.0
  %589 = vmatprep.subr.mxu0 0.0
  %590 = vmatpush1.msra.mxu0 0.0
  %591 = vmatprep.subr.mxu0 0.0
  %592 = vmatpush1.msra.mxu0 0.0
  %593 = vmatprep.subr.mxu0 0.0
  %594 = vmatpush1.msra.mxu0 0.0
  %595 = vmatprep.subr.mxu0 0.0
  %596 = vmatpush1.msra.mxu0 0.0
  %597 = vmatprep.subr.mxu0 0.0
  %598 = vmatpush1.msra.mxu0 0.0
  %599 = vmatprep.subr.mxu0 0.0
  %600 = vmatpush1.msra.mxu0 0.0
  %601 = vmatprep.subr.mxu0 0.0
  %602 = vmatpush1.msra.mxu0 0.0
  %603 = vmatprep.subr.mxu0 0.0
  %604 = vmatpush1.msra.mxu0 0.0
  %605 = vmatprep.mubr.f32.mxu0 %v535
  %606 = vmatmul.mubr.f32.gmra.mrb[0].mxu0 %v525
  %v607 = vpop.f32.mrb[0].mxu0
  %v608 = vadd.f32 %v533, %v607
  %v609 = vpop.f32.mrb[0].mxu0
  %610 = vmatprep.mubr.f32.mxu0 %v537
  %611 = vmatmul.mubr.f32.gmra.mrb[0].mxu0 %v526
  %v612 = vpop.f32.mrb[0].mxu0
  %v613 = vadd.f32 %v533, %v612
  %v614 = vpop.f32.mrb[0].mxu0
  %615 = vmatprep.mubr.f32.mxu0 %v539
  %616 = vmatmul.mubr.f32.gmra.mrb[0].mxu0 %v527
  %v617 = vpop.f32.mrb[0].mxu0
  %v618 = vadd.f32 %v533, %v617
  %v619 = vpop.f32.mrb[0].mxu0
  %620 = vmatprep.mubr.f32.mxu0 %v537
  %621 = vmatmul.mubr.f32.gmra.mrb[0].mxu0 %v528
  %v622 = vpop.f32.mrb[0].mxu0
  %v623 = vadd.f32 %v533, %v622
  %v624 = vpop.f32.mrb[0].mxu0
  %625 = vdwg.mxu0
  %v626 = vsel %vm495, %v608, 0.0
  %v627 = vsel %vm495, %v613, 0.0
  %v628 = vadd.f32 %v626, %v627
  %v629 = vsel %vm495, %v618, 0.0
  %v630 = vadd.f32 %v628, %v629
  %v631 = vsel %vm495, %v623, 0.0
  %v632 = vadd.f32 %v630, %v631
  %v633 = vrot.slane %v632, 4
  %v634 = vadd.f32 %v632, %v633
  %v635 = vrot.slane %v634, 2
  %v636 = vadd.f32 %v634, %v635
  %v637 = vrot.slane %v636, 1
  %v638 = vadd.f32 %v636, %v637
  %v639 = vmul.f32 %v638, 0.03125
  %v640 = vmul.f32 %v608, %v608
  %v641 = vmul.f32 %v613, %v613
  %v642 = vmul.f32 %v618, %v618
  %v643 = vmul.f32 %v623, %v623
  %v644 = vsel %vm495, %v640, 0.0
  %v645 = vsel %vm495, %v641, 0.0
  %v646 = vadd.f32 %v644, %v645
  %v647 = vsel %vm495, %v642, 0.0
  %v648 = vadd.f32 %v646, %v647
  %v649 = vsel %vm495, %v643, 0.0
  %v650 = vadd.f32 %v648, %v649
  %v651 = vrot.slane %v650, 4
  %v652 = vadd.f32 %v650, %v651
  %v653 = vrot.slane %v652, 2
  %v654 = vadd.f32 %v652, %v653
  %v655 = vrot.slane %v654, 1
  %v656 = vadd.f32 %v654, %v655
  %v657 = vmul.f32 %v656, 0.03125
  %v658 = vmul.f32 %v639, %v639
  %v659 = vsub.f32 %v657, %v658
  %v660 = vadd.f32 %v659, 1e-05
  %v661 = vrsqrt.pop %v660
  %v662 = vmul.f32 %v280, %v661
  %v663 = vsub.f32 %v608, %v639
  %v664 = vsub.f32 %v613, %v639
  %v665 = vsub.f32 %v618, %v639
  %v666 = vsub.f32 %v623, %v639
  %v668 = vlaneseq
  %v669 = vshrl.u32 %v668, 7
  %v670 = vsub.s32 0, %v669
  %v671 = vrot.slane %v662, %v670
  %v673 = vmul.f32 %v663, %v671
  %v674 = vmul.f32 %v664, %v671
  %v675 = vmul.f32 %v665, %v671
  %v676 = vmul.f32 %v666, %v671
  %v678 = vlaneseq
  %v679 = vshrl.u32 %v678, 7
  %v680 = vsub.s32 0, %v679
  %v681 = vrot.slane %v281, %v680
  %v683 = vadd.f32 %v673, %v681
  %v684 = vadd.f32 %v674, %v681
  %v685 = vadd.f32 %v675, %v681
  %v686 = vadd.f32 %v676, %v681
  %v687 = vmax.f32 %v683, 0.0
  %v688 = vmax.f32 %v684, 0.0
  %v689 = vmax.f32 %v685, 0.0
  %v690 = vmax.f32 %v686, 0.0
  %v695 = vcombine.high %v687, %v687
  %v696 = vcombine.high %v688, %v688
  %v697 = vcombine.high %v689, %v689
  %v698 = vcombine.high %v690, %v690
  %v699 = vld [vmem:[%s9] sm:$0xff]
  %v700 = vld [vmem:[%s9 + $0x8] sm:$0xff]
  %v701 = vld [vmem:[%s9 + $0x10] sm:$0xff]
  %v702 = vld [vmem:[%s9 + $0x18] sm:$0xff]
  %v703 = vld [vmem:[%s9 + $0x20] sm:$0xff]
  %v704 = vld [vmem:[%s9 + $0x28] sm:$0xff]
  %v705 = vld [vmem:[%s9 + $0x30] sm:$0xff]
  %v706 = vld [vmem:[%s9 + $0x38] sm:$0xff]
  %v707 = vld [vmem:[%s9 + $0x40] sm:$0xff]
  %v708 = vld [vmem:[%s9 + $0x48] sm:$0xff]
  %v709 = vld [vmem:[%s9 + $0x50] sm:$0xff]
  %v710 = vld [vmem:[%s9 + $0x58] sm:$0xff]
  %v711 = vld [vmem:[%s9 + $0x60] sm:$0xff]
  %v712 = vld [vmem:[%s9 + $0x68] sm:$0xff]
  %v713 = vld [vmem:[%s9 + $0x70] sm:$0xff]
  %v714 = vld [vmem:[%s9 + $0x78] sm:$0xff]
  %v715 = vld [vmem:[%s9 + $0x80] sm:$0xff]
  %v716 = vld [vmem:[%s9 + $0x88] sm:$0xff]
  %v717 = vld [vmem:[%s10] sm:$0x1]
  %v718 = vld [vmem:[%s11] sm:$0x1]
  %v719 = vld [vmem:[%s12] sm:$0x1]
  %v720 = vrot.slane %v687, 7
  %v721 = vrot.slane %v695, 7
  %v722 = vrot.slane %v688, 7
  %v723 = vrot.slane %v696, 7
  %v724 = vrot.slane %v689, 7
  %v725 = vrot.slane %v697, 7
  %v726 = vrot.slane %v690, 7
  %v727 = vrot.slane %v698, 7
  %v736 = vsel %vm252, 0.0, %v720
  %v737 = vsel %vm252, 0.0, %v721
  %v738 = vsel %vm252, 0.0, %v722
  %v739 = vsel %vm252, 0.0, %v723
  %v740 = vsel %vm252, 0.0, %v724
  %v741 = vsel %vm252, 0.0, %v725
  %v742 = vsel %vm252, 0.0, %v726
  %v743 = vsel %vm252, 0.0, %v727
  %v744 = vsel %vm326, %v303, 0.0
  %v745 = vsel %vm326, %v736, 0.0
  %v746 = vsel %vm326, %v737, 0.0
  %v747 = vsel %vm326, %v738, 0.0
  %v748 = vsel %vm326, %v739, 0.0
  %v749 = vsel %vm326, %v740, 0.0
  %v750 = vsel %vm326, %v741, 0.0
  %v751 = vsel %vm326, %v742, 0.0
  %v752 = vsel %vm326, %v743, 0.0
  %v760 = vcombine.high %v744, %v744
  %v761 = vcombine.high %v745, %v745
  %v762 = vcombine.high %v746, %v746
  %v763 = vcombine.high %v747, %v747
  %v764 = vcombine.high %v749, %v749
  %v765 = vcombine.high %v750, %v750
  %v766 = vcombine.high %v751, %v751
  %v767 = vrot.slane %v744, 5
  %v768 = vrot.slane %v767, 4
  %v769 = vrot.slane %v760, 5
  %v770 = vsel %vm343, %v768, %v769
  %v771 = vrot.slane %v745, 5
  %v772 = vrot.slane %v771, 4
  %v773 = vrot.slane %v761, 5
  %v774 = vsel %vm343, %v772, %v773
  %v775 = vrot.slane %v746, 5
  %v776 = vrot.slane %v775, 4
  %v777 = vrot.slane %v762, 5
  %v778 = vsel %vm343, %v776, %v777
  %v779 = vrot.slane %v747, 5
  %v780 = vrot.slane %v779, 4
  %v781 = vrot.slane %v763, 5
  %v782 = vsel %vm343, %v780, %v781
  %v783 = vrot.slane %v749, 5
  %v784 = vrot.slane %v783, 4
  %v785 = vrot.slane %v764, 5
  %v786 = vsel %vm343, %v784, %v785
  %v787 = vrot.slane %v750, 5
  %v788 = vrot.slane %v787, 4
  %v789 = vrot.slane %v765, 5
  %v790 = vsel %vm343, %v788, %v789
  %v791 = vrot.slane %v751, 5
  %v792 = vrot.slane %v791, 4
  %v793 = vrot.slane %v766, 5
  %v794 = vsel %vm343, %v792, %v793
  %v795 = vrot.slane %v744, 6
  %v796 = vrot.slane %v795, 4
  %v797 = vrot.slane %v760, 6
  %v798 = vsel %vm365, %v796, %v797
  %v799 = vrot.slane %v745, 6
  %v800 = vrot.slane %v799, 4
  %v801 = vrot.slane %v761, 6
  %v802 = vsel %vm365, %v800, %v801
  %v803 = vrot.slane %v746, 6
  %v804 = vrot.slane %v803, 4
  %v805 = vrot.slane %v762, 6
  %v806 = vsel %vm365, %v804, %v805
  %v807 = vrot.slane %v747, 6
  %v808 = vrot.slane %v807, 4
  %v809 = vrot.slane %v763, 6
  %v810 = vsel %vm365, %v808, %v809
  %v811 = vrot.slane %v749, 6
  %v812 = vrot.slane %v811, 4
  %v813 = vrot.slane %v764, 6
  %v814 = vsel %vm365, %v812, %v813
  %v815 = vrot.slane %v750, 6
  %v816 = vrot.slane %v815, 4
  %v817 = vrot.slane %v765, 6
  %v818 = vsel %vm365, %v816, %v817
  %v819 = vrot.slane %v751, 6
  %v820 = vrot.slane %v819, 4
  %v821 = vrot.slane %v766, 6
  %v822 = vsel %vm365, %v820, %v821
  %v825 = vcombine.high %v748, %v748
  %v826 = vcombine.high %v752, %v752
  %v827 = vrot.slane %v748, 5
  %v828 = vrot.slane %v827, 4
  %v829 = vrot.slane %v825, 5
  %v830 = vsel %vm343, %v828, %v829
  %v831 = vrot.slane %v752, 5
  %v832 = vrot.slane %v831, 4
  %v833 = vrot.slane %v826, 5
  %v834 = vsel %vm343, %v832, %v833
  %v835 = vrot.slane %v748, 6
  %v836 = vrot.slane %v835, 4
  %v837 = vrot.slane %v825, 6
  %v838 = vsel %vm365, %v836, %v837
  %v839 = vrot.slane %v752, 6
  %v840 = vrot.slane %v839, 4
  %v841 = vrot.slane %v826, 6
  %v842 = vsel %vm365, %v840, %v841
  %v843 = vcombine.low %v744, %v745
  %v844 = vcombine.low %v746, %v747
  %v845 = vcombine.low %v744, %v749
  %v846 = vcombine.low %v750, %v751
  %v851 = vcombine.low %v770, %v774
  %v852 = vcombine.low %v778, %v782
  %v853 = vcombine.low %v770, %v786
  %v854 = vcombine.low %v790, %v794
  %855 = vrot.lane.b32.xlu0 %v851, 16
  %v856 = vpop.permute.xlu0 %855
  %857 = vrot.lane.b32.xlu0 %v852, 16
  %v858 = vpop.permute.xlu0 %857
  %859 = vrot.lane.b32.xlu0 %v853, 16
  %v860 = vpop.permute.xlu0 %859
  %861 = vrot.lane.b32.xlu0 %v854, 16
  %v862 = vpop.permute.xlu0 %861
  %v867 = vcombine.low %v798, %v802
  %v868 = vcombine.low %v806, %v810
  %v869 = vcombine.low %v798, %v814
  %v870 = vcombine.low %v818, %v822
  %871 = vrot.lane.b32.xlu0 %v867, 32
  %v872 = vpop.permute.xlu0 %871
  %873 = vrot.lane.b32.xlu0 %v868, 32
  %v874 = vpop.permute.xlu0 %873
  %875 = vrot.lane.b32.xlu0 %v869, 32
  %v876 = vpop.permute.xlu0 %875
  %877 = vrot.lane.b32.xlu0 %v870, 32
  %v878 = vpop.permute.xlu0 %877
  %v883 = vcombine.low %v745, %v746
  %v884 = vcombine.low %v747, %v748
  %v885 = vcombine.low %v749, %v750
  %v886 = vcombine.low %v751, %v752
  %887 = vrot.lane.b32.xlu0 %v883, 48
  %v888 = vpop.permute.xlu0 %887
  %889 = vrot.lane.b32.xlu0 %v884, 48
  %v890 = vpop.permute.xlu0 %889
  %891 = vrot.lane.b32.xlu0 %v885, 48
  %v892 = vpop.permute.xlu0 %891
  %893 = vrot.lane.b32.xlu0 %v886, 48
  %v894 = vpop.permute.xlu0 %893
  %v899 = vcombine.low %v774, %v778
  %v900 = vcombine.low %v782, %v830
  %v901 = vcombine.low %v786, %v790
  %v902 = vcombine.low %v794, %v834
  %903 = vrot.lane.b32.xlu0 %v899, 64
  %v904 = vpop.permute.xlu0 %903
  %905 = vrot.lane.b32.xlu0 %v900, 64
  %v906 = vpop.permute.xlu0 %905
  %907 = vrot.lane.b32.xlu0 %v901, 64
  %v908 = vpop.permute.xlu0 %907
  %909 = vrot.lane.b32.xlu0 %v902, 64
  %v910 = vpop.permute.xlu0 %909
  %v915 = vcombine.low %v802, %v806
  %v916 = vcombine.low %v810, %v838
  %v917 = vcombine.low %v814, %v818
  %v918 = vcombine.low %v822, %v842
  %919 = vrot.lane.b32.xlu0 %v915, 80
  %v920 = vpop.permute.xlu0 %919
  %921 = vrot.lane.b32.xlu0 %v916, 80
  %v922 = vpop.permute.xlu0 %921
  %923 = vrot.lane.b32.xlu0 %v917, 80
  %v924 = vpop.permute.xlu0 %923
  %925 = vrot.lane.b32.xlu0 %v918, 80
  %v926 = vpop.permute.xlu0 %925
  %v931 = vcombine.low %v748, %v744
  %v932 = vcombine.low %v752, %v744
  %933 = vrot.lane.b32.xlu0 %v844, 96
  %v934 = vpop.permute.xlu0 %933
  %935 = vrot.lane.b32.xlu0 %v931, 96
  %v936 = vpop.permute.xlu0 %935
  %937 = vrot.lane.b32.xlu0 %v846, 96
  %v938 = vpop.permute.xlu0 %937
  %939 = vrot.lane.b32.xlu0 %v932, 96
  %v940 = vpop.permute.xlu0 %939
  %v945 = vcombine.low %v830, %v770
  %v946 = vcombine.low %v834, %v770
  %947 = vrot.lane.b32.xlu0 %v852, 112
  %v948 = vpop.permute.xlu0 %947
  %949 = vrot.lane.b32.xlu0 %v945, 112
  %v950 = vpop.permute.xlu0 %949
  %951 = vrot.lane.b32.xlu0 %v854, 112
  %v952 = vpop.permute.xlu0 %951
  %953 = vrot.lane.b32.xlu0 %v946, 112
  %v954 = vpop.permute.xlu0 %953
  %v959 = vcombine.low %v838, %v798
  %v960 = vcombine.low %v842, %v798
  %v961 = vsel %vm495, %v843, %v856
  %v962 = vsel %vm495, %v844, %v858
  %v963 = vsel %vm495, %v845, %v860
  %v964 = vsel %vm495, %v846, %v862
  %v965 = vsel %vm98, %v961, %v872
  %v966 = vsel %vm98, %v962, %v874
  %v967 = vsel %vm98, %v963, %v876
  %v968 = vsel %vm98, %v964, %v878
  %v969 = vsel %vm504, %v965, %v888
  %v970 = vsel %vm504, %v966, %v890
  %v971 = vsel %vm504, %v967, %v892
  %v972 = vsel %vm504, %v968, %v894
  %v973 = vsel %vm509, %v969, %v904
  %v974 = vsel %vm509, %v970, %v906
  %v975 = vsel %vm509, %v971, %v908
  %v976 = vsel %vm509, %v972, %v910
  %v977 = vsel %vm514, %v973, %v920
  %v978 = vsel %vm514, %v974, %v922
  %v979 = vsel %vm514, %v975, %v924
  %v980 = vsel %vm514, %v976, %v926
  %v981 = vsel %vm519, %v977, %v934
  %v982 = vsel %vm519, %v978, %v936
  %v983 = vsel %vm519, %v979, %v938
  %v984 = vsel %vm519, %v980, %v940
  %v985 = vsel %vm524, %v981, %v948
  %v986 = vsel %vm524, %v982, %v950
  %v987 = vsel %vm524, %v983, %v952
  %v988 = vsel %vm524, %v984, %v954
  %v990 = vlaneseq
  %v991 = vshrl.u32 %v990, 7
  %v992 = vsub.s32 0, %v991
  %v993 = vrot.slane %v717, %v992
  %v995 = vsel %vm495, %v868, 0
  %v997 = vsel %vm495, %v959, 0
  %v999 = vsel %vm495, %v870, 0
  %v1001 = vsel %vm495, %v960, 0
  %1003 = vmatprep.subr.mxu0 0.0
  %1004 = vmatpush1.msra.mxu0 %v699
  %1005 = vmatprep.subr.mxu0 0.0
  %1006 = vmatpush1.msra.mxu0 %v700
  %1007 = vmatprep.subr.mxu0 0.0
  %1008 = vmatpush1.msra.mxu0 %v701
  %1009 = vmatprep.subr.mxu0 0.0
  %1010 = vmatpush1.msra.mxu0 %v702
  %1011 = vmatprep.subr.mxu0 0.0
  %1012 = vmatpush1.msra.mxu0 %v703
  %1013 = vmatprep.subr.mxu0 0.0
  %1014 = vmatpush1.msra.mxu0 %v704
  %1015 = vmatprep.subr.mxu0 0.0
  %1016 = vmatpush1.msra.mxu0 %v705
  %1017 = vmatprep.subr.mxu0 0.0
  %1018 = vmatpush1.msra.mxu0 %v706
  %1019 = vmatprep.subr.mxu0 0.0
  %1020 = vmatpush1.msra.mxu0 %v707
  %1021 = vmatprep.subr.mxu0 0.0
  %1022 = vmatpush1.msra.mxu0 %v708
  %1023 = vmatprep.subr.mxu0 0.0
  %1024 = vmatpush1.msra.mxu0 %v709
  %1025 = vmatprep.subr.mxu0 0.0
  %1026 = vmatpush1.msra.mxu0 %v710
  %1027 = vmatprep.subr.mxu0 0.0
  %1028 = vmatpush1.msra.mxu0 %v711
  %1029 = vmatprep.subr.mxu0 0.0
  %1030 = vmatpush1.msra.mxu0 %v712
  %1031 = vmatprep.subr.mxu0 0.0
  %1032 = vmatpush1.msra.mxu0 %v713
  %1033 = vmatprep.subr.mxu0 0.0
  %1034 = vmatpush1.msra.mxu0 %v714
  %1035 = vmatprep.subr.mxu0 0.0
  %1036 = vmatpush1.msra.mxu0 %v715
  %1037 = vmatprep.subr.mxu0 0.0
  %1038 = vmatpush1.msra.mxu0 %v716
  %1039 = vmatprep.subr.mxu0 0.0
  %1040 = vmatpush1.msra.mxu0 0.0
  %1041 = vmatprep.subr.mxu0 0.0
  %1042 = vmatpush1.msra.mxu0 0.0
  %1043 = vmatprep.subr.mxu0 0.0
  %1044 = vmatpush1.msra.mxu0 0.0
  %1045 = vmatprep.subr.mxu0 0.0
  %1046 = vmatpush1.msra.mxu0 0.0
  %1047 = vmatprep.subr.mxu0 0.0
  %1048 = vmatpush1.msra.mxu0 0.0
  %1049 = vmatprep.subr.mxu0 0.0
  %1050 = vmatpush1.msra.mxu0 0.0
  %1051 = vmatprep.subr.mxu0 0.0
  %1052 = vmatpush1.msra.mxu0 0.0
  %1053 = vmatprep.subr.mxu0 0.0
  %1054 = vmatpush1.msra.mxu0 0.0
  %1055 = vmatprep.subr.mxu0 0.0
  %1056 = vmatpush1.msra.mxu0 0.0
  %1057 = vmatprep.subr.mxu0 0.0
  %1058 = vmatpush1.msra.mxu0 0.0
  %1059 = vmatprep.subr.mxu0 0.0
  %1060 = vmatpush1.msra.mxu0 0.0
  %1061 = vmatprep.subr.mxu0 0.0
  %1062 = vmatpush1.msra.mxu0 0.0
  %1063 = vmatprep.subr.mxu0 0.0
  %1064 = vmatpush1.msra.mxu0 0.0
  %1065 = vmatprep.subr.mxu0 0.0
  %1066 = vmatpush1.msra.mxu0 0.0
  %1067 = vmatprep.mubr.f32.mxu0 %v995
  %1068 = vmatmul.mubr.f32.gmra.mrb[0].mxu0 %v985
  %v1069 = vpop.f32.mrb[0].mxu0
  %v1070 = vadd.f32 %v993, %v1069
  %v1071 = vpop.f32.mrb[0].mxu0
  %1072 = vmatprep.mubr.f32.mxu0 %v997
  %1073 = vmatmul.mubr.f32.gmra.mrb[0].mxu0 %v986
  %v1074 = vpop.f32.mrb[0].mxu0
  %v1075 = vadd.f32 %v993, %v1074
  %v1076 = vpop.f32.mrb[0].mxu0
  %1077 = vmatprep.mubr.f32.mxu0 %v999
  %1078 = vmatmul.mubr.f32.gmra.mrb[0].mxu0 %v987
  %v1079 = vpop.f32.mrb[0].mxu0
  %v1080 = vadd.f32 %v993, %v1079
  %v1081 = vpop.f32.mrb[0].mxu0
  %1082 = vmatprep.mubr.f32.mxu0 %v1001
  %1083 = vmatmul.mubr.f32.gmra.mrb[0].mxu0 %v988
  %v1084 = vpop.f32.mrb[0].mxu0
  %v1085 = vadd.f32 %v993, %v1084
  %v1086 = vpop.f32.mrb[0].mxu0
  %1087 = vdwg.mxu0
  %v1088 = vsel %vm495, %v1070, 0.0
  %v1089 = vsel %vm495, %v1075, 0.0
  %v1090 = vadd.f32 %v1088, %v1089
  %v1091 = vsel %vm495, %v1080, 0.0
  %v1092 = vadd.f32 %v1090, %v1091
  %v1093 = vsel %vm495, %v1085, 0.0
  %v1094 = vadd.f32 %v1092, %v1093
  %v1095 = vrot.slane %v1094, 4
  %v1096 = vadd.f32 %v1094, %v1095
  %v1097 = vrot.slane %v1096, 2
  %v1098 = vadd.f32 %v1096, %v1097
  %v1099 = vrot.slane %v1098, 1
  %v1100 = vadd.f32 %v1098, %v1099
  %v1101 = vmul.f32 %v1100, 0.03125
  %v1102 = vmul.f32 %v1070, %v1070
  %v1103 = vmul.f32 %v1075, %v1075
  %v1104 = vmul.f32 %v1080, %v1080
  %v1105 = vmul.f32 %v1085, %v1085
  %v1106 = vsel %vm495, %v1102, 0.0
  %v1107 = vsel %vm495, %v1103, 0.0
  %v1108 = vadd.f32 %v1106, %v1107
  %v1109 = vsel %vm495, %v1104, 0.0
  %v1110 = vadd.f32 %v1108, %v1109
  %v1111 = vsel %vm495, %v1105, 0.0
  %v1112 = vadd.f32 %v1110, %v1111
  %v1113 = vrot.slane %v1112, 4
  %v1114 = vadd.f32 %v1112, %v1113
  %v1115 = vrot.slane %v1114, 2
  %v1116 = vadd.f32 %v1114, %v1115
  %v1117 = vrot.slane %v1116, 1
  %v1118 = vadd.f32 %v1116, %v1117
  %v1119 = vmul.f32 %v1118, 0.03125
  %v1120 = vmul.f32 %v1101, %v1101
  %v1121 = vsub.f32 %v1119, %v1120
  %v1122 = vadd.f32 %v1121, 1e-05
  %v1123 = vrsqrt.pop %v1122
  %v1124 = vmul.f32 %v718, %v1123
  %v1125 = vsub.f32 %v1070, %v1101
  %v1126 = vsub.f32 %v1075, %v1101
  %v1127 = vsub.f32 %v1080, %v1101
  %v1128 = vsub.f32 %v1085, %v1101
  %v1130 = vlaneseq
  %v1131 = vshrl.u32 %v1130, 7
  %v1132 = vsub.s32 0, %v1131
  %v1133 = vrot.slane %v1124, %v1132
  %v1135 = vmul.f32 %v1125, %v1133
  %v1136 = vmul.f32 %v1126, %v1133
  %v1137 = vmul.f32 %v1127, %v1133
  %v1138 = vmul.f32 %v1128, %v1133
  %v1140 = vlaneseq
  %v1141 = vshrl.u32 %v1140, 7
  %v1142 = vsub.s32 0, %v1141
  %v1143 = vrot.slane %v719, %v1142
  %v1145 = vadd.f32 %v1135, %v1143
  %v1146 = vadd.f32 %v1136, %v1143
  %v1147 = vadd.f32 %v1137, %v1143
  %v1148 = vadd.f32 %v1138, %v1143
  %v1149 = vmax.f32 %v1145, 0.0
  %v1150 = vmax.f32 %v1146, 0.0
  %v1151 = vmax.f32 %v1147, 0.0
  %v1152 = vmax.f32 %v1148, 0.0
  %v1157 = vcombine.high %v1149, %v1149
  %v1158 = vcombine.high %v1150, %v1150
  %v1159 = vcombine.high %v1151, %v1151
  %v1160 = vcombine.high %v1152, %v1152
  %v1161 = vld [vmem:[%s13] sm:$0xff]
  %v1162 = vld [vmem:[%s13 + $0x8] sm:$0xff]
  %v1163 = vld [vmem:[%s13 + $0x10] sm:$0xff]
  %v1164 = vld [vmem:[%s13 + $0x18] sm:$0xff]
  %v1165 = vld [vmem:[%s13 + $0x20] sm:$0xff]
  %v1166 = vld [vmem:[%s13 + $0x28] sm:$0xff]
  %v1167 = vld [vmem:[%s13 + $0x30] sm:$0xff]
  %v1168 = vld [vmem:[%s13 + $0x38] sm:$0xff]
  %v1169 = vld [vmem:[%s13 + $0x40] sm:$0xff]
  %v1170 = vld [vmem:[%s13 + $0x48] sm:$0xff]
  %v1171 = vld [vmem:[%s13 + $0x50] sm:$0xff]
  %v1172 = vld [vmem:[%s13 + $0x58] sm:$0xff]
  %v1173 = vld [vmem:[%s13 + $0x60] sm:$0xff]
  %v1174 = vld [vmem:[%s13 + $0x68] sm:$0xff]
  %v1175 = vld [vmem:[%s13 + $0x70] sm:$0xff]
  %v1176 = vld [vmem:[%s13 + $0x78] sm:$0xff]
  %v1177 = vld [vmem:[%s13 + $0x80] sm:$0xff]
  %v1178 = vld [vmem:[%s13 + $0x88] sm:$0xff]
  %v1179 = vld [vmem:[%s14] sm:$0x1]
  %v1180 = vld [vmem:[%s15] sm:$0x1]
  %v1181 = vld [vmem:[%s16] sm:$0x1]
  %v1182 = vrot.slane %v1149, 7
  %v1183 = vrot.slane %v1157, 7
  %v1184 = vrot.slane %v1150, 7
  %v1185 = vrot.slane %v1158, 7
  %v1186 = vrot.slane %v1151, 7
  %v1187 = vrot.slane %v1159, 7
  %v1188 = vrot.slane %v1152, 7
  %v1189 = vrot.slane %v1160, 7
  %v1198 = vrot.slane %v1149, 6
  %v1199 = vrot.slane %v1157, 6
  %v1200 = vrot.slane %v1150, 6
  %v1201 = vrot.slane %v1158, 6
  %v1202 = vrot.slane %v1151, 6
  %v1203 = vrot.slane %v1159, 6
  %v1204 = vrot.slane %v1152, 6
  %v1205 = vrot.slane %v1160, 6
  %v1214 = vrot.slane 0.0, 5
  %v1215 = vrot.slane %v1149, 5
  %v1216 = vrot.slane %v1157, 5
  %v1217 = vrot.slane %v1150, 5
  %v1218 = vrot.slane %v1158, 5
  %v1219 = vrot.slane %v1151, 5
  %v1220 = vrot.slane %v1159, 5
  %v1221 = vrot.slane %v1152, 5
  %v1222 = vrot.slane %v1160, 5
  %v1232 = vrot.slane 0.0, 4
  %v1233 = vrot.slane %v1149, 4
  %v1234 = vrot.slane %v1157, 4
  %v1235 = vrot.slane %v1150, 4
  %v1236 = vrot.slane %v1158, 4
  %v1237 = vrot.slane %v1151, 4
  %v1238 = vrot.slane %v1159, 4
  %v1239 = vrot.slane %v1152, 4
  %v1240 = vrot.slane %v1160, 4
  %v1250 = vsel %vm252, 0.0, %v1182
  %v1251 = vsel %vm252, 0.0, %v1183
  %v1252 = vsel %vm252, 0.0, %v1184
  %v1253 = vsel %vm252, 0.0, %v1185
  %v1254 = vsel %vm252, 0.0, %v1186
  %v1255 = vsel %vm252, 0.0, %v1187
  %v1256 = vsel %vm252, 0.0, %v1188
  %v1257 = vsel %vm252, 0.0, %v1189
  %v1258 = vsel %vm308, %v1250, 0.0
  %v1259 = vsel %vm308, %v1251, 0.0
  %v1260 = vsel %vm308, %v1252, 0.0
  %v1261 = vsel %vm308, %v1253, 0.0
  %v1262 = vsel %vm308, %v1254, 0.0
  %v1263 = vsel %vm308, %v1255, 0.0
  %v1264 = vsel %vm308, %v1256, 0.0
  %v1265 = vsel %vm308, %v1257, 0.0
  %v1266 = vsel %vm314, %v1258, %v1198
  %v1267 = vsel %vm314, %v1259, %v1199
  %v1268 = vsel %vm314, %v1260, %v1200
  %v1269 = vsel %vm314, %v1261, %v1201
  %v1270 = vsel %vm314, %v1262, %v1202
  %v1271 = vsel %vm314, %v1263, %v1203
  %v1272 = vsel %vm314, %v1264, %v1204
  %v1273 = vsel %vm314, %v1265, %v1205
  %v1274 = vsel %vm320, %v1266, 0.0
  %v1275 = vsel %vm320, %v1267, 0.0
  %v1276 = vsel %vm320, %v1268, 0.0
  %v1277 = vsel %vm320, %v1269, 0.0
  %v1278 = vsel %vm320, %v1270, 0.0
  %v1279 = vsel %vm320, %v1271, 0.0
  %v1280 = vsel %vm320, %v1272, 0.0
  %v1281 = vsel %vm320, %v1273, 0.0
  %v1282 = vsel %vm326, %v321, %v1214
  %v1283 = vsel %vm326, %v1274, %v1215
  %v1284 = vsel %vm326, %v1275, %v1216
  %v1285 = vsel %vm326, %v1276, %v1217
  %v1286 = vsel %vm326, %v1277, %v1218
  %v1287 = vsel %vm326, %v1278, %v1219
  %v1288 = vsel %vm326, %v1279, %v1220
  %v1289 = vsel %vm326, %v1280, %v1221
  %v1290 = vsel %vm326, %v1281, %v1222
  %vm1291 = vcmask 1045504
  %v1292 = vsel %vm1291, %v1282, 0.0
  %v1293 = vsel %vm1291, %v1283, 0.0
  %v1294 = vsel %vm1291, %v1284, 0.0
  %v1295 = vsel %vm1291, %v1285, 0.0
  %v1296 = vsel %vm1291, %v1286, 0.0
  %v1297 = vsel %vm1291, %v1287, 0.0
  %v1298 = vsel %vm1291, %v1288, 0.0
  %v1299 = vsel %vm1291, %v1289, 0.0
  %v1300 = vsel %vm1291, %v1290, 0.0
  %vm1301 = vcmask 1046528
  %v1302 = vsel %vm1301, %v1292, %v1232
  %v1303 = vsel %vm1301, %v1293, %v1233
  %v1304 = vsel %vm1301, %v1294, %v1234
  %v1305 = vsel %vm1301, %v1295, %v1235
  %v1306 = vsel %vm1301, %v1296, %v1236
  %v1307 = vsel %vm1301, %v1297, %v1237
  %v1308 = vsel %vm1301, %v1298, %v1238
  %v1309 = vsel %vm1301, %v1299, %v1239
  %v1310 = vsel %vm1301, %v1300, %v1240
  %v1320 = vrot.slane %v1302, 1
  %v1321 = vrot.slane 0.0, 1
  %v1322 = vsel %vm1301, %v1320, %v1321
  %v1323 = vrot.slane %v1303, 1
  %v1324 = vsel %vm1301, %v1323, %v1321
  %v1325 = vrot.slane %v1304, 1
  %v1326 = vsel %vm1301, %v1325, %v1321
  %v1327 = vrot.slane %v1305, 1
  %v1328 = vsel %vm1301, %v1327, %v1321
  %v1329 = vrot.slane %v1306, 1
  %v1330 = vsel %vm1301, %v1329, %v1321
  %v1331 = vrot.slane %v1307, 1
  %v1332 = vsel %vm1301, %v1331, %v1321
  %v1333 = vrot.slane %v1308, 1
  %v1334 = vsel %vm1301, %v1333, %v1321
  %v1335 = vrot.slane %v1309, 1
  %v1336 = vsel %vm1301, %v1335, %v1321
  %v1337 = vrot.slane %v1310, 1
  %v1338 = vsel %vm1301, %v1337, %v1321
  %v1339 = vrot.slane %v1302, 2
  %v1340 = vrot.slane 0.0, 2
  %v1341 = vsel %vm1291, %v1339, %v1340
  %v1342 = vrot.slane %v1303, 2
  %v1343 = vsel %vm1291, %v1342, %v1340
  %v1344 = vrot.slane %v1304, 2
  %v1345 = vsel %vm1291, %v1344, %v1340
  %v1346 = vrot.slane %v1305, 2
  %v1347 = vsel %vm1291, %v1346, %v1340
  %v1348 = vrot.slane %v1306, 2
  %v1349 = vsel %vm1291, %v1348, %v1340
  %v1350 = vrot.slane %v1307, 2
  %v1351 = vsel %vm1291, %v1350, %v1340
  %v1352 = vrot.slane %v1308, 2
  %v1353 = vsel %vm1291, %v1352, %v1340
  %v1354 = vrot.slane %v1309, 2
  %v1355 = vsel %vm1291, %v1354, %v1340
  %v1356 = vrot.slane %v1310, 2
  %v1357 = vsel %vm1291, %v1356, %v1340
  %1358 = vrot.lane.b32.xlu0 %v1322, 16
  %v1359 = vpop.permute.xlu0 %1358
  %1360 = vrot.lane.b32.xlu0 %v1324, 16
  %v1361 = vpop.permute.xlu0 %1360
  %1362 = vrot.lane.b32.xlu0 %v1326, 16
  %v1363 = vpop.permute.xlu0 %1362
  %1364 = vrot.lane.b32.xlu0 %v1328, 16
  %v1365 = vpop.permute.xlu0 %1364
  %1366 = vrot.lane.b32.xlu0 %v1330, 16
  %v1367 = vpop.permute.xlu0 %1366
  %1368 = vrot.lane.b32.xlu0 %v1332, 16
  %v1369 = vpop.permute.xlu0 %1368
  %1370 = vrot.lane.b32.xlu0 %v1334, 16
  %v1371 = vpop.permute.xlu0 %1370
  %1372 = vrot.lane.b32.xlu0 %v1336, 16
  %v1373 = vpop.permute.xlu0 %1372
  %1374 = vrot.lane.b32.xlu0 %v1338, 16
  %v1375 = vpop.permute.xlu0 %1374
  %1385 = vrot.lane.b32.xlu0 %v1341, 32
  %v1386 = vpop.permute.xlu0 %1385
  %1387 = vrot.lane.b32.xlu0 %v1343, 32
  %v1388 = vpop.permute.xlu0 %1387
  %1389 = vrot.lane.b32.xlu0 %v1345, 32
  %v1390 = vpop.permute.xlu0 %1389
  %1391 = vrot.lane.b32.xlu0 %v1347, 32
  %v1392 = vpop.permute.xlu0 %1391
  %1393 = vrot.lane.b32.xlu0 %v1349, 32
  %v1394 = vpop.permute.xlu0 %1393
  %1395 = vrot.lane.b32.xlu0 %v1351, 32
  %v1396 = vpop.permute.xlu0 %1395
  %1397 = vrot.lane.b32.xlu0 %v1353, 32
  %v1398 = vpop.permute.xlu0 %1397
  %1399 = vrot.lane.b32.xlu0 %v1355, 32
  %v1400 = vpop.permute.xlu0 %1399
  %1401 = vrot.lane.b32.xlu0 %v1357, 32
  %v1402 = vpop.permute.xlu0 %1401
  %1412 = vrot.lane.b32.xlu0 %v1303, 48
  %v1413 = vpop.permute.xlu0 %1412
  %1414 = vrot.lane.b32.xlu0 %v1302, 48
  %v1415 = vpop.permute.xlu0 %1414
  %1416 = vrot.lane.b32.xlu0 %v1304, 48
  %v1417 = vpop.permute.xlu0 %1416
  %1418 = vrot.lane.b32.xlu0 %v1305, 48
  %v1419 = vpop.permute.xlu0 %1418
  %1420 = vrot.lane.b32.xlu0 %v1306, 48
  %v1421 = vpop.permute.xlu0 %1420
  %1422 = vrot.lane.b32.xlu0 %v1307, 48
  %v1423 = vpop.permute.xlu0 %1422
  %1424 = vrot.lane.b32.xlu0 %v1308, 48
  %v1425 = vpop.permute.xlu0 %1424
  %1426 = vrot.lane.b32.xlu0 %v1309, 48
  %v1427 = vpop.permute.xlu0 %1426
  %1428 = vrot.lane.b32.xlu0 %v1310, 48
  %v1429 = vpop.permute.xlu0 %1428
  %1439 = vrot.lane.b32.xlu0 %v1324, 64
  %v1440 = vpop.permute.xlu0 %1439
  %1441 = vrot.lane.b32.xlu0 %v1322, 64
  %v1442 = vpop.permute.xlu0 %1441
  %1443 = vrot.lane.b32.xlu0 %v1326, 64
  %v1444 = vpop.permute.xlu0 %1443
  %1445 = vrot.lane.b32.xlu0 %v1328, 64
  %v1446 = vpop.permute.xlu0 %1445
  %1447 = vrot.lane.b32.xlu0 %v1330, 64
  %v1448 = vpop.permute.xlu0 %1447
  %1449 = vrot.lane.b32.xlu0 %v1332, 64
  %v1450 = vpop.permute.xlu0 %1449
  %1451 = vrot.lane.b32.xlu0 %v1334, 64
  %v1452 = vpop.permute.xlu0 %1451
  %1453 = vrot.lane.b32.xlu0 %v1336, 64
  %v1454 = vpop.permute.xlu0 %1453
  %1455 = vrot.lane.b32.xlu0 %v1338, 64
  %v1456 = vpop.permute.xlu0 %1455
  %1466 = vrot.lane.b32.xlu0 %v1343, 80
  %v1467 = vpop.permute.xlu0 %1466
  %1468 = vrot.lane.b32.xlu0 %v1341, 80
  %v1469 = vpop.permute.xlu0 %1468
  %1470 = vrot.lane.b32.xlu0 %v1345, 80
  %v1471 = vpop.permute.xlu0 %1470
  %1472 = vrot.lane.b32.xlu0 %v1347, 80
  %v1473 = vpop.permute.xlu0 %1472
  %1474 = vrot.lane.b32.xlu0 %v1349, 80
  %v1475 = vpop.permute.xlu0 %1474
  %1476 = vrot.lane.b32.xlu0 %v1351, 80
  %v1477 = vpop.permute.xlu0 %1476
  %1478 = vrot.lane.b32.xlu0 %v1353, 80
  %v1479 = vpop.permute.xlu0 %1478
  %1480 = vrot.lane.b32.xlu0 %v1355, 80
  %v1481 = vpop.permute.xlu0 %1480
  %1482 = vrot.lane.b32.xlu0 %v1357, 80
  %v1483 = vpop.permute.xlu0 %1482
  %1493 = vrot.lane.b32.xlu0 %v1302, 96
  %v1494 = vpop.permute.xlu0 %1493
  %1495 = vrot.lane.b32.xlu0 %v1304, 96
  %v1496 = vpop.permute.xlu0 %1495
  %1497 = vrot.lane.b32.xlu0 %v1305, 96
  %v1498 = vpop.permute.xlu0 %1497
  %1499 = vrot.lane.b32.xlu0 %v1306, 96
  %v1500 = vpop.permute.xlu0 %1499
  %1501 = vrot.lane.b32.xlu0 %v1308, 96
  %v1502 = vpop.permute.xlu0 %1501
  %1503 = vrot.lane.b32.xlu0 %v1309, 96
  %v1504 = vpop.permute.xlu0 %1503
  %1505 = vrot.lane.b32.xlu0 %v1310, 96
  %v1506 = vpop.permute.xlu0 %1505
  %1514 = vrot.lane.b32.xlu0 %v1322, 112
  %v1515 = vpop.permute.xlu0 %1514
  %1516 = vrot.lane.b32.xlu0 %v1326, 112
  %v1517 = vpop.permute.xlu0 %1516
  %1518 = vrot.lane.b32.xlu0 %v1328, 112
  %v1519 = vpop.permute.xlu0 %1518
  %1520 = vrot.lane.b32.xlu0 %v1330, 112
  %v1521 = vpop.permute.xlu0 %1520
  %1522 = vrot.lane.b32.xlu0 %v1334, 112
  %v1523 = vpop.permute.xlu0 %1522
  %1524 = vrot.lane.b32.xlu0 %v1336, 112
  %v1525 = vpop.permute.xlu0 %1524
  %1526 = vrot.lane.b32.xlu0 %v1338, 112
  %v1527 = vpop.permute.xlu0 %1526
  %v1535 = vsel %vm495, %v1302, %v1359
  %v1536 = vsel %vm495, %v1303, %v1361
  %v1537 = vsel %vm495, %v1304, %v1363
  %v1538 = vsel %vm495, %v1305, %v1365
  %v1539 = vsel %vm495, %v1306, %v1367
  %v1540 = vsel %vm495, %v1307, %v1369
  %v1541 = vsel %vm495, %v1308, %v1371
  %v1542 = vsel %vm495, %v1309, %v1373
  %v1543 = vsel %vm495, %v1310, %v1375
  %v1544 = vsel %vm98, %v1535, %v1386
  %v1545 = vsel %vm98, %v1536, %v1388
  %v1546 = vsel %vm98, %v1537, %v1390
  %v1547 = vsel %vm98, %v1538, %v1392
  %v1548 = vsel %vm98, %v1539, %v1394
  %v1549 = vsel %vm98, %v1540, %v1396
  %v1550 = vsel %vm98, %v1541, %v1398
  %v1551 = vsel %vm98, %v1542, %v1400
  %v1552 = vsel %vm98, %v1543, %v1402
  %v1553 = vsel %vm504, %v1544, %v1413
  %v1554 = vsel %vm504, %v1545, %v1415
  %v1555 = vsel %vm504, %v1544, %v1417
  %v1556 = vsel %vm504, %v1546, %v1415
  %v1557 = vsel %vm504, %v1544, %v1419
  %v1558 = vsel %vm504, %v1547, %v1415
  %v1559 = vsel %vm504, %v1544, %v1421
  %v1560 = vsel %vm504, %v1548, %v1415
  %v1561 = vsel %vm504, %v1544, %v1423
  %v1562 = vsel %vm504, %v1549, %v1415
  %v1563 = vsel %vm504, %v1544, %v1425
  %v1564 = vsel %vm504, %v1550, %v1415
  %v1565 = vsel %vm504, %v1544, %v1427
  %v1566 = vsel %vm504, %v1551, %v1415
  %v1567 = vsel %vm504, %v1544, %v1429
  %v1568 = vsel %vm504, %v1552, %v1415
  %v1569 = vsel %vm509, %v1553, %v1440
  %v1570 = vsel %vm509, %v1554, %v1442
  %v1571 = vsel %vm509, %v1555, %v1444
  %v1572 = vsel %vm509, %v1556, %v1442
  %v1573 = vsel %vm509, %v1557, %v1446
  %v1574 = vsel %vm509, %v1558, %v1442
  %v1575 = vsel %vm509, %v1559, %v1448
  %v1576 = vsel %vm509, %v1560, %v1442
  %v1577 = vsel %vm509, %v1561, %v1450
  %v1578 = vsel %vm509, %v1562, %v1442
  %v1579 = vsel %vm509, %v1563, %v1452
  %v1580 = vsel %vm509, %v1564, %v1442
  %v1581 = vsel %vm509, %v1565, %v1454
  %v1582 = vsel %vm509, %v1566, %v1442
  %v1583 = vsel %vm509, %v1567, %v1456
  %v1584 = vsel %vm509, %v1568, %v1442
  %v1585 = vsel %vm514, %v1569, %v1467
  %v1586 = vsel %vm514, %v1570, %v1469
  %v1587 = vsel %vm514, %v1571, %v1471
  %v1588 = vsel %vm514, %v1572, %v1469
  %v1589 = vsel %vm514, %v1573, %v1473
  %v1590 = vsel %vm514, %v1574, %v1469
  %v1591 = vsel %vm514, %v1575, %v1475
  %v1592 = vsel %vm514, %v1576, %v1469
  %v1593 = vsel %vm514, %v1577, %v1477
  %v1594 = vsel %vm514, %v1578, %v1469
  %v1595 = vsel %vm514, %v1579, %v1479
  %v1596 = vsel %vm514, %v1580, %v1469
  %v1597 = vsel %vm514, %v1581, %v1481
  %v1598 = vsel %vm514, %v1582, %v1469
  %v1599 = vsel %vm514, %v1583, %v1483
  %v1600 = vsel %vm514, %v1584, %v1469
  %v1601 = vsel %vm519, %v1585, %v1494
  %v1602 = vsel %vm519, %v1586, %v1496
  %v1603 = vsel %vm519, %v1587, %v1494
  %v1604 = vsel %vm519, %v1588, %v1498
  %v1605 = vsel %vm519, %v1589, %v1494
  %v1606 = vsel %vm519, %v1590, %v1500
  %v1607 = vsel %vm519, %v1591, %v1494
  %v1608 = vsel %vm519, %v1592, %v1494
  %v1609 = vsel %vm519, %v1593, %v1494
  %v1610 = vsel %vm519, %v1594, %v1502
  %v1611 = vsel %vm519, %v1595, %v1494
  %v1612 = vsel %vm519, %v1596, %v1504
  %v1613 = vsel %vm519, %v1597, %v1494
  %v1614 = vsel %vm519, %v1598, %v1506
  %v1615 = vsel %vm519, %v1599, %v1494
  %v1616 = vsel %vm519, %v1600, %v1494
  %v1617 = vsel %vm524, %v1601, %v1515
  %v1618 = vsel %vm524, %v1602, %v1517
  %v1619 = vsel %vm524, %v1603, %v1515
  %v1620 = vsel %vm524, %v1604, %v1519
  %v1621 = vsel %vm524, %v1605, %v1515
  %v1622 = vsel %vm524, %v1606, %v1521
  %v1623 = vsel %vm524, %v1607, %v1515
  %v1624 = vsel %vm524, %v1608, %v1515
  %v1625 = vsel %vm524, %v1609, %v1515
  %v1626 = vsel %vm524, %v1610, %v1523
  %v1627 = vsel %vm524, %v1611, %v1515
  %v1628 = vsel %vm524, %v1612, %v1525
  %v1629 = vsel %vm524, %v1613, %v1515
  %v1630 = vsel %vm524, %v1614, %v1527
  %v1631 = vsel %vm524, %v1615, %v1515
  %v1632 = vsel %vm524, %v1616, %v1515
  %v1634 = vlaneseq
  %v1635 = vshrl.u32 %v1634, 7
  %v1636 = vsub.s32 0, %v1635
  %v1637 = vrot.slane %v1179, %v1636
  %v1639 = vsel %vm495, %v1341, 0
  %v1641 = vsel %vm495, %v1345, 0
  %v1643 = vsel %vm495, %v1347, 0
  %v1645 = vsel %vm495, %v1349, 0
  %v1647 = vsel %vm495, %v1353, 0
  %v1649 = vsel %vm495, %v1355, 0
  %v1651 = vsel %vm495, %v1357, 0
  %1653 = vmatprep.subr.mxu0 0.0
  %1654 = vmatpush1.msra.mxu0 %v1161
  %1655 = vmatprep.subr.mxu0 0.0
  %1656 = vmatpush1.msra.mxu0 %v1162
  %1657 = vmatprep.subr.mxu0 0.0
  %1658 = vmatpush1.msra.mxu0 %v1163
  %1659 = vmatprep.subr.mxu0 0.0
  %1660 = vmatpush1.msra.mxu0 %v1164
  %1661 = vmatprep.subr.mxu0 0.0
  %1662 = vmatpush1.msra.mxu0 %v1165
  %1663 = vmatprep.subr.mxu0 0.0
  %1664 = vmatpush1.msra.mxu0 %v1166
  %1665 = vmatprep.subr.mxu0 0.0
  %1666 = vmatpush1.msra.mxu0 %v1167
  %1667 = vmatprep.subr.mxu0 0.0
  %1668 = vmatpush1.msra.mxu0 %v1168
  %1669 = vmatprep.subr.mxu0 0.0
  %1670 = vmatpush1.msra.mxu0 %v1169
  %1671 = vmatprep.subr.mxu0 0.0
  %1672 = vmatpush1.msra.mxu0 %v1170
  %1673 = vmatprep.subr.mxu0 0.0
  %1674 = vmatpush1.msra.mxu0 %v1171
  %1675 = vmatprep.subr.mxu0 0.0
  %1676 = vmatpush1.msra.mxu0 %v1172
  %1677 = vmatprep.subr.mxu0 0.0
  %1678 = vmatpush1.msra.mxu0 %v1173
  %1679 = vmatprep.subr.mxu0 0.0
  %1680 = vmatpush1.msra.mxu0 %v1174
  %1681 = vmatprep.subr.mxu0 0.0
  %1682 = vmatpush1.msra.mxu0 %v1175
  %1683 = vmatprep.subr.mxu0 0.0
  %1684 = vmatpush1.msra.mxu0 %v1176
  %1685 = vmatprep.subr.mxu0 0.0
  %1686 = vmatpush1.msra.mxu0 %v1177
  %1687 = vmatprep.subr.mxu0 0.0
  %1688 = vmatpush1.msra.mxu0 %v1178
  %1689 = vmatprep.subr.mxu0 0.0
  %1690 = vmatpush1.msra.mxu0 0.0
  %1691 = vmatprep.subr.mxu0 0.0
  %1692 = vmatpush1.msra.mxu0 0.0
  %1693 = vmatprep.subr.mxu0 0.0
  %1694 = vmatpush1.msra.mxu0 0.0
  %1695 = vmatprep.subr.mxu0 0.0
  %1696 = vmatpush1.msra.mxu0 0.0
  %1697 = vmatprep.subr.mxu0 0.0
  %1698 = vmatpush1.msra.mxu0 0.0
  %1699 = vmatprep.subr.mxu0 0.0
  %1700 = vmatpush1.msra.mxu0 0.0
  %1701 = vmatprep.subr.mxu0 0.0
  %1702 = vmatpush1.msra.mxu0 0.0
  %1703 = vmatprep.subr.mxu0 0.0
  %1704 = vmatpush1.msra.mxu0 0.0
  %1705 = vmatprep.subr.mxu0 0.0
  %1706 = vmatpush1.msra.mxu0 0.0
  %1707 = vmatprep.subr.mxu0 0.0
  %1708 = vmatpush1.msra.mxu0 0.0
  %1709 = vmatprep.subr.mxu0 0.0
  %1710 = vmatpush1.msra.mxu0 0.0
  %1711 = vmatprep.subr.mxu0 0.0
  %1712 = vmatpush1.msra.mxu0 0.0
  %1713 = vmatprep.subr.mxu0 0.0
  %1714 = vmatpush1.msra.mxu0 0.0
  %1715 = vmatprep.subr.mxu0 0.0
  %1716 = vmatpush1.msra.mxu0 0.0
  %1717 = vmatprep.mubr.f32.mxu0 %v1639
  %1718 = vmatmul.mubr.f32.gmra.mrb[0].mxu0 %v1617
  %v1719 = vpop.f32.mrb[0].mxu0
  %v1720 = vadd.f32 %v1637, %v1719
  %v1721 = vpop.f32.mrb[0].mxu0
  %1722 = vmatprep.mubr.f32.mxu0 %v1641
  %1723 = vmatmul.mubr.f32.gmra.mrb[0].mxu0 %v1618
  %v1724 = vpop.f32.mrb[0].mxu0
  %v1725 = vadd.f32 %v1637, %v1724
  %v1726 = vpop.f32.mrb[0].mxu0
  %1727 = vmatprep.mubr.f32.mxu0 %v1639
  %1728 = vmatmul.mubr.f32.gmra.mrb[0].mxu0 %v1619
  %v1729 = vpop.f32.mrb[0].mxu0
  %v1730 = vadd.f32 %v1637, %v1729
  %v1731 = vpop.f32.mrb[0].mxu0
  %1732 = vmatprep.mubr.f32.mxu0 %v1643
  %1733 = vmatmul.mubr.f32.gmra.mrb[0].mxu0 %v1620
  %v1734 = vpop.f32.mrb[0].mxu0
  %v1735 = vadd.f32 %v1637, %v1734
  %v1736 = vpop.f32.mrb[0].mxu0
  %1737 = vmatprep.mubr.f32.mxu0 %v1639
  %1738 = vmatmul.mubr.f32.gmra.mrb[0].mxu0 %v1621
  %v1739 = vpop.f32.mrb[0].mxu0
  %v1740 = vadd.f32 %v1637, %v1739
  %v1741 = vpop.f32.mrb[0].mxu0
  %1742 = vmatprep.mubr.f32.mxu0 %v1645
  %1743 = vmatmul.mubr.f32.gmra.mrb[0].mxu0 %v1622
  %v1744 = vpop.f32.mrb[0].mxu0
  %v1745 = vadd.f32 %v1637, %v1744
  %v1746 = vpop.f32.mrb[0].mxu0
  %1747 = vmatprep.mubr.f32.mxu0 %v1639
  %1748 = vmatmul.mubr.f32.gmra.mrb[0].mxu0 %v1623
  %v1749 = vpop.f32.mrb[0].mxu0
  %v1750 = vadd.f32 %v1637, %v1749
  %v1751 = vpop.f32.mrb[0].mxu0
  %1752 = vmatprep.mubr.f32.mxu0 %v1639
  %1753 = vmatmul.mubr.f32.gmra.mrb[0].mxu0 %v1624
  %v1754 = vpop.f32.mrb[0].mxu0
  %v1755 = vadd.f32 %v1637, %v1754
  %v1756 = vpop.f32.mrb[0].mxu0
  %1757 = vmatprep.mubr.f32.mxu0 %v1639
  %1758 = vmatmul.mubr.f32.gmra.mrb[0].mxu0 %v1625
  %v1759 = vpop.f32.mrb[0].mxu0
  %v1760 = vadd.f32 %v1637, %v1759
  %v1761 = vpop.f32.mrb[0].mxu0
  %1762 = vmatprep.mubr.f32.mxu0 %v1647
  %1763 = vmatmul.mubr.f32.gmra.mrb[0].mxu0 %v1626
  %v1764 = vpop.f32.mrb[0].mxu0
  %v1765 = vadd.f32 %v1637, %v1764
  %v1766 = vpop.f32.mrb[0].mxu0
  %1767 = vmatprep.mubr.f32.mxu0 %v1639
  %1768 = vmatmul.mubr.f32.gmra.mrb[0].mxu0 %v1627
  %v1769 = vpop.f32.mrb[0].mxu0
  %v1770 = vadd.f32 %v1637, %v1769
  %v1771 = vpop.f32.mrb[0].mxu0
  %1772 = vmatprep.mubr.f32.mxu0 %v1649
  %1773 = vmatmul.mubr.f32.gmra.mrb[0].mxu0 %v1628
  %v1774 = vpop.f32.mrb[0].mxu0
  %v1775 = vadd.f32 %v1637, %v1774
  %v1776 = vpop.f32.mrb[0].mxu0
  %1777 = vmatprep.mubr.f32.mxu0 %v1639
  %1778 = vmatmul.mubr.f32.gmra.mrb[0].mxu0 %v1629
  %v1779 = vpop.f32.mrb[0].mxu0
  %v1780 = vadd.f32 %v1637, %v1779
  %v1781 = vpop.f32.mrb[0].mxu0
  %1782 = vmatprep.mubr.f32.mxu0 %v1651
  %1783 = vmatmul.mubr.f32.gmra.mrb[0].mxu0 %v1630
  %v1784 = vpop.f32.mrb[0].mxu0
  %v1785 = vadd.f32 %v1637, %v1784
  %v1786 = vpop.f32.mrb[0].mxu0
  %1787 = vmatprep.mubr.f32.mxu0 %v1639
  %1788 = vmatmul.mubr.f32.gmra.mrb[0].mxu0 %v1631
  %v1789 = vpop.f32.mrb[0].mxu0
  %v1790 = vadd.f32 %v1637, %v1789
  %v1791 = vpop.f32.mrb[0].mxu0
  %1792 = vmatprep.mubr.f32.mxu0 %v1639
  %1793 = vmatmul.mubr.f32.gmra.mrb[0].mxu0 %v1632
  %v1794 = vpop.f32.mrb[0].mxu0
  %v1795 = vadd.f32 %v1637, %v1794
  %v1796 = vpop.f32.mrb[0].mxu0
  %1797 = vdwg.mxu0
  %v1798 = vsel %vm495, %v1720, 0.0
  %v1799 = vsel %vm495, %v1725, 0.0
  %v1800 = vadd.f32 %v1798, %v1799
  %v1801 = vsel %vm495, %v1730, 0.0
  %v1802 = vadd.f32 %v1800, %v1801
  %v1803 = vsel %vm495, %v1735, 0.0
  %v1804 = vadd.f32 %v1802, %v1803
  %v1805 = vsel %vm495, %v1740, 0.0
  %v1806 = vadd.f32 %v1804, %v1805
  %v1807 = vsel %vm495, %v1745, 0.0
  %v1808 = vadd.f32 %v1806, %v1807
  %v1809 = vsel %vm495, %v1750, 0.0
  %v1810 = vadd.f32 %v1808, %v1809
  %v1811 = vsel %vm495, %v1755, 0.0
  %v1812 = vadd.f32 %v1810, %v1811
  %v1813 = vsel %vm495, %v1760, 0.0
  %v1814 = vadd.f32 %v1812, %v1813
  %v1815 = vsel %vm495, %v1765, 0.0
  %v1816 = vadd.f32 %v1814, %v1815
  %v1817 = vsel %vm495, %v1770, 0.0
  %v1818 = vadd.f32 %v1816, %v1817
  %v1819 = vsel %vm495, %v1775, 0.0
  %v1820 = vadd.f32 %v1818, %v1819
  %v1821 = vsel %vm495, %v1780, 0.0
  %v1822 = vadd.f32 %v1820, %v1821
  %v1823 = vsel %vm495, %v1785, 0.0
  %v1824 = vadd.f32 %v1822, %v1823
  %v1825 = vsel %vm495, %v1790, 0.0
  %v1826 = vadd.f32 %v1824, %v1825
  %v1827 = vsel %vm495, %v1795, 0.0
  %v1828 = vadd.f32 %v1826, %v1827
  %v1829 = vrot.slane %v1828, 4
  %v1830 = vadd.f32 %v1828, %v1829
  %v1831 = vrot.slane %v1830, 2
  %v1832 = vadd.f32 %v1830, %v1831
  %v1833 = vrot.slane %v1832, 1
  %v1834 = vadd.f32 %v1832, %v1833
  %v1835 = vmul.f32 %v1834, 0.0078125
  %v1836 = vmul.f32 %v1720, %v1720
  %v1837 = vmul.f32 %v1725, %v1725
  %v1838 = vmul.f32 %v1730, %v1730
  %v1839 = vmul.f32 %v1735, %v1735
  %v1840 = vmul.f32 %v1740, %v1740
  %v1841 = vmul.f32 %v1745, %v1745
  %v1842 = vmul.f32 %v1750, %v1750
  %v1843 = vmul.f32 %v1755, %v1755
  %v1844 = vmul.f32 %v1760, %v1760
  %v1845 = vmul.f32 %v1765, %v1765
  %v1846 = vmul.f32 %v1770, %v1770
  %v1847 = vmul.f32 %v1775, %v1775
  %v1848 = vmul.f32 %v1780, %v1780
  %v1849 = vmul.f32 %v1785, %v1785
  %v1850 = vmul.f32 %v1790, %v1790
  %v1851 = vmul.f32 %v1795, %v1795
  %v1852 = vsel %vm495, %v1836, 0.0
  %v1853 = vsel %vm495, %v1837, 0.0
  %v1854 = vadd.f32 %v1852, %v1853
  %v1855 = vsel %vm495, %v1838, 0.0
  %v1856 = vadd.f32 %v1854, %v1855
  %v1857 = vsel %vm495, %v1839, 0.0
  %v1858 = vadd.f32 %v1856, %v1857
  %v1859 = vsel %vm495, %v1840, 0.0
  %v1860 = vadd.f32 %v1858, %v1859
  %v1861 = vsel %vm495, %v1841, 0.0
  %v1862 = vadd.f32 %v1860, %v1861
  %v1863 = vsel %vm495, %v1842, 0.0
  %v1864 = vadd.f32 %v1862, %v1863
  %v1865 = vsel %vm495, %v1843, 0.0
  %v1866 = vadd.f32 %v1864, %v1865
  %v1867 = vsel %vm495, %v1844, 0.0
  %v1868 = vadd.f32 %v1866, %v1867
  %v1869 = vsel %vm495, %v1845, 0.0
  %v1870 = vadd.f32 %v1868, %v1869
  %v1871 = vsel %vm495, %v1846, 0.0
  %v1872 = vadd.f32 %v1870, %v1871
  %v1873 = vsel %vm495, %v1847, 0.0
  %v1874 = vadd.f32 %v1872, %v1873
  %v1875 = vsel %vm495, %v1848, 0.0
  %v1876 = vadd.f32 %v1874, %v1875
  %v1877 = vsel %vm495, %v1849, 0.0
  %v1878 = vadd.f32 %v1876, %v1877
  %v1879 = vsel %vm495, %v1850, 0.0
  %v1880 = vadd.f32 %v1878, %v1879
  %v1881 = vsel %vm495, %v1851, 0.0
  %v1882 = vadd.f32 %v1880, %v1881
  %v1883 = vrot.slane %v1882, 4
  %v1884 = vadd.f32 %v1882, %v1883
  %v1885 = vrot.slane %v1884, 2
  %v1886 = vadd.f32 %v1884, %v1885
  %v1887 = vrot.slane %v1886, 1
  %v1888 = vadd.f32 %v1886, %v1887
  %v1889 = vmul.f32 %v1888, 0.0078125
  %v1890 = vmul.f32 %v1835, %v1835
  %v1891 = vsub.f32 %v1889, %v1890
  %v1892 = vadd.f32 %v1891, 1e-05
  %v1893 = vrsqrt.pop %v1892
  %v1894 = vmul.f32 %v1180, %v1893
  %v1895 = vsub.f32 %v1720, %v1835
  %v1896 = vsub.f32 %v1725, %v1835
  %v1897 = vsub.f32 %v1730, %v1835
  %v1898 = vsub.f32 %v1735, %v1835
  %v1899 = vsub.f32 %v1740, %v1835
  %v1900 = vsub.f32 %v1745, %v1835
  %v1901 = vsub.f32 %v1750, %v1835
  %v1902 = vsub.f32 %v1755, %v1835
  %v1903 = vsub.f32 %v1760, %v1835
  %v1904 = vsub.f32 %v1765, %v1835
  %v1905 = vsub.f32 %v1770, %v1835
  %v1906 = vsub.f32 %v1775, %v1835
  %v1907 = vsub.f32 %v1780, %v1835
  %v1908 = vsub.f32 %v1785, %v1835
  %v1909 = vsub.f32 %v1790, %v1835
  %v1910 = vsub.f32 %v1795, %v1835
  %v1912 = vlaneseq
  %v1913 = vshrl.u32 %v1912, 7
  %v1914 = vsub.s32 0, %v1913
  %v1915 = vrot.slane %v1894, %v1914
  %v1917 = vmul.f32 %v1895, %v1915
  %v1918 = vmul.f32 %v1896, %v1915
  %v1919 = vmul.f32 %v1897, %v1915
  %v1920 = vmul.f32 %v1898, %v1915
  %v1921 = vmul.f32 %v1899, %v1915
  %v1922 = vmul.f32 %v1900, %v1915
  %v1923 = vmul.f32 %v1901, %v1915
  %v1924 = vmul.f32 %v1902, %v1915
  %v1925 = vmul.f32 %v1903, %v1915
  %v1926 = vmul.f32 %v1904, %v1915
  %v1927 = vmul.f32 %v1905, %v1915
  %v1928 = vmul.f32 %v1906, %v1915
  %v1929 = vmul.f32 %v1907, %v1915
  %v1930 = vmul.f32 %v1908, %v1915
  %v1931 = vmul.f32 %v1909, %v1915
  %v1932 = vmul.f32 %v1910, %v1915
  %v1934 = vlaneseq
  %v1935 = vshrl.u32 %v1934, 7
  %v1936 = vsub.s32 0, %v1935
  %v1937 = vrot.slane %v1181, %v1936
  %v1939 = vadd.f32 %v1917, %v1937
  %v1940 = vadd.f32 %v1918, %v1937
  %v1941 = vadd.f32 %v1919, %v1937
  %v1942 = vadd.f32 %v1920, %v1937
  %v1943 = vadd.f32 %v1921, %v1937
  %v1944 = vadd.f32 %v1922, %v1937
  %v1945 = vadd.f32 %v1923, %v1937
  %v1946 = vadd.f32 %v1924, %v1937
  %v1947 = vadd.f32 %v1925, %v1937
  %v1948 = vadd.f32 %v1926, %v1937
  %v1949 = vadd.f32 %v1927, %v1937
  %v1950 = vadd.f32 %v1928, %v1937
  %v1951 = vadd.f32 %v1929, %v1937
  %v1952 = vadd.f32 %v1930, %v1937
  %v1953 = vadd.f32 %v1931, %v1937
  %v1954 = vadd.f32 %v1932, %v1937
  %v1955 = vmax.f32 %v1939, 0.0
  %v1956 = vmax.f32 %v1940, 0.0
  %v1957 = vmax.f32 %v1941, 0.0
  %v1958 = vmax.f32 %v1942, 0.0
  %v1959 = vmax.f32 %v1943, 0.0
  %v1960 = vmax.f32 %v1944, 0.0
  %v1961 = vmax.f32 %v1945, 0.0
  %v1962 = vmax.f32 %v1946, 0.0
  %v1963 = vmax.f32 %v1947, 0.0
  %v1964 = vmax.f32 %v1948, 0.0
  %v1965 = vmax.f32 %v1949, 0.0
  %v1966 = vmax.f32 %v1950, 0.0
  %v1967 = vmax.f32 %v1951, 0.0
  %v1968 = vmax.f32 %v1952, 0.0
  %v1969 = vmax.f32 %v1953, 0.0
  %v1970 = vmax.f32 %v1954, 0.0
  %v1971 = vld [vmem:[%s17] sm:$0xff]
  %v1972 = vld [vmem:[%s17 + $0x8] sm:$0xff]
  %v1973 = vld [vmem:[%s17 + $0x10] sm:$0xff]
  %v1974 = vld [vmem:[%s17 + $0x18] sm:$0xff]
  %v1975 = vld [vmem:[%s17 + $0x20] sm:$0xff]
  %v1976 = vld [vmem:[%s17 + $0x28] sm:$0xff]
  %v1977 = vld [vmem:[%s17 + $0x30] sm:$0xff]
  %v1978 = vld [vmem:[%s17 + $0x38] sm:$0xff]
  %v1979 = vld [vmem:[%s17 + $0x40] sm:$0xff]
  %v1980 = vld [vmem:[%s17 + $0x48] sm:$0xff]
  %v1981 = vld [vmem:[%s17 + $0x50] sm:$0xff]
  %v1982 = vld [vmem:[%s17 + $0x58] sm:$0xff]
  %v1983 = vld [vmem:[%s17 + $0x60] sm:$0xff]
  %v1984 = vld [vmem:[%s17 + $0x68] sm:$0xff]
  %v1985 = vld [vmem:[%s17 + $0x70] sm:$0xff]
  %v1986 = vld [vmem:[%s17 + $0x78] sm:$0xff]
  %v1987 = vld [vmem:[%s17 + $0x80] sm:$0xff]
  %v1988 = vld [vmem:[%s17 + $0x88] sm:$0xff]
  %v1989 = vld [vmem:[%s18] sm:$0x1]
  %v1990 = vld [vmem:[%s19] sm:$0x1]
  %v1991 = vld [vmem:[%s20] sm:$0x1]
  %v2008 = vrot.slane %v1955, 7
  %v2009 = vrot.slane %v1956, 7
  %v2010 = vrot.slane %v1957, 7
  %v2011 = vrot.slane %v1958, 7
  %v2012 = vrot.slane %v1959, 7
  %v2013 = vrot.slane %v1960, 7
  %v2014 = vrot.slane %v1961, 7
  %v2015 = vrot.slane %v1962, 7
  %v2016 = vrot.slane %v1963, 7
  %v2017 = vrot.slane %v1964, 7
  %v2018 = vrot.slane %v1965, 7
  %v2019 = vrot.slane %v1966, 7
  %v2020 = vrot.slane %v1967, 7
  %v2021 = vrot.slane %v1968, 7
  %v2022 = vrot.slane %v1969, 7
  %v2023 = vrot.slane %v1970, 7
  %v2040 = vsel %vm252, 0.0, %v2008
  %v2041 = vsel %vm252, 0.0, %v2009
  %v2042 = vsel %vm252, 0.0, %v2010
  %v2043 = vsel %vm252, 0.0, %v2011
  %v2044 = vsel %vm252, 0.0, %v2012
  %v2045 = vsel %vm252, 0.0, %v2013
  %v2046 = vsel %vm252, 0.0, %v2014
  %v2047 = vsel %vm252, 0.0, %v2015
  %v2048 = vsel %vm252, 0.0, %v2016
  %v2049 = vsel %vm252, 0.0, %v2017
  %v2050 = vsel %vm252, 0.0, %v2018
  %v2051 = vsel %vm252, 0.0, %v2019
  %v2052 = vsel %vm252, 0.0, %v2020
  %v2053 = vsel %vm252, 0.0, %v2021
  %v2054 = vsel %vm252, 0.0, %v2022
  %v2055 = vsel %vm252, 0.0, %v2023
  %v2056 = vsel %vm252, %v283, 0.0
  %v2057 = vsel %vm252, %v2008, 0.0
  %v2058 = vsel %vm252, %v2009, 0.0
  %v2059 = vsel %vm252, %v2010, 0.0
  %v2060 = vsel %vm252, %v2011, 0.0
  %v2061 = vsel %vm252, %v2012, 0.0
  %v2062 = vsel %vm252, %v2013, 0.0
  %v2063 = vsel %vm252, %v2014, 0.0
  %v2064 = vsel %vm252, %v2015, 0.0
  %v2065 = vsel %vm252, %v2016, 0.0
  %v2066 = vsel %vm252, %v2017, 0.0
  %v2067 = vsel %vm252, %v2018, 0.0
  %v2068 = vsel %vm252, %v2019, 0.0
  %v2069 = vsel %vm252, %v2020, 0.0
  %v2070 = vsel %vm252, %v2021, 0.0
  %v2071 = vsel %vm252, %v2022, 0.0
  %v2072 = vsel %vm252, %v2023, 0.0
  %v2103 = vrot.slane %v303, 1
  %v2104 = vrot.slane %v2056, 1
  %v2105 = vsel %vm1301, %v2103, %v2104
  %v2106 = vrot.slane %v2040, 1
  %v2107 = vrot.slane %v2057, 1
  %v2108 = vsel %vm1301, %v2106, %v2107
  %v2109 = vrot.slane %v2041, 1
  %v2110 = vrot.slane %v2058, 1
  %v2111 = vsel %vm1301, %v2109, %v2110
  %v2112 = vrot.slane %v2042, 1
  %v2113 = vrot.slane %v2059, 1
  %v2114 = vsel %vm1301, %v2112, %v2113
  %v2115 = vrot.slane %v2043, 1
  %v2116 = vrot.slane %v2060, 1
  %v2117 = vsel %vm1301, %v2115, %v2116
  %v2118 = vrot.slane %v2044, 1
  %v2119 = vrot.slane %v2061, 1
  %v2120 = vsel %vm1301, %v2118, %v2119
  %v2121 = vrot.slane %v2045, 1
  %v2122 = vrot.slane %v2062, 1
  %v2123 = vsel %vm1301, %v2121, %v2122
  %v2124 = vrot.slane %v2046, 1
  %v2125 = vrot.slane %v2063, 1
  %v2126 = vsel %vm1301, %v2124, %v2125
  %v2127 = vrot.slane %v2048, 1
  %v2128 = vrot.slane %v2065, 1
  %v2129 = vsel %vm1301, %v2127, %v2128
  %v2130 = vrot.slane %v2049, 1
  %v2131 = vrot.slane %v2066, 1
  %v2132 = vsel %vm1301, %v2130, %v2131
  %v2133 = vrot.slane %v2050, 1
  %v2134 = vrot.slane %v2067, 1
  %v2135 = vsel %vm1301, %v2133, %v2134
  %v2136 = vrot.slane %v2051, 1
  %v2137 = vrot.slane %v2068, 1
  %v2138 = vsel %vm1301, %v2136, %v2137
  %v2139 = vrot.slane %v2052, 1
  %v2140 = vrot.slane %v2069, 1
  %v2141 = vsel %vm1301, %v2139, %v2140
  %v2142 = vrot.slane %v2053, 1
  %v2143 = vrot.slane %v2070, 1
  %v2144 = vsel %vm1301, %v2142, %v2143
  %v2145 = vrot.slane %v2054, 1
  %v2146 = vrot.slane %v2071, 1
  %v2147 = vsel %vm1301, %v2145, %v2146
  %v2148 = vrot.slane %v303, 2
  %v2149 = vrot.slane %v2056, 2
  %v2150 = vsel %vm1291, %v2148, %v2149
  %v2151 = vrot.slane %v2040, 2
  %v2152 = vrot.slane %v2057, 2
  %v2153 = vsel %vm1291, %v2151, %v2152
  %v2154 = vrot.slane %v2041, 2
  %v2155 = vrot.slane %v2058, 2
  %v2156 = vsel %vm1291, %v2154, %v2155
  %v2157 = vrot.slane %v2042, 2
  %v2158 = vrot.slane %v2059, 2
  %v2159 = vsel %vm1291, %v2157, %v2158
  %v2160 = vrot.slane %v2043, 2
  %v2161 = vrot.slane %v2060, 2
  %v2162 = vsel %vm1291, %v2160, %v2161
  %v2163 = vrot.slane %v2044, 2
  %v2164 = vrot.slane %v2061, 2
  %v2165 = vsel %vm1291, %v2163, %v2164
  %v2166 = vrot.slane %v2045, 2
  %v2167 = vrot.slane %v2062, 2
  %v2168 = vsel %vm1291, %v2166, %v2167
  %v2169 = vrot.slane %v2046, 2
  %v2170 = vrot.slane %v2063, 2
  %v2171 = vsel %vm1291, %v2169, %v2170
  %v2172 = vrot.slane %v2048, 2
  %v2173 = vrot.slane %v2065, 2
  %v2174 = vsel %vm1291, %v2172, %v2173
  %v2175 = vrot.slane %v2049, 2
  %v2176 = vrot.slane %v2066, 2
  %v2177 = vsel %vm1291, %v2175, %v2176
  %v2178 = vrot.slane %v2050, 2
  %v2179 = vrot.slane %v2067, 2
  %v2180 = vsel %vm1291, %v2178, %v2179
  %v2181 = vrot.slane %v2051, 2
  %v2182 = vrot.slane %v2068, 2
  %v2183 = vsel %vm1291, %v2181, %v2182
  %v2184 = vrot.slane %v2052, 2
  %v2185 = vrot.slane %v2069, 2
  %v2186 = vsel %vm1291, %v2184, %v2185
  %v2187 = vrot.slane %v2053, 2
  %v2188 = vrot.slane %v2070, 2
  %v2189 = vsel %vm1291, %v2187, %v2188
  %v2190 = vrot.slane %v2054, 2
  %v2191 = vrot.slane %v2071, 2
  %v2192 = vsel %vm1291, %v2190, %v2191
  %v2197 = vrot.slane %v2047, 1
  %v2198 = vrot.slane %v2064, 1
  %v2199 = vsel %vm1301, %v2197, %v2198
  %v2200 = vrot.slane %v2055, 1
  %v2201 = vrot.slane %v2072, 1
  %v2202 = vsel %vm1301, %v2200, %v2201
  %v2203 = vrot.slane %v2047, 2
  %v2204 = vrot.slane %v2064, 2
  %v2205 = vsel %vm1291, %v2203, %v2204
  %v2206 = vrot.slane %v2055, 2
  %v2207 = vrot.slane %v2072, 2
  %v2208 = vsel %vm1291, %v2206, %v2207
  %2209 = vrot.lane.b32.xlu0 %v2105, 16
  %v2210 = vpop.permute.xlu0 %2209
  %2211 = vrot.lane.b32.xlu0 %v2108, 16
  %v2212 = vpop.permute.xlu0 %2211
  %2213 = vrot.lane.b32.xlu0 %v2111, 16
  %v2214 = vpop.permute.xlu0 %2213
  %2215 = vrot.lane.b32.xlu0 %v2114, 16
  %v2216 = vpop.permute.xlu0 %2215
  %2217 = vrot.lane.b32.xlu0 %v2117, 16
  %v2218 = vpop.permute.xlu0 %2217
  %2219 = vrot.lane.b32.xlu0 %v2120, 16
  %v2220 = vpop.permute.xlu0 %2219
  %2221 = vrot.lane.b32.xlu0 %v2123, 16
  %v2222 = vpop.permute.xlu0 %2221
  %2223 = vrot.lane.b32.xlu0 %v2126, 16
  %v2224 = vpop.permute.xlu0 %2223
  %2225 = vrot.lane.b32.xlu0 %v2129, 16
  %v2226 = vpop.permute.xlu0 %2225
  %2227 = vrot.lane.b32.xlu0 %v2132, 16
  %v2228 = vpop.permute.xlu0 %2227
  %2229 = vrot.lane.b32.xlu0 %v2135, 16
  %v2230 = vpop.permute.xlu0 %2229
  %2231 = vrot.lane.b32.xlu0 %v2138, 16
  %v2232 = vpop.permute.xlu0 %2231
  %2233 = vrot.lane.b32.xlu0 %v2141, 16
  %v2234 = vpop.permute.xlu0 %2233
  %2235 = vrot.lane.b32.xlu0 %v2144, 16
  %v2236 = vpop.permute.xlu0 %2235
  %2237 = vrot.lane.b32.xlu0 %v2147, 16
  %v2238 = vpop.permute.xlu0 %2237
  %2254 = vrot.lane.b32.xlu0 %v2150, 32
  %v2255 = vpop.permute.xlu0 %2254
  %2256 = vrot.lane.b32.xlu0 %v2153, 32
  %v2257 = vpop.permute.xlu0 %2256
  %2258 = vrot.lane.b32.xlu0 %v2156, 32
  %v2259 = vpop.permute.xlu0 %2258
  %2260 = vrot.lane.b32.xlu0 %v2159, 32
  %v2261 = vpop.permute.xlu0 %2260
  %2262 = vrot.lane.b32.xlu0 %v2162, 32
  %v2263 = vpop.permute.xlu0 %2262
  %2264 = vrot.lane.b32.xlu0 %v2165, 32
  %v2265 = vpop.permute.xlu0 %2264
  %2266 = vrot.lane.b32.xlu0 %v2168, 32
  %v2267 = vpop.permute.xlu0 %2266
  %2268 = vrot.lane.b32.xlu0 %v2171, 32
  %v2269 = vpop.permute.xlu0 %2268
  %2270 = vrot.lane.b32.xlu0 %v2174, 32
  %v2271 = vpop.permute.xlu0 %2270
  %2272 = vrot.lane.b32.xlu0 %v2177, 32
  %v2273 = vpop.permute.xlu0 %2272
  %2274 = vrot.lane.b32.xlu0 %v2180, 32
  %v2275 = vpop.permute.xlu0 %2274
  %2276 = vrot.lane.b32.xlu0 %v2183, 32
  %v2277 = vpop.permute.xlu0 %2276
  %2278 = vrot.lane.b32.xlu0 %v2186, 32
  %v2279 = vpop.permute.xlu0 %2278
  %2280 = vrot.lane.b32.xlu0 %v2189, 32
  %v2281 = vpop.permute.xlu0 %2280
  %2282 = vrot.lane.b32.xlu0 %v2192, 32
  %v2283 = vpop.permute.xlu0 %2282
  %2299 = vrot.lane.b32.xlu0 %v2040, 48
  %v2300 = vpop.permute.xlu0 %2299
  %2301 = vrot.lane.b32.xlu0 %v2041, 48
  %v2302 = vpop.permute.xlu0 %2301
  %2303 = vrot.lane.b32.xlu0 %v2042, 48
  %v2304 = vpop.permute.xlu0 %2303
  %2305 = vrot.lane.b32.xlu0 %v2043, 48
  %v2306 = vpop.permute.xlu0 %2305
  %2307 = vrot.lane.b32.xlu0 %v2044, 48
  %v2308 = vpop.permute.xlu0 %2307
  %2309 = vrot.lane.b32.xlu0 %v2045, 48
  %v2310 = vpop.permute.xlu0 %2309
  %2311 = vrot.lane.b32.xlu0 %v2046, 48
  %v2312 = vpop.permute.xlu0 %2311
  %2313 = vrot.lane.b32.xlu0 %v2047, 48
  %v2314 = vpop.permute.xlu0 %2313
  %2315 = vrot.lane.b32.xlu0 %v2048, 48
  %v2316 = vpop.permute.xlu0 %2315
  %2317 = vrot.lane.b32.xlu0 %v2049, 48
  %v2318 = vpop.permute.xlu0 %2317
  %2319 = vrot.lane.b32.xlu0 %v2050, 48
  %v2320 = vpop.permute.xlu0 %2319
  %2321 = vrot.lane.b32.xlu0 %v2051, 48
  %v2322 = vpop.permute.xlu0 %2321
  %2323 = vrot.lane.b32.xlu0 %v2052, 48
  %v2324 = vpop.permute.xlu0 %2323
  %2325 = vrot.lane.b32.xlu0 %v2053, 48
  %v2326 = vpop.permute.xlu0 %2325
  %2327 = vrot.lane.b32.xlu0 %v2054, 48
  %v2328 = vpop.permute.xlu0 %2327
  %2329 = vrot.lane.b32.xlu0 %v2055, 48
  %v2330 = vpop.permute.xlu0 %2329
  %2347 = vrot.lane.b32.xlu0 %v2108, 64
  %v2348 = vpop.permute.xlu0 %2347
  %2349 = vrot.lane.b32.xlu0 %v2111, 64
  %v2350 = vpop.permute.xlu0 %2349
  %2351 = vrot.lane.b32.xlu0 %v2114, 64
  %v2352 = vpop.permute.xlu0 %2351
  %2353 = vrot.lane.b32.xlu0 %v2117, 64
  %v2354 = vpop.permute.xlu0 %2353
  %2355 = vrot.lane.b32.xlu0 %v2120, 64
  %v2356 = vpop.permute.xlu0 %2355
  %2357 = vrot.lane.b32.xlu0 %v2123, 64
  %v2358 = vpop.permute.xlu0 %2357
  %2359 = vrot.lane.b32.xlu0 %v2126, 64
  %v2360 = vpop.permute.xlu0 %2359
  %2361 = vrot.lane.b32.xlu0 %v2199, 64
  %v2362 = vpop.permute.xlu0 %2361
  %2363 = vrot.lane.b32.xlu0 %v2129, 64
  %v2364 = vpop.permute.xlu0 %2363
  %2365 = vrot.lane.b32.xlu0 %v2132, 64
  %v2366 = vpop.permute.xlu0 %2365
  %2367 = vrot.lane.b32.xlu0 %v2135, 64
  %v2368 = vpop.permute.xlu0 %2367
  %2369 = vrot.lane.b32.xlu0 %v2138, 64
  %v2370 = vpop.permute.xlu0 %2369
  %2371 = vrot.lane.b32.xlu0 %v2141, 64
  %v2372 = vpop.permute.xlu0 %2371
  %2373 = vrot.lane.b32.xlu0 %v2144, 64
  %v2374 = vpop.permute.xlu0 %2373
  %2375 = vrot.lane.b32.xlu0 %v2147, 64
  %v2376 = vpop.permute.xlu0 %2375
  %2377 = vrot.lane.b32.xlu0 %v2202, 64
  %v2378 = vpop.permute.xlu0 %2377
  %2395 = vrot.lane.b32.xlu0 %v2153, 80
  %v2396 = vpop.permute.xlu0 %2395
  %2397 = vrot.lane.b32.xlu0 %v2156, 80
  %v2398 = vpop.permute.xlu0 %2397
  %2399 = vrot.lane.b32.xlu0 %v2159, 80
  %v2400 = vpop.permute.xlu0 %2399
  %2401 = vrot.lane.b32.xlu0 %v2162, 80
  %v2402 = vpop.permute.xlu0 %2401
  %2403 = vrot.lane.b32.xlu0 %v2165, 80
  %v2404 = vpop.permute.xlu0 %2403
  %2405 = vrot.lane.b32.xlu0 %v2168, 80
  %v2406 = vpop.permute.xlu0 %2405
  %2407 = vrot.lane.b32.xlu0 %v2171, 80
  %v2408 = vpop.permute.xlu0 %2407
  %2409 = vrot.lane.b32.xlu0 %v2205, 80
  %v2410 = vpop.permute.xlu0 %2409
  %2411 = vrot.lane.b32.xlu0 %v2174, 80
  %v2412 = vpop.permute.xlu0 %2411
  %2413 = vrot.lane.b32.xlu0 %v2177, 80
  %v2414 = vpop.permute.xlu0 %2413
  %2415 = vrot.lane.b32.xlu0 %v2180, 80
  %v2416 = vpop.permute.xlu0 %2415
  %2417 = vrot.lane.b32.xlu0 %v2183, 80
  %v2418 = vpop.permute.xlu0 %2417
  %2419 = vrot.lane.b32.xlu0 %v2186, 80
  %v2420 = vpop.permute.xlu0 %2419
  %2421 = vrot.lane.b32.xlu0 %v2189, 80
  %v2422 = vpop.permute.xlu0 %2421
  %2423 = vrot.lane.b32.xlu0 %v2192, 80
  %v2424 = vpop.permute.xlu0 %2423
  %2425 = vrot.lane.b32.xlu0 %v2208, 80
  %v2426 = vpop.permute.xlu0 %2425
  %2443 = vrot.lane.b32.xlu0 %v2041, 96
  %v2444 = vpop.permute.xlu0 %2443
  %2445 = vrot.lane.b32.xlu0 %v2042, 96
  %v2446 = vpop.permute.xlu0 %2445
  %2447 = vrot.lane.b32.xlu0 %v2043, 96
  %v2448 = vpop.permute.xlu0 %2447
  %2449 = vrot.lane.b32.xlu0 %v2044, 96
  %v2450 = vpop.permute.xlu0 %2449
  %2451 = vrot.lane.b32.xlu0 %v2045, 96
  %v2452 = vpop.permute.xlu0 %2451
  %2453 = vrot.lane.b32.xlu0 %v2046, 96
  %v2454 = vpop.permute.xlu0 %2453
  %2455 = vrot.lane.b32.xlu0 %v2047, 96
  %v2456 = vpop.permute.xlu0 %2455
  %2457 = vrot.lane.b32.xlu0 %v303, 96
  %v2458 = vpop.permute.xlu0 %2457
  %2459 = vrot.lane.b32.xlu0 %v2049, 96
  %v2460 = vpop.permute.xlu0 %2459
  %2461 = vrot.lane.b32.xlu0 %v2050, 96
  %v2462 = vpop.permute.xlu0 %2461
  %2463 = vrot.lane.b32.xlu0 %v2051, 96
  %v2464 = vpop.permute.xlu0 %2463
  %2465 = vrot.lane.b32.xlu0 %v2052, 96
  %v2466 = vpop.permute.xlu0 %2465
  %2467 = vrot.lane.b32.xlu0 %v2053, 96
  %v2468 = vpop.permute.xlu0 %2467
  %2469 = vrot.lane.b32.xlu0 %v2054, 96
  %v2470 = vpop.permute.xlu0 %2469
  %2471 = vrot.lane.b32.xlu0 %v2055, 96
  %v2472 = vpop.permute.xlu0 %2471
  %2488 = vrot.lane.b32.xlu0 %v2111, 112
  %v2489 = vpop.permute.xlu0 %2488
  %2490 = vrot.lane.b32.xlu0 %v2114, 112
  %v2491 = vpop.permute.xlu0 %2490
  %2492 = vrot.lane.b32.xlu0 %v2117, 112
  %v2493 = vpop.permute.xlu0 %2492
  %2494 = vrot.lane.b32.xlu0 %v2120, 112
  %v2495 = vpop.permute.xlu0 %2494
  %2496 = vrot.lane.b32.xlu0 %v2123, 112
  %v2497 = vpop.permute.xlu0 %2496
  %2498 = vrot.lane.b32.xlu0 %v2126, 112
  %v2499 = vpop.permute.xlu0 %2498
  %2500 = vrot.lane.b32.xlu0 %v2199, 112
  %v2501 = vpop.permute.xlu0 %2500
  %2502 = vrot.lane.b32.xlu0 %v2105, 112
  %v2503 = vpop.permute.xlu0 %2502
  %2504 = vrot.lane.b32.xlu0 %v2132, 112
  %v2505 = vpop.permute.xlu0 %2504
  %2506 = vrot.lane.b32.xlu0 %v2135, 112
  %v2507 = vpop.permute.xlu0 %2506
  %2508 = vrot.lane.b32.xlu0 %v2138, 112
  %v2509 = vpop.permute.xlu0 %2508
  %2510 = vrot.lane.b32.xlu0 %v2141, 112
  %v2511 = vpop.permute.xlu0 %2510
  %2512 = vrot.lane.b32.xlu0 %v2144, 112
  %v2513 = vpop.permute.xlu0 %2512
  %2514 = vrot.lane.b32.xlu0 %v2147, 112
  %v2515 = vpop.permute.xlu0 %2514
  %2516 = vrot.lane.b32.xlu0 %v2202, 112
  %v2517 = vpop.permute.xlu0 %2516
  %v2533 = vsel %vm495, %v303, %v2210
  %v2534 = vsel %vm495, %v2040, %v2212
  %v2535 = vsel %vm495, %v2041, %v2214
  %v2536 = vsel %vm495, %v2042, %v2216
  %v2537 = vsel %vm495, %v2043, %v2218
  %v2538 = vsel %vm495, %v2044, %v2220
  %v2539 = vsel %vm495, %v2045, %v2222
  %v2540 = vsel %vm495, %v2046, %v2224
  %v2541 = vsel %vm495, %v2048, %v2226
  %v2542 = vsel %vm495, %v2049, %v2228
  %v2543 = vsel %vm495, %v2050, %v2230
  %v2544 = vsel %vm495, %v2051, %v2232
  %v2545 = vsel %vm495, %v2052, %v2234
  %v2546 = vsel %vm495, %v2053, %v2236
  %v2547 = vsel %vm495, %v2054, %v2238
  %v2548 = vsel %vm98, %v2533, %v2255
  %v2549 = vsel %vm98, %v2534, %v2257
  %v2550 = vsel %vm98, %v2535, %v2259
  %v2551 = vsel %vm98, %v2536, %v2261
  %v2552 = vsel %vm98, %v2537, %v2263
  %v2553 = vsel %vm98, %v2538, %v2265
  %v2554 = vsel %vm98, %v2539, %v2267
  %v2555 = vsel %vm98, %v2540, %v2269
  %v2556 = vsel %vm98, %v2541, %v2271
  %v2557 = vsel %vm98, %v2542, %v2273
  %v2558 = vsel %vm98, %v2543, %v2275
  %v2559 = vsel %vm98, %v2544, %v2277
  %v2560 = vsel %vm98, %v2545, %v2279
  %v2561 = vsel %vm98, %v2546, %v2281
  %v2562 = vsel %vm98, %v2547, %v2283
  %v2563 = vsel %vm504, %v2548, %v2300
  %v2564 = vsel %vm504, %v2549, %v2302
  %v2565 = vsel %vm504, %v2550, %v2304
  %v2566 = vsel %vm504, %v2551, %v2306
  %v2567 = vsel %vm504, %v2552, %v2308
  %v2568 = vsel %vm504, %v2553, %v2310
  %v2569 = vsel %vm504, %v2554, %v2312
  %v2570 = vsel %vm504, %v2555, %v2314
  %v2571 = vsel %vm504, %v2548, %v2316
  %v2572 = vsel %vm504, %v2556, %v2318
  %v2573 = vsel %vm504, %v2557, %v2320
  %v2574 = vsel %vm504, %v2558, %v2322
  %v2575 = vsel %vm504, %v2559, %v2324
  %v2576 = vsel %vm504, %v2560, %v2326
  %v2577 = vsel %vm504, %v2561, %v2328
  %v2578 = vsel %vm504, %v2562, %v2330
  %v2579 = vsel %vm509, %v2563, %v2348
  %v2580 = vsel %vm509, %v2564, %v2350
  %v2581 = vsel %vm509, %v2565, %v2352
  %v2582 = vsel %vm509, %v2566, %v2354
  %v2583 = vsel %vm509, %v2567, %v2356
  %v2584 = vsel %vm509, %v2568, %v2358
  %v2585 = vsel %vm509, %v2569, %v2360
  %v2586 = vsel %vm509, %v2570, %v2362
  %v2587 = vsel %vm509, %v2571, %v2364
  %v2588 = vsel %vm509, %v2572, %v2366
  %v2589 = vsel %vm509, %v2573, %v2368
  %v2590 = vsel %vm509, %v2574, %v2370
  %v2591 = vsel %vm509, %v2575, %v2372
  %v2592 = vsel %vm509, %v2576, %v2374
  %v2593 = vsel %vm509, %v2577, %v2376
  %v2594 = vsel %vm509, %v2578, %v2378
  %v2595 = vsel %vm514, %v2579, %v2396
  %v2596 = vsel %vm514, %v2580, %v2398
  %v2597 = vsel %vm514, %v2581, %v2400
  %v2598 = vsel %vm514, %v2582, %v2402
  %v2599 = vsel %vm514, %v2583, %v2404
  %v2600 = vsel %vm514, %v2584, %v2406
  %v2601 = vsel %vm514, %v2585, %v2408
  %v2602 = vsel %vm514, %v2586, %v2410
  %v2603 = vsel %vm514, %v2587, %v2412
  %v2604 = vsel %vm514, %v2588, %v2414
  %v2605 = vsel %vm514, %v2589, %v2416
  %v2606 = vsel %vm514, %v2590, %v2418
  %v2607 = vsel %vm514, %v2591, %v2420
  %v2608 = vsel %vm514, %v2592, %v2422
  %v2609 = vsel %vm514, %v2593, %v2424
  %v2610 = vsel %vm514, %v2594, %v2426
  %v2611 = vsel %vm519, %v2595, %v2444
  %v2612 = vsel %vm519, %v2596, %v2446
  %v2613 = vsel %vm519, %v2597, %v2448
  %v2614 = vsel %vm519, %v2598, %v2450
  %v2615 = vsel %vm519, %v2599, %v2452
  %v2616 = vsel %vm519, %v2600, %v2454
  %v2617 = vsel %vm519, %v2601, %v2456
  %v2618 = vsel %vm519, %v2602, %v2458
  %v2619 = vsel %vm519, %v2603, %v2460
  %v2620 = vsel %vm519, %v2604, %v2462
  %v2621 = vsel %vm519, %v2605, %v2464
  %v2622 = vsel %vm519, %v2606, %v2466
  %v2623 = vsel %vm519, %v2607, %v2468
  %v2624 = vsel %vm519, %v2608, %v2470
  %v2625 = vsel %vm519, %v2609, %v2472
  %v2626 = vsel %vm519, %v2610, %v2458
  %v2627 = vsel %vm524, %v2611, %v2489
  %v2628 = vsel %vm524, %v2612, %v2491
  %v2629 = vsel %vm524, %v2613, %v2493
  %v2630 = vsel %vm524, %v2614, %v2495
  %v2631 = vsel %vm524, %v2615, %v2497
  %v2632 = vsel %vm524, %v2616, %v2499
  %v2633 = vsel %vm524, %v2617, %v2501
  %v2634 = vsel %vm524, %v2618, %v2503
  %v2635 = vsel %vm524, %v2619, %v2505
  %v2636 = vsel %vm524, %v2620, %v2507
  %v2637 = vsel %vm524, %v2621, %v2509
  %v2638 = vsel %vm524, %v2622, %v2511
  %v2639 = vsel %vm524, %v2623, %v2513
  %v2640 = vsel %vm524, %v2624, %v2515
  %v2641 = vsel %vm524, %v2625, %v2517
  %v2642 = vsel %vm524, %v2626, %v2503
  %v2644 = vlaneseq
  %v2645 = vshrl.u32 %v2644, 7
  %v2646 = vsub.s32 0, %v2645
  %v2647 = vrot.slane %v1989, %v2646
  %v2649 = vsel %vm495, %v2156, 0
  %v2651 = vsel %vm495, %v2159, 0
  %v2653 = vsel %vm495, %v2162, 0
  %v2655 = vsel %vm495, %v2165, 0
  %v2657 = vsel %vm495, %v2168, 0
  %v2659 = vsel %vm495, %v2171, 0
  %v2661 = vsel %vm495, %v2205, 0
  %v2663 = vsel %vm495, %v2150, 0
  %v2665 = vsel %vm495, %v2177, 0
  %v2667 = vsel %vm495, %v2180, 0
  %v2669 = vsel %vm495, %v2183, 0
  %v2671 = vsel %vm495, %v2186, 0
  %v2673 = vsel %vm495, %v2189, 0
  %v2675 = vsel %vm495, %v2192, 0
  %v2677 = vsel %vm495, %v2208, 0
  %2679 = vmatprep.subr.mxu0 0.0
  %2680 = vmatpush1.msra.mxu0 %v1971
  %2681 = vmatprep.subr.mxu0 0.0
  %2682 = vmatpush1.msra.mxu0 %v1972
  %2683 = vmatprep.subr.mxu0 0.0
  %2684 = vmatpush1.msra.mxu0 %v1973
  %2685 = vmatprep.subr.mxu0 0.0
  %2686 = vmatpush1.msra.mxu0 %v1974
  %2687 = vmatprep.subr.mxu0 0.0
  %2688 = vmatpush1.msra.mxu0 %v1975
  %2689 = vmatprep.subr.mxu0 0.0
  %2690 = vmatpush1.msra.mxu0 %v1976
  %2691 = vmatprep.subr.mxu0 0.0
  %2692 = vmatpush1.msra.mxu0 %v1977
  %2693 = vmatprep.subr.mxu0 0.0
  %2694 = vmatpush1.msra.mxu0 %v1978
  %2695 = vmatprep.subr.mxu0 0.0
  %2696 = vmatpush1.msra.mxu0 %v1979
  %2697 = vmatprep.subr.mxu0 0.0
  %2698 = vmatpush1.msra.mxu0 %v1980
  %2699 = vmatprep.subr.mxu0 0.0
  %2700 = vmatpush1.msra.mxu0 %v1981
  %2701 = vmatprep.subr.mxu0 0.0
  %2702 = vmatpush1.msra.mxu0 %v1982
  %2703 = vmatprep.subr.mxu0 0.0
  %2704 = vmatpush1.msra.mxu0 %v1983
  %2705 = vmatprep.subr.mxu0 0.0
  %2706 = vmatpush1.msra.mxu0 %v1984
  %2707 = vmatprep.subr.mxu0 0.0
  %2708 = vmatpush1.msra.mxu0 %v1985
  %2709 = vmatprep.subr.mxu0 0.0
  %2710 = vmatpush1.msra.mxu0 %v1986
  %2711 = vmatprep.subr.mxu0 0.0
  %2712 = vmatpush1.msra.mxu0 %v1987
  %2713 = vmatprep.subr.mxu0 0.0
  %2714 = vmatpush1.msra.mxu0 %v1988
  %2715 = vmatprep.subr.mxu0 0.0
  %2716 = vmatpush1.msra.mxu0 0.0
  %2717 = vmatprep.subr.mxu0 0.0
  %2718 = vmatpush1.msra.mxu0 0.0
  %2719 = vmatprep.subr.mxu0 0.0
  %2720 = vmatpush1.msra.mxu0 0.0
  %2721 = vmatprep.subr.mxu0 0.0
  %2722 = vmatpush1.msra.mxu0 0.0
  %2723 = vmatprep.subr.mxu0 0.0
  %2724 = vmatpush1.msra.mxu0 0.0
  %2725 = vmatprep.subr.mxu0 0.0
  %2726 = vmatpush1.msra.mxu0 0.0
  %2727 = vmatprep.subr.mxu0 0.0
  %2728 = vmatpush1.msra.mxu0 0.0
  %2729 = vmatprep.subr.mxu0 0.0
  %2730 = vmatpush1.msra.mxu0 0.0
  %2731 = vmatprep.subr.mxu0 0.0
  %2732 = vmatpush1.msra.mxu0 0.0
  %2733 = vmatprep.subr.mxu0 0.0
  %2734 = vmatpush1.msra.mxu0 0.0
  %2735 = vmatprep.subr.mxu0 0.0
  %2736 = vmatpush1.msra.mxu0 0.0
  %2737 = vmatprep.subr.mxu0 0.0
  %2738 = vmatpush1.msra.mxu0 0.0
  %2739 = vmatprep.subr.mxu0 0.0
  %2740 = vmatpush1.msra.mxu0 0.0
  %2741 = vmatprep.subr.mxu0 0.0
  %2742 = vmatpush1.msra.mxu0 0.0
  %2743 = vmatprep.mubr.f32.mxu0 %v2649
  %2744 = vmatmul.mubr.f32.gmra.mrb[0].mxu0 %v2627
  %v2745 = vpop.f32.mrb[0].mxu0
  %v2746 = vadd.f32 %v2647, %v2745
  %v2747 = vpop.f32.mrb[0].mxu0
  %2748 = vmatprep.mubr.f32.mxu0 %v2651
  %2749 = vmatmul.mubr.f32.gmra.mrb[0].mxu0 %v2628
  %v2750 = vpop.f32.mrb[0].mxu0
  %v2751 = vadd.f32 %v2647, %v2750
  %v2752 = vpop.f32.mrb[0].mxu0
  %2753 = vmatprep.mubr.f32.mxu0 %v2653
  %2754 = vmatmul.mubr.f32.gmra.mrb[0].mxu0 %v2629
  %v2755 = vpop.f32.mrb[0].mxu0
  %v2756 = vadd.f32 %v2647, %v2755
  %v2757 = vpop.f32.mrb[0].mxu0
  %2758 = vmatprep.mubr.f32.mxu0 %v2655
  %2759 = vmatmul.mubr.f32.gmra.mrb[0].mxu0 %v2630
  %v2760 = vpop.f32.mrb[0].mxu0
  %v2761 = vadd.f32 %v2647, %v2760
  %v2762 = vpop.f32.mrb[0].mxu0
  %2763 = vmatprep.mubr.f32.mxu0 %v2657
  %2764 = vmatmul.mubr.f32.gmra.mrb[0].mxu0 %v2631
  %v2765 = vpop.f32.mrb[0].mxu0
  %v2766 = vadd.f32 %v2647, %v2765
  %v2767 = vpop.f32.mrb[0].mxu0
  %2768 = vmatprep.mubr.f32.mxu0 %v2659
  %2769 = vmatmul.mubr.f32.gmra.mrb[0].mxu0 %v2632
  %v2770 = vpop.f32.mrb[0].mxu0
  %v2771 = vadd.f32 %v2647, %v2770
  %v2772 = vpop.f32.mrb[0].mxu0
  %2773 = vmatprep.mubr.f32.mxu0 %v2661
  %2774 = vmatmul.mubr.f32.gmra.mrb[0].mxu0 %v2633
  %v2775 = vpop.f32.mrb[0].mxu0
  %v2776 = vadd.f32 %v2647, %v2775
  %v2777 = vpop.f32.mrb[0].mxu0
  %2778 = vmatprep.mubr.f32.mxu0 %v2663
  %2779 = vmatmul.mubr.f32.gmra.mrb[0].mxu0 %v2634
  %v2780 = vpop.f32.mrb[0].mxu0
  %v2781 = vadd.f32 %v2647, %v2780
  %v2782 = vpop.f32.mrb[0].mxu0
  %2783 = vmatprep.mubr.f32.mxu0 %v2665
  %2784 = vmatmul.mubr.f32.gmra.mrb[0].mxu0 %v2635
  %v2785 = vpop.f32.mrb[0].mxu0
  %v2786 = vadd.f32 %v2647, %v2785
  %v2787 = vpop.f32.mrb[0].mxu0
  %2788 = vmatprep.mubr.f32.mxu0 %v2667
  %2789 = vmatmul.mubr.f32.gmra.mrb[0].mxu0 %v2636
  %v2790 = vpop.f32.mrb[0].mxu0
  %v2791 = vadd.f32 %v2647, %v2790
  %v2792 = vpop.f32.mrb[0].mxu0
  %2793 = vmatprep.mubr.f32.mxu0 %v2669
  %2794 = vmatmul.mubr.f32.gmra.mrb[0].mxu0 %v2637
  %v2795 = vpop.f32.mrb[0].mxu0
  %v2796 = vadd.f32 %v2647, %v2795
  %v2797 = vpop.f32.mrb[0].mxu0
  %2798 = vmatprep.mubr.f32.mxu0 %v2671
  %2799 = vmatmul.mubr.f32.gmra.mrb[0].mxu0 %v2638
  %v2800 = vpop.f32.mrb[0].mxu0
  %v2801 = vadd.f32 %v2647, %v2800
  %v2802 = vpop.f32.mrb[0].mxu0
  %2803 = vmatprep.mubr.f32.mxu0 %v2673
  %2804 = vmatmul.mubr.f32.gmra.mrb[0].mxu0 %v2639
  %v2805 = vpop.f32.mrb[0].mxu0
  %v2806 = vadd.f32 %v2647, %v2805
  %v2807 = vpop.f32.mrb[0].mxu0
  %2808 = vmatprep.mubr.f32.mxu0 %v2675
  %2809 = vmatmul.mubr.f32.gmra.mrb[0].mxu0 %v2640
  %v2810 = vpop.f32.mrb[0].mxu0
  %v2811 = vadd.f32 %v2647, %v2810
  %v2812 = vpop.f32.mrb[0].mxu0
  %2813 = vmatprep.mubr.f32.mxu0 %v2677
  %2814 = vmatmul.mubr.f32.gmra.mrb[0].mxu0 %v2641
  %v2815 = vpop.f32.mrb[0].mxu0
  %v2816 = vadd.f32 %v2647, %v2815
  %v2817 = vpop.f32.mrb[0].mxu0
  %2818 = vmatprep.mubr.f32.mxu0 %v2663
  %2819 = vmatmul.mubr.f32.gmra.mrb[0].mxu0 %v2642
  %v2820 = vpop.f32.mrb[0].mxu0
  %v2821 = vadd.f32 %v2647, %v2820
  %v2822 = vpop.f32.mrb[0].mxu0
  %2823 = vdwg.mxu0
  %v2824 = vsel %vm495, %v2746, 0.0
  %v2825 = vsel %vm495, %v2751, 0.0
  %v2826 = vadd.f32 %v2824, %v2825
  %v2827 = vsel %vm495, %v2756, 0.0
  %v2828 = vadd.f32 %v2826, %v2827
  %v2829 = vsel %vm495, %v2761, 0.0
  %v2830 = vadd.f32 %v2828, %v2829
  %v2831 = vsel %vm495, %v2766, 0.0
  %v2832 = vadd.f32 %v2830, %v2831
  %v2833 = vsel %vm495, %v2771, 0.0
  %v2834 = vadd.f32 %v2832, %v2833
  %v2835 = vsel %vm495, %v2776, 0.0
  %v2836 = vadd.f32 %v2834, %v2835
  %v2837 = vsel %vm495, %v2781, 0.0
  %v2838 = vadd.f32 %v2836, %v2837
  %v2839 = vsel %vm495, %v2786, 0.0
  %v2840 = vadd.f32 %v2838, %v2839
  %v2841 = vsel %vm495, %v2791, 0.0
  %v2842 = vadd.f32 %v2840, %v2841
  %v2843 = vsel %vm495, %v2796, 0.0
  %v2844 = vadd.f32 %v2842, %v2843
  %v2845 = vsel %vm495, %v2801, 0.0
  %v2846 = vadd.f32 %v2844, %v2845
  %v2847 = vsel %vm495, %v2806, 0.0
  %v2848 = vadd.f32 %v2846, %v2847
  %v2849 = vsel %vm495, %v2811, 0.0
  %v2850 = vadd.f32 %v2848, %v2849
  %v2851 = vsel %vm495, %v2816, 0.0
  %v2852 = vadd.f32 %v2850, %v2851
  %v2853 = vsel %vm495, %v2821, 0.0
  %v2854 = vadd.f32 %v2852, %v2853
  %v2855 = vrot.slane %v2854, 4
  %v2856 = vadd.f32 %v2854, %v2855
  %v2857 = vrot.slane %v2856, 2
  %v2858 = vadd.f32 %v2856, %v2857
  %v2859 = vrot.slane %v2858, 1
  %v2860 = vadd.f32 %v2858, %v2859
  %v2861 = vmul.f32 %v2860, 0.0078125
  %v2862 = vmul.f32 %v2746, %v2746
  %v2863 = vmul.f32 %v2751, %v2751
  %v2864 = vmul.f32 %v2756, %v2756
  %v2865 = vmul.f32 %v2761, %v2761
  %v2866 = vmul.f32 %v2766, %v2766
  %v2867 = vmul.f32 %v2771, %v2771
  %v2868 = vmul.f32 %v2776, %v2776
  %v2869 = vmul.f32 %v2781, %v2781
  %v2870 = vmul.f32 %v2786, %v2786
  %v2871 = vmul.f32 %v2791, %v2791
  %v2872 = vmul.f32 %v2796, %v2796
  %v2873 = vmul.f32 %v2801, %v2801
  %v2874 = vmul.f32 %v2806, %v2806
  %v2875 = vmul.f32 %v2811, %v2811
  %v2876 = vmul.f32 %v2816, %v2816
  %v2877 = vmul.f32 %v2821, %v2821
  %v2878 = vsel %vm495, %v2862, 0.0
  %v2879 = vsel %vm495, %v2863, 0.0
  %v2880 = vadd.f32 %v2878, %v2879
  %v2881 = vsel %vm495, %v2864, 0.0
  %v2882 = vadd.f32 %v2880, %v2881
  %v2883 = vsel %vm495, %v2865, 0.0
  %v2884 = vadd.f32 %v2882, %v2883
  %v2885 = vsel %vm495, %v2866, 0.0
  %v2886 = vadd.f32 %v2884, %v2885
  %v2887 = vsel %vm495, %v2867, 0.0
  %v2888 = vadd.f32 %v2886, %v2887
  %v2889 = vsel %vm495, %v2868, 0.0
  %v2890 = vadd.f32 %v2888, %v2889
  %v2891 = vsel %vm495, %v2869, 0.0
  %v2892 = vadd.f32 %v2890, %v2891
  %v2893 = vsel %vm495, %v2870, 0.0
  %v2894 = vadd.f32 %v2892, %v2893
  %v2895 = vsel %vm495, %v2871, 0.0
  %v2896 = vadd.f32 %v2894, %v2895
  %v2897 = vsel %vm495, %v2872, 0.0
  %v2898 = vadd.f32 %v2896, %v2897
  %v2899 = vsel %vm495, %v2873, 0.0
  %v2900 = vadd.f32 %v2898, %v2899
  %v2901 = vsel %vm495, %v2874, 0.0
  %v2902 = vadd.f32 %v2900, %v2901
  %v2903 = vsel %vm495, %v2875, 0.0
  %v2904 = vadd.f32 %v2902, %v2903
  %v2905 = vsel %vm495, %v2876, 0.0
  %v2906 = vadd.f32 %v2904, %v2905
  %v2907 = vsel %vm495, %v2877, 0.0
  %v2908 = vadd.f32 %v2906, %v2907
  %v2909 = vrot.slane %v2908, 4
  %v2910 = vadd.f32 %v2908, %v2909
  %v2911 = vrot.slane %v2910, 2
  %v2912 = vadd.f32 %v2910, %v2911
  %v2913 = vrot.slane %v2912, 1
  %v2914 = vadd.f32 %v2912, %v2913
  %v2915 = vmul.f32 %v2914, 0.0078125
  %v2916 = vmul.f32 %v2861, %v2861
  %v2917 = vsub.f32 %v2915, %v2916
  %v2918 = vadd.f32 %v2917, 1e-05
  %v2919 = vrsqrt.pop %v2918
  %v2920 = vmul.f32 %v1990, %v2919
  %v2921 = vsub.f32 %v2746, %v2861
  %v2922 = vsub.f32 %v2751, %v2861
  %v2923 = vsub.f32 %v2756, %v2861
  %v2924 = vsub.f32 %v2761, %v2861
  %v2925 = vsub.f32 %v2766, %v2861
  %v2926 = vsub.f32 %v2771, %v2861
  %v2927 = vsub.f32 %v2776, %v2861
  %v2928 = vsub.f32 %v2781, %v2861
  %v2929 = vsub.f32 %v2786, %v2861
  %v2930 = vsub.f32 %v2791, %v2861
  %v2931 = vsub.f32 %v2796, %v2861
  %v2932 = vsub.f32 %v2801, %v2861
  %v2933 = vsub.f32 %v2806, %v2861
  %v2934 = vsub.f32 %v2811, %v2861
  %v2935 = vsub.f32 %v2816, %v2861
  %v2936 = vsub.f32 %v2821, %v2861
  %v2938 = vlaneseq
  %v2939 = vshrl.u32 %v2938, 7
  %v2940 = vsub.s32 0, %v2939
  %v2941 = vrot.slane %v2920, %v2940
  %v2943 = vmul.f32 %v2921, %v2941
  %v2944 = vmul.f32 %v2922, %v2941
  %v2945 = vmul.f32 %v2923, %v2941
  %v2946 = vmul.f32 %v2924, %v2941
  %v2947 = vmul.f32 %v2925, %v2941
  %v2948 = vmul.f32 %v2926, %v2941
  %v2949 = vmul.f32 %v2927, %v2941
  %v2950 = vmul.f32 %v2928, %v2941
  %v2951 = vmul.f32 %v2929, %v2941
  %v2952 = vmul.f32 %v2930, %v2941
  %v2953 = vmul.f32 %v2931, %v2941
  %v2954 = vmul.f32 %v2932, %v2941
  %v2955 = vmul.f32 %v2933, %v2941
  %v2956 = vmul.f32 %v2934, %v2941
  %v2957 = vmul.f32 %v2935, %v2941
  %v2958 = vmul.f32 %v2936, %v2941
  %v2960 = vlaneseq
  %v2961 = vshrl.u32 %v2960, 7
  %v2962 = vsub.s32 0, %v2961
  %v2963 = vrot.slane %v1991, %v2962
  %v2965 = vadd.f32 %v2943, %v2963
  %v2966 = vadd.f32 %v2944, %v2963
  %v2967 = vadd.f32 %v2945, %v2963
  %v2968 = vadd.f32 %v2946, %v2963
  %v2969 = vadd.f32 %v2947, %v2963
  %v2970 = vadd.f32 %v2948, %v2963
  %v2971 = vadd.f32 %v2949, %v2963
  %v2972 = vadd.f32 %v2950, %v2963
  %v2973 = vadd.f32 %v2951, %v2963
  %v2974 = vadd.f32 %v2952, %v2963
  %v2975 = vadd.f32 %v2953, %v2963
  %v2976 = vadd.f32 %v2954, %v2963
  %v2977 = vadd.f32 %v2955, %v2963
  %v2978 = vadd.f32 %v2956, %v2963
  %v2979 = vadd.f32 %v2957, %v2963
  %v2980 = vadd.f32 %v2958, %v2963
  %v2981 = vmax.f32 %v2965, 0.0
  %v2982 = vmax.f32 %v2966, 0.0
  %v2983 = vmax.f32 %v2967, 0.0
  %v2984 = vmax.f32 %v2968, 0.0
  %v2985 = vmax.f32 %v2969, 0.0
  %v2986 = vmax.f32 %v2970, 0.0
  %v2987 = vmax.f32 %v2971, 0.0
  %v2988 = vmax.f32 %v2972, 0.0
  %v2989 = vmax.f32 %v2973, 0.0
  %v2990 = vmax.f32 %v2974, 0.0
  %v2991 = vmax.f32 %v2975, 0.0
  %v2992 = vmax.f32 %v2976, 0.0
  %v2993 = vmax.f32 %v2977, 0.0
  %v2994 = vmax.f32 %v2978, 0.0
  %v2995 = vmax.f32 %v2979, 0.0
  %v2996 = vmax.f32 %v2980, 0.0
  %v2997 = vld [vmem:[%s21] sm:$0xff]
  %v2998 = vld [vmem:[%s21 + $0x8] sm:$0xff]
  %v2999 = vld [vmem:[%s21 + $0x10] sm:$0xff]
  %v3000 = vld [vmem:[%s21 + $0x18] sm:$0xff]
  %v3001 = vld [vmem:[%s21 + $0x20] sm:$0xff]
  %v3002 = vld [vmem:[%s21 + $0x28] sm:$0xff]
  %v3003 = vld [vmem:[%s21 + $0x30] sm:$0xff]
  %v3004 = vld [vmem:[%s21 + $0x38] sm:$0xff]
  %v3005 = vld [vmem:[%s21 + $0x40] sm:$0xff]
  %v3006 = vld [vmem:[%s21 + $0x48] sm:$0xff]
  %v3007 = vld [vmem:[%s21 + $0x50] sm:$0xff]
  %v3008 = vld [vmem:[%s21 + $0x58] sm:$0xff]
  %v3009 = vld [vmem:[%s21 + $0x60] sm:$0xff]
  %v3010 = vld [vmem:[%s21 + $0x68] sm:$0xff]
  %v3011 = vld [vmem:[%s21 + $0x70] sm:$0xff]
  %v3012 = vld [vmem:[%s21 + $0x78] sm:$0xff]
  %v3013 = vld [vmem:[%s21 + $0x80] sm:$0xff]
  %v3014 = vld [vmem:[%s21 + $0x88] sm:$0xff]
  %v3015 = vld [vmem:[%s22] sm:$0x1]
  %v3016 = vld [vmem:[%s23] sm:$0x1]
  %v3017 = vld [vmem:[%s24] sm:$0x1]
  %v3034 = vrot.slane %v2981, 7
  %v3035 = vrot.slane %v2982, 7
  %v3036 = vrot.slane %v2983, 7
  %v3037 = vrot.slane %v2984, 7
  %v3038 = vrot.slane %v2985, 7
  %v3039 = vrot.slane %v2986, 7
  %v3040 = vrot.slane %v2987, 7
  %v3041 = vrot.slane %v2988, 7
  %v3042 = vrot.slane %v2989, 7
  %v3043 = vrot.slane %v2990, 7
  %v3044 = vrot.slane %v2991, 7
  %v3045 = vrot.slane %v2992, 7
  %v3046 = vrot.slane %v2993, 7
  %v3047 = vrot.slane %v2994, 7
  %v3048 = vrot.slane %v2995, 7
  %v3049 = vrot.slane %v2996, 7
  %v3066 = vrot.slane %v2981, 6
  %v3067 = vrot.slane %v2982, 6
  %v3068 = vrot.slane %v2983, 6
  %v3069 = vrot.slane %v2984, 6
  %v3070 = vrot.slane %v2985, 6
  %v3071 = vrot.slane %v2986, 6
  %v3072 = vrot.slane %v2987, 6
  %v3073 = vrot.slane %v2988, 6
  %v3074 = vrot.slane %v2989, 6
  %v3075 = vrot.slane %v2990, 6
  %v3076 = vrot.slane %v2991, 6
  %v3077 = vrot.slane %v2992, 6
  %v3078 = vrot.slane %v2993, 6
  %v3079 = vrot.slane %v2994, 6
  %v3080 = vrot.slane %v2995, 6
  %v3081 = vrot.slane %v2996, 6
  %v3098 = vrot.slane %v2981, 5
  %v3099 = vrot.slane %v2982, 5
  %v3100 = vrot.slane %v2983, 5
  %v3101 = vrot.slane %v2984, 5
  %v3102 = vrot.slane %v2985, 5
  %v3103 = vrot.slane %v2986, 5
  %v3104 = vrot.slane %v2987, 5
  %v3105 = vrot.slane %v2988, 5
  %v3106 = vrot.slane %v2989, 5
  %v3107 = vrot.slane %v2990, 5
  %v3108 = vrot.slane %v2991, 5
  %v3109 = vrot.slane %v2992, 5
  %v3110 = vrot.slane %v2993, 5
  %v3111 = vrot.slane %v2994, 5
  %v3112 = vrot.slane %v2995, 5
  %v3113 = vrot.slane %v2996, 5
  %v3130 = vrot.slane %v2981, 4
  %v3131 = vrot.slane %v2982, 4
  %v3132 = vrot.slane %v2983, 4
  %v3133 = vrot.slane %v2984, 4
  %v3134 = vrot.slane %v2985, 4
  %v3135 = vrot.slane %v2986, 4
  %v3136 = vrot.slane %v2987, 4
  %v3137 = vrot.slane %v2988, 4
  %v3138 = vrot.slane %v2989, 4
  %v3139 = vrot.slane %v2990, 4
  %v3140 = vrot.slane %v2991, 4
  %v3141 = vrot.slane %v2992, 4
  %v3142 = vrot.slane %v2993, 4
  %v3143 = vrot.slane %v2994, 4
  %v3144 = vrot.slane %v2995, 4
  %v3145 = vrot.slane %v2996, 4
  %v3162 = vrot.slane 0.0, 3
  %v3163 = vrot.slane %v2981, 3
  %v3164 = vrot.slane %v2982, 3
  %v3165 = vrot.slane %v2983, 3
  %v3166 = vrot.slane %v2984, 3
  %v3167 = vrot.slane %v2985, 3
  %v3168 = vrot.slane %v2986, 3
  %v3169 = vrot.slane %v2987, 3
  %v3170 = vrot.slane %v2988, 3
  %v3171 = vrot.slane %v2989, 3
  %v3172 = vrot.slane %v2990, 3
  %v3173 = vrot.slane %v2991, 3
  %v3174 = vrot.slane %v2992, 3
  %v3175 = vrot.slane %v2993, 3
  %v3176 = vrot.slane %v2994, 3
  %v3177 = vrot.slane %v2995, 3
  %v3178 = vrot.slane %v2996, 3
  %v3196 = vrot.slane %v2981, 2
  %v3197 = vrot.slane %v2982, 2
  %v3198 = vrot.slane %v2983, 2
  %v3199 = vrot.slane %v2984, 2
  %v3200 = vrot.slane %v2985, 2
  %v3201 = vrot.slane %v2986, 2
  %v3202 = vrot.slane %v2987, 2
  %v3203 = vrot.slane %v2988, 2
  %v3204 = vrot.slane %v2989, 2
  %v3205 = vrot.slane %v2990, 2
  %v3206 = vrot.slane %v2991, 2
  %v3207 = vrot.slane %v2992, 2
  %v3208 = vrot.slane %v2993, 2
  %v3209 = vrot.slane %v2994, 2
  %v3210 = vrot.slane %v2995, 2
  %v3211 = vrot.slane %v2996, 2
  %v3229 = vrot.slane %v2981, 1
  %v3230 = vrot.slane %v2982, 1
  %v3231 = vrot.slane %v2983, 1
  %v3232 = vrot.slane %v2984, 1
  %v3233 = vrot.slane %v2985, 1
  %v3234 = vrot.slane %v2986, 1
  %v3235 = vrot.slane %v2987, 1
  %v3236 = vrot.slane %v2988, 1
  %v3237 = vrot.slane %v2989, 1
  %v3238 = vrot.slane %v2990, 1
  %v3239 = vrot.slane %v2991, 1
  %v3240 = vrot.slane %v2992, 1
  %v3241 = vrot.slane %v2993, 1
  %v3242 = vrot.slane %v2994, 1
  %v3243 = vrot.slane %v2995, 1
  %v3244 = vrot.slane %v2996, 1
  %v3262 = vsel %vm252, 0.0, %v3034
  %v3263 = vsel %vm252, 0.0, %v3035
  %v3264 = vsel %vm252, 0.0, %v3036
  %v3265 = vsel %vm252, 0.0, %v3037
  %v3266 = vsel %vm252, 0.0, %v3038
  %v3267 = vsel %vm252, 0.0, %v3039
  %v3268 = vsel %vm252, 0.0, %v3040
  %v3269 = vsel %vm252, 0.0, %v3041
  %v3270 = vsel %vm252, 0.0, %v3042
  %v3271 = vsel %vm252, 0.0, %v3043
  %v3272 = vsel %vm252, 0.0, %v3044
  %v3273 = vsel %vm252, 0.0, %v3045
  %v3274 = vsel %vm252, 0.0, %v3046
  %v3275 = vsel %vm252, 0.0, %v3047
  %v3276 = vsel %vm252, 0.0, %v3048
  %v3277 = vsel %vm252, 0.0, %v3049
  %v3278 = vsel %vm308, %v3262, 0.0
  %v3279 = vsel %vm308, %v3263, 0.0
  %v3280 = vsel %vm308, %v3264, 0.0
  %v3281 = vsel %vm308, %v3265, 0.0
  %v3282 = vsel %vm308, %v3266, 0.0
  %v3283 = vsel %vm308, %v3267, 0.0
  %v3284 = vsel %vm308, %v3268, 0.0
  %v3285 = vsel %vm308, %v3269, 0.0
  %v3286 = vsel %vm308, %v3270, 0.0
  %v3287 = vsel %vm308, %v3271, 0.0
  %v3288 = vsel %vm308, %v3272, 0.0
  %v3289 = vsel %vm308, %v3273, 0.0
  %v3290 = vsel %vm308, %v3274, 0.0
  %v3291 = vsel %vm308, %v3275, 0.0
  %v3292 = vsel %vm308, %v3276, 0.0
  %v3293 = vsel %vm308, %v3277, 0.0
  %v3294 = vsel %vm314, %v3278, %v3066
  %v3295 = vsel %vm314, %v3279, %v3067
  %v3296 = vsel %vm314, %v3280, %v3068
  %v3297 = vsel %vm314, %v3281, %v3069
  %v3298 = vsel %vm314, %v3282, %v3070
  %v3299 = vsel %vm314, %v3283, %v3071
  %v3300 = vsel %vm314, %v3284, %v3072
  %v3301 = vsel %vm314, %v3285, %v3073
  %v3302 = vsel %vm314, %v3286, %v3074
  %v3303 = vsel %vm314, %v3287, %v3075
  %v3304 = vsel %vm314, %v3288, %v3076
  %v3305 = vsel %vm314, %v3289, %v3077
  %v3306 = vsel %vm314, %v3290, %v3078
  %v3307 = vsel %vm314, %v3291, %v3079
  %v3308 = vsel %vm314, %v3292, %v3080
  %v3309 = vsel %vm314, %v3293, %v3081
  %v3310 = vsel %vm320, %v3294, 0.0
  %v3311 = vsel %vm320, %v3295, 0.0
  %v3312 = vsel %vm320, %v3296, 0.0
  %v3313 = vsel %vm320, %v3297, 0.0
  %v3314 = vsel %vm320, %v3298, 0.0
  %v3315 = vsel %vm320, %v3299, 0.0
  %v3316 = vsel %vm320, %v3300, 0.0
  %v3317 = vsel %vm320, %v3301, 0.0
  %v3318 = vsel %vm320, %v3302, 0.0
  %v3319 = vsel %vm320, %v3303, 0.0
  %v3320 = vsel %vm320, %v3304, 0.0
  %v3321 = vsel %vm320, %v3305, 0.0
  %v3322 = vsel %vm320, %v3306, 0.0
  %v3323 = vsel %vm320, %v3307, 0.0
  %v3324 = vsel %vm320, %v3308, 0.0
  %v3325 = vsel %vm320, %v3309, 0.0
  %v3326 = vsel %vm326, %v3310, %v3098
  %v3327 = vsel %vm326, %v3311, %v3099
  %v3328 = vsel %vm326, %v3312, %v3100
  %v3329 = vsel %vm326, %v3313, %v3101
  %v3330 = vsel %vm326, %v3314, %v3102
  %v3331 = vsel %vm326, %v3315, %v3103
  %v3332 = vsel %vm326, %v3316, %v3104
  %v3333 = vsel %vm326, %v3317, %v3105
  %v3334 = vsel %vm326, %v3318, %v3106
  %v3335 = vsel %vm326, %v3319, %v3107
  %v3336 = vsel %vm326, %v3320, %v3108
  %v3337 = vsel %vm326, %v3321, %v3109
  %v3338 = vsel %vm326, %v3322, %v3110
  %v3339 = vsel %vm326, %v3323, %v3111
  %v3340 = vsel %vm326, %v3324, %v3112
  %v3341 = vsel %vm326, %v3325, %v3113
  %v3342 = vsel %vm1291, %v3326, 0.0
  %v3343 = vsel %vm1291, %v3327, 0.0
  %v3344 = vsel %vm1291, %v3328, 0.0
  %v3345 = vsel %vm1291, %v3329, 0.0
  %v3346 = vsel %vm1291, %v3330, 0.0
  %v3347 = vsel %vm1291, %v3331, 0.0
  %v3348 = vsel %vm1291, %v3332, 0.0
  %v3349 = vsel %vm1291, %v3333, 0.0
  %v3350 = vsel %vm1291, %v3334, 0.0
  %v3351 = vsel %vm1291, %v3335, 0.0
  %v3352 = vsel %vm1291, %v3336, 0.0
  %v3353 = vsel %vm1291, %v3337, 0.0
  %v3354 = vsel %vm1291, %v3338, 0.0
  %v3355 = vsel %vm1291, %v3339, 0.0
  %v3356 = vsel %vm1291, %v3340, 0.0
  %v3357 = vsel %vm1291, %v3341, 0.0
  %v3358 = vsel %vm1301, %v3342, %v3130
  %v3359 = vsel %vm1301, %v3343, %v3131
  %v3360 = vsel %vm1301, %v3344, %v3132
  %v3361 = vsel %vm1301, %v3345, %v3133
  %v3362 = vsel %vm1301, %v3346, %v3134
  %v3363 = vsel %vm1301, %v3347, %v3135
  %v3364 = vsel %vm1301, %v3348, %v3136
  %v3365 = vsel %vm1301, %v3349, %v3137
  %v3366 = vsel %vm1301, %v3350, %v3138
  %v3367 = vsel %vm1301, %v3351, %v3139
  %v3368 = vsel %vm1301, %v3352, %v3140
  %v3369 = vsel %vm1301, %v3353, %v3141
  %v3370 = vsel %vm1301, %v3354, %v3142
  %v3371 = vsel %vm1301, %v3355, %v3143
  %v3372 = vsel %vm1301, %v3356, %v3144
  %v3373 = vsel %vm1301, %v3357, %v3145
  %v3374 = vsel %vm252, 0.0, %v3162
  %v3375 = vsel %vm252, 0.0, %v3163
  %v3376 = vsel %vm252, 0.0, %v3164
  %v3377 = vsel %vm252, 0.0, %v3165
  %v3378 = vsel %vm252, 0.0, %v3166
  %v3379 = vsel %vm252, 0.0, %v3167
  %v3380 = vsel %vm252, 0.0, %v3168
  %v3381 = vsel %vm252, 0.0, %v3169
  %v3382 = vsel %vm252, 0.0, %v3170
  %v3383 = vsel %vm252, 0.0, %v3171
  %v3384 = vsel %vm252, 0.0, %v3172
  %v3385 = vsel %vm252, 0.0, %v3173
  %v3386 = vsel %vm252, 0.0, %v3174
  %v3387 = vsel %vm252, 0.0, %v3175
  %v3388 = vsel %vm252, 0.0, %v3176
  %v3389 = vsel %vm252, 0.0, %v3177
  %v3390 = vsel %vm252, 0.0, %v3178
  %v3391 = vsel %vm308, %v3374, 0.0
  %v3392 = vsel %vm308, %v3375, 0.0
  %v3393 = vsel %vm308, %v3376, 0.0
  %v3394 = vsel %vm308, %v3377, 0.0
  %v3395 = vsel %vm308, %v3378, 0.0
  %v3396 = vsel %vm308, %v3379, 0.0
  %v3397 = vsel %vm308, %v3380, 0.0
  %v3398 = vsel %vm308, %v3381, 0.0
  %v3399 = vsel %vm308, %v3382, 0.0
  %v3400 = vsel %vm308, %v3383, 0.0
  %v3401 = vsel %vm308, %v3384, 0.0
  %v3402 = vsel %vm308, %v3385, 0.0
  %v3403 = vsel %vm308, %v3386, 0.0
  %v3404 = vsel %vm308, %v3387, 0.0
  %v3405 = vsel %vm308, %v3388, 0.0
  %v3406 = vsel %vm308, %v3389, 0.0
  %v3407 = vsel %vm308, %v3390, 0.0
  %v3408 = vsel %vm314, %v3391, %v1340
  %v3409 = vsel %vm314, %v3392, %v3196
  %v3410 = vsel %vm314, %v3393, %v3197
  %v3411 = vsel %vm314, %v3394, %v3198
  %v3412 = vsel %vm314, %v3395, %v3199
  %v3413 = vsel %vm314, %v3396, %v3200
  %v3414 = vsel %vm314, %v3397, %v3201
  %v3415 = vsel %vm314, %v3398, %v3202
  %v3416 = vsel %vm314, %v3399, %v3203
  %v3417 = vsel %vm314, %v3400, %v3204
  %v3418 = vsel %vm314, %v3401, %v3205
  %v3419 = vsel %vm314, %v3402, %v3206
  %v3420 = vsel %vm314, %v3403, %v3207
  %v3421 = vsel %vm314, %v3404, %v3208
  %v3422 = vsel %vm314, %v3405, %v3209
  %v3423 = vsel %vm314, %v3406, %v3210
  %v3424 = vsel %vm314, %v3407, %v3211
  %v3425 = vsel %vm320, %v3408, 0.0
  %v3426 = vsel %vm320, %v3409, 0.0
  %v3427 = vsel %vm320, %v3410, 0.0
  %v3428 = vsel %vm320, %v3411, 0.0
  %v3429 = vsel %vm320, %v3412, 0.0
  %v3430 = vsel %vm320, %v3413, 0.0
  %v3431 = vsel %vm320, %v3414, 0.0
  %v3432 = vsel %vm320, %v3415, 0.0
  %v3433 = vsel %vm320, %v3416, 0.0
  %v3434 = vsel %vm320, %v3417, 0.0
  %v3435 = vsel %vm320, %v3418, 0.0
  %v3436 = vsel %vm320, %v3419, 0.0
  %v3437 = vsel %vm320, %v3420, 0.0
  %v3438 = vsel %vm320, %v3421, 0.0
  %v3439 = vsel %vm320, %v3422, 0.0
  %v3440 = vsel %vm320, %v3423, 0.0
  %v3441 = vsel %vm320, %v3424, 0.0
  %v3442 = vsel %vm326, %v3425, %v1321
  %v3443 = vsel %vm326, %v3426, %v3229
  %v3444 = vsel %vm326, %v3427, %v3230
  %v3445 = vsel %vm326, %v3428, %v3231
  %v3446 = vsel %vm326, %v3429, %v3232
  %v3447 = vsel %vm326, %v3430, %v3233
  %v3448 = vsel %vm326, %v3431, %v3234
  %v3449 = vsel %vm326, %v3432, %v3235
  %v3450 = vsel %vm326, %v3433, %v3236
  %v3451 = vsel %vm326, %v3434, %v3237
  %v3452 = vsel %vm326, %v3435, %v3238
  %v3453 = vsel %vm326, %v3436, %v3239
  %v3454 = vsel %vm326, %v3437, %v3240
  %v3455 = vsel %vm326, %v3438, %v3241
  %v3456 = vsel %vm326, %v3439, %v3242
  %v3457 = vsel %vm326, %v3440, %v3243
  %v3458 = vsel %vm326, %v3441, %v3244
  %v3459 = vsel %vm1291, %v3442, 0.0
  %v3460 = vsel %vm1291, %v3443, 0.0
  %v3461 = vsel %vm1291, %v3444, 0.0
  %v3462 = vsel %vm1291, %v3445, 0.0
  %v3463 = vsel %vm1291, %v3446, 0.0
  %v3464 = vsel %vm1291, %v3447, 0.0
  %v3465 = vsel %vm1291, %v3448, 0.0
  %v3466 = vsel %vm1291, %v3449, 0.0
  %v3467 = vsel %vm1291, %v3450, 0.0
  %v3468 = vsel %vm1291, %v3451, 0.0
  %v3469 = vsel %vm1291, %v3452, 0.0
  %v3470 = vsel %vm1291, %v3453, 0.0
  %v3471 = vsel %vm1291, %v3454, 0.0
  %v3472 = vsel %vm1291, %v3455, 0.0
  %v3473 = vsel %vm1291, %v3456, 0.0
  %v3474 = vsel %vm1291, %v3457, 0.0
  %v3475 = vsel %vm1291, %v3458, 0.0
  %v3476 = vsel %vm1301, %v3459, 0.0
  %v3477 = vsel %vm1301, %v3460, %v2981
  %v3478 = vsel %vm1301, %v3461, %v2982
  %v3479 = vsel %vm1301, %v3462, %v2983
  %v3480 = vsel %vm1301, %v3463, %v2984
  %v3481 = vsel %vm1301, %v3464, %v2985
  %v3482 = vsel %vm1301, %v3465, %v2986
  %v3483 = vsel %vm1301, %v3466, %v2987
  %v3484 = vsel %vm1301, %v3467, %v2988
  %v3485 = vsel %vm1301, %v3468, %v2989
  %v3486 = vsel %vm1301, %v3469, %v2990
  %v3487 = vsel %vm1301, %v3470, %v2991
  %v3488 = vsel %vm1301, %v3471, %v2992
  %v3489 = vsel %vm1301, %v3472, %v2993
  %v3490 = vsel %vm1301, %v3473, %v2994
  %v3491 = vsel %vm1301, %v3474, %v2995
  %v3492 = vsel %vm1301, %v3475, %v2996
  %v3526 = vrot.slane %v3476, 1
  %v3527 = vsel %vm1301, %v1320, %v3526
  %v3528 = vsel %vm1301, %v3526, %v1321
  %v3529 = vrot.slane %v3358, 1
  %v3530 = vrot.slane %v3477, 1
  %v3531 = vsel %vm1301, %v3529, %v3530
  %v3532 = vsel %vm1301, %v3530, %v1321
  %v3533 = vrot.slane %v3359, 1
  %v3534 = vrot.slane %v3478, 1
  %v3535 = vsel %vm1301, %v3533, %v3534
  %v3536 = vsel %vm1301, %v3534, %v1321
  %v3537 = vrot.slane %v3360, 1
  %v3538 = vrot.slane %v3479, 1
  %v3539 = vsel %vm1301, %v3537, %v3538
  %v3540 = vsel %vm1301, %v3538, %v1321
  %v3541 = vrot.slane %v3361, 1
  %v3542 = vrot.slane %v3480, 1
  %v3543 = vsel %vm1301, %v3541, %v3542
  %v3544 = vsel %vm1301, %v3542, %v1321
  %v3545 = vrot.slane %v3362, 1
  %v3546 = vrot.slane %v3481, 1
  %v3547 = vsel %vm1301, %v3545, %v3546
  %v3548 = vsel %vm1301, %v3546, %v1321
  %v3549 = vrot.slane %v3363, 1
  %v3550 = vrot.slane %v3482, 1
  %v3551 = vsel %vm1301, %v3549, %v3550
  %v3552 = vsel %vm1301, %v3550, %v1321
  %v3553 = vrot.slane %v3364, 1
  %v3554 = vrot.slane %v3483, 1
  %v3555 = vsel %vm1301, %v3553, %v3554
  %v3556 = vsel %vm1301, %v3554, %v1321
  %v3557 = vrot.slane %v3365, 1
  %v3558 = vrot.slane %v3484, 1
  %v3559 = vsel %vm1301, %v3557, %v3558
  %v3560 = vsel %vm1301, %v3558, %v1321
  %v3561 = vrot.slane %v3366, 1
  %v3562 = vrot.slane %v3485, 1
  %v3563 = vsel %vm1301, %v3561, %v3562
  %v3564 = vsel %vm1301, %v3562, %v1321
  %v3565 = vrot.slane %v3367, 1
  %v3566 = vrot.slane %v3486, 1
  %v3567 = vsel %vm1301, %v3565, %v3566
  %v3568 = vsel %vm1301, %v3566, %v1321
  %v3569 = vrot.slane %v3368, 1
  %v3570 = vrot.slane %v3487, 1
  %v3571 = vsel %vm1301, %v3569, %v3570
  %v3572 = vsel %vm1301, %v3570, %v1321
  %v3573 = vrot.slane %v3369, 1
  %v3574 = vrot.slane %v3488, 1
  %v3575 = vsel %vm1301, %v3573, %v3574
  %v3576 = vsel %vm1301, %v3574, %v1321
  %v3577 = vrot.slane %v3370, 1
  %v3578 = vrot.slane %v3489, 1
  %v3579 = vsel %vm1301, %v3577, %v3578
  %v3580 = vsel %vm1301, %v3578, %v1321
  %v3581 = vrot.slane %v3371, 1
  %v3582 = vrot.slane %v3490, 1
  %v3583 = vsel %vm1301, %v3581, %v3582
  %v3584 = vsel %vm1301, %v3582, %v1321
  %v3585 = vrot.slane %v3372, 1
  %v3586 = vrot.slane %v3491, 1
  %v3587 = vsel %vm1301, %v3585, %v3586
  %v3588 = vsel %vm1301, %v3586, %v1321
  %v3589 = vrot.slane %v3373, 1
  %v3590 = vrot.slane %v3492, 1
  %v3591 = vsel %vm1301, %v3589, %v3590
  %v3592 = vsel %vm1301, %v3590, %v1321
  %v3593 = vrot.slane %v3476, 2
  %v3594 = vsel %vm1291, %v1339, %v3593
  %v3595 = vsel %vm1291, %v3593, %v1340
  %v3596 = vrot.slane %v3358, 2
  %v3597 = vrot.slane %v3477, 2
  %v3598 = vsel %vm1291, %v3596, %v3597
  %v3599 = vsel %vm1291, %v3597, %v1340
  %v3600 = vrot.slane %v3359, 2
  %v3601 = vrot.slane %v3478, 2
  %v3602 = vsel %vm1291, %v3600, %v3601
  %v3603 = vsel %vm1291, %v3601, %v1340
  %v3604 = vrot.slane %v3360, 2
  %v3605 = vrot.slane %v3479, 2
  %v3606 = vsel %vm1291, %v3604, %v3605
  %v3607 = vsel %vm1291, %v3605, %v1340
  %v3608 = vrot.slane %v3361, 2
  %v3609 = vrot.slane %v3480, 2
  %v3610 = vsel %vm1291, %v3608, %v3609
  %v3611 = vsel %vm1291, %v3609, %v1340
  %v3612 = vrot.slane %v3362, 2
  %v3613 = vrot.slane %v3481, 2
  %v3614 = vsel %vm1291, %v3612, %v3613
  %v3615 = vsel %vm1291, %v3613, %v1340
  %v3616 = vrot.slane %v3363, 2
  %v3617 = vrot.slane %v3482, 2
  %v3618 = vsel %vm1291, %v3616, %v3617
  %v3619 = vsel %vm1291, %v3617, %v1340
  %v3620 = vrot.slane %v3364, 2
  %v3621 = vrot.slane %v3483, 2
  %v3622 = vsel %vm1291, %v3620, %v3621
  %v3623 = vsel %vm1291, %v3621, %v1340
  %v3624 = vrot.slane %v3365, 2
  %v3625 = vrot.slane %v3484, 2
  %v3626 = vsel %vm1291, %v3624, %v3625
  %v3627 = vsel %vm1291, %v3625, %v1340
  %v3628 = vrot.slane %v3366, 2
  %v3629 = vrot.slane %v3485, 2
  %v3630 = vsel %vm1291, %v3628, %v3629
  %v3631 = vsel %vm1291, %v3629, %v1340
  %v3632 = vrot.slane %v3367, 2
  %v3633 = vrot.slane %v3486, 2
  %v3634 = vsel %vm1291, %v3632, %v3633
  %v3635 = vsel %vm1291, %v3633, %v1340
  %v3636 = vrot.slane %v3368, 2
  %v3637 = vrot.slane %v3487, 2
  %v3638 = vsel %vm1291, %v3636, %v3637
  %v3639 = vsel %vm1291, %v3637, %v1340
  %v3640 = vrot.slane %v3369, 2
  %v3641 = vrot.slane %v3488, 2
  %v3642 = vsel %vm1291, %v3640, %v3641
  %v3643 = vsel %vm1291, %v3641, %v1340
  %v3644 = vrot.slane %v3370, 2
  %v3645 = vrot.slane %v3489, 2
  %v3646 = vsel %vm1291, %v3644, %v3645
  %v3647 = vsel %vm1291, %v3645, %v1340
  %v3648 = vrot.slane %v3371, 2
  %v3649 = vrot.slane %v3490, 2
  %v3650 = vsel %vm1291, %v3648, %v3649
  %v3651 = vsel %vm1291, %v3649, %v1340
  %v3652 = vrot.slane %v3372, 2
  %v3653 = vrot.slane %v3491, 2
  %v3654 = vsel %vm1291, %v3652, %v3653
  %v3655 = vsel %vm1291, %v3653, %v1340
  %v3656 = vrot.slane %v3373, 2
  %v3657 = vrot.slane %v3492, 2
  %v3658 = vsel %vm1291, %v3656, %v3657
  %v3659 = vsel %vm1291, %v3657, %v1340
  %3660 = vrot.lane.b32.xlu0 %v3527, 16
  %v3661 = vpop.permute.xlu0 %3660
  %3662 = vrot.lane.b32.xlu0 %v3528, 16
  %v3663 = vpop.permute.xlu0 %3662
  %3664 = vrot.lane.b32.xlu0 %v3531, 16
  %v3665 = vpop.permute.xlu0 %3664
  %3666 = vrot.lane.b32.xlu0 %v3532, 16
  %v3667 = vpop.permute.xlu0 %3666
  %3668 = vrot.lane.b32.xlu0 %v3535, 16
  %v3669 = vpop.permute.xlu0 %3668
  %3670 = vrot.lane.b32.xlu0 %v3536, 16
  %v3671 = vpop.permute.xlu0 %3670
  %3672 = vrot.lane.b32.xlu0 %v3539, 16
  %v3673 = vpop.permute.xlu0 %3672
  %3674 = vrot.lane.b32.xlu0 %v3540, 16
  %v3675 = vpop.permute.xlu0 %3674
  %3676 = vrot.lane.b32.xlu0 %v3543, 16
  %v3677 = vpop.permute.xlu0 %3676
  %3678 = vrot.lane.b32.xlu0 %v3544, 16
  %v3679 = vpop.permute.xlu0 %3678
  %3680 = vrot.lane.b32.xlu0 %v3547, 16
  %v3681 = vpop.permute.xlu0 %3680
  %3682 = vrot.lane.b32.xlu0 %v3548, 16
  %v3683 = vpop.permute.xlu0 %3682
  %3684 = vrot.lane.b32.xlu0 %v3551, 16
  %v3685 = vpop.permute.xlu0 %3684
  %3686 = vrot.lane.b32.xlu0 %v3552, 16
  %v3687 = vpop.permute.xlu0 %3686
  %3688 = vrot.lane.b32.xlu0 %v3555, 16
  %v3689 = vpop.permute.xlu0 %3688
  %3690 = vrot.lane.b32.xlu0 %v3556, 16
  %v3691 = vpop.permute.xlu0 %3690
  %3692 = vrot.lane.b32.xlu0 %v3559, 16
  %v3693 = vpop.permute.xlu0 %3692
  %3694 = vrot.lane.b32.xlu0 %v3560, 16
  %v3695 = vpop.permute.xlu0 %3694
  %3696 = vrot.lane.b32.xlu0 %v3563, 16
  %v3697 = vpop.permute.xlu0 %3696
  %3698 = vrot.lane.b32.xlu0 %v3564, 16
  %v3699 = vpop.permute.xlu0 %3698
  %3700 = vrot.lane.b32.xlu0 %v3567, 16
  %v3701 = vpop.permute.xlu0 %3700
  %3702 = vrot.lane.b32.xlu0 %v3568, 16
  %v3703 = vpop.permute.xlu0 %3702
  %3704 = vrot.lane.b32.xlu0 %v3571, 16
  %v3705 = vpop.permute.xlu0 %3704
  %3706 = vrot.lane.b32.xlu0 %v3572, 16
  %v3707 = vpop.permute.xlu0 %3706
  %3708 = vrot.lane.b32.xlu0 %v3575, 16
  %v3709 = vpop.permute.xlu0 %3708
  %3710 = vrot.lane.b32.xlu0 %v3576, 16
  %v3711 = vpop.permute.xlu0 %3710
  %3712 = vrot.lane.b32.xlu0 %v3579, 16
  %v3713 = vpop.permute.xlu0 %3712
  %3714 = vrot.lane.b32.xlu0 %v3580, 16
  %v3715 = vpop.permute.xlu0 %3714
  %3716 = vrot.lane.b32.xlu0 %v3583, 16
  %v3717 = vpop.permute.xlu0 %3716
  %3718 = vrot.lane.b32.xlu0 %v3584, 16
  %v3719 = vpop.permute.xlu0 %3718
  %3720 = vrot.lane.b32.xlu0 %v3587, 16
  %v3721 = vpop.permute.xlu0 %3720
  %3722 = vrot.lane.b32.xlu0 %v3588, 16
  %v3723 = vpop.permute.xlu0 %3722
  %3724 = vrot.lane.b32.xlu0 %v3591, 16
  %v3725 = vpop.permute.xlu0 %3724
  %3726 = vrot.lane.b32.xlu0 %v3592, 16
  %v3727 = vpop.permute.xlu0 %3726
  %3762 = vrot.lane.b32.xlu0 %v3594, 32
  %v3763 = vpop.permute.xlu0 %3762
  %3764 = vrot.lane.b32.xlu0 %v3595, 32
  %v3765 = vpop.permute.xlu0 %3764
  %3766 = vrot.lane.b32.xlu0 %v3598, 32
  %v3767 = vpop.permute.xlu0 %3766
  %3768 = vrot.lane.b32.xlu0 %v3599, 32
  %v3769 = vpop.permute.xlu0 %3768
  %3770 = vrot.lane.b32.xlu0 %v3602, 32
  %v3771 = vpop.permute.xlu0 %3770
  %3772 = vrot.lane.b32.xlu0 %v3603, 32
  %v3773 = vpop.permute.xlu0 %3772
  %3774 = vrot.lane.b32.xlu0 %v3606, 32
  %v3775 = vpop.permute.xlu0 %3774
  %3776 = vrot.lane.b32.xlu0 %v3607, 32
  %v3777 = vpop.permute.xlu0 %3776
  %3778 = vrot.lane.b32.xlu0 %v3610, 32
  %v3779 = vpop.permute.xlu0 %3778
  %3780 = vrot.lane.b32.xlu0 %v3611, 32
  %v3781 = vpop.permute.xlu0 %3780
  %3782 = vrot.lane.b32.xlu0 %v3614, 32
  %v3783 = vpop.permute.xlu0 %3782
  %3784 = vrot.lane.b32.xlu0 %v3615, 32
  %v3785 = vpop.permute.xlu0 %3784
  %3786 = vrot.lane.b32.xlu0 %v3618, 32
  %v3787 = vpop.permute.xlu0 %3786
  %3788 = vrot.lane.b32.xlu0 %v3619, 32
  %v3789 = vpop.permute.xlu0 %3788
  %3790 = vrot.lane.b32.xlu0 %v3622, 32
  %v3791 = vpop.permute.xlu0 %3790
  %3792 = vrot.lane.b32.xlu0 %v3623, 32
  %v3793 = vpop.permute.xlu0 %3792
  %3794 = vrot.lane.b32.xlu0 %v3626, 32
  %v3795 = vpop.permute.xlu0 %3794
  %3796 = vrot.lane.b32.xlu0 %v3627, 32
  %v3797 = vpop.permute.xlu0 %3796
  %3798 = vrot.lane.b32.xlu0 %v3630, 32
  %v3799 = vpop.permute.xlu0 %3798
  %3800 = vrot.lane.b32.xlu0 %v3631, 32
  %v3801 = vpop.permute.xlu0 %3800
  %3802 = vrot.lane.b32.xlu0 %v3634, 32
  %v3803 = vpop.permute.xlu0 %3802
  %3804 = vrot.lane.b32.xlu0 %v3635, 32
  %v3805 = vpop.permute.xlu0 %3804
  %3806 = vrot.lane.b32.xlu0 %v3638, 32
  %v3807 = vpop.permute.xlu0 %3806
  %3808 = vrot.lane.b32.xlu0 %v3639, 32
  %v3809 = vpop.permute.xlu0 %3808
  %3810 = vrot.lane.b32.xlu0 %v3642, 32
  %v3811 = vpop.permute.xlu0 %3810
  %3812 = vrot.lane.b32.xlu0 %v3643, 32
  %v3813 = vpop.permute.xlu0 %3812
  %3814 = vrot.lane.b32.xlu0 %v3646, 32
  %v3815 = vpop.permute.xlu0 %3814
  %3816 = vrot.lane.b32.xlu0 %v3647, 32
  %v3817 = vpop.permute.xlu0 %3816
  %3818 = vrot.lane.b32.xlu0 %v3650, 32
  %v3819 = vpop.permute.xlu0 %3818
  %3820 = vrot.lane.b32.xlu0 %v3651, 32
  %v3821 = vpop.permute.xlu0 %3820
  %3822 = vrot.lane.b32.xlu0 %v3654, 32
  %v3823 = vpop.permute.xlu0 %3822
  %3824 = vrot.lane.b32.xlu0 %v3655, 32
  %v3825 = vpop.permute.xlu0 %3824
  %3826 = vrot.lane.b32.xlu0 %v3658, 32
  %v3827 = vpop.permute.xlu0 %3826
  %3828 = vrot.lane.b32.xlu0 %v3659, 32
  %v3829 = vpop.permute.xlu0 %3828
  %3864 = vrot.lane.b32.xlu0 %v3358, 48
  %v3865 = vpop.permute.xlu0 %3864
  %3866 = vrot.lane.b32.xlu0 %v3477, 48
  %v3867 = vpop.permute.xlu0 %3866
  %3868 = vrot.lane.b32.xlu0 %v3476, 48
  %v3869 = vpop.permute.xlu0 %3868
  %3870 = vrot.lane.b32.xlu0 %v3359, 48
  %v3871 = vpop.permute.xlu0 %3870
  %3872 = vrot.lane.b32.xlu0 %v3478, 48
  %v3873 = vpop.permute.xlu0 %3872
  %3874 = vrot.lane.b32.xlu0 %v3360, 48
  %v3875 = vpop.permute.xlu0 %3874
  %3876 = vrot.lane.b32.xlu0 %v3479, 48
  %v3877 = vpop.permute.xlu0 %3876
  %3878 = vrot.lane.b32.xlu0 %v3361, 48
  %v3879 = vpop.permute.xlu0 %3878
  %3880 = vrot.lane.b32.xlu0 %v3480, 48
  %v3881 = vpop.permute.xlu0 %3880
  %3882 = vrot.lane.b32.xlu0 %v3362, 48
  %v3883 = vpop.permute.xlu0 %3882
  %3884 = vrot.lane.b32.xlu0 %v3481, 48
  %v3885 = vpop.permute.xlu0 %3884
  %3886 = vrot.lane.b32.xlu0 %v3363, 48
  %v3887 = vpop.permute.xlu0 %3886
  %3888 = vrot.lane.b32.xlu0 %v3482, 48
  %v3889 = vpop.permute.xlu0 %3888
  %3890 = vrot.lane.b32.xlu0 %v3364, 48
  %v3891 = vpop.permute.xlu0 %3890
  %3892 = vrot.lane.b32.xlu0 %v3483, 48
  %v3893 = vpop.permute.xlu0 %3892
  %3894 = vrot.lane.b32.xlu0 %v3365, 48
  %v3895 = vpop.permute.xlu0 %3894
  %3896 = vrot.lane.b32.xlu0 %v3484, 48
  %v3897 = vpop.permute.xlu0 %3896
  %3898 = vrot.lane.b32.xlu0 %v3366, 48
  %v3899 = vpop.permute.xlu0 %3898
  %3900 = vrot.lane.b32.xlu0 %v3485, 48
  %v3901 = vpop.permute.xlu0 %3900
  %3902 = vrot.lane.b32.xlu0 %v3367, 48
  %v3903 = vpop.permute.xlu0 %3902
  %3904 = vrot.lane.b32.xlu0 %v3486, 48
  %v3905 = vpop.permute.xlu0 %3904
  %3906 = vrot.lane.b32.xlu0 %v3368, 48
  %v3907 = vpop.permute.xlu0 %3906
  %3908 = vrot.lane.b32.xlu0 %v3487, 48
  %v3909 = vpop.permute.xlu0 %3908
  %3910 = vrot.lane.b32.xlu0 %v3369, 48
  %v3911 = vpop.permute.xlu0 %3910
  %3912 = vrot.lane.b32.xlu0 %v3488, 48
  %v3913 = vpop.permute.xlu0 %3912
  %3914 = vrot.lane.b32.xlu0 %v3370, 48
  %v3915 = vpop.permute.xlu0 %3914
  %3916 = vrot.lane.b32.xlu0 %v3489, 48
  %v3917 = vpop.permute.xlu0 %3916
  %3918 = vrot.lane.b32.xlu0 %v3371, 48
  %v3919 = vpop.permute.xlu0 %3918
  %3920 = vrot.lane.b32.xlu0 %v3490, 48
  %v3921 = vpop.permute.xlu0 %3920
  %3922 = vrot.lane.b32.xlu0 %v3372, 48
  %v3923 = vpop.permute.xlu0 %3922
  %3924 = vrot.lane.b32.xlu0 %v3491, 48
  %v3925 = vpop.permute.xlu0 %3924
  %3926 = vrot.lane.b32.xlu0 %v3373, 48
  %v3927 = vpop.permute.xlu0 %3926
  %3928 = vrot.lane.b32.xlu0 %v3492, 48
  %v3929 = vpop.permute.xlu0 %3928
  %3963 = vrot.lane.b32.xlu0 %v3531, 64
  %v3964 = vpop.permute.xlu0 %3963
  %3965 = vrot.lane.b32.xlu0 %v3532, 64
  %v3966 = vpop.permute.xlu0 %3965
  %3967 = vrot.lane.b32.xlu0 %v3527, 64
  %v3968 = vpop.permute.xlu0 %3967
  %3969 = vrot.lane.b32.xlu0 %v3528, 64
  %v3970 = vpop.permute.xlu0 %3969
  %3971 = vrot.lane.b32.xlu0 %v3535, 64
  %v3972 = vpop.permute.xlu0 %3971
  %3973 = vrot.lane.b32.xlu0 %v3536, 64
  %v3974 = vpop.permute.xlu0 %3973
  %3975 = vrot.lane.b32.xlu0 %v3539, 64
  %v3976 = vpop.permute.xlu0 %3975
  %3977 = vrot.lane.b32.xlu0 %v3540, 64
  %v3978 = vpop.permute.xlu0 %3977
  %3979 = vrot.lane.b32.xlu0 %v3543, 64
  %v3980 = vpop.permute.xlu0 %3979
  %3981 = vrot.lane.b32.xlu0 %v3544, 64
  %v3982 = vpop.permute.xlu0 %3981
  %3983 = vrot.lane.b32.xlu0 %v3547, 64
  %v3984 = vpop.permute.xlu0 %3983
  %3985 = vrot.lane.b32.xlu0 %v3548, 64
  %v3986 = vpop.permute.xlu0 %3985
  %3987 = vrot.lane.b32.xlu0 %v3551, 64
  %v3988 = vpop.permute.xlu0 %3987
  %3989 = vrot.lane.b32.xlu0 %v3552, 64
  %v3990 = vpop.permute.xlu0 %3989
  %3991 = vrot.lane.b32.xlu0 %v3555, 64
  %v3992 = vpop.permute.xlu0 %3991
  %3993 = vrot.lane.b32.xlu0 %v3556, 64
  %v3994 = vpop.permute.xlu0 %3993
  %3995 = vrot.lane.b32.xlu0 %v3559, 64
  %v3996 = vpop.permute.xlu0 %3995
  %3997 = vrot.lane.b32.xlu0 %v3560, 64
  %v3998 = vpop.permute.xlu0 %3997
  %3999 = vrot.lane.b32.xlu0 %v3563, 64
  %v4000 = vpop.permute.xlu0 %3999
  %4001 = vrot.lane.b32.xlu0 %v3564, 64
  %v4002 = vpop.permute.xlu0 %4001
  %4003 = vrot.lane.b32.xlu0 %v3567, 64
  %v4004 = vpop.permute.xlu0 %4003
  %4005 = vrot.lane.b32.xlu0 %v3568, 64
  %v4006 = vpop.permute.xlu0 %4005
  %4007 = vrot.lane.b32.xlu0 %v3571, 64
  %v4008 = vpop.permute.xlu0 %4007
  %4009 = vrot.lane.b32.xlu0 %v3572, 64
  %v4010 = vpop.permute.xlu0 %4009
  %4011 = vrot.lane.b32.xlu0 %v3575, 64
  %v4012 = vpop.permute.xlu0 %4011
  %4013 = vrot.lane.b32.xlu0 %v3576, 64
  %v4014 = vpop.permute.xlu0 %4013
  %4015 = vrot.lane.b32.xlu0 %v3579, 64
  %v4016 = vpop.permute.xlu0 %4015
  %4017 = vrot.lane.b32.xlu0 %v3580, 64
  %v4018 = vpop.permute.xlu0 %4017
  %4019 = vrot.lane.b32.xlu0 %v3583, 64
  %v4020 = vpop.permute.xlu0 %4019
  %4021 = vrot.lane.b32.xlu0 %v3584, 64
  %v4022 = vpop.permute.xlu0 %4021
  %4023 = vrot.lane.b32.xlu0 %v3587, 64
  %v4024 = vpop.permute.xlu0 %4023
  %4025 = vrot.lane.b32.xlu0 %v3588, 64
  %v4026 = vpop.permute.xlu0 %4025
  %4027 = vrot.lane.b32.xlu0 %v3591, 64
  %v4028 = vpop.permute.xlu0 %4027
  %4029 = vrot.lane.b32.xlu0 %v3592, 64
  %v4030 = vpop.permute.xlu0 %4029
  %4065 = vrot.lane.b32.xlu0 %v3598, 80
  %v4066 = vpop.permute.xlu0 %4065
  %4067 = vrot.lane.b32.xlu0 %v3599, 80
  %v4068 = vpop.permute.xlu0 %4067
  %4069 = vrot.lane.b32.xlu0 %v3594, 80
  %v4070 = vpop.permute.xlu0 %4069
  %4071 = vrot.lane.b32.xlu0 %v3595, 80
  %v4072 = vpop.permute.xlu0 %4071
  %4073 = vrot.lane.b32.xlu0 %v3602, 80
  %v4074 = vpop.permute.xlu0 %4073
  %4075 = vrot.lane.b32.xlu0 %v3603, 80
  %v4076 = vpop.permute.xlu0 %4075
  %4077 = vrot.lane.b32.xlu0 %v3606, 80
  %v4078 = vpop.permute.xlu0 %4077
  %4079 = vrot.lane.b32.xlu0 %v3607, 80
  %v4080 = vpop.permute.xlu0 %4079
  %4081 = vrot.lane.b32.xlu0 %v3610, 80
  %v4082 = vpop.permute.xlu0 %4081
  %4083 = vrot.lane.b32.xlu0 %v3611, 80
  %v4084 = vpop.permute.xlu0 %4083
  %4085 = vrot.lane.b32.xlu0 %v3614, 80
  %v4086 = vpop.permute.xlu0 %4085
  %4087 = vrot.lane.b32.xlu0 %v3615, 80
  %v4088 = vpop.permute.xlu0 %4087
  %4089 = vrot.lane.b32.xlu0 %v3618, 80
  %v4090 = vpop.permute.xlu0 %4089
  %4091 = vrot.lane.b32.xlu0 %v3619, 80
  %v4092 = vpop.permute.xlu0 %4091
  %4093 = vrot.lane.b32.xlu0 %v3622, 80
  %v4094 = vpop.permute.xlu0 %4093
  %4095 = vrot.lane.b32.xlu0 %v3623, 80
  %v4096 = vpop.permute.xlu0 %4095
  %4097 = vrot.lane.b32.xlu0 %v3626, 80
  %v4098 = vpop.permute.xlu0 %4097
  %4099 = vrot.lane.b32.xlu0 %v3627, 80
  %v4100 = vpop.permute.xlu0 %4099
  %4101 = vrot.lane.b32.xlu0 %v3630, 80
  %v4102 = vpop.permute.xlu0 %4101
  %4103 = vrot.lane.b32.xlu0 %v3631, 80
  %v4104 = vpop.permute.xlu0 %4103
  %4105 = vrot.lane.b32.xlu0 %v3634, 80
  %v4106 = vpop.permute.xlu0 %4105
  %4107 = vrot.lane.b32.xlu0 %v3635, 80
  %v4108 = vpop.permute.xlu0 %4107
  %4109 = vrot.lane.b32.xlu0 %v3638, 80
  %v4110 = vpop.permute.xlu0 %4109
  %4111 = vrot.lane.b32.xlu0 %v3639, 80
  %v4112 = vpop.permute.xlu0 %4111
  %4113 = vrot.lane.b32.xlu0 %v3642, 80
  %v4114 = vpop.permute.xlu0 %4113
  %4115 = vrot.lane.b32.xlu0 %v3643, 80
  %v4116 = vpop.permute.xlu0 %4115
  %4117 = vrot.lane.b32.xlu0 %v3646, 80
  %v4118 = vpop.permute.xlu0 %4117
  %4119 = vrot.lane.b32.xlu0 %v3647, 80
  %v4120 = vpop.permute.xlu0 %4119
  %4121 = vrot.lane.b32.xlu0 %v3650, 80
  %v4122 = vpop.permute.xlu0 %4121
  %4123 = vrot.lane.b32.xlu0 %v3651, 80
  %v4124 = vpop.permute.xlu0 %4123
  %4125 = vrot.lane.b32.xlu0 %v3654, 80
  %v4126 = vpop.permute.xlu0 %4125
  %4127 = vrot.lane.b32.xlu0 %v3655, 80
  %v4128 = vpop.permute.xlu0 %4127
  %4129 = vrot.lane.b32.xlu0 %v3658, 80
  %v4130 = vpop.permute.xlu0 %4129
  %4131 = vrot.lane.b32.xlu0 %v3659, 80
  %v4132 = vpop.permute.xlu0 %4131
  %4167 = vrot.lane.b32.xlu0 %v3476, 96
  %v4168 = vpop.permute.xlu0 %4167
  %4169 = vrot.lane.b32.xlu0 %v3359, 96
  %v4170 = vpop.permute.xlu0 %4169
  %4171 = vrot.lane.b32.xlu0 %v3478, 96
  %v4172 = vpop.permute.xlu0 %4171
  %4173 = vrot.lane.b32.xlu0 %v3360, 96
  %v4174 = vpop.permute.xlu0 %4173
  %4175 = vrot.lane.b32.xlu0 %v3479, 96
  %v4176 = vpop.permute.xlu0 %4175
  %4177 = vrot.lane.b32.xlu0 %v3361, 96
  %v4178 = vpop.permute.xlu0 %4177
  %4179 = vrot.lane.b32.xlu0 %v3480, 96
  %v4180 = vpop.permute.xlu0 %4179
  %4181 = vrot.lane.b32.xlu0 %v3362, 96
  %v4182 = vpop.permute.xlu0 %4181
  %4183 = vrot.lane.b32.xlu0 %v3481, 96
  %v4184 = vpop.permute.xlu0 %4183
  %4185 = vrot.lane.b32.xlu0 %v3363, 96
  %v4186 = vpop.permute.xlu0 %4185
  %4187 = vrot.lane.b32.xlu0 %v3482, 96
  %v4188 = vpop.permute.xlu0 %4187
  %4189 = vrot.lane.b32.xlu0 %v3364, 96
  %v4190 = vpop.permute.xlu0 %4189
  %4191 = vrot.lane.b32.xlu0 %v3483, 96
  %v4192 = vpop.permute.xlu0 %4191
  %4193 = vrot.lane.b32.xlu0 %v3365, 96
  %v4194 = vpop.permute.xlu0 %4193
  %4195 = vrot.lane.b32.xlu0 %v3484, 96
  %v4196 = vpop.permute.xlu0 %4195
  %4197 = vrot.lane.b32.xlu0 %v3367, 96
  %v4198 = vpop.permute.xlu0 %4197
  %4199 = vrot.lane.b32.xlu0 %v3486, 96
  %v4200 = vpop.permute.xlu0 %4199
  %4201 = vrot.lane.b32.xlu0 %v3368, 96
  %v4202 = vpop.permute.xlu0 %4201
  %4203 = vrot.lane.b32.xlu0 %v3487, 96
  %v4204 = vpop.permute.xlu0 %4203
  %4205 = vrot.lane.b32.xlu0 %v3369, 96
  %v4206 = vpop.permute.xlu0 %4205
  %4207 = vrot.lane.b32.xlu0 %v3488, 96
  %v4208 = vpop.permute.xlu0 %4207
  %4209 = vrot.lane.b32.xlu0 %v3370, 96
  %v4210 = vpop.permute.xlu0 %4209
  %4211 = vrot.lane.b32.xlu0 %v3489, 96
  %v4212 = vpop.permute.xlu0 %4211
  %4213 = vrot.lane.b32.xlu0 %v3371, 96
  %v4214 = vpop.permute.xlu0 %4213
  %4215 = vrot.lane.b32.xlu0 %v3490, 96
  %v4216 = vpop.permute.xlu0 %4215
  %4217 = vrot.lane.b32.xlu0 %v3372, 96
  %v4218 = vpop.permute.xlu0 %4217
  %4219 = vrot.lane.b32.xlu0 %v3491, 96
  %v4220 = vpop.permute.xlu0 %4219
  %4221 = vrot.lane.b32.xlu0 %v3373, 96
  %v4222 = vpop.permute.xlu0 %4221
  %4223 = vrot.lane.b32.xlu0 %v3492, 96
  %v4224 = vpop.permute.xlu0 %4223
  %4254 = vrot.lane.b32.xlu0 %v3527, 112
  %v4255 = vpop.permute.xlu0 %4254
  %4256 = vrot.lane.b32.xlu0 %v3528, 112
  %v4257 = vpop.permute.xlu0 %4256
  %4258 = vrot.lane.b32.xlu0 %v3535, 112
  %v4259 = vpop.permute.xlu0 %4258
  %4260 = vrot.lane.b32.xlu0 %v3536, 112
  %v4261 = vpop.permute.xlu0 %4260
  %4262 = vrot.lane.b32.xlu0 %v3539, 112
  %v4263 = vpop.permute.xlu0 %4262
  %4264 = vrot.lane.b32.xlu0 %v3540, 112
  %v4265 = vpop.permute.xlu0 %4264
  %4266 = vrot.lane.b32.xlu0 %v3543, 112
  %v4267 = vpop.permute.xlu0 %4266
  %4268 = vrot.lane.b32.xlu0 %v3544, 112
  %v4269 = vpop.permute.xlu0 %4268
  %4270 = vrot.lane.b32.xlu0 %v3547, 112
  %v4271 = vpop.permute.xlu0 %4270
  %4272 = vrot.lane.b32.xlu0 %v3548, 112
  %v4273 = vpop.permute.xlu0 %4272
  %4274 = vrot.lane.b32.xlu0 %v3551, 112
  %v4275 = vpop.permute.xlu0 %4274
  %4276 = vrot.lane.b32.xlu0 %v3552, 112
  %v4277 = vpop.permute.xlu0 %4276
  %4278 = vrot.lane.b32.xlu0 %v3555, 112
  %v4279 = vpop.permute.xlu0 %4278
  %4280 = vrot.lane.b32.xlu0 %v3556, 112
  %v4281 = vpop.permute.xlu0 %4280
  %4282 = vrot.lane.b32.xlu0 %v3559, 112
  %v4283 = vpop.permute.xlu0 %4282
  %4284 = vrot.lane.b32.xlu0 %v3560, 112
  %v4285 = vpop.permute.xlu0 %4284
  %4286 = vrot.lane.b32.xlu0 %v3567, 112
  %v4287 = vpop.permute.xlu0 %4286
  %4288 = vrot.lane.b32.xlu0 %v3568, 112
  %v4289 = vpop.permute.xlu0 %4288
  %4290 = vrot.lane.b32.xlu0 %v3571, 112
  %v4291 = vpop.permute.xlu0 %4290
  %4292 = vrot.lane.b32.xlu0 %v3572, 112
  %v4293 = vpop.permute.xlu0 %4292
  %4294 = vrot.lane.b32.xlu0 %v3575, 112
  %v4295 = vpop.permute.xlu0 %4294
  %4296 = vrot.lane.b32.xlu0 %v3576, 112
  %v4297 = vpop.permute.xlu0 %4296
  %4298 = vrot.lane.b32.xlu0 %v3579, 112
  %v4299 = vpop.permute.xlu0 %4298
  %4300 = vrot.lane.b32.xlu0 %v3580, 112
  %v4301 = vpop.permute.xlu0 %4300
  %4302 = vrot.lane.b32.xlu0 %v3583, 112
  %v4303 = vpop.permute.xlu0 %4302
  %4304 = vrot.lane.b32.xlu0 %v3584, 112
  %v4305 = vpop.permute.xlu0 %4304
  %4306 = vrot.lane.b32.xlu0 %v3587, 112
  %v4307 = vpop.permute.xlu0 %4306
  %4308 = vrot.lane.b32.xlu0 %v3588, 112
  %v4309 = vpop.permute.xlu0 %4308
  %4310 = vrot.lane.b32.xlu0 %v3591, 112
  %v4311 = vpop.permute.xlu0 %4310
  %4312 = vrot.lane.b32.xlu0 %v3592, 112
  %v4313 = vpop.permute.xlu0 %4312
  %v4344 = vsel %vm495, %v1302, %v3661
  %v4345 = vsel %vm495, %v3476, %v3663
  %v4346 = vsel %vm495, %v3358, %v3665
  %v4347 = vsel %vm495, %v3477, %v3667
  %v4348 = vsel %vm495, %v3359, %v3669
  %v4349 = vsel %vm495, %v3478, %v3671
  %v4350 = vsel %vm495, %v3360, %v3673
  %v4351 = vsel %vm495, %v3479, %v3675
  %v4352 = vsel %vm495, %v3361, %v3677
  %v4353 = vsel %vm495, %v3480, %v3679
  %v4354 = vsel %vm495, %v3362, %v3681
  %v4355 = vsel %vm495, %v3481, %v3683
  %v4356 = vsel %vm495, %v3363, %v3685
  %v4357 = vsel %vm495, %v3482, %v3687
  %v4358 = vsel %vm495, %v3364, %v3689
  %v4359 = vsel %vm495, %v3483, %v3691
  %v4360 = vsel %vm495, %v3365, %v3693
  %v4361 = vsel %vm495, %v3484, %v3695
  %v4362 = vsel %vm495, %v3366, %v3697
  %v4363 = vsel %vm495, %v3485, %v3699
  %v4364 = vsel %vm495, %v3367, %v3701
  %v4365 = vsel %vm495, %v3486, %v3703
  %v4366 = vsel %vm495, %v3368, %v3705
  %v4367 = vsel %vm495, %v3487, %v3707
  %v4368 = vsel %vm495, %v3369, %v3709
  %v4369 = vsel %vm495, %v3488, %v3711
  %v4370 = vsel %vm495, %v3370, %v3713
  %v4371 = vsel %vm495, %v3489, %v3715
  %v4372 = vsel %vm495, %v3371, %v3717
  %v4373 = vsel %vm495, %v3490, %v3719
  %v4374 = vsel %vm495, %v3372, %v3721
  %v4375 = vsel %vm495, %v3491, %v3723
  %v4376 = vsel %vm495, %v3373, %v3725
  %v4377 = vsel %vm495, %v3492, %v3727
  %v4378 = vsel %vm98, %v4344, %v3763
  %v4379 = vsel %vm98, %v4345, %v3765
  %v4380 = vsel %vm98, %v4346, %v3767
  %v4381 = vsel %vm98, %v4347, %v3769
  %v4382 = vsel %vm98, %v4348, %v3771
  %v4383 = vsel %vm98, %v4349, %v3773
  %v4384 = vsel %vm98, %v4350, %v3775
  %v4385 = vsel %vm98, %v4351, %v3777
  %v4386 = vsel %vm98, %v4352, %v3779
  %v4387 = vsel %vm98, %v4353, %v3781
  %v4388 = vsel %vm98, %v4354, %v3783
  %v4389 = vsel %vm98, %v4355, %v3785
  %v4390 = vsel %vm98, %v4356, %v3787
  %v4391 = vsel %vm98, %v4357, %v3789
  %v4392 = vsel %vm98, %v4358, %v3791
  %v4393 = vsel %vm98, %v4359, %v3793
  %v4394 = vsel %vm98, %v4360, %v3795
  %v4395 = vsel %vm98, %v4361, %v3797
  %v4396 = vsel %vm98, %v4362, %v3799
  %v4397 = vsel %vm98, %v4363, %v3801
  %v4398 = vsel %vm98, %v4364, %v3803
  %v4399 = vsel %vm98, %v4365, %v3805
  %v4400 = vsel %vm98, %v4366, %v3807
  %v4401 = vsel %vm98, %v4367, %v3809
  %v4402 = vsel %vm98, %v4368, %v3811
  %v4403 = vsel %vm98, %v4369, %v3813
  %v4404 = vsel %vm98, %v4370, %v3815
  %v4405 = vsel %vm98, %v4371, %v3817
  %v4406 = vsel %vm98, %v4372, %v3819
  %v4407 = vsel %vm98, %v4373, %v3821
  %v4408 = vsel %vm98, %v4374, %v3823
  %v4409 = vsel %vm98, %v4375, %v3825
  %v4410 = vsel %vm98, %v4376, %v3827
  %v4411 = vsel %vm98, %v4377, %v3829
  %v4412 = vsel %vm504, %v4378, %v3865
  %v4413 = vsel %vm504, %v4379, %v3867
  %v4414 = vsel %vm504, %v4380, %v1415
  %v4415 = vsel %vm504, %v4381, %v3869
  %v4416 = vsel %vm504, %v4378, %v3871
  %v4417 = vsel %vm504, %v4379, %v3873
  %v4418 = vsel %vm504, %v4382, %v1415
  %v4419 = vsel %vm504, %v4383, %v3869
  %v4420 = vsel %vm504, %v4378, %v3875
  %v4421 = vsel %vm504, %v4379, %v3877
  %v4422 = vsel %vm504, %v4384, %v1415
  %v4423 = vsel %vm504, %v4385, %v3869
  %v4424 = vsel %vm504, %v4378, %v3879
  %v4425 = vsel %vm504, %v4379, %v3881
  %v4426 = vsel %vm504, %v4386, %v1415
  %v4427 = vsel %vm504, %v4387, %v3869
  %v4428 = vsel %vm504, %v4378, %v3883
  %v4429 = vsel %vm504, %v4379, %v3885
  %v4430 = vsel %vm504, %v4388, %v1415
  %v4431 = vsel %vm504, %v4389, %v3869
  %v4432 = vsel %vm504, %v4378, %v3887
  %v4433 = vsel %vm504, %v4379, %v3889
  %v4434 = vsel %vm504, %v4390, %v1415
  %v4435 = vsel %vm504, %v4391, %v3869
  %v4436 = vsel %vm504, %v4378, %v3891
  %v4437 = vsel %vm504, %v4379, %v3893
  %v4438 = vsel %vm504, %v4392, %v1415
  %v4439 = vsel %vm504, %v4393, %v3869
  %v4440 = vsel %vm504, %v4378, %v3895
  %v4441 = vsel %vm504, %v4379, %v3897
  %v4442 = vsel %vm504, %v4394, %v1415
  %v4443 = vsel %vm504, %v4395, %v3869
  %v4444 = vsel %vm504, %v4378, %v3899
  %v4445 = vsel %vm504, %v4379, %v3901
  %v4446 = vsel %vm504, %v4396, %v1415
  %v4447 = vsel %vm504, %v4397, %v3869
  %v4448 = vsel %vm504, %v4378, %v3903
  %v4449 = vsel %vm504, %v4379, %v3905
  %v4450 = vsel %vm504, %v4398, %v1415
  %v4451 = vsel %vm504, %v4399, %v3869
  %v4452 = vsel %vm504, %v4378, %v3907
  %v4453 = vsel %vm504, %v4379, %v3909
  %v4454 = vsel %vm504, %v4400, %v1415
  %v4455 = vsel %vm504, %v4401, %v3869
  %v4456 = vsel %vm504, %v4378, %v3911
  %v4457 = vsel %vm504, %v4379, %v3913
  %v4458 = vsel %vm504, %v4402, %v1415
  %v4459 = vsel %vm504, %v4403, %v3869
  %v4460 = vsel %vm504, %v4378, %v3915
  %v4461 = vsel %vm504, %v4379, %v3917
  %v4462 = vsel %vm504, %v4404, %v1415
  %v4463 = vsel %vm504, %v4405, %v3869
  %v4464 = vsel %vm504, %v4378, %v3919
  %v4465 = vsel %vm504, %v4379, %v3921
  %v4466 = vsel %vm504, %v4406, %v1415
  %v4467 = vsel %vm504, %v4407, %v3869
  %v4468 = vsel %vm504, %v4378, %v3923
  %v4469 = vsel %vm504, %v4379, %v3925
  %v4470 = vsel %vm504, %v4408, %v1415
  %v4471 = vsel %vm504, %v4409, %v3869
  %v4472 = vsel %vm504, %v4378, %v3927
  %v4473 = vsel %vm504, %v4379, %v3929
  %v4474 = vsel %vm504, %v4410, %v1415
  %v4475 = vsel %vm504, %v4411, %v3869
  %v4476 = vsel %vm509, %v4412, %v3964
  %v4477 = vsel %vm509, %v4413, %v3966
  %v4478 = vsel %vm509, %v4414, %v3968
  %v4479 = vsel %vm509, %v4415, %v3970
  %v4480 = vsel %vm509, %v4416, %v3972
  %v4481 = vsel %vm509, %v4417, %v3974
  %v4482 = vsel %vm509, %v4418, %v3968
  %v4483 = vsel %vm509, %v4419, %v3970
  %v4484 = vsel %vm509, %v4420, %v3976
  %v4485 = vsel %vm509, %v4421, %v3978
  %v4486 = vsel %vm509, %v4422, %v3968
  %v4487 = vsel %vm509, %v4423, %v3970
  %v4488 = vsel %vm509, %v4424, %v3980
  %v4489 = vsel %vm509, %v4425, %v3982
  %v4490 = vsel %vm509, %v4426, %v3968
  %v4491 = vsel %vm509, %v4427, %v3970
  %v4492 = vsel %vm509, %v4428, %v3984
  %v4493 = vsel %vm509, %v4429, %v3986
  %v4494 = vsel %vm509, %v4430, %v3968
  %v4495 = vsel %vm509, %v4431, %v3970
  %v4496 = vsel %vm509, %v4432, %v3988
  %v4497 = vsel %vm509, %v4433, %v3990
  %v4498 = vsel %vm509, %v4434, %v3968
  %v4499 = vsel %vm509, %v4435, %v3970
  %v4500 = vsel %vm509, %v4436, %v3992
  %v4501 = vsel %vm509, %v4437, %v3994
  %v4502 = vsel %vm509, %v4438, %v3968
  %v4503 = vsel %vm509, %v4439, %v3970
  %v4504 = vsel %vm509, %v4440, %v3996
  %v4505 = vsel %vm509, %v4441, %v3998
  %v4506 = vsel %vm509, %v4442, %v3968
  %v4507 = vsel %vm509, %v4443, %v3970
  %v4508 = vsel %vm509, %v4444, %v4000
  %v4509 = vsel %vm509, %v4445, %v4002
  %v4510 = vsel %vm509, %v4446, %v3968
  %v4511 = vsel %vm509, %v4447, %v3970
  %v4512 = vsel %vm509, %v4448, %v4004
  %v4513 = vsel %vm509, %v4449, %v4006
  %v4514 = vsel %vm509, %v4450, %v3968
  %v4515 = vsel %vm509, %v4451, %v3970
  %v4516 = vsel %vm509, %v4452, %v4008
  %v4517 = vsel %vm509, %v4453, %v4010
  %v4518 = vsel %vm509, %v4454, %v3968
  %v4519 = vsel %vm509, %v4455, %v3970
  %v4520 = vsel %vm509, %v4456, %v4012
  %v4521 = vsel %vm509, %v4457, %v4014
  %v4522 = vsel %vm509, %v4458, %v3968
  %v4523 = vsel %vm509, %v4459, %v3970
  %v4524 = vsel %vm509, %v4460, %v4016
  %v4525 = vsel %vm509, %v4461, %v4018
  %v4526 = vsel %vm509, %v4462, %v3968
  %v4527 = vsel %vm509, %v4463, %v3970
  %v4528 = vsel %vm509, %v4464, %v4020
  %v4529 = vsel %vm509, %v4465, %v4022
  %v4530 = vsel %vm509, %v4466, %v3968
  %v4531 = vsel %vm509, %v4467, %v3970
  %v4532 = vsel %vm509, %v4468, %v4024
  %v4533 = vsel %vm509, %v4469, %v4026
  %v4534 = vsel %vm509, %v4470, %v3968
  %v4535 = vsel %vm509, %v4471, %v3970
  %v4536 = vsel %vm509, %v4472, %v4028
  %v4537 = vsel %vm509, %v4473, %v4030
  %v4538 = vsel %vm509, %v4474, %v3968
  %v4539 = vsel %vm509, %v4475, %v3970
  %v4540 = vsel %vm514, %v4476, %v4066
  %v4541 = vsel %vm514, %v4477, %v4068
  %v4542 = vsel %vm514, %v4478, %v4070
  %v4543 = vsel %vm514, %v4479, %v4072
  %v4544 = vsel %vm514, %v4480, %v4074
  %v4545 = vsel %vm514, %v4481, %v4076
  %v4546 = vsel %vm514, %v4482, %v4070
  %v4547 = vsel %vm514, %v4483, %v4072
  %v4548 = vsel %vm514, %v4484, %v4078
  %v4549 = vsel %vm514, %v4485, %v4080
  %v4550 = vsel %vm514, %v4486, %v4070
  %v4551 = vsel %vm514, %v4487, %v4072
  %v4552 = vsel %vm514, %v4488, %v4082
  %v4553 = vsel %vm514, %v4489, %v4084
  %v4554 = vsel %vm514, %v4490, %v4070
  %v4555 = vsel %vm514, %v4491, %v4072
  %v4556 = vsel %vm514, %v4492, %v4086
  %v4557 = vsel %vm514, %v4493, %v4088
  %v4558 = vsel %vm514, %v4494, %v4070
  %v4559 = vsel %vm514, %v4495, %v4072
  %v4560 = vsel %vm514, %v4496, %v4090
  %v4561 = vsel %vm514, %v4497, %v4092
  %v4562 = vsel %vm514, %v4498, %v4070
  %v4563 = vsel %vm514, %v4499, %v4072
  %v4564 = vsel %vm514, %v4500, %v4094
  %v4565 = vsel %vm514, %v4501, %v4096
  %v4566 = vsel %vm514, %v4502, %v4070
  %v4567 = vsel %vm514, %v4503, %v4072
  %v4568 = vsel %vm514, %v4504, %v4098
  %v4569 = vsel %vm514, %v4505, %v4100
  %v4570 = vsel %vm514, %v4506, %v4070
  %v4571 = vsel %vm514, %v4507, %v4072
  %v4572 = vsel %vm514, %v4508, %v4102
  %v4573 = vsel %vm514, %v4509, %v4104
  %v4574 = vsel %vm514, %v4510, %v4070
  %v4575 = vsel %vm514, %v4511, %v4072
  %v4576 = vsel %vm514, %v4512, %v4106
  %v4577 = vsel %vm514, %v4513, %v4108
  %v4578 = vsel %vm514, %v4514, %v4070
  %v4579 = vsel %vm514, %v4515, %v4072
  %v4580 = vsel %vm514, %v4516, %v4110
  %v4581 = vsel %vm514, %v4517, %v4112
  %v4582 = vsel %vm514, %v4518, %v4070
  %v4583 = vsel %vm514, %v4519, %v4072
  %v4584 = vsel %vm514, %v4520, %v4114
  %v4585 = vsel %vm514, %v4521, %v4116
  %v4586 = vsel %vm514, %v4522, %v4070
  %v4587 = vsel %vm514, %v4523, %v4072
  %v4588 = vsel %vm514, %v4524, %v4118
  %v4589 = vsel %vm514, %v4525, %v4120
  %v4590 = vsel %vm514, %v4526, %v4070
  %v4591 = vsel %vm514, %v4527, %v4072
  %v4592 = vsel %vm514, %v4528, %v4122
  %v4593 = vsel %vm514, %v4529, %v4124
  %v4594 = vsel %vm514, %v4530, %v4070
  %v4595 = vsel %vm514, %v4531, %v4072
  %v4596 = vsel %vm514, %v4532, %v4126
  %v4597 = vsel %vm514, %v4533, %v4128
  %v4598 = vsel %vm514, %v4534, %v4070
  %v4599 = vsel %vm514, %v4535, %v4072
  %v4600 = vsel %vm514, %v4536, %v4130
  %v4601 = vsel %vm514, %v4537, %v4132
  %v4602 = vsel %vm514, %v4538, %v4070
  %v4603 = vsel %vm514, %v4539, %v4072
  %v4604 = vsel %vm519, %v4540, %v1494
  %v4605 = vsel %vm519, %v4541, %v4168
  %v4606 = vsel %vm519, %v4542, %v4170
  %v4607 = vsel %vm519, %v4543, %v4172
  %v4608 = vsel %vm519, %v4544, %v1494
  %v4609 = vsel %vm519, %v4545, %v4168
  %v4610 = vsel %vm519, %v4546, %v4174
  %v4611 = vsel %vm519, %v4547, %v4176
  %v4612 = vsel %vm519, %v4548, %v1494
  %v4613 = vsel %vm519, %v4549, %v4168
  %v4614 = vsel %vm519, %v4550, %v4178
  %v4615 = vsel %vm519, %v4551, %v4180
  %v4616 = vsel %vm519, %v4552, %v1494
  %v4617 = vsel %vm519, %v4553, %v4168
  %v4618 = vsel %vm519, %v4554, %v4182
  %v4619 = vsel %vm519, %v4555, %v4184
  %v4620 = vsel %vm519, %v4556, %v1494
  %v4621 = vsel %vm519, %v4557, %v4168
  %v4622 = vsel %vm519, %v4558, %v4186
  %v4623 = vsel %vm519, %v4559, %v4188
  %v4624 = vsel %vm519, %v4560, %v1494
  %v4625 = vsel %vm519, %v4561, %v4168
  %v4626 = vsel %vm519, %v4562, %v4190
  %v4627 = vsel %vm519, %v4563, %v4192
  %v4628 = vsel %vm519, %v4564, %v1494
  %v4629 = vsel %vm519, %v4565, %v4168
  %v4630 = vsel %vm519, %v4566, %v4194
  %v4631 = vsel %vm519, %v4567, %v4196
  %v4632 = vsel %vm519, %v4568, %v1494
  %v4633 = vsel %vm519, %v4569, %v4168
  %v4634 = vsel %vm519, %v4570, %v1494
  %v4635 = vsel %vm519, %v4571, %v4168
  %v4636 = vsel %vm519, %v4572, %v1494
  %v4637 = vsel %vm519, %v4573, %v4168
  %v4638 = vsel %vm519, %v4574, %v4198
  %v4639 = vsel %vm519, %v4575, %v4200
  %v4640 = vsel %vm519, %v4576, %v1494
  %v4641 = vsel %vm519, %v4577, %v4168
  %v4642 = vsel %vm519, %v4578, %v4202
  %v4643 = vsel %vm519, %v4579, %v4204
  %v4644 = vsel %vm519, %v4580, %v1494
  %v4645 = vsel %vm519, %v4581, %v4168
  %v4646 = vsel %vm519, %v4582, %v4206
  %v4647 = vsel %vm519, %v4583, %v4208
  %v4648 = vsel %vm519, %v4584, %v1494
  %v4649 = vsel %vm519, %v4585, %v4168
  %v4650 = vsel %vm519, %v4586, %v4210
  %v4651 = vsel %vm519, %v4587, %v4212
  %v4652 = vsel %vm519, %v4588, %v1494
  %v4653 = vsel %vm519, %v4589, %v4168
  %v4654 = vsel %vm519, %v4590, %v4214
  %v4655 = vsel %vm519, %v4591, %v4216
  %v4656 = vsel %vm519, %v4592, %v1494
  %v4657 = vsel %vm519, %v4593, %v4168
  %v4658 = vsel %vm519, %v4594, %v4218
  %v4659 = vsel %vm519, %v4595, %v4220
  %v4660 = vsel %vm519, %v4596, %v1494
  %v4661 = vsel %vm519, %v4597, %v4168
  %v4662 = vsel %vm519, %v4598, %v4222
  %v4663 = vsel %vm519, %v4599, %v4224
  %v4664 = vsel %vm519, %v4600, %v1494
  %v4665 = vsel %vm519, %v4601, %v4168
  %v4666 = vsel %vm519, %v4602, %v1494
  %v4667 = vsel %vm519, %v4603, %v4168
  %v4668 = vsel %vm524, %v4604, %v4255
  %v4669 = vsel %vm524, %v4605, %v4257
  %v4670 = vsel %vm524, %v4606, %v4259
  %v4671 = vsel %vm524, %v4607, %v4261
  %v4672 = vsel %vm524, %v4608, %v4255
  %v4673 = vsel %vm524, %v4609, %v4257
  %v4674 = vsel %vm524, %v4610, %v4263
  %v4675 = vsel %vm524, %v4611, %v4265
  %v4676 = vsel %vm524, %v4612, %v4255
  %v4677 = vsel %vm524, %v4613, %v4257
  %v4678 = vsel %vm524, %v4614, %v4267
  %v4679 = vsel %vm524, %v4615, %v4269
  %v4680 = vsel %vm524, %v4616, %v4255
  %v4681 = vsel %vm524, %v4617, %v4257
  %v4682 = vsel %vm524, %v4618, %v4271
  %v4683 = vsel %vm524, %v4619, %v4273
  %v4684 = vsel %vm524, %v4620, %v4255
  %v4685 = vsel %vm524, %v4621, %v4257
  %v4686 = vsel %vm524, %v4622, %v4275
  %v4687 = vsel %vm524, %v4623, %v4277
  %v4688 = vsel %vm524, %v4624, %v4255
  %v4689 = vsel %vm524, %v4625, %v4257
  %v4690 = vsel %vm524, %v4626, %v4279
  %v4691 = vsel %vm524, %v4627, %v4281
  %v4692 = vsel %vm524, %v4628, %v4255
  %v4693 = vsel %vm524, %v4629, %v4257
  %v4694 = vsel %vm524, %v4630, %v4283
  %v4695 = vsel %vm524, %v4631, %v4285
  %v4696 = vsel %vm524, %v4632, %v4255
  %v4697 = vsel %vm524, %v4633, %v4257
  %v4698 = vsel %vm524, %v4634, %v4255
  %v4699 = vsel %vm524, %v4635, %v4257
  %v4700 = vsel %vm524, %v4636, %v4255
  %v4701 = vsel %vm524, %v4637, %v4257
  %v4702 = vsel %vm524, %v4638, %v4287
  %v4703 = vsel %vm524, %v4639, %v4289
  %v4704 = vsel %vm524, %v4640, %v4255
  %v4705 = vsel %vm524, %v4641, %v4257
  %v4706 = vsel %vm524, %v4642, %v4291
  %v4707 = vsel %vm524, %v4643, %v4293
  %v4708 = vsel %vm524, %v4644, %v4255
  %v4709 = vsel %vm524, %v4645, %v4257
  %v4710 = vsel %vm524, %v4646, %v4295
  %v4711 = vsel %vm524, %v4647, %v4297
  %v4712 = vsel %vm524, %v4648, %v4255
  %v4713 = vsel %vm524, %v4649, %v4257
  %v4714 = vsel %vm524, %v4650, %v4299
  %v4715 = vsel %vm524, %v4651, %v4301
  %v4716 = vsel %vm524, %v4652, %v4255
  %v4717 = vsel %vm524, %v4653, %v4257
  %v4718 = vsel %vm524, %v4654, %v4303
  %v4719 = vsel %vm524, %v4655, %v4305
  %v4720 = vsel %vm524, %v4656, %v4255
  %v4721 = vsel %vm524, %v4657, %v4257
  %v4722 = vsel %vm524, %v4658, %v4307
  %v4723 = vsel %vm524, %v4659, %v4309
  %v4724 = vsel %vm524, %v4660, %v4255
  %v4725 = vsel %vm524, %v4661, %v4257
  %v4726 = vsel %vm524, %v4662, %v4311
  %v4727 = vsel %vm524, %v4663, %v4313
  %v4728 = vsel %vm524, %v4664, %v4255
  %v4729 = vsel %vm524, %v4665, %v4257
  %v4730 = vsel %vm524, %v4666, %v4255
  %v4731 = vsel %vm524, %v4667, %v4257
  %v4733 = vlaneseq
  %v4734 = vshrl.u32 %v4733, 7
  %v4735 = vsub.s32 0, %v4734
  %v4736 = vrot.slane %v3015, %v4735
  %v4738 = vsel %vm495, %v3594, 0
  %v4740 = vsel %vm495, %v3595, 0
  %v4742 = vsel %vm495, %v3602, 0
  %v4744 = vsel %vm495, %v3603, 0
  %v4746 = vsel %vm495, %v3606, 0
  %v4748 = vsel %vm495, %v3607, 0
  %v4750 = vsel %vm495, %v3610, 0
  %v4752 = vsel %vm495, %v3611, 0
  %v4754 = vsel %vm495, %v3614, 0
  %v4756 = vsel %vm495, %v3615, 0
  %v4758 = vsel %vm495, %v3618, 0
  %v4760 = vsel %vm495, %v3619, 0
  %v4762 = vsel %vm495, %v3622, 0
  %v4764 = vsel %vm495, %v3623, 0
  %v4766 = vsel %vm495, %v3626, 0
  %v4768 = vsel %vm495, %v3627, 0
  %v4770 = vsel %vm495, %v3634, 0
  %v4772 = vsel %vm495, %v3635, 0
  %v4774 = vsel %vm495, %v3638, 0
  %v4776 = vsel %vm495, %v3639, 0
  %v4778 = vsel %vm495, %v3642, 0
  %v4780 = vsel %vm495, %v3643, 0
  %v4782 = vsel %vm495, %v3646, 0
  %v4784 = vsel %vm495, %v3647, 0
  %v4786 = vsel %vm495, %v3650, 0
  %v4788 = vsel %vm495, %v3651, 0
  %v4790 = vsel %vm495, %v3654, 0
  %v4792 = vsel %vm495, %v3655, 0
  %v4794 = vsel %vm495, %v3658, 0
  %v4796 = vsel %vm495, %v3659, 0
  %4798 = vmatprep.subr.mxu0 0.0
  %4799 = vmatpush1.msra.mxu0 %v2997
  %4800 = vmatprep.subr.mxu0 0.0
  %4801 = vmatpush1.msra.mxu0 %v2998
  %4802 = vmatprep.subr.mxu0 0.0
  %4803 = vmatpush1.msra.mxu0 %v2999
  %4804 = vmatprep.subr.mxu0 0.0
  %4805 = vmatpush1.msra.mxu0 %v3000
  %4806 = vmatprep.subr.mxu0 0.0
  %4807 = vmatpush1.msra.mxu0 %v3001
  %4808 = vmatprep.subr.mxu0 0.0
  %4809 = vmatpush1.msra.mxu0 %v3002
  %4810 = vmatprep.subr.mxu0 0.0
  %4811 = vmatpush1.msra.mxu0 %v3003
  %4812 = vmatprep.subr.mxu0 0.0
  %4813 = vmatpush1.msra.mxu0 %v3004
  %4814 = vmatprep.subr.mxu0 0.0
  %4815 = vmatpush1.msra.mxu0 %v3005
  %4816 = vmatprep.subr.mxu0 0.0
  %4817 = vmatpush1.msra.mxu0 %v3006
  %4818 = vmatprep.subr.mxu0 0.0
  %4819 = vmatpush1.msra.mxu0 %v3007
  %4820 = vmatprep.subr.mxu0 0.0
  %4821 = vmatpush1.msra.mxu0 %v3008
  %4822 = vmatprep.subr.mxu0 0.0
  %4823 = vmatpush1.msra.mxu0 %v3009
  %4824 = vmatprep.subr.mxu0 0.0
  %4825 = vmatpush1.msra.mxu0 %v3010
  %4826 = vmatprep.subr.mxu0 0.0
  %4827 = vmatpush1.msra.mxu0 %v3011
  %4828 = vmatprep.subr.mxu0 0.0
  %4829 = vmatpush1.msra.mxu0 %v3012
  %4830 = vmatprep.subr.mxu0 0.0
  %4831 = vmatpush1.msra.mxu0 %v3013
  %4832 = vmatprep.subr.mxu0 0.0
  %4833 = vmatpush1.msra.mxu0 %v3014
  %4834 = vmatprep.subr.mxu0 0.0
  %4835 = vmatpush1.msra.mxu0 0.0
  %4836 = vmatprep.subr.mxu0 0.0
  %4837 = vmatpush1.msra.mxu0 0.0
  %4838 = vmatprep.subr.mxu0 0.0
  %4839 = vmatpush1.msra.mxu0 0.0
  %4840 = vmatprep.subr.mxu0 0.0
  %4841 = vmatpush1.msra.mxu0 0.0
  %4842 = vmatprep.subr.mxu0 0.0
  %4843 = vmatpush1.msra.mxu0 0.0
  %4844 = vmatprep.subr.mxu0 0.0
  %4845 = vmatpush1.msra.mxu0 0.0
  %4846 = vmatprep.subr.mxu0 0.0
  %4847 = vmatpush1.msra.mxu0 0.0
  %4848 = vmatprep.subr.mxu0 0.0
  %4849 = vmatpush1.msra.mxu0 0.0
  %4850 = vmatprep.subr.mxu0 0.0
  %4851 = vmatpush1.msra.mxu0 0.0
  %4852 = vmatprep.subr.mxu0 0.0
  %4853 = vmatpush1.msra.mxu0 0.0
  %4854 = vmatprep.subr.mxu0 0.0
  %4855 = vmatpush1.msra.mxu0 0.0
  %4856 = vmatprep.subr.mxu0 0.0
  %4857 = vmatpush1.msra.mxu0 0.0
  %4858 = vmatprep.subr.mxu0 0.0
  %4859 = vmatpush1.msra.mxu0 0.0
  %4860 = vmatprep.subr.mxu0 0.0
  %4861 = vmatpush1.msra.mxu0 0.0
  %4862 = vmatprep.mubr.f32.mxu0 %v4738
  %4863 = vmatmul.mubr.f32.gmra.mrb[0].mxu0 %v4668
  %v4864 = vpop.f32.mrb[0].mxu0
  %v4865 = vadd.f32 %v4736, %v4864
  %v4866 = vpop.f32.mrb[0].mxu0
  %4867 = vmatprep.mubr.f32.mxu0 %v4740
  %4868 = vmatmul.mubr.f32.gmra.mrb[0].mxu0 %v4669
  %v4869 = vpop.f32.mrb[0].mxu0
  %v4870 = vadd.f32 %v4736, %v4869
  %v4871 = vpop.f32.mrb[0].mxu0
  %4872 = vmatprep.mubr.f32.mxu0 %v4742
  %4873 = vmatmul.mubr.f32.gmra.mrb[0].mxu0 %v4670
  %v4874 = vpop.f32.mrb[0].mxu0
  %v4875 = vadd.f32 %v4736, %v4874
  %v4876 = vpop.f32.mrb[0].mxu0
  %4877 = vmatprep.mubr.f32.mxu0 %v4744
  %4878 = vmatmul.mubr.f32.gmra.mrb[0].mxu0 %v4671
  %v4879 = vpop.f32.mrb[0].mxu0
  %v4880 = vadd.f32 %v4736, %v4879
  %v4881 = vpop.f32.mrb[0].mxu0
  %4882 = vmatprep.mubr.f32.mxu0 %v4738
  %4883 = vmatmul.mubr.f32.gmra.mrb[0].mxu0 %v4672
  %v4884 = vpop.f32.mrb[0].mxu0
  %v4885 = vadd.f32 %v4736, %v4884
  %v4886 = vpop.f32.mrb[0].mxu0
  %4887 = vmatprep.mubr.f32.mxu0 %v4740
  %4888 = vmatmul.mubr.f32.gmra.mrb[0].mxu0 %v4673
  %v4889 = vpop.f32.mrb[0].mxu0
  %v4890 = vadd.f32 %v4736, %v4889
  %v4891 = vpop.f32.mrb[0].mxu0
  %4892 = vmatprep.mubr.f32.mxu0 %v4746
  %4893 = vmatmul.mubr.f32.gmra.mrb[0].mxu0 %v4674
  %v4894 = vpop.f32.mrb[0].mxu0
  %v4895 = vadd.f32 %v4736, %v4894
  %v4896 = vpop.f32.mrb[0].mxu0
  %4897 = vmatprep.mubr.f32.mxu0 %v4748
  %4898 = vmatmul.mubr.f32.gmra.mrb[0].mxu0 %v4675
  %v4899 = vpop.f32.mrb[0].mxu0
  %v4900 = vadd.f32 %v4736, %v4899
  %v4901 = vpop.f32.mrb[0].mxu0
  %4902 = vmatprep.mubr.f32.mxu0 %v4738
  %4903 = vmatmul.mubr.f32.gmra.mrb[0].mxu0 %v4676
  %v4904 = vpop.f32.mrb[0].mxu0
  %v4905 = vadd.f32 %v4736, %v4904
  %v4906 = vpop.f32.mrb[0].mxu0
  %4907 = vmatprep.mubr.f32.mxu0 %v4740
  %4908 = vmatmul.mubr.f32.gmra.mrb[0].mxu0 %v4677
  %v4909 = vpop.f32.mrb[0].mxu0
  %v4910 = vadd.f32 %v4736, %v4909
  %v4911 = vpop.f32.mrb[0].mxu0
  %4912 = vmatprep.mubr.f32.mxu0 %v4750
  %4913 = vmatmul.mubr.f32.gmra.mrb[0].mxu0 %v4678
  %v4914 = vpop.f32.mrb[0].mxu0
  %v4915 = vadd.f32 %v4736, %v4914
  %v4916 = vpop.f32.mrb[0].mxu0
  %4917 = vmatprep.mubr.f32.mxu0 %v4752
  %4918 = vmatmul.mubr.f32.gmra.mrb[0].mxu0 %v4679
  %v4919 = vpop.f32.mrb[0].mxu0
  %v4920 = vadd.f32 %v4736, %v4919
  %v4921 = vpop.f32.mrb[0].mxu0
  %4922 = vmatprep.mubr.f32.mxu0 %v4738
  %4923 = vmatmul.mubr.f32.gmra.mrb[0].mxu0 %v4680
  %v4924 = vpop.f32.mrb[0].mxu0
  %v4925 = vadd.f32 %v4736, %v4924
  %v4926 = vpop.f32.mrb[0].mxu0
  %4927 = vmatprep.mubr.f32.mxu0 %v4740
  %4928 = vmatmul.mubr.f32.gmra.mrb[0].mxu0 %v4681
  %v4929 = vpop.f32.mrb[0].mxu0
  %v4930 = vadd.f32 %v4736, %v4929
  %v4931 = vpop.f32.mrb[0].mxu0
  %4932 = vmatprep.mubr.f32.mxu0 %v4754
  %4933 = vmatmul.mubr.f32.gmra.mrb[0].mxu0 %v4682
  %v4934 = vpop.f32.mrb[0].mxu0
  %v4935 = vadd.f32 %v4736, %v4934
  %v4936 = vpop.f32.mrb[0].mxu0
  %4937 = vmatprep.mubr.f32.mxu0 %v4756
  %4938 = vmatmul.mubr.f32.gmra.mrb[0].mxu0 %v4683
  %v4939 = vpop.f32.mrb[0].mxu0
  %v4940 = vadd.f32 %v4736, %v4939
  %v4941 = vpop.f32.mrb[0].mxu0
  %4942 = vmatprep.mubr.f32.mxu0 %v4738
  %4943 = vmatmul.mubr.f32.gmra.mrb[0].mxu0 %v4684
  %v4944 = vpop.f32.mrb[0].mxu0
  %v4945 = vadd.f32 %v4736, %v4944
  %v4946 = vpop.f32.mrb[0].mxu0
  %4947 = vmatprep.mubr.f32.mxu0 %v4740
  %4948 = vmatmul.mubr.f32.gmra.mrb[0].mxu0 %v4685
  %v4949 = vpop.f32.mrb[0].mxu0
  %v4950 = vadd.f32 %v4736, %v4949
  %v4951 = vpop.f32.mrb[0].mxu0
  %4952 = vmatprep.mubr.f32.mxu0 %v4758
  %4953 = vmatmul.mubr.f32.gmra.mrb[0].mxu0 %v4686
  %v4954 = vpop.f32.mrb[0].mxu0
  %v4955 = vadd.f32 %v4736, %v4954
  %v4956 = vpop.f32.mrb[0].mxu0
  %4957 = vmatprep.mubr.f32.mxu0 %v4760
  %4958 = vmatmul.mubr.f32.gmra.mrb[0].mxu0 %v4687
  %v4959 = vpop.f32.mrb[0].mxu0
  %v4960 = vadd.f32 %v4736, %v4959
  %v4961 = vpop.f32.mrb[0].mxu0
  %4962 = vmatprep.mubr.f32.mxu0 %v4738
  %4963 = vmatmul.mubr.f32.gmra.mrb[0].mxu0 %v4688
  %v4964 = vpop.f32.mrb[0].mxu0
  %v4965 = vadd.f32 %v4736, %v4964
  %v4966 = vpop.f32.mrb[0].mxu0
  %4967 = vmatprep.mubr.f32.mxu0 %v4740
  %4968 = vmatmul.mubr.f32.gmra.mrb[0].mxu0 %v4689
  %v4969 = vpop.f32.mrb[0].mxu0
  %v4970 = vadd.f32 %v4736, %v4969
  %v4971 = vpop.f32.mrb[0].mxu0
  %4972 = vmatprep.mubr.f32.mxu0 %v4762
  %4973 = vmatmul.mubr.f32.gmra.mrb[0].mxu0 %v4690
  %v4974 = vpop.f32.mrb[0].mxu0
  %v4975 = vadd.f32 %v4736, %v4974
  %v4976 = vpop.f32.mrb[0].mxu0
  %4977 = vmatprep.mubr.f32.mxu0 %v4764
  %4978 = vmatmul.mubr.f32.gmra.mrb[0].mxu0 %v4691
  %v4979 = vpop.f32.mrb[0].mxu0
  %v4980 = vadd.f32 %v4736, %v4979
  %v4981 = vpop.f32.mrb[0].mxu0
  %4982 = vmatprep.mubr.f32.mxu0 %v4738
  %4983 = vmatmul.mubr.f32.gmra.mrb[0].mxu0 %v4692
  %v4984 = vpop.f32.mrb[0].mxu0
  %v4985 = vadd.f32 %v4736, %v4984
  %v4986 = vpop.f32.mrb[0].mxu0
  %4987 = vmatprep.mubr.f32.mxu0 %v4740
  %4988 = vmatmul.mubr.f32.gmra.mrb[0].mxu0 %v4693
  %v4989 = vpop.f32.mrb[0].mxu0
  %v4990 = vadd.f32 %v4736, %v4989
  %v4991 = vpop.f32.mrb[0].mxu0
  %4992 = vmatprep.mubr.f32.mxu0 %v4766
  %4993 = vmatmul.mubr.f32.gmra.mrb[0].mxu0 %v4694
  %v4994 = vpop.f32.mrb[0].mxu0
  %v4995 = vadd.f32 %v4736, %v4994
  %v4996 = vpop.f32.mrb[0].mxu0
  %4997 = vmatprep.mubr.f32.mxu0 %v4768
  %4998 = vmatmul.mubr.f32.gmra.mrb[0].mxu0 %v4695
  %v4999 = vpop.f32.mrb[0].mxu0
  %v5000 = vadd.f32 %v4736, %v4999
  %v5001 = vpop.f32.mrb[0].mxu0
  %5002 = vmatprep.mubr.f32.mxu0 %v4738
  %5003 = vmatmul.mubr.f32.gmra.mrb[0].mxu0 %v4696
  %v5004 = vpop.f32.mrb[0].mxu0
  %v5005 = vadd.f32 %v4736, %v5004
  %v5006 = vpop.f32.mrb[0].mxu0
  %5007 = vmatprep.mubr.f32.mxu0 %v4740
  %5008 = vmatmul.mubr.f32.gmra.mrb[0].mxu0 %v4697
  %v5009 = vpop.f32.mrb[0].mxu0
  %v5010 = vadd.f32 %v4736, %v5009
  %v5011 = vpop.f32.mrb[0].mxu0
  %5012 = vmatprep.mubr.f32.mxu0 %v4738
  %5013 = vmatmul.mubr.f32.gmra.mrb[0].mxu0 %v4698
  %v5014 = vpop.f32.mrb[0].mxu0
  %v5015 = vadd.f32 %v4736, %v5014
  %v5016 = vpop.f32.mrb[0].mxu0
  %5017 = vmatprep.mubr.f32.mxu0 %v4740
  %5018 = vmatmul.mubr.f32.gmra.mrb[0].mxu0 %v4699
  %v5019 = vpop.f32.mrb[0].mxu0
  %v5020 = vadd.f32 %v4736, %v5019
  %v5021 = vpop.f32.mrb[0].mxu0
  %5022 = vmatprep.mubr.f32.mxu0 %v4738
  %5023 = vmatmul.mubr.f32.gmra.mrb[0].mxu0 %v4700
  %v5024 = vpop.f32.mrb[0].mxu0
  %v5025 = vadd.f32 %v4736, %v5024
  %v5026 = vpop.f32.mrb[0].mxu0
  %5027 = vmatprep.mubr.f32.mxu0 %v4740
  %5028 = vmatmul.mubr.f32.gmra.mrb[0].mxu0 %v4701
  %v5029 = vpop.f32.mrb[0].mxu0
  %v5030 = vadd.f32 %v4736, %v5029
  %v5031 = vpop.f32.mrb[0].mxu0
  %5032 = vmatprep.mubr.f32.mxu0 %v4770
  %5033 = vmatmul.mubr.f32.gmra.mrb[0].mxu0 %v4702
  %v5034 = vpop.f32.mrb[0].mxu0
  %v5035 = vadd.f32 %v4736, %v5034
  %v5036 = vpop.f32.mrb[0].mxu0
  %5037 = vmatprep.mubr.f32.mxu0 %v4772
  %5038 = vmatmul.mubr.f32.gmra.mrb[0].mxu0 %v4703
  %v5039 = vpop.f32.mrb[0].mxu0
  %v5040 = vadd.f32 %v4736, %v5039
  %v5041 = vpop.f32.mrb[0].mxu0
  %5042 = vmatprep.mubr.f32.mxu0 %v4738
  %5043 = vmatmul.mubr.f32.gmra.mrb[0].mxu0 %v4704
  %v5044 = vpop.f32.mrb[0].mxu0
  %v5045 = vadd.f32 %v4736, %v5044
  %v5046 = vpop.f32.mrb[0].mxu0
  %5047 = vmatprep.mubr.f32.mxu0 %v4740
  %5048 = vmatmul.mubr.f32.gmra.mrb[0].mxu0 %v4705
  %v5049 = vpop.f32.mrb[0].mxu0
  %v5050 = vadd.f32 %v4736, %v5049
  %v5051 = vpop.f32.mrb[0].mxu0
  %5052 = vmatprep.mubr.f32.mxu0 %v4774
  %5053 = vmatmul.mubr.f32.gmra.mrb[0].mxu0 %v4706
  %v5054 = vpop.f32.mrb[0].mxu0
  %v5055 = vadd.f32 %v4736, %v5054
  %v5056 = vpop.f32.mrb[0].mxu0
  %5057 = vmatprep.mubr.f32.mxu0 %v4776
  %5058 = vmatmul.mubr.f32.gmra.mrb[0].mxu0 %v4707
  %v5059 = vpop.f32.mrb[0].mxu0
  %v5060 = vadd.f32 %v4736, %v5059
  %v5061 = vpop.f32.mrb[0].mxu0
  %5062 = vmatprep.mubr.f32.mxu0 %v4738
  %5063 = vmatmul.mubr.f32.gmra.mrb[0].mxu0 %v4708
  %v5064 = vpop.f32.mrb[0].mxu0
  %v5065 = vadd.f32 %v4736, %v5064
  %v5066 = vpop.f32.mrb[0].mxu0
  %5067 = vmatprep.mubr.f32.mxu0 %v4740
  %5068 = vmatmul.mubr.f32.gmra.mrb[0].mxu0 %v4709
  %v5069 = vpop.f32.mrb[0].mxu0
  %v5070 = vadd.f32 %v4736, %v5069
  %v5071 = vpop.f32.mrb[0].mxu0
  %5072 = vmatprep.mubr.f32.mxu0 %v4778
  %5073 = vmatmul.mubr.f32.gmra.mrb[0].mxu0 %v4710
  %v5074 = vpop.f32.mrb[0].mxu0
  %v5075 = vadd.f32 %v4736, %v5074
  %v5076 = vpop.f32.mrb[0].mxu0
  %5077 = vmatprep.mubr.f32.mxu0 %v4780
  %5078 = vmatmul.mubr.f32.gmra.mrb[0].mxu0 %v4711
  %v5079 = vpop.f32.mrb[0].mxu0
  %v5080 = vadd.f32 %v4736, %v5079
  %v5081 = vpop.f32.mrb[0].mxu0
  %5082 = vmatprep.mubr.f32.mxu0 %v4738
  %5083 = vmatmul.mubr.f32.gmra.mrb[0].mxu0 %v4712
  %v5084 = vpop.f32.mrb[0].mxu0
  %v5085 = vadd.f32 %v4736, %v5084
  %v5086 = vpop.f32.mrb[0].mxu0
  %5087 = vmatprep.mubr.f32.mxu0 %v4740
  %5088 = vmatmul.mubr.f32.gmra.mrb[0].mxu0 %v4713
  %v5089 = vpop.f32.mrb[0].mxu0
  %v5090 = vadd.f32 %v4736, %v5089
  %v5091 = vpop.f32.mrb[0].mxu0
  %5092 = vmatprep.mubr.f32.mxu0 %v4782
  %5093 = vmatmul.mubr.f32.gmra.mrb[0].mxu0 %v4714
  %v5094 = vpop.f32.mrb[0].mxu0
  %v5095 = vadd.f32 %v4736, %v5094
  %v5096 = vpop.f32.mrb[0].mxu0
  %5097 = vmatprep.mubr.f32.mxu0 %v4784
  %5098 = vmatmul.mubr.f32.gmra.mrb[0].mxu0 %v4715
  %v5099 = vpop.f32.mrb[0].mxu0
  %v5100 = vadd.f32 %v4736, %v5099
  %v5101 = vpop.f32.mrb[0].mxu0
  %5102 = vmatprep.mubr.f32.mxu0 %v4738
  %5103 = vmatmul.mubr.f32.gmra.mrb[0].mxu0 %v4716
  %v5104 = vpop.f32.mrb[0].mxu0
  %v5105 = vadd.f32 %v4736, %v5104
  %v5106 = vpop.f32.mrb[0].mxu0
  %5107 = vmatprep.mubr.f32.mxu0 %v4740
  %5108 = vmatmul.mubr.f32.gmra.mrb[0].mxu0 %v4717
  %v5109 = vpop.f32.mrb[0].mxu0
  %v5110 = vadd.f32 %v4736, %v5109
  %v5111 = vpop.f32.mrb[0].mxu0
  %5112 = vmatprep.mubr.f32.mxu0 %v4786
  %5113 = vmatmul.mubr.f32.gmra.mrb[0].mxu0 %v4718
  %v5114 = vpop.f32.mrb[0].mxu0
  %v5115 = vadd.f32 %v4736, %v5114
  %v5116 = vpop.f32.mrb[0].mxu0
  %5117 = vmatprep.mubr.f32.mxu0 %v4788
  %5118 = vmatmul.mubr.f32.gmra.mrb[0].mxu0 %v4719
  %v5119 = vpop.f32.mrb[0].mxu0
  %v5120 = vadd.f32 %v4736, %v5119
  %v5121 = vpop.f32.mrb[0].mxu0
  %5122 = vmatprep.mubr.f32.mxu0 %v4738
  %5123 = vmatmul.mubr.f32.gmra.mrb[0].mxu0 %v4720
  %v5124 = vpop.f32.mrb[0].mxu0
  %v5125 = vadd.f32 %v4736, %v5124
  %v5126 = vpop.f32.mrb[0].mxu0
  %5127 = vmatprep.mubr.f32.mxu0 %v4740
  %5128 = vmatmul.mubr.f32.gmra.mrb[0].mxu0 %v4721
  %v5129 = vpop.f32.mrb[0].mxu0
  %v5130 = vadd.f32 %v4736, %v5129
  %v5131 = vpop.f32.mrb[0].mxu0
  %5132 = vmatprep.mubr.f32.mxu0 %v4790
  %5133 = vmatmul.mubr.f32.gmra.mrb[0].mxu0 %v4722
  %v5134 = vpop.f32.mrb[0].mxu0
  %v5135 = vadd.f32 %v4736, %v5134
  %v5136 = vpop.f32.mrb[0].mxu0
  %5137 = vmatprep.mubr.f32.mxu0 %v4792
  %5138 = vmatmul.mubr.f32.gmra.mrb[0].mxu0 %v4723
  %v5139 = vpop.f32.mrb[0].mxu0
  %v5140 = vadd.f32 %v4736, %v5139
  %v5141 = vpop.f32.mrb[0].mxu0
  %5142 = vmatprep.mubr.f32.mxu0 %v4738
  %5143 = vmatmul.mubr.f32.gmra.mrb[0].mxu0 %v4724
  %v5144 = vpop.f32.mrb[0].mxu0
  %v5145 = vadd.f32 %v4736, %v5144
  %v5146 = vpop.f32.mrb[0].mxu0
  %5147 = vmatprep.mubr.f32.mxu0 %v4740
  %5148 = vmatmul.mubr.f32.gmra.mrb[0].mxu0 %v4725
  %v5149 = vpop.f32.mrb[0].mxu0
  %v5150 = vadd.f32 %v4736, %v5149
  %v5151 = vpop.f32.mrb[0].mxu0
  %5152 = vmatprep.mubr.f32.mxu0 %v4794
  %5153 = vmatmul.mubr.f32.gmra.mrb[0].mxu0 %v4726
  %v5154 = vpop.f32.mrb[0].mxu0
  %v5155 = vadd.f32 %v4736, %v5154
  %v5156 = vpop.f32.mrb[0].mxu0
  %5157 = vmatprep.mubr.f32.mxu0 %v4796
  %5158 = vmatmul.mubr.f32.gmra.mrb[0].mxu0 %v4727
  %v5159 = vpop.f32.mrb[0].mxu0
  %v5160 = vadd.f32 %v4736, %v5159
  %v5161 = vpop.f32.mrb[0].mxu0
  %5162 = vmatprep.mubr.f32.mxu0 %v4738
  %5163 = vmatmul.mubr.f32.gmra.mrb[0].mxu0 %v4728
  %v5164 = vpop.f32.mrb[0].mxu0
  %v5165 = vadd.f32 %v4736, %v5164
  %v5166 = vpop.f32.mrb[0].mxu0
  %5167 = vmatprep.mubr.f32.mxu0 %v4740
  %5168 = vmatmul.mubr.f32.gmra.mrb[0].mxu0 %v4729
  %v5169 = vpop.f32.mrb[0].mxu0
  %v5170 = vadd.f32 %v4736, %v5169
  %v5171 = vpop.f32.mrb[0].mxu0
  %5172 = vmatprep.mubr.f32.mxu0 %v4738
  %5173 = vmatmul.mubr.f32.gmra.mrb[0].mxu0 %v4730
  %v5174 = vpop.f32.mrb[0].mxu0
  %v5175 = vadd.f32 %v4736, %v5174
  %v5176 = vpop.f32.mrb[0].mxu0
  %5177 = vmatprep.mubr.f32.mxu0 %v4740
  %5178 = vmatmul.mubr.f32.gmra.mrb[0].mxu0 %v4731
  %v5179 = vpop.f32.mrb[0].mxu0
  %v5180 = vadd.f32 %v4736, %v5179
  %v5181 = vpop.f32.mrb[0].mxu0
  %5182 = vdwg.mxu0
  %vm5183 = vcmask 64512
  %v5184 = vsel %vm5183, %v4865, 0.0
  %v5185 = vsel %vm5183, %v4870, 0.0
  %v5186 = vadd.f32 %v5184, %v5185
  %v5187 = vsel %vm5183, %v4875, 0.0
  %v5188 = vadd.f32 %v5186, %v5187
  %v5189 = vsel %vm5183, %v4880, 0.0
  %v5190 = vadd.f32 %v5188, %v5189
  %v5191 = vsel %vm5183, %v4885, 0.0
  %v5192 = vadd.f32 %v5190, %v5191
  %v5193 = vsel %vm5183, %v4890, 0.0
  %v5194 = vadd.f32 %v5192, %v5193
  %v5195 = vsel %vm5183, %v4895, 0.0
  %v5196 = vadd.f32 %v5194, %v5195
  %v5197 = vsel %vm5183, %v4900, 0.0
  %v5198 = vadd.f32 %v5196, %v5197
  %v5199 = vsel %vm5183, %v4905, 0.0
  %v5200 = vadd.f32 %v5198, %v5199
  %v5201 = vsel %vm5183, %v4910, 0.0
  %v5202 = vadd.f32 %v5200, %v5201
  %v5203 = vsel %vm5183, %v4915, 0.0
  %v5204 = vadd.f32 %v5202, %v5203
  %v5205 = vsel %vm5183, %v4920, 0.0
  %v5206 = vadd.f32 %v5204, %v5205
  %v5207 = vsel %vm5183, %v4925, 0.0
  %v5208 = vadd.f32 %v5206, %v5207
  %v5209 = vsel %vm5183, %v4930, 0.0
  %v5210 = vadd.f32 %v5208, %v5209
  %v5211 = vsel %vm5183, %v4935, 0.0
  %v5212 = vadd.f32 %v5210, %v5211
  %v5213 = vsel %vm5183, %v4940, 0.0
  %v5214 = vadd.f32 %v5212, %v5213
  %v5215 = vsel %vm5183, %v4945, 0.0
  %v5216 = vadd.f32 %v5214, %v5215
  %v5217 = vsel %vm5183, %v4950, 0.0
  %v5218 = vadd.f32 %v5216, %v5217
  %v5219 = vsel %vm5183, %v4955, 0.0
  %v5220 = vadd.f32 %v5218, %v5219
  %v5221 = vsel %vm5183, %v4960, 0.0
  %v5222 = vadd.f32 %v5220, %v5221
  %v5223 = vsel %vm5183, %v4965, 0.0
  %v5224 = vadd.f32 %v5222, %v5223
  %v5225 = vsel %vm5183, %v4970, 0.0
  %v5226 = vadd.f32 %v5224, %v5225
  %v5227 = vsel %vm5183, %v4975, 0.0
  %v5228 = vadd.f32 %v5226, %v5227
  %v5229 = vsel %vm5183, %v4980, 0.0
  %v5230 = vadd.f32 %v5228, %v5229
  %v5231 = vsel %vm5183, %v4985, 0.0
  %v5232 = vadd.f32 %v5230, %v5231
  %v5233 = vsel %vm5183, %v4990, 0.0
  %v5234 = vadd.f32 %v5232, %v5233
  %v5235 = vsel %vm5183, %v4995, 0.0
  %v5236 = vadd.f32 %v5234, %v5235
  %v5237 = vsel %vm5183, %v5000, 0.0
  %v5238 = vadd.f32 %v5236, %v5237
  %v5239 = vsel %vm5183, %v5005, 0.0
  %v5240 = vadd.f32 %v5238, %v5239
  %v5241 = vsel %vm5183, %v5010, 0.0
  %v5242 = vadd.f32 %v5240, %v5241
  %v5243 = vsel %vm5183, %v5015, 0.0
  %v5244 = vadd.f32 %v5242, %v5243
  %v5245 = vsel %vm5183, %v5020, 0.0
  %v5246 = vadd.f32 %v5244, %v5245
  %v5247 = vsel %vm5183, %v5025, 0.0
  %v5248 = vadd.f32 %v5246, %v5247
  %v5249 = vsel %vm5183, %v5030, 0.0
  %v5250 = vadd.f32 %v5248, %v5249
  %v5251 = vsel %vm5183, %v5035, 0.0
  %v5252 = vadd.f32 %v5250, %v5251
  %v5253 = vsel %vm5183, %v5040, 0.0
  %v5254 = vadd.f32 %v5252, %v5253
  %v5255 = vsel %vm5183, %v5045, 0.0
  %v5256 = vadd.f32 %v5254, %v5255
  %v5257 = vsel %vm5183, %v5050, 0.0
  %v5258 = vadd.f32 %v5256, %v5257
  %v5259 = vsel %vm5183, %v5055, 0.0
  %v5260 = vadd.f32 %v5258, %v5259
  %v5261 = vsel %vm5183, %v5060, 0.0
  %v5262 = vadd.f32 %v5260, %v5261
  %v5263 = vsel %vm5183, %v5065, 0.0
  %v5264 = vadd.f32 %v5262, %v5263
  %v5265 = vsel %vm5183, %v5070, 0.0
  %v5266 = vadd.f32 %v5264, %v5265
  %v5267 = vsel %vm5183, %v5075, 0.0
  %v5268 = vadd.f32 %v5266, %v5267
  %v5269 = vsel %vm5183, %v5080, 0.0
  %v5270 = vadd.f32 %v5268, %v5269
  %v5271 = vsel %vm5183, %v5085, 0.0
  %v5272 = vadd.f32 %v5270, %v5271
  %v5273 = vsel %vm5183, %v5090, 0.0
  %v5274 = vadd.f32 %v5272, %v5273
  %v5275 = vsel %vm5183, %v5095, 0.0
  %v5276 = vadd.f32 %v5274, %v5275
  %v5277 = vsel %vm5183, %v5100, 0.0
  %v5278 = vadd.f32 %v5276, %v5277
  %v5279 = vsel %vm5183, %v5105, 0.0
  %v5280 = vadd.f32 %v5278, %v5279
  %v5281 = vsel %vm5183, %v5110, 0.0
  %v5282 = vadd.f32 %v5280, %v5281
  %v5283 = vsel %vm5183, %v5115, 0.0
  %v5284 = vadd.f32 %v5282, %v5283
  %v5285 = vsel %vm5183, %v5120, 0.0
  %v5286 = vadd.f32 %v5284, %v5285
  %v5287 = vsel %vm5183, %v5125, 0.0
  %v5288 = vadd.f32 %v5286, %v5287
  %v5289 = vsel %vm5183, %v5130, 0.0
  %v5290 = vadd.f32 %v5288, %v5289
  %v5291 = vsel %vm5183, %v5135, 0.0
  %v5292 = vadd.f32 %v5290, %v5291
  %v5293 = vsel %vm5183, %v5140, 0.0
  %v5294 = vadd.f32 %v5292, %v5293
  %v5295 = vsel %vm5183, %v5145, 0.0
  %v5296 = vadd.f32 %v5294, %v5295
  %v5297 = vsel %vm5183, %v5150, 0.0
  %v5298 = vadd.f32 %v5296, %v5297
  %v5299 = vsel %vm5183, %v5155, 0.0
  %v5300 = vadd.f32 %v5298, %v5299
  %v5301 = vsel %vm5183, %v5160, 0.0
  %v5302 = vadd.f32 %v5300, %v5301
  %v5303 = vsel %vm5183, %v5165, 0.0
  %v5304 = vadd.f32 %v5302, %v5303
  %v5305 = vsel %vm5183, %v5170, 0.0
  %v5306 = vadd.f32 %v5304, %v5305
  %v5307 = vsel %vm5183, %v5175, 0.0
  %v5308 = vadd.f32 %v5306, %v5307
  %v5309 = vsel %vm5183, %v5180, 0.0
  %v5310 = vadd.f32 %v5308, %v5309
  %v5311 = vrot.slane %v5310, 4
  %v5312 = vadd.f32 %v5310, %v5311
  %v5313 = vrot.slane %v5312, 2
  %v5314 = vadd.f32 %v5312, %v5313
  %v5315 = vrot.slane %v5314, 1
  %v5316 = vadd.f32 %v5314, %v5315
  %v5317 = vmul.f32 %v5316, 0.001953125
  %v5318 = vmul.f32 %v4865, %v4865
  %v5319 = vmul.f32 %v4870, %v4870
  %v5320 = vmul.f32 %v4875, %v4875
  %v5321 = vmul.f32 %v4880, %v4880
  %v5322 = vmul.f32 %v4885, %v4885
  %v5323 = vmul.f32 %v4890, %v4890
  %v5324 = vmul.f32 %v4895, %v4895
  %v5325 = vmul.f32 %v4900, %v4900
  %v5326 = vmul.f32 %v4905, %v4905
  %v5327 = vmul.f32 %v4910, %v4910
  %v5328 = vmul.f32 %v4915, %v4915
  %v5329 = vmul.f32 %v4920, %v4920
  %v5330 = vmul.f32 %v4925, %v4925
  %v5331 = vmul.f32 %v4930, %v4930
  %v5332 = vmul.f32 %v4935, %v4935
  %v5333 = vmul.f32 %v4940, %v4940
  %v5334 = vmul.f32 %v4945, %v4945
  %v5335 = vmul.f32 %v4950, %v4950
  %v5336 = vmul.f32 %v4955, %v4955
  %v5337 = vmul.f32 %v4960, %v4960
  %v5338 = vmul.f32 %v4965, %v4965
  %v5339 = vmul.f32 %v4970, %v4970
  %v5340 = vmul.f32 %v4975, %v4975
  %v5341 = vmul.f32 %v4980, %v4980
  %v5342 = vmul.f32 %v4985, %v4985
  %v5343 = vmul.f32 %v4990, %v4990
  %v5344 = vmul.f32 %v4995, %v4995
  %v5345 = vmul.f32 %v5000, %v5000
  %v5346 = vmul.f32 %v5005, %v5005
  %v5347 = vmul.f32 %v5010, %v5010
  %v5348 = vmul.f32 %v5015, %v5015
  %v5349 = vmul.f32 %v5020, %v5020
  %v5350 = vmul.f32 %v5025, %v5025
  %v5351 = vmul.f32 %v5030, %v5030
  %v5352 = vmul.f32 %v5035, %v5035
  %v5353 = vmul.f32 %v5040, %v5040
  %v5354 = vmul.f32 %v5045, %v5045
  %v5355 = vmul.f32 %v5050, %v5050
  %v5356 = vmul.f32 %v5055, %v5055
  %v5357 = vmul.f32 %v5060, %v5060
  %v5358 = vmul.f32 %v5065, %v5065
  %v5359 = vmul.f32 %v5070, %v5070
  %v5360 = vmul.f32 %v5075, %v5075
  %v5361 = vmul.f32 %v5080, %v5080
  %v5362 = vmul.f32 %v5085, %v5085
  %v5363 = vmul.f32 %v5090, %v5090
  %v5364 = vmul.f32 %v5095, %v5095
  %v5365 = vmul.f32 %v5100, %v5100
  %v5366 = vmul.f32 %v5105, %v5105
  %v5367 = vmul.f32 %v5110, %v5110
  %v5368 = vmul.f32 %v5115, %v5115
  %v5369 = vmul.f32 %v5120, %v5120
  %v5370 = vmul.f32 %v5125, %v5125
  %v5371 = vmul.f32 %v5130, %v5130
  %v5372 = vmul.f32 %v5135, %v5135
  %v5373 = vmul.f32 %v5140, %v5140
  %v5374 = vmul.f32 %v5145, %v5145
  %v5375 = vmul.f32 %v5150, %v5150
  %v5376 = vmul.f32 %v5155, %v5155
  %v5377 = vmul.f32 %v5160, %v5160
  %v5378 = vmul.f32 %v5165, %v5165
  %v5379 = vmul.f32 %v5170, %v5170
  %v5380 = vmul.f32 %v5175, %v5175
  %v5381 = vmul.f32 %v5180, %v5180
  %v5382 = vsel %vm5183, %v5318, 0.0
  %v5383 = vsel %vm5183, %v5319, 0.0
  %v5384 = vadd.f32 %v5382, %v5383
  %v5385 = vsel %vm5183, %v5320, 0.0
  %v5386 = vadd.f32 %v5384, %v5385
  %v5387 = vsel %vm5183, %v5321, 0.0
  %v5388 = vadd.f32 %v5386, %v5387
  %v5389 = vsel %vm5183, %v5322, 0.0
  %v5390 = vadd.f32 %v5388, %v5389
  %v5391 = vsel %vm5183, %v5323, 0.0
  %v5392 = vadd.f32 %v5390, %v5391
  %v5393 = vsel %vm5183, %v5324, 0.0
  %v5394 = vadd.f32 %v5392, %v5393
  %v5395 = vsel %vm5183, %v5325, 0.0
  %v5396 = vadd.f32 %v5394, %v5395
  %v5397 = vsel %vm5183, %v5326, 0.0
  %v5398 = vadd.f32 %v5396, %v5397
  %v5399 = vsel %vm5183, %v5327, 0.0
  %v5400 = vadd.f32 %v5398, %v5399
  %v5401 = vsel %vm5183, %v5328, 0.0
  %v5402 = vadd.f32 %v5400, %v5401
  %v5403 = vsel %vm5183, %v5329, 0.0
  %v5404 = vadd.f32 %v5402, %v5403
  %v5405 = vsel %vm5183, %v5330, 0.0
  %v5406 = vadd.f32 %v5404, %v5405
  %v5407 = vsel %vm5183, %v5331, 0.0
  %v5408 = vadd.f32 %v5406, %v5407
  %v5409 = vsel %vm5183, %v5332, 0.0
  %v5410 = vadd.f32 %v5408, %v5409
  %v5411 = vsel %vm5183, %v5333, 0.0
  %v5412 = vadd.f32 %v5410, %v5411
  %v5413 = vsel %vm5183, %v5334, 0.0
  %v5414 = vadd.f32 %v5412, %v5413
  %v5415 = vsel %vm5183, %v5335, 0.0
  %v5416 = vadd.f32 %v5414, %v5415
  %v5417 = vsel %vm5183, %v5336, 0.0
  %v5418 = vadd.f32 %v5416, %v5417
  %v5419 = vsel %vm5183, %v5337, 0.0
  %v5420 = vadd.f32 %v5418, %v5419
  %v5421 = vsel %vm5183, %v5338, 0.0
  %v5422 = vadd.f32 %v5420, %v5421
  %v5423 = vsel %vm5183, %v5339, 0.0
  %v5424 = vadd.f32 %v5422, %v5423
  %v5425 = vsel %vm5183, %v5340, 0.0
  %v5426 = vadd.f32 %v5424, %v5425
  %v5427 = vsel %vm5183, %v5341, 0.0
  %v5428 = vadd.f32 %v5426, %v5427
  %v5429 = vsel %vm5183, %v5342, 0.0
  %v5430 = vadd.f32 %v5428, %v5429
  %v5431 = vsel %vm5183, %v5343, 0.0
  %v5432 = vadd.f32 %v5430, %v5431
  %v5433 = vsel %vm5183, %v5344, 0.0
  %v5434 = vadd.f32 %v5432, %v5433
  %v5435 = vsel %vm5183, %v5345, 0.0
  %v5436 = vadd.f32 %v5434, %v5435
  %v5437 = vsel %vm5183, %v5346, 0.0
  %v5438 = vadd.f32 %v5436, %v5437
  %v5439 = vsel %vm5183, %v5347, 0.0
  %v5440 = vadd.f32 %v5438, %v5439
  %v5441 = vsel %vm5183, %v5348, 0.0
  %v5442 = vadd.f32 %v5440, %v5441
  %v5443 = vsel %vm5183, %v5349, 0.0
  %v5444 = vadd.f32 %v5442, %v5443
  %v5445 = vsel %vm5183, %v5350, 0.0
  %v5446 = vadd.f32 %v5444, %v5445
  %v5447 = vsel %vm5183, %v5351, 0.0
  %v5448 = vadd.f32 %v5446, %v5447
  %v5449 = vsel %vm5183, %v5352, 0.0
  %v5450 = vadd.f32 %v5448, %v5449
  %v5451 = vsel %vm5183, %v5353, 0.0
  %v5452 = vadd.f32 %v5450, %v5451
  %v5453 = vsel %vm5183, %v5354, 0.0
  %v5454 = vadd.f32 %v5452, %v5453
  %v5455 = vsel %vm5183, %v5355, 0.0
  %v5456 = vadd.f32 %v5454, %v5455
  %v5457 = vsel %vm5183, %v5356, 0.0
  %v5458 = vadd.f32 %v5456, %v5457
  %v5459 = vsel %vm5183, %v5357, 0.0
  %v5460 = vadd.f32 %v5458, %v5459
  %v5461 = vsel %vm5183, %v5358, 0.0
  %v5462 = vadd.f32 %v5460, %v5461
  %v5463 = vsel %vm5183, %v5359, 0.0
  %v5464 = vadd.f32 %v5462, %v5463
  %v5465 = vsel %vm5183, %v5360, 0.0
  %v5466 = vadd.f32 %v5464, %v5465
  %v5467 = vsel %vm5183, %v5361, 0.0
  %v5468 = vadd.f32 %v5466, %v5467
  %v5469 = vsel %vm5183, %v5362, 0.0
  %v5470 = vadd.f32 %v5468, %v5469
  %v5471 = vsel %vm5183, %v5363, 0.0
  %v5472 = vadd.f32 %v5470, %v5471
  %v5473 = vsel %vm5183, %v5364, 0.0
  %v5474 = vadd.f32 %v5472, %v5473
  %v5475 = vsel %vm5183, %v5365, 0.0
  %v5476 = vadd.f32 %v5474, %v5475
  %v5477 = vsel %vm5183, %v5366, 0.0
  %v5478 = vadd.f32 %v5476, %v5477
  %v5479 = vsel %vm5183, %v5367, 0.0
  %v5480 = vadd.f32 %v5478, %v5479
  %v5481 = vsel %vm5183, %v5368, 0.0
  %v5482 = vadd.f32 %v5480, %v5481
  %v5483 = vsel %vm5183, %v5369, 0.0
  %v5484 = vadd.f32 %v5482, %v5483
  %v5485 = vsel %vm5183, %v5370, 0.0
  %v5486 = vadd.f32 %v5484, %v5485
  %v5487 = vsel %vm5183, %v5371, 0.0
  %v5488 = vadd.f32 %v5486, %v5487
  %v5489 = vsel %vm5183, %v5372, 0.0
  %v5490 = vadd.f32 %v5488, %v5489
  %v5491 = vsel %vm5183, %v5373, 0.0
  %v5492 = vadd.f32 %v5490, %v5491
  %v5493 = vsel %vm5183, %v5374, 0.0
  %v5494 = vadd.f32 %v5492, %v5493
  %v5495 = vsel %vm5183, %v5375, 0.0
  %v5496 = vadd.f32 %v5494, %v5495
  %v5497 = vsel %vm5183, %v5376, 0.0
  %v5498 = vadd.f32 %v5496, %v5497
  %v5499 = vsel %vm5183, %v5377, 0.0
  %v5500 = vadd.f32 %v5498, %v5499
  %v5501 = vsel %vm5183, %v5378, 0.0
  %v5502 = vadd.f32 %v5500, %v5501
  %v5503 = vsel %vm5183, %v5379, 0.0
  %v5504 = vadd.f32 %v5502, %v5503
  %v5505 = vsel %vm5183, %v5380, 0.0
  %v5506 = vadd.f32 %v5504, %v5505
  %v5507 = vsel %vm5183, %v5381, 0.0
  %v5508 = vadd.f32 %v5506, %v5507
  %v5509 = vrot.slane %v5508, 4
  %v5510 = vadd.f32 %v5508, %v5509
  %v5511 = vrot.slane %v5510, 2
  %v5512 = vadd.f32 %v5510, %v5511
  %v5513 = vrot.slane %v5512, 1
  %v5514 = vadd.f32 %v5512, %v5513
  %v5515 = vmul.f32 %v5514, 0.001953125
  %v5516 = vmul.f32 %v5317, %v5317
  %v5517 = vsub.f32 %v5515, %v5516
  %v5518 = vadd.f32 %v5517, 1e-05
  %v5519 = vrsqrt.pop %v5518
  %v5520 = vmul.f32 %v3016, %v5519
  %v5521 = vsub.f32 %v4865, %v5317
  %v5522 = vsub.f32 %v4870, %v5317
  %v5523 = vsub.f32 %v4875, %v5317
  %v5524 = vsub.f32 %v4880, %v5317
  %v5525 = vsub.f32 %v4885, %v5317
  %v5526 = vsub.f32 %v4890, %v5317
  %v5527 = vsub.f32 %v4895, %v5317
  %v5528 = vsub.f32 %v4900, %v5317
  %v5529 = vsub.f32 %v4905, %v5317
  %v5530 = vsub.f32 %v4910, %v5317
  %v5531 = vsub.f32 %v4915, %v5317
  %v5532 = vsub.f32 %v4920, %v5317
  %v5533 = vsub.f32 %v4925, %v5317
  %v5534 = vsub.f32 %v4930, %v5317
  %v5535 = vsub.f32 %v4935, %v5317
  %v5536 = vsub.f32 %v4940, %v5317
  %v5537 = vsub.f32 %v4945, %v5317
  %v5538 = vsub.f32 %v4950, %v5317
  %v5539 = vsub.f32 %v4955, %v5317
  %v5540 = vsub.f32 %v4960, %v5317
  %v5541 = vsub.f32 %v4965, %v5317
  %v5542 = vsub.f32 %v4970, %v5317
  %v5543 = vsub.f32 %v4975, %v5317
  %v5544 = vsub.f32 %v4980, %v5317
  %v5545 = vsub.f32 %v4985, %v5317
  %v5546 = vsub.f32 %v4990, %v5317
  %v5547 = vsub.f32 %v4995, %v5317
  %v5548 = vsub.f32 %v5000, %v5317
  %v5549 = vsub.f32 %v5005, %v5317
  %v5550 = vsub.f32 %v5010, %v5317
  %v5551 = vsub.f32 %v5015, %v5317
  %v5552 = vsub.f32 %v5020, %v5317
  %v5553 = vsub.f32 %v5025, %v5317
  %v5554 = vsub.f32 %v5030, %v5317
  %v5555 = vsub.f32 %v5035, %v5317
  %v5556 = vsub.f32 %v5040, %v5317
  %v5557 = vsub.f32 %v5045, %v5317
  %v5558 = vsub.f32 %v5050, %v5317
  %v5559 = vsub.f32 %v5055, %v5317
  %v5560 = vsub.f32 %v5060, %v5317
  %v5561 = vsub.f32 %v5065, %v5317
  %v5562 = vsub.f32 %v5070, %v5317
  %v5563 = vsub.f32 %v5075, %v5317
  %v5564 = vsub.f32 %v5080, %v5317
  %v5565 = vsub.f32 %v5085, %v5317
  %v5566 = vsub.f32 %v5090, %v5317
  %v5567 = vsub.f32 %v5095, %v5317
  %v5568 = vsub.f32 %v5100, %v5317
  %v5569 = vsub.f32 %v5105, %v5317
  %v5570 = vsub.f32 %v5110, %v5317
  %v5571 = vsub.f32 %v5115, %v5317
  %v5572 = vsub.f32 %v5120, %v5317
  %v5573 = vsub.f32 %v5125, %v5317
  %v5574 = vsub.f32 %v5130, %v5317
  %v5575 = vsub.f32 %v5135, %v5317
  %v5576 = vsub.f32 %v5140, %v5317
  %v5577 = vsub.f32 %v5145, %v5317
  %v5578 = vsub.f32 %v5150, %v5317
  %v5579 = vsub.f32 %v5155, %v5317
  %v5580 = vsub.f32 %v5160, %v5317
  %v5581 = vsub.f32 %v5165, %v5317
  %v5582 = vsub.f32 %v5170, %v5317
  %v5583 = vsub.f32 %v5175, %v5317
  %v5584 = vsub.f32 %v5180, %v5317
  %v5586 = vlaneseq
  %v5587 = vshrl.u32 %v5586, 7
  %v5588 = vsub.s32 0, %v5587
  %v5589 = vrot.slane %v5520, %v5588
  %v5591 = vmul.f32 %v5521, %v5589
  %v5592 = vmul.f32 %v5522, %v5589
  %v5593 = vmul.f32 %v5523, %v5589
  %v5594 = vmul.f32 %v5524, %v5589
  %v5595 = vmul.f32 %v5525, %v5589
  %v5596 = vmul.f32 %v5526, %v5589
  %v5597 = vmul.f32 %v5527, %v5589
  %v5598 = vmul.f32 %v5528, %v5589
  %v5599 = vmul.f32 %v5529, %v5589
  %v5600 = vmul.f32 %v5530, %v5589
  %v5601 = vmul.f32 %v5531, %v5589
  %v5602 = vmul.f32 %v5532, %v5589
  %v5603 = vmul.f32 %v5533, %v5589
  %v5604 = vmul.f32 %v5534, %v5589
  %v5605 = vmul.f32 %v5535, %v5589
  %v5606 = vmul.f32 %v5536, %v5589
  %v5607 = vmul.f32 %v5537, %v5589
  %v5608 = vmul.f32 %v5538, %v5589
  %v5609 = vmul.f32 %v5539, %v5589
  %v5610 = vmul.f32 %v5540, %v5589
  %v5611 = vmul.f32 %v5541, %v5589
  %v5612 = vmul.f32 %v5542, %v5589
  %v5613 = vmul.f32 %v5543, %v5589
  %v5614 = vmul.f32 %v5544, %v5589
  %v5615 = vmul.f32 %v5545, %v5589
  %v5616 = vmul.f32 %v5546, %v5589
  %v5617 = vmul.f32 %v5547, %v5589
  %v5618 = vmul.f32 %v5548, %v5589
  %v5619 = vmul.f32 %v5549, %v5589
  %v5620 = vmul.f32 %v5550, %v5589
  %v5621 = vmul.f32 %v5551, %v5589
  %v5622 = vmul.f32 %v5552, %v5589
  %v5623 = vmul.f32 %v5553, %v5589
  %v5624 = vmul.f32 %v5554, %v5589
  %v5625 = vmul.f32 %v5555, %v5589
  %v5626 = vmul.f32 %v5556, %v5589
  %v5627 = vmul.f32 %v5557, %v5589
  %v5628 = vmul.f32 %v5558, %v5589
  %v5629 = vmul.f32 %v5559, %v5589
  %v5630 = vmul.f32 %v5560, %v5589
  %v5631 = vmul.f32 %v5561, %v5589
  %v5632 = vmul.f32 %v5562, %v5589
  %v5633 = vmul.f32 %v5563, %v5589
  %v5634 = vmul.f32 %v5564, %v5589
  %v5635 = vmul.f32 %v5565, %v5589
  %v5636 = vmul.f32 %v5566, %v5589
  %v5637 = vmul.f32 %v5567, %v5589
  %v5638 = vmul.f32 %v5568, %v5589
  %v5639 = vmul.f32 %v5569, %v5589
  %v5640 = vmul.f32 %v5570, %v5589
  %v5641 = vmul.f32 %v5571, %v5589
  %v5642 = vmul.f32 %v5572, %v5589
  %v5643 = vmul.f32 %v5573, %v5589
  %v5644 = vmul.f32 %v5574, %v5589
  %v5645 = vmul.f32 %v5575, %v5589
  %v5646 = vmul.f32 %v5576, %v5589
  %v5647 = vmul.f32 %v5577, %v5589
  %v5648 = vmul.f32 %v5578, %v5589
  %v5649 = vmul.f32 %v5579, %v5589
  %v5650 = vmul.f32 %v5580, %v5589
  %v5651 = vmul.f32 %v5581, %v5589
  %v5652 = vmul.f32 %v5582, %v5589
  %v5653 = vmul.f32 %v5583, %v5589
  %v5654 = vmul.f32 %v5584, %v5589
  %v5656 = vlaneseq
  %v5657 = vshrl.u32 %v5656, 7
  %v5658 = vsub.s32 0, %v5657
  %v5659 = vrot.slane %v3017, %v5658
  %v5661 = vadd.f32 %v5591, %v5659
  %v5662 = vadd.f32 %v5592, %v5659
  %v5663 = vadd.f32 %v5593, %v5659
  %v5664 = vadd.f32 %v5594, %v5659
  %v5665 = vadd.f32 %v5595, %v5659
  %v5666 = vadd.f32 %v5596, %v5659
  %v5667 = vadd.f32 %v5597, %v5659
  %v5668 = vadd.f32 %v5598, %v5659
  %v5669 = vadd.f32 %v5599, %v5659
  %v5670 = vadd.f32 %v5600, %v5659
  %v5671 = vadd.f32 %v5601, %v5659
  %v5672 = vadd.f32 %v5602, %v5659
  %v5673 = vadd.f32 %v5603, %v5659
  %v5674 = vadd.f32 %v5604, %v5659
  %v5675 = vadd.f32 %v5605, %v5659
  %v5676 = vadd.f32 %v5606, %v5659
  %v5677 = vadd.f32 %v5607, %v5659
  %v5678 = vadd.f32 %v5608, %v5659
  %v5679 = vadd.f32 %v5609, %v5659
  %v5680 = vadd.f32 %v5610, %v5659
  %v5681 = vadd.f32 %v5611, %v5659
  %v5682 = vadd.f32 %v5612, %v5659
  %v5683 = vadd.f32 %v5613, %v5659
  %v5684 = vadd.f32 %v5614, %v5659
  %v5685 = vadd.f32 %v5615, %v5659
  %v5686 = vadd.f32 %v5616, %v5659
  %v5687 = vadd.f32 %v5617, %v5659
  %v5688 = vadd.f32 %v5618, %v5659
  %v5689 = vadd.f32 %v5619, %v5659
  %v5690 = vadd.f32 %v5620, %v5659
  %v5691 = vadd.f32 %v5621, %v5659
  %v5692 = vadd.f32 %v5622, %v5659
  %v5693 = vadd.f32 %v5623, %v5659
  %v5694 = vadd.f32 %v5624, %v5659
  %v5695 = vadd.f32 %v5625, %v5659
  %v5696 = vadd.f32 %v5626, %v5659
  %v5697 = vadd.f32 %v5627, %v5659
  %v5698 = vadd.f32 %v5628, %v5659
  %v5699 = vadd.f32 %v5629, %v5659
  %v5700 = vadd.f32 %v5630, %v5659
  %v5701 = vadd.f32 %v5631, %v5659
  %v5702 = vadd.f32 %v5632, %v5659
  %v5703 = vadd.f32 %v5633, %v5659
  %v5704 = vadd.f32 %v5634, %v5659
  %v5705 = vadd.f32 %v5635, %v5659
  %v5706 = vadd.f32 %v5636, %v5659
  %v5707 = vadd.f32 %v5637, %v5659
  %v5708 = vadd.f32 %v5638, %v5659
  %v5709 = vadd.f32 %v5639, %v5659
  %v5710 = vadd.f32 %v5640, %v5659
  %v5711 = vadd.f32 %v5641, %v5659
  %v5712 = vadd.f32 %v5642, %v5659
  %v5713 = vadd.f32 %v5643, %v5659
  %v5714 = vadd.f32 %v5644, %v5659
  %v5715 = vadd.f32 %v5645, %v5659
  %v5716 = vadd.f32 %v5646, %v5659
  %v5717 = vadd.f32 %v5647, %v5659
  %v5718 = vadd.f32 %v5648, %v5659
  %v5719 = vadd.f32 %v5649, %v5659
  %v5720 = vadd.f32 %v5650, %v5659
  %v5721 = vadd.f32 %v5651, %v5659
  %v5722 = vadd.f32 %v5652, %v5659
  %v5723 = vadd.f32 %v5653, %v5659
  %v5724 = vadd.f32 %v5654, %v5659
  %v5725 = vmax.f32 %v5661, 0.0
  %v5726 = vmax.f32 %v5662, 0.0
  %v5727 = vmax.f32 %v5663, 0.0
  %v5728 = vmax.f32 %v5664, 0.0
  %v5729 = vmax.f32 %v5665, 0.0
  %v5730 = vmax.f32 %v5666, 0.0
  %v5731 = vmax.f32 %v5667, 0.0
  %v5732 = vmax.f32 %v5668, 0.0
  %v5733 = vmax.f32 %v5669, 0.0
  %v5734 = vmax.f32 %v5670, 0.0
  %v5735 = vmax.f32 %v5671, 0.0
  %v5736 = vmax.f32 %v5672, 0.0
  %v5737 = vmax.f32 %v5673, 0.0
  %v5738 = vmax.f32 %v5674, 0.0
  %v5739 = vmax.f32 %v5675, 0.0
  %v5740 = vmax.f32 %v5676, 0.0
  %v5741 = vmax.f32 %v5677, 0.0
  %v5742 = vmax.f32 %v5678, 0.0
  %v5743 = vmax.f32 %v5679, 0.0
  %v5744 = vmax.f32 %v5680, 0.0
  %v5745 = vmax.f32 %v5681, 0.0
  %v5746 = vmax.f32 %v5682, 0.0
  %v5747 = vmax.f32 %v5683, 0.0
  %v5748 = vmax.f32 %v5684, 0.0
  %v5749 = vmax.f32 %v5685, 0.0
  %v5750 = vmax.f32 %v5686, 0.0
  %v5751 = vmax.f32 %v5687, 0.0
  %v5752 = vmax.f32 %v5688, 0.0
  %v5753 = vmax.f32 %v5689, 0.0
  %v5754 = vmax.f32 %v5690, 0.0
  %v5755 = vmax.f32 %v5691, 0.0
  %v5756 = vmax.f32 %v5692, 0.0
  %v5757 = vmax.f32 %v5693, 0.0
  %v5758 = vmax.f32 %v5694, 0.0
  %v5759 = vmax.f32 %v5695, 0.0
  %v5760 = vmax.f32 %v5696, 0.0
  %v5761 = vmax.f32 %v5697, 0.0
  %v5762 = vmax.f32 %v5698, 0.0
  %v5763 = vmax.f32 %v5699, 0.0
  %v5764 = vmax.f32 %v5700, 0.0
  %v5765 = vmax.f32 %v5701, 0.0
  %v5766 = vmax.f32 %v5702, 0.0
  %v5767 = vmax.f32 %v5703, 0.0
  %v5768 = vmax.f32 %v5704, 0.0
  %v5769 = vmax.f32 %v5705, 0.0
  %v5770 = vmax.f32 %v5706, 0.0
  %v5771 = vmax.f32 %v5707, 0.0
  %v5772 = vmax.f32 %v5708, 0.0
  %v5773 = vmax.f32 %v5709, 0.0
  %v5774 = vmax.f32 %v5710, 0.0
  %v5775 = vmax.f32 %v5711, 0.0
  %v5776 = vmax.f32 %v5712, 0.0
  %v5777 = vmax.f32 %v5713, 0.0
  %v5778 = vmax.f32 %v5714, 0.0
  %v5779 = vmax.f32 %v5715, 0.0
  %v5780 = vmax.f32 %v5716, 0.0
  %v5781 = vmax.f32 %v5717, 0.0
  %v5782 = vmax.f32 %v5718, 0.0
  %v5783 = vmax.f32 %v5719, 0.0
  %v5784 = vmax.f32 %v5720, 0.0
  %v5785 = vmax.f32 %v5721, 0.0
  %v5786 = vmax.f32 %v5722, 0.0
  %v5787 = vmax.f32 %v5723, 0.0
  %v5788 = vmax.f32 %v5724, 0.0
  %v5789 = vld [vmem:[%s25] sm:$0xff]
  %v5790 = vld [vmem:[%s25 + $0x8] sm:$0xff]
  %v5791 = vld [vmem:[%s25 + $0x10] sm:$0xff]
  %v5792 = vld [vmem:[%s25 + $0x18] sm:$0xff]
  %v5793 = vld [vmem:[%s25 + $0x20] sm:$0xff]
  %v5794 = vld [vmem:[%s25 + $0x28] sm:$0xff]
  %v5795 = vld [vmem:[%s25 + $0x30] sm:$0xff]
  %v5796 = vld [vmem:[%s25 + $0x38] sm:$0xff]
  %v5797 = vld [vmem:[%s25 + $0x40] sm:$0xff]
  %v5798 = vld [vmem:[%s26] sm:$0x1]
  %v5863 = vsel %vm252, %v283, %v283
  %v5864 = vrot.slane %v5725, 7
  %v5865 = vrot.slane %v5726, 7
  %v5866 = vsel %vm252, %v5864, %v5865
  %v5867 = vrot.slane %v5727, 7
  %v5868 = vrot.slane %v5728, 7
  %v5869 = vsel %vm252, %v5867, %v5868
  %v5870 = vrot.slane %v5729, 7
  %v5871 = vrot.slane %v5730, 7
  %v5872 = vsel %vm252, %v5870, %v5871
  %v5873 = vrot.slane %v5731, 7
  %v5874 = vrot.slane %v5732, 7
  %v5875 = vsel %vm252, %v5873, %v5874
  %v5876 = vrot.slane %v5733, 7
  %v5877 = vrot.slane %v5734, 7
  %v5878 = vsel %vm252, %v5876, %v5877
  %v5879 = vrot.slane %v5735, 7
  %v5880 = vrot.slane %v5736, 7
  %v5881 = vsel %vm252, %v5879, %v5880
  %v5882 = vrot.slane %v5737, 7
  %v5883 = vrot.slane %v5738, 7
  %v5884 = vsel %vm252, %v5882, %v5883
  %v5885 = vrot.slane %v5739, 7
  %v5886 = vrot.slane %v5740, 7
  %v5887 = vsel %vm252, %v5885, %v5886
  %v5888 = vrot.slane %v5741, 7
  %v5889 = vrot.slane %v5742, 7
  %v5890 = vsel %vm252, %v5888, %v5889
  %v5891 = vrot.slane %v5743, 7
  %v5892 = vrot.slane %v5744, 7
  %v5893 = vsel %vm252, %v5891, %v5892
  %v5894 = vrot.slane %v5745, 7
  %v5895 = vrot.slane %v5746, 7
  %v5896 = vsel %vm252, %v5894, %v5895
  %v5897 = vrot.slane %v5747, 7
  %v5898 = vrot.slane %v5748, 7
  %v5899 = vsel %vm252, %v5897, %v5898
  %v5900 = vrot.slane %v5749, 7
  %v5901 = vrot.slane %v5750, 7
  %v5902 = vsel %vm252, %v5900, %v5901
  %v5903 = vrot.slane %v5751, 7
  %v5904 = vrot.slane %v5752, 7
  %v5905 = vsel %vm252, %v5903, %v5904
  %v5906 = vrot.slane %v5753, 7
  %v5907 = vrot.slane %v5754, 7
  %v5908 = vsel %vm252, %v5906, %v5907
  %v5909 = vrot.slane %v5755, 7
  %v5910 = vrot.slane %v5756, 7
  %v5911 = vsel %vm252, %v5909, %v5910
  %v5912 = vrot.slane %v5757, 7
  %v5913 = vrot.slane %v5758, 7
  %v5914 = vsel %vm252, %v5912, %v5913
  %v5915 = vrot.slane %v5759, 7
  %v5916 = vrot.slane %v5760, 7
  %v5917 = vsel %vm252, %v5915, %v5916
  %v5918 = vrot.slane %v5761, 7
  %v5919 = vrot.slane %v5762, 7
  %v5920 = vsel %vm252, %v5918, %v5919
  %v5921 = vrot.slane %v5763, 7
  %v5922 = vrot.slane %v5764, 7
  %v5923 = vsel %vm252, %v5921, %v5922
  %v5924 = vrot.slane %v5765, 7
  %v5925 = vrot.slane %v5766, 7
  %v5926 = vsel %vm252, %v5924, %v5925
  %v5927 = vrot.slane %v5767, 7
  %v5928 = vrot.slane %v5768, 7
  %v5929 = vsel %vm252, %v5927, %v5928
  %v5930 = vrot.slane %v5769, 7
  %v5931 = vrot.slane %v5770, 7
  %v5932 = vsel %vm252, %v5930, %v5931
  %v5933 = vrot.slane %v5771, 7
  %v5934 = vrot.slane %v5772, 7
  %v5935 = vsel %vm252, %v5933, %v5934
  %v5936 = vrot.slane %v5773, 7
  %v5937 = vrot.slane %v5774, 7
  %v5938 = vsel %vm252, %v5936, %v5937
  %v5939 = vrot.slane %v5775, 7
  %v5940 = vrot.slane %v5776, 7
  %v5941 = vsel %vm252, %v5939, %v5940
  %v5942 = vrot.slane %v5777, 7
  %v5943 = vrot.slane %v5778, 7
  %v5944 = vsel %vm252, %v5942, %v5943
  %v5945 = vrot.slane %v5779, 7
  %v5946 = vrot.slane %v5780, 7
  %v5947 = vsel %vm252, %v5945, %v5946
  %v5948 = vrot.slane %v5781, 7
  %v5949 = vrot.slane %v5782, 7
  %v5950 = vsel %vm252, %v5948, %v5949
  %v5951 = vrot.slane %v5783, 7
  %v5952 = vrot.slane %v5784, 7
  %v5953 = vsel %vm252, %v5951, %v5952
  %v5954 = vrot.slane %v5785, 7
  %v5955 = vrot.slane %v5786, 7
  %v5956 = vsel %vm252, %v5954, %v5955
  %v5957 = vrot.slane %v5787, 7
  %v5958 = vrot.slane %v5788, 7
  %v5959 = vsel %vm252, %v5957, %v5958
  %v6055 = vsel %vm252, 0.0, %v5864
  %v6056 = vsel %vm252, 0.0, %v5867
  %v6057 = vsel %vm252, 0.0, %v5870
  %v6058 = vsel %vm252, 0.0, %v5873
  %v6059 = vsel %vm252, 0.0, %v5876
  %v6060 = vsel %vm252, 0.0, %v5879
  %v6061 = vsel %vm252, 0.0, %v5882
  %v6062 = vsel %vm252, 0.0, %v5885
  %v6063 = vsel %vm252, 0.0, %v5888
  %v6064 = vsel %vm252, 0.0, %v5891
  %v6065 = vsel %vm252, 0.0, %v5894
  %v6066 = vsel %vm252, 0.0, %v5897
  %v6067 = vsel %vm252, 0.0, %v5900
  %v6068 = vsel %vm252, 0.0, %v5903
  %v6069 = vsel %vm252, 0.0, %v5906
  %v6070 = vsel %vm252, 0.0, %v5909
  %v6071 = vsel %vm252, 0.0, %v5912
  %v6072 = vsel %vm252, 0.0, %v5915
  %v6073 = vsel %vm252, 0.0, %v5918
  %v6074 = vsel %vm252, 0.0, %v5921
  %v6075 = vsel %vm252, 0.0, %v5924
  %v6076 = vsel %vm252, 0.0, %v5927
  %v6077 = vsel %vm252, 0.0, %v5930
  %v6078 = vsel %vm252, 0.0, %v5933
  %v6079 = vsel %vm252, 0.0, %v5936
  %v6080 = vsel %vm252, 0.0, %v5939
  %v6081 = vsel %vm252, 0.0, %v5942
  %v6082 = vsel %vm252, 0.0, %v5945
  %v6083 = vsel %vm252, 0.0, %v5948
  %v6084 = vsel %vm252, 0.0, %v5951
  %v6085 = vsel %vm252, 0.0, %v5954
  %v6086 = vsel %vm252, 0.0, %v5957
  %v6087 = vsel %vm252, %v5865, 0.0
  %v6088 = vsel %vm252, %v5868, 0.0
  %v6089 = vsel %vm252, %v5871, 0.0
  %v6090 = vsel %vm252, %v5874, 0.0
  %v6091 = vsel %vm252, %v5877, 0.0
  %v6092 = vsel %vm252, %v5880, 0.0
  %v6093 = vsel %vm252, %v5883, 0.0
  %v6094 = vsel %vm252, %v5886, 0.0
  %v6095 = vsel %vm252, %v5889, 0.0
  %v6096 = vsel %vm252, %v5892, 0.0
  %v6097 = vsel %vm252, %v5895, 0.0
  %v6098 = vsel %vm252, %v5898, 0.0
  %v6099 = vsel %vm252, %v5901, 0.0
  %v6100 = vsel %vm252, %v5904, 0.0
  %v6101 = vsel %vm252, %v5907, 0.0
  %v6102 = vsel %vm252, %v5910, 0.0
  %v6103 = vsel %vm252, %v5913, 0.0
  %v6104 = vsel %vm252, %v5916, 0.0
  %v6105 = vsel %vm252, %v5919, 0.0
  %v6106 = vsel %vm252, %v5922, 0.0
  %v6107 = vsel %vm252, %v5925, 0.0
  %v6108 = vsel %vm252, %v5928, 0.0
  %v6109 = vsel %vm252, %v5931, 0.0
  %v6110 = vsel %vm252, %v5934, 0.0
  %v6111 = vsel %vm252, %v5937, 0.0
  %v6112 = vsel %vm252, %v5940, 0.0
  %v6113 = vsel %vm252, %v5943, 0.0
  %v6114 = vsel %vm252, %v5946, 0.0
  %v6115 = vsel %vm252, %v5949, 0.0
  %v6116 = vsel %vm252, %v5952, 0.0
  %v6117 = vsel %vm252, %v5955, 0.0
  %v6118 = vsel %vm252, %v5958, 0.0
  %v6179 = vrot.slane %v5863, 1
  %v6180 = vsel %vm1301, %v2103, %v6179
  %v6181 = vsel %vm1301, %v6179, %v2104
  %v6182 = vrot.slane %v6055, 1
  %v6183 = vrot.slane %v5866, 1
  %v6184 = vsel %vm1301, %v6182, %v6183
  %v6185 = vrot.slane %v6087, 1
  %v6186 = vsel %vm1301, %v6183, %v6185
  %v6187 = vrot.slane %v6056, 1
  %v6188 = vrot.slane %v5869, 1
  %v6189 = vsel %vm1301, %v6187, %v6188
  %v6190 = vrot.slane %v6088, 1
  %v6191 = vsel %vm1301, %v6188, %v6190
  %v6192 = vrot.slane %v6057, 1
  %v6193 = vrot.slane %v5872, 1
  %v6194 = vsel %vm1301, %v6192, %v6193
  %v6195 = vrot.slane %v6089, 1
  %v6196 = vsel %vm1301, %v6193, %v6195
  %v6197 = vrot.slane %v6058, 1
  %v6198 = vrot.slane %v5875, 1
  %v6199 = vsel %vm1301, %v6197, %v6198
  %v6200 = vrot.slane %v6090, 1
  %v6201 = vsel %vm1301, %v6198, %v6200
  %v6202 = vrot.slane %v6059, 1
  %v6203 = vrot.slane %v5878, 1
  %v6204 = vsel %vm1301, %v6202, %v6203
  %v6205 = vrot.slane %v6091, 1
  %v6206 = vsel %vm1301, %v6203, %v6205
  %v6207 = vrot.slane %v6060, 1
  %v6208 = vrot.slane %v5881, 1
  %v6209 = vsel %vm1301, %v6207, %v6208
  %v6210 = vrot.slane %v6092, 1
  %v6211 = vsel %vm1301, %v6208, %v6210
  %v6212 = vrot.slane %v6061, 1
  %v6213 = vrot.slane %v5884, 1
  %v6214 = vsel %vm1301, %v6212, %v6213
  %v6215 = vrot.slane %v6093, 1
  %v6216 = vsel %vm1301, %v6213, %v6215
  %v6217 = vrot.slane %v6062, 1
  %v6218 = vrot.slane %v5887, 1
  %v6219 = vsel %vm1301, %v6217, %v6218
  %v6220 = vrot.slane %v6094, 1
  %v6221 = vsel %vm1301, %v6218, %v6220
  %v6222 = vrot.slane %v6063, 1
  %v6223 = vrot.slane %v5890, 1
  %v6224 = vsel %vm1301, %v6222, %v6223
  %v6225 = vrot.slane %v6095, 1
  %v6226 = vsel %vm1301, %v6223, %v6225
  %v6227 = vrot.slane %v6064, 1
  %v6228 = vrot.slane %v5893, 1
  %v6229 = vsel %vm1301, %v6227, %v6228
  %v6230 = vrot.slane %v6096, 1
  %v6231 = vsel %vm1301, %v6228, %v6230
  %v6232 = vrot.slane %v6065, 1
  %v6233 = vrot.slane %v5896, 1
  %v6234 = vsel %vm1301, %v6232, %v6233
  %v6235 = vrot.slane %v6097, 1
  %v6236 = vsel %vm1301, %v6233, %v6235
  %v6237 = vrot.slane %v6066, 1
  %v6238 = vrot.slane %v5899, 1
  %v6239 = vsel %vm1301, %v6237, %v6238
  %v6240 = vrot.slane %v6098, 1
  %v6241 = vsel %vm1301, %v6238, %v6240
  %v6242 = vrot.slane %v6067, 1
  %v6243 = vrot.slane %v5902, 1
  %v6244 = vsel %vm1301, %v6242, %v6243
  %v6245 = vrot.slane %v6099, 1
  %v6246 = vsel %vm1301, %v6243, %v6245
  %v6247 = vrot.slane %v6068, 1
  %v6248 = vrot.slane %v5905, 1
  %v6249 = vsel %vm1301, %v6247, %v6248
  %v6250 = vrot.slane %v6100, 1
  %v6251 = vsel %vm1301, %v6248, %v6250
  %v6252 = vrot.slane %v6069, 1
  %v6253 = vrot.slane %v5908, 1
  %v6254 = vsel %vm1301, %v6252, %v6253
  %v6255 = vrot.slane %v6101, 1
  %v6256 = vsel %vm1301, %v6253, %v6255
  %v6257 = vrot.slane %v6071, 1
  %v6258 = vrot.slane %v5914, 1
  %v6259 = vsel %vm1301, %v6257, %v6258
  %v6260 = vrot.slane %v6103, 1
  %v6261 = vsel %vm1301, %v6258, %v6260
  %v6262 = vrot.slane %v6072, 1
  %v6263 = vrot.slane %v5917, 1
  %v6264 = vsel %vm1301, %v6262, %v6263
  %v6265 = vrot.slane %v6104, 1
  %v6266 = vsel %vm1301, %v6263, %v6265
  %v6267 = vrot.slane %v6073, 1
  %v6268 = vrot.slane %v5920, 1
  %v6269 = vsel %vm1301, %v6267, %v6268
  %v6270 = vrot.slane %v6105, 1
  %v6271 = vsel %vm1301, %v6268, %v6270
  %v6272 = vrot.slane %v6074, 1
  %v6273 = vrot.slane %v5923, 1
  %v6274 = vsel %vm1301, %v6272, %v6273
  %v6275 = vrot.slane %v6106, 1
  %v6276 = vsel %vm1301, %v6273, %v6275
  %v6277 = vrot.slane %v6075, 1
  %v6278 = vrot.slane %v5926, 1
  %v6279 = vsel %vm1301, %v6277, %v6278
  %v6280 = vrot.slane %v6107, 1
  %v6281 = vsel %vm1301, %v6278, %v6280
  %v6282 = vrot.slane %v6076, 1
  %v6283 = vrot.slane %v5929, 1
  %v6284 = vsel %vm1301, %v6282, %v6283
  %v6285 = vrot.slane %v6108, 1
  %v6286 = vsel %vm1301, %v6283, %v6285
  %v6287 = vrot.slane %v6077, 1
  %v6288 = vrot.slane %v5932, 1
  %v6289 = vsel %vm1301, %v6287, %v6288
  %v6290 = vrot.slane %v6109, 1
  %v6291 = vsel %vm1301, %v6288, %v6290
  %v6292 = vrot.slane %v6078, 1
  %v6293 = vrot.slane %v5935, 1
  %v6294 = vsel %vm1301, %v6292, %v6293
  %v6295 = vrot.slane %v6110, 1
  %v6296 = vsel %vm1301, %v6293, %v6295
  %v6297 = vrot.slane %v6079, 1
  %v6298 = vrot.slane %v5938, 1
  %v6299 = vsel %vm1301, %v6297, %v6298
  %v6300 = vrot.slane %v6111, 1
  %v6301 = vsel %vm1301, %v6298, %v6300
  %v6302 = vrot.slane %v6080, 1
  %v6303 = vrot.slane %v5941, 1
  %v6304 = vsel %vm1301, %v6302, %v6303
  %v6305 = vrot.slane %v6112, 1
  %v6306 = vsel %vm1301, %v6303, %v6305
  %v6307 = vrot.slane %v6081, 1
  %v6308 = vrot.slane %v5944, 1
  %v6309 = vsel %vm1301, %v6307, %v6308
  %v6310 = vrot.slane %v6113, 1
  %v6311 = vsel %vm1301, %v6308, %v6310
  %v6312 = vrot.slane %v6082, 1
  %v6313 = vrot.slane %v5947, 1
  %v6314 = vsel %vm1301, %v6312, %v6313
  %v6315 = vrot.slane %v6114, 1
  %v6316 = vsel %vm1301, %v6313, %v6315
  %v6317 = vrot.slane %v6083, 1
  %v6318 = vrot.slane %v5950, 1
  %v6319 = vsel %vm1301, %v6317, %v6318
  %v6320 = vrot.slane %v6115, 1
  %v6321 = vsel %vm1301, %v6318, %v6320
  %v6322 = vrot.slane %v6084, 1
  %v6323 = vrot.slane %v5953, 1
  %v6324 = vsel %vm1301, %v6322, %v6323
  %v6325 = vrot.slane %v6116, 1
  %v6326 = vsel %vm1301, %v6323, %v6325
  %v6327 = vrot.slane %v6085, 1
  %v6328 = vrot.slane %v5956, 1
  %v6329 = vsel %vm1301, %v6327, %v6328
  %v6330 = vrot.slane %v6117, 1
  %v6331 = vsel %vm1301, %v6328, %v6330
  %v6332 = vrot.slane %v5863, 2
  %v6333 = vsel %vm1291, %v2148, %v6332
  %v6334 = vsel %vm1291, %v6332, %v2149
  %v6335 = vrot.slane %v6055, 2
  %v6336 = vrot.slane %v5866, 2
  %v6337 = vsel %vm1291, %v6335, %v6336
  %v6338 = vrot.slane %v6087, 2
  %v6339 = vsel %vm1291, %v6336, %v6338
  %v6340 = vrot.slane %v6056, 2
  %v6341 = vrot.slane %v5869, 2
  %v6342 = vsel %vm1291, %v6340, %v6341
  %v6343 = vrot.slane %v6088, 2
  %v6344 = vsel %vm1291, %v6341, %v6343
  %v6345 = vrot.slane %v6057, 2
  %v6346 = vrot.slane %v5872, 2
  %v6347 = vsel %vm1291, %v6345, %v6346
  %v6348 = vrot.slane %v6089, 2
  %v6349 = vsel %vm1291, %v6346, %v6348
  %v6350 = vrot.slane %v6058, 2
  %v6351 = vrot.slane %v5875, 2
  %v6352 = vsel %vm1291, %v6350, %v6351
  %v6353 = vrot.slane %v6090, 2
  %v6354 = vsel %vm1291, %v6351, %v6353
  %v6355 = vrot.slane %v6059, 2
  %v6356 = vrot.slane %v5878, 2
  %v6357 = vsel %vm1291, %v6355, %v6356
  %v6358 = vrot.slane %v6091, 2
  %v6359 = vsel %vm1291, %v6356, %v6358
  %v6360 = vrot.slane %v6060, 2
  %v6361 = vrot.slane %v5881, 2
  %v6362 = vsel %vm1291, %v6360, %v6361
  %v6363 = vrot.slane %v6092, 2
  %v6364 = vsel %vm1291, %v6361, %v6363
  %v6365 = vrot.slane %v6061, 2
  %v6366 = vrot.slane %v5884, 2
  %v6367 = vsel %vm1291, %v6365, %v6366
  %v6368 = vrot.slane %v6093, 2
  %v6369 = vsel %vm1291, %v6366, %v6368
  %v6370 = vrot.slane %v6062, 2
  %v6371 = vrot.slane %v5887, 2
  %v6372 = vsel %vm1291, %v6370, %v6371
  %v6373 = vrot.slane %v6094, 2
  %v6374 = vsel %vm1291, %v6371, %v6373
  %v6375 = vrot.slane %v6063, 2
  %v6376 = vrot.slane %v5890, 2
  %v6377 = vsel %vm1291, %v6375, %v6376
  %v6378 = vrot.slane %v6095, 2
  %v6379 = vsel %vm1291, %v6376, %v6378
  %v6380 = vrot.slane %v6064, 2
  %v6381 = vrot.slane %v5893, 2
  %v6382 = vsel %vm1291, %v6380, %v6381
  %v6383 = vrot.slane %v6096, 2
  %v6384 = vsel %vm1291, %v6381, %v6383
  %v6385 = vrot.slane %v6065, 2
  %v6386 = vrot.slane %v5896, 2
  %v6387 = vsel %vm1291, %v6385, %v6386
  %v6388 = vrot.slane %v6097, 2
  %v6389 = vsel %vm1291, %v6386, %v6388
  %v6390 = vrot.slane %v6066, 2
  %v6391 = vrot.slane %v5899, 2
  %v6392 = vsel %vm1291, %v6390, %v6391
  %v6393 = vrot.slane %v6098, 2
  %v6394 = vsel %vm1291, %v6391, %v6393
  %v6395 = vrot.slane %v6067, 2
  %v6396 = vrot.slane %v5902, 2
  %v6397 = vsel %vm1291, %v6395, %v6396
  %v6398 = vrot.slane %v6099, 2
  %v6399 = vsel %vm1291, %v6396, %v6398
  %v6400 = vrot.slane %v6068, 2
  %v6401 = vrot.slane %v5905, 2
  %v6402 = vsel %vm1291, %v6400, %v6401
  %v6403 = vrot.slane %v6100, 2
  %v6404 = vsel %vm1291, %v6401, %v6403
  %v6405 = vrot.slane %v6069, 2
  %v6406 = vrot.slane %v5908, 2
  %v6407 = vsel %vm1291, %v6405, %v6406
  %v6408 = vrot.slane %v6101, 2
  %v6409 = vsel %vm1291, %v6406, %v6408
  %v6410 = vrot.slane %v6071, 2
  %v6411 = vrot.slane %v5914, 2
  %v6412 = vsel %vm1291, %v6410, %v6411
  %v6413 = vrot.slane %v6103, 2
  %v6414 = vsel %vm1291, %v6411, %v6413
  %v6415 = vrot.slane %v6072, 2
  %v6416 = vrot.slane %v5917, 2
  %v6417 = vsel %vm1291, %v6415, %v6416
  %v6418 = vrot.slane %v6104, 2
  %v6419 = vsel %vm1291, %v6416, %v6418
  %v6420 = vrot.slane %v6073, 2
  %v6421 = vrot.slane %v5920, 2
  %v6422 = vsel %vm1291, %v6420, %v6421
  %v6423 = vrot.slane %v6105, 2
  %v6424 = vsel %vm1291, %v6421, %v6423
  %v6425 = vrot.slane %v6074, 2
  %v6426 = vrot.slane %v5923, 2
  %v6427 = vsel %vm1291, %v6425, %v6426
  %v6428 = vrot.slane %v6106, 2
  %v6429 = vsel %vm1291, %v6426, %v6428
  %v6430 = vrot.slane %v6075, 2
  %v6431 = vrot.slane %v5926, 2
  %v6432 = vsel %vm1291, %v6430, %v6431
  %v6433 = vrot.slane %v6107, 2
  %v6434 = vsel %vm1291, %v6431, %v6433
  %v6435 = vrot.slane %v6076, 2
  %v6436 = vrot.slane %v5929, 2
  %v6437 = vsel %vm1291, %v6435, %v6436
  %v6438 = vrot.slane %v6108, 2
  %v6439 = vsel %vm1291, %v6436, %v6438
  %v6440 = vrot.slane %v6077, 2
  %v6441 = vrot.slane %v5932, 2
  %v6442 = vsel %vm1291, %v6440, %v6441
  %v6443 = vrot.slane %v6109, 2
  %v6444 = vsel %vm1291, %v6441, %v6443
  %v6445 = vrot.slane %v6078, 2
  %v6446 = vrot.slane %v5935, 2
  %v6447 = vsel %vm1291, %v6445, %v6446
  %v6448 = vrot.slane %v6110, 2
  %v6449 = vsel %vm1291, %v6446, %v6448
  %v6450 = vrot.slane %v6079, 2
  %v6451 = vrot.slane %v5938, 2
  %v6452 = vsel %vm1291, %v6450, %v6451
  %v6453 = vrot.slane %v6111, 2
  %v6454 = vsel %vm1291, %v6451, %v6453
  %v6455 = vrot.slane %v6080, 2
  %v6456 = vrot.slane %v5941, 2
  %v6457 = vsel %vm1291, %v6455, %v6456
  %v6458 = vrot.slane %v6112, 2
  %v6459 = vsel %vm1291, %v6456, %v6458
  %v6460 = vrot.slane %v6081, 2
  %v6461 = vrot.slane %v5944, 2
  %v6462 = vsel %vm1291, %v6460, %v6461
  %v6463 = vrot.slane %v6113, 2
  %v6464 = vsel %vm1291, %v6461, %v6463
  %v6465 = vrot.slane %v6082, 2
  %v6466 = vrot.slane %v5947, 2
  %v6467 = vsel %vm1291, %v6465, %v6466
  %v6468 = vrot.slane %v6114, 2
  %v6469 = vsel %vm1291, %v6466, %v6468
  %v6470 = vrot.slane %v6083, 2
  %v6471 = vrot.slane %v5950, 2
  %v6472 = vsel %vm1291, %v6470, %v6471
  %v6473 = vrot.slane %v6115, 2
  %v6474 = vsel %vm1291, %v6471, %v6473
  %v6475 = vrot.slane %v6084, 2
  %v6476 = vrot.slane %v5953, 2
  %v6477 = vsel %vm1291, %v6475, %v6476
  %v6478 = vrot.slane %v6116, 2
  %v6479 = vsel %vm1291, %v6476, %v6478
  %v6480 = vrot.slane %v6085, 2
  %v6481 = vrot.slane %v5956, 2
  %v6482 = vsel %vm1291, %v6480, %v6481
  %v6483 = vrot.slane %v6117, 2
  %v6484 = vsel %vm1291, %v6481, %v6483
  %v6489 = vrot.slane %v6070, 1
  %v6490 = vrot.slane %v5911, 1
  %v6491 = vsel %vm1301, %v6489, %v6490
  %v6492 = vrot.slane %v6102, 1
  %v6493 = vsel %vm1301, %v6490, %v6492
  %v6494 = vrot.slane %v6086, 1
  %v6495 = vrot.slane %v5959, 1
  %v6496 = vsel %vm1301, %v6494, %v6495
  %v6497 = vrot.slane %v6118, 1
  %v6498 = vsel %vm1301, %v6495, %v6497
  %v6499 = vrot.slane %v6070, 2
  %v6500 = vrot.slane %v5911, 2
  %v6501 = vsel %vm1291, %v6499, %v6500
  %v6502 = vrot.slane %v6102, 2
  %v6503 = vsel %vm1291, %v6500, %v6502
  %v6504 = vrot.slane %v6086, 2
  %v6505 = vrot.slane %v5959, 2
  %v6506 = vsel %vm1291, %v6504, %v6505
  %v6507 = vrot.slane %v6118, 2
  %v6508 = vsel %vm1291, %v6505, %v6507
  %6509 = vrot.lane.b32.xlu0 %v6180, 8
  %v6510 = vpop.permute.xlu0 %6509
  %6511 = vrot.lane.b32.xlu0 %v6181, 8
  %v6512 = vpop.permute.xlu0 %6511
  %6513 = vrot.lane.b32.xlu0 %v6184, 8
  %v6514 = vpop.permute.xlu0 %6513
  %6515 = vrot.lane.b32.xlu0 %v6186, 8
  %v6516 = vpop.permute.xlu0 %6515
  %6517 = vrot.lane.b32.xlu0 %v6189, 8
  %v6518 = vpop.permute.xlu0 %6517
  %6519 = vrot.lane.b32.xlu0 %v6191, 8
  %v6520 = vpop.permute.xlu0 %6519
  %6521 = vrot.lane.b32.xlu0 %v6194, 8
  %v6522 = vpop.permute.xlu0 %6521
  %6523 = vrot.lane.b32.xlu0 %v6196, 8
  %v6524 = vpop.permute.xlu0 %6523
  %6525 = vrot.lane.b32.xlu0 %v6199, 8
  %v6526 = vpop.permute.xlu0 %6525
  %6527 = vrot.lane.b32.xlu0 %v6201, 8
  %v6528 = vpop.permute.xlu0 %6527
  %6529 = vrot.lane.b32.xlu0 %v6204, 8
  %v6530 = vpop.permute.xlu0 %6529
  %6531 = vrot.lane.b32.xlu0 %v6206, 8
  %v6532 = vpop.permute.xlu0 %6531
  %6533 = vrot.lane.b32.xlu0 %v6209, 8
  %v6534 = vpop.permute.xlu0 %6533
  %6535 = vrot.lane.b32.xlu0 %v6211, 8
  %v6536 = vpop.permute.xlu0 %6535
  %6537 = vrot.lane.b32.xlu0 %v6214, 8
  %v6538 = vpop.permute.xlu0 %6537
  %6539 = vrot.lane.b32.xlu0 %v6216, 8
  %v6540 = vpop.permute.xlu0 %6539
  %6541 = vrot.lane.b32.xlu0 %v6219, 8
  %v6542 = vpop.permute.xlu0 %6541
  %6543 = vrot.lane.b32.xlu0 %v6221, 8
  %v6544 = vpop.permute.xlu0 %6543
  %6545 = vrot.lane.b32.xlu0 %v6224, 8
  %v6546 = vpop.permute.xlu0 %6545
  %6547 = vrot.lane.b32.xlu0 %v6226, 8
  %v6548 = vpop.permute.xlu0 %6547
  %6549 = vrot.lane.b32.xlu0 %v6229, 8
  %v6550 = vpop.permute.xlu0 %6549
  %6551 = vrot.lane.b32.xlu0 %v6231, 8
  %v6552 = vpop.permute.xlu0 %6551
  %6553 = vrot.lane.b32.xlu0 %v6234, 8
  %v6554 = vpop.permute.xlu0 %6553
  %6555 = vrot.lane.b32.xlu0 %v6236, 8
  %v6556 = vpop.permute.xlu0 %6555
  %6557 = vrot.lane.b32.xlu0 %v6239, 8
  %v6558 = vpop.permute.xlu0 %6557
  %6559 = vrot.lane.b32.xlu0 %v6241, 8
  %v6560 = vpop.permute.xlu0 %6559
  %6561 = vrot.lane.b32.xlu0 %v6244, 8
  %v6562 = vpop.permute.xlu0 %6561
  %6563 = vrot.lane.b32.xlu0 %v6246, 8
  %v6564 = vpop.permute.xlu0 %6563
  %6565 = vrot.lane.b32.xlu0 %v6249, 8
  %v6566 = vpop.permute.xlu0 %6565
  %6567 = vrot.lane.b32.xlu0 %v6251, 8
  %v6568 = vpop.permute.xlu0 %6567
  %6569 = vrot.lane.b32.xlu0 %v6254, 8
  %v6570 = vpop.permute.xlu0 %6569
  %6571 = vrot.lane.b32.xlu0 %v6256, 8
  %v6572 = vpop.permute.xlu0 %6571
  %6573 = vrot.lane.b32.xlu0 %v6259, 8
  %v6574 = vpop.permute.xlu0 %6573
  %6575 = vrot.lane.b32.xlu0 %v6261, 8
  %v6576 = vpop.permute.xlu0 %6575
  %6577 = vrot.lane.b32.xlu0 %v6264, 8
  %v6578 = vpop.permute.xlu0 %6577
  %6579 = vrot.lane.b32.xlu0 %v6266, 8
  %v6580 = vpop.permute.xlu0 %6579
  %6581 = vrot.lane.b32.xlu0 %v6269, 8
  %v6582 = vpop.permute.xlu0 %6581
  %6583 = vrot.lane.b32.xlu0 %v6271, 8
  %v6584 = vpop.permute.xlu0 %6583
  %6585 = vrot.lane.b32.xlu0 %v6274, 8
  %v6586 = vpop.permute.xlu0 %6585
  %6587 = vrot.lane.b32.xlu0 %v6276, 8
  %v6588 = vpop.permute.xlu0 %6587
  %6589 = vrot.lane.b32.xlu0 %v6279, 8
  %v6590 = vpop.permute.xlu0 %6589
  %6591 = vrot.lane.b32.xlu0 %v6281, 8
  %v6592 = vpop.permute.xlu0 %6591
  %6593 = vrot.lane.b32.xlu0 %v6284, 8
  %v6594 = vpop.permute.xlu0 %6593
  %6595 = vrot.lane.b32.xlu0 %v6286, 8
  %v6596 = vpop.permute.xlu0 %6595
  %6597 = vrot.lane.b32.xlu0 %v6289, 8
  %v6598 = vpop.permute.xlu0 %6597
  %6599 = vrot.lane.b32.xlu0 %v6291, 8
  %v6600 = vpop.permute.xlu0 %6599
  %6601 = vrot.lane.b32.xlu0 %v6294, 8
  %v6602 = vpop.permute.xlu0 %6601
  %6603 = vrot.lane.b32.xlu0 %v6296, 8
  %v6604 = vpop.permute.xlu0 %6603
  %6605 = vrot.lane.b32.xlu0 %v6299, 8
  %v6606 = vpop.permute.xlu0 %6605
  %6607 = vrot.lane.b32.xlu0 %v6301, 8
  %v6608 = vpop.permute.xlu0 %6607
  %6609 = vrot.lane.b32.xlu0 %v6304, 8
  %v6610 = vpop.permute.xlu0 %6609
  %6611 = vrot.lane.b32.xlu0 %v6306, 8
  %v6612 = vpop.permute.xlu0 %6611
  %6613 = vrot.lane.b32.xlu0 %v6309, 8
  %v6614 = vpop.permute.xlu0 %6613
  %6615 = vrot.lane.b32.xlu0 %v6311, 8
  %v6616 = vpop.permute.xlu0 %6615
  %6617 = vrot.lane.b32.xlu0 %v6314, 8
  %v6618 = vpop.permute.xlu0 %6617
  %6619 = vrot.lane.b32.xlu0 %v6316, 8
  %v6620 = vpop.permute.xlu0 %6619
  %6621 = vrot.lane.b32.xlu0 %v6319, 8
  %v6622 = vpop.permute.xlu0 %6621
  %6623 = vrot.lane.b32.xlu0 %v6321, 8
  %v6624 = vpop.permute.xlu0 %6623
  %6625 = vrot.lane.b32.xlu0 %v6324, 8
  %v6626 = vpop.permute.xlu0 %6625
  %6627 = vrot.lane.b32.xlu0 %v6326, 8
  %v6628 = vpop.permute.xlu0 %6627
  %6629 = vrot.lane.b32.xlu0 %v6329, 8
  %v6630 = vpop.permute.xlu0 %6629
  %6631 = vrot.lane.b32.xlu0 %v6331, 8
  %v6632 = vpop.permute.xlu0 %6631
  %6695 = vrot.lane.b32.xlu0 %v6333, 16
  %v6696 = vpop.permute.xlu0 %6695
  %6697 = vrot.lane.b32.xlu0 %v6334, 16
  %v6698 = vpop.permute.xlu0 %6697
  %6699 = vrot.lane.b32.xlu0 %v6337, 16
  %v6700 = vpop.permute.xlu0 %6699
  %6701 = vrot.lane.b32.xlu0 %v6339, 16
  %v6702 = vpop.permute.xlu0 %6701
  %6703 = vrot.lane.b32.xlu0 %v6342, 16
  %v6704 = vpop.permute.xlu0 %6703
  %6705 = vrot.lane.b32.xlu0 %v6344, 16
  %v6706 = vpop.permute.xlu0 %6705
  %6707 = vrot.lane.b32.xlu0 %v6347, 16
  %v6708 = vpop.permute.xlu0 %6707
  %6709 = vrot.lane.b32.xlu0 %v6349, 16
  %v6710 = vpop.permute.xlu0 %6709
  %6711 = vrot.lane.b32.xlu0 %v6352, 16
  %v6712 = vpop.permute.xlu0 %6711
  %6713 = vrot.lane.b32.xlu0 %v6354, 16
  %v6714 = vpop.permute.xlu0 %6713
  %6715 = vrot.lane.b32.xlu0 %v6357, 16
  %v6716 = vpop.permute.xlu0 %6715
  %6717 = vrot.lane.b32.xlu0 %v6359, 16
  %v6718 = vpop.permute.xlu0 %6717
  %6719 = vrot.lane.b32.xlu0 %v6362, 16
  %v6720 = vpop.permute.xlu0 %6719
  %6721 = vrot.lane.b32.xlu0 %v6364, 16
  %v6722 = vpop.permute.xlu0 %6721
  %6723 = vrot.lane.b32.xlu0 %v6367, 16
  %v6724 = vpop.permute.xlu0 %6723
  %6725 = vrot.lane.b32.xlu0 %v6369, 16
  %v6726 = vpop.permute.xlu0 %6725
  %6727 = vrot.lane.b32.xlu0 %v6372, 16
  %v6728 = vpop.permute.xlu0 %6727
  %6729 = vrot.lane.b32.xlu0 %v6374, 16
  %v6730 = vpop.permute.xlu0 %6729
  %6731 = vrot.lane.b32.xlu0 %v6377, 16
  %v6732 = vpop.permute.xlu0 %6731
  %6733 = vrot.lane.b32.xlu0 %v6379, 16
  %v6734 = vpop.permute.xlu0 %6733
  %6735 = vrot.lane.b32.xlu0 %v6382, 16
  %v6736 = vpop.permute.xlu0 %6735
  %6737 = vrot.lane.b32.xlu0 %v6384, 16
  %v6738 = vpop.permute.xlu0 %6737
  %6739 = vrot.lane.b32.xlu0 %v6387, 16
  %v6740 = vpop.permute.xlu0 %6739
  %6741 = vrot.lane.b32.xlu0 %v6389, 16
  %v6742 = vpop.permute.xlu0 %6741
  %6743 = vrot.lane.b32.xlu0 %v6392, 16
  %v6744 = vpop.permute.xlu0 %6743
  %6745 = vrot.lane.b32.xlu0 %v6394, 16
  %v6746 = vpop.permute.xlu0 %6745
  %6747 = vrot.lane.b32.xlu0 %v6397, 16
  %v6748 = vpop.permute.xlu0 %6747
  %6749 = vrot.lane.b32.xlu0 %v6399, 16
  %v6750 = vpop.permute.xlu0 %6749
  %6751 = vrot.lane.b32.xlu0 %v6402, 16
  %v6752 = vpop.permute.xlu0 %6751
  %6753 = vrot.lane.b32.xlu0 %v6404, 16
  %v6754 = vpop.permute.xlu0 %6753
  %6755 = vrot.lane.b32.xlu0 %v6407, 16
  %v6756 = vpop.permute.xlu0 %6755
  %6757 = vrot.lane.b32.xlu0 %v6409, 16
  %v6758 = vpop.permute.xlu0 %6757
  %6759 = vrot.lane.b32.xlu0 %v6412, 16
  %v6760 = vpop.permute.xlu0 %6759
  %6761 = vrot.lane.b32.xlu0 %v6414, 16
  %v6762 = vpop.permute.xlu0 %6761
  %6763 = vrot.lane.b32.xlu0 %v6417, 16
  %v6764 = vpop.permute.xlu0 %6763
  %6765 = vrot.lane.b32.xlu0 %v6419, 16
  %v6766 = vpop.permute.xlu0 %6765
  %6767 = vrot.lane.b32.xlu0 %v6422, 16
  %v6768 = vpop.permute.xlu0 %6767
  %6769 = vrot.lane.b32.xlu0 %v6424, 16
  %v6770 = vpop.permute.xlu0 %6769
  %6771 = vrot.lane.b32.xlu0 %v6427, 16
  %v6772 = vpop.permute.xlu0 %6771
  %6773 = vrot.lane.b32.xlu0 %v6429, 16
  %v6774 = vpop.permute.xlu0 %6773
  %6775 = vrot.lane.b32.xlu0 %v6432, 16
  %v6776 = vpop.permute.xlu0 %6775
  %6777 = vrot.lane.b32.xlu0 %v6434, 16
  %v6778 = vpop.permute.xlu0 %6777
  %6779 = vrot.lane.b32.xlu0 %v6437, 16
  %v6780 = vpop.permute.xlu0 %6779
  %6781 = vrot.lane.b32.xlu0 %v6439, 16
  %v6782 = vpop.permute.xlu0 %6781
  %6783 = vrot.lane.b32.xlu0 %v6442, 16
  %v6784 = vpop.permute.xlu0 %6783
  %6785 = vrot.lane.b32.xlu0 %v6444, 16
  %v6786 = vpop.permute.xlu0 %6785
  %6787 = vrot.lane.b32.xlu0 %v6447, 16
  %v6788 = vpop.permute.xlu0 %6787
  %6789 = vrot.lane.b32.xlu0 %v6449, 16
  %v6790 = vpop.permute.xlu0 %6789
  %6791 = vrot.lane.b32.xlu0 %v6452, 16
  %v6792 = vpop.permute.xlu0 %6791
  %6793 = vrot.lane.b32.xlu0 %v6454, 16
  %v6794 = vpop.permute.xlu0 %6793
  %6795 = vrot.lane.b32.xlu0 %v6457, 16
  %v6796 = vpop.permute.xlu0 %6795
  %6797 = vrot.lane.b32.xlu0 %v6459, 16
  %v6798 = vpop.permute.xlu0 %6797
  %6799 = vrot.lane.b32.xlu0 %v6462, 16
  %v6800 = vpop.permute.xlu0 %6799
  %6801 = vrot.lane.b32.xlu0 %v6464, 16
  %v6802 = vpop.permute.xlu0 %6801
  %6803 = vrot.lane.b32.xlu0 %v6467, 16
  %v6804 = vpop.permute.xlu0 %6803
  %6805 = vrot.lane.b32.xlu0 %v6469, 16
  %v6806 = vpop.permute.xlu0 %6805
  %6807 = vrot.lane.b32.xlu0 %v6472, 16
  %v6808 = vpop.permute.xlu0 %6807
  %6809 = vrot.lane.b32.xlu0 %v6474, 16
  %v6810 = vpop.permute.xlu0 %6809
  %6811 = vrot.lane.b32.xlu0 %v6477, 16
  %v6812 = vpop.permute.xlu0 %6811
  %6813 = vrot.lane.b32.xlu0 %v6479, 16
  %v6814 = vpop.permute.xlu0 %6813
  %6815 = vrot.lane.b32.xlu0 %v6482, 16
  %v6816 = vpop.permute.xlu0 %6815
  %6817 = vrot.lane.b32.xlu0 %v6484, 16
  %v6818 = vpop.permute.xlu0 %6817
  %6881 = vrot.lane.b32.xlu0 %v6055, 24
  %v6882 = vpop.permute.xlu0 %6881
  %6883 = vrot.lane.b32.xlu0 %v5866, 24
  %v6884 = vpop.permute.xlu0 %6883
  %6885 = vrot.lane.b32.xlu0 %v6056, 24
  %v6886 = vpop.permute.xlu0 %6885
  %6887 = vrot.lane.b32.xlu0 %v5869, 24
  %v6888 = vpop.permute.xlu0 %6887
  %6889 = vrot.lane.b32.xlu0 %v6057, 24
  %v6890 = vpop.permute.xlu0 %6889
  %6891 = vrot.lane.b32.xlu0 %v5872, 24
  %v6892 = vpop.permute.xlu0 %6891
  %6893 = vrot.lane.b32.xlu0 %v6058, 24
  %v6894 = vpop.permute.xlu0 %6893
  %6895 = vrot.lane.b32.xlu0 %v5875, 24
  %v6896 = vpop.permute.xlu0 %6895
  %6897 = vrot.lane.b32.xlu0 %v6059, 24
  %v6898 = vpop.permute.xlu0 %6897
  %6899 = vrot.lane.b32.xlu0 %v5878, 24
  %v6900 = vpop.permute.xlu0 %6899
  %6901 = vrot.lane.b32.xlu0 %v6060, 24
  %v6902 = vpop.permute.xlu0 %6901
  %6903 = vrot.lane.b32.xlu0 %v5881, 24
  %v6904 = vpop.permute.xlu0 %6903
  %6905 = vrot.lane.b32.xlu0 %v6061, 24
  %v6906 = vpop.permute.xlu0 %6905
  %6907 = vrot.lane.b32.xlu0 %v5884, 24
  %v6908 = vpop.permute.xlu0 %6907
  %6909 = vrot.lane.b32.xlu0 %v6062, 24
  %v6910 = vpop.permute.xlu0 %6909
  %6911 = vrot.lane.b32.xlu0 %v5887, 24
  %v6912 = vpop.permute.xlu0 %6911
  %6913 = vrot.lane.b32.xlu0 %v6063, 24
  %v6914 = vpop.permute.xlu0 %6913
  %6915 = vrot.lane.b32.xlu0 %v5890, 24
  %v6916 = vpop.permute.xlu0 %6915
  %6917 = vrot.lane.b32.xlu0 %v6064, 24
  %v6918 = vpop.permute.xlu0 %6917
  %6919 = vrot.lane.b32.xlu0 %v5893, 24
  %v6920 = vpop.permute.xlu0 %6919
  %6921 = vrot.lane.b32.xlu0 %v6065, 24
  %v6922 = vpop.permute.xlu0 %6921
  %6923 = vrot.lane.b32.xlu0 %v5896, 24
  %v6924 = vpop.permute.xlu0 %6923
  %6925 = vrot.lane.b32.xlu0 %v6066, 24
  %v6926 = vpop.permute.xlu0 %6925
  %6927 = vrot.lane.b32.xlu0 %v5899, 24
  %v6928 = vpop.permute.xlu0 %6927
  %6929 = vrot.lane.b32.xlu0 %v6067, 24
  %v6930 = vpop.permute.xlu0 %6929
  %6931 = vrot.lane.b32.xlu0 %v5902, 24
  %v6932 = vpop.permute.xlu0 %6931
  %6933 = vrot.lane.b32.xlu0 %v6068, 24
  %v6934 = vpop.permute.xlu0 %6933
  %6935 = vrot.lane.b32.xlu0 %v5905, 24
  %v6936 = vpop.permute.xlu0 %6935
  %6937 = vrot.lane.b32.xlu0 %v6069, 24
  %v6938 = vpop.permute.xlu0 %6937
  %6939 = vrot.lane.b32.xlu0 %v5908, 24
  %v6940 = vpop.permute.xlu0 %6939
  %6941 = vrot.lane.b32.xlu0 %v6070, 24
  %v6942 = vpop.permute.xlu0 %6941
  %6943 = vrot.lane.b32.xlu0 %v5911, 24
  %v6944 = vpop.permute.xlu0 %6943
  %6945 = vrot.lane.b32.xlu0 %v6071, 24
  %v6946 = vpop.permute.xlu0 %6945
  %6947 = vrot.lane.b32.xlu0 %v5914, 24
  %v6948 = vpop.permute.xlu0 %6947
  %6949 = vrot.lane.b32.xlu0 %v6072, 24
  %v6950 = vpop.permute.xlu0 %6949
  %6951 = vrot.lane.b32.xlu0 %v5917, 24
  %v6952 = vpop.permute.xlu0 %6951
  %6953 = vrot.lane.b32.xlu0 %v6073, 24
  %v6954 = vpop.permute.xlu0 %6953
  %6955 = vrot.lane.b32.xlu0 %v5920, 24
  %v6956 = vpop.permute.xlu0 %6955
  %6957 = vrot.lane.b32.xlu0 %v6074, 24
  %v6958 = vpop.permute.xlu0 %6957
  %6959 = vrot.lane.b32.xlu0 %v5923, 24
  %v6960 = vpop.permute.xlu0 %6959
  %6961 = vrot.lane.b32.xlu0 %v6075, 24
  %v6962 = vpop.permute.xlu0 %6961
  %6963 = vrot.lane.b32.xlu0 %v5926, 24
  %v6964 = vpop.permute.xlu0 %6963
  %6965 = vrot.lane.b32.xlu0 %v6076, 24
  %v6966 = vpop.permute.xlu0 %6965
  %6967 = vrot.lane.b32.xlu0 %v5929, 24
  %v6968 = vpop.permute.xlu0 %6967
  %6969 = vrot.lane.b32.xlu0 %v6077, 24
  %v6970 = vpop.permute.xlu0 %6969
  %6971 = vrot.lane.b32.xlu0 %v5932, 24
  %v6972 = vpop.permute.xlu0 %6971
  %6973 = vrot.lane.b32.xlu0 %v6078, 24
  %v6974 = vpop.permute.xlu0 %6973
  %6975 = vrot.lane.b32.xlu0 %v5935, 24
  %v6976 = vpop.permute.xlu0 %6975
  %6977 = vrot.lane.b32.xlu0 %v6079, 24
  %v6978 = vpop.permute.xlu0 %6977
  %6979 = vrot.lane.b32.xlu0 %v5938, 24
  %v6980 = vpop.permute.xlu0 %6979
  %6981 = vrot.lane.b32.xlu0 %v6080, 24
  %v6982 = vpop.permute.xlu0 %6981
  %6983 = vrot.lane.b32.xlu0 %v5941, 24
  %v6984 = vpop.permute.xlu0 %6983
  %6985 = vrot.lane.b32.xlu0 %v6081, 24
  %v6986 = vpop.permute.xlu0 %6985
  %6987 = vrot.lane.b32.xlu0 %v5944, 24
  %v6988 = vpop.permute.xlu0 %6987
  %6989 = vrot.lane.b32.xlu0 %v6082, 24
  %v6990 = vpop.permute.xlu0 %6989
  %6991 = vrot.lane.b32.xlu0 %v5947, 24
  %v6992 = vpop.permute.xlu0 %6991
  %6993 = vrot.lane.b32.xlu0 %v6083, 24
  %v6994 = vpop.permute.xlu0 %6993
  %6995 = vrot.lane.b32.xlu0 %v5950, 24
  %v6996 = vpop.permute.xlu0 %6995
  %6997 = vrot.lane.b32.xlu0 %v6084, 24
  %v6998 = vpop.permute.xlu0 %6997
  %6999 = vrot.lane.b32.xlu0 %v5953, 24
  %v7000 = vpop.permute.xlu0 %6999
  %7001 = vrot.lane.b32.xlu0 %v6085, 24
  %v7002 = vpop.permute.xlu0 %7001
  %7003 = vrot.lane.b32.xlu0 %v5956, 24
  %v7004 = vpop.permute.xlu0 %7003
  %7005 = vrot.lane.b32.xlu0 %v6086, 24
  %v7006 = vpop.permute.xlu0 %7005
  %7007 = vrot.lane.b32.xlu0 %v5959, 24
  %v7008 = vpop.permute.xlu0 %7007
  %7073 = vrot.lane.b32.xlu0 %v6184, 32
  %v7074 = vpop.permute.xlu0 %7073
  %7075 = vrot.lane.b32.xlu0 %v6186, 32
  %v7076 = vpop.permute.xlu0 %7075
  %7077 = vrot.lane.b32.xlu0 %v6189, 32
  %v7078 = vpop.permute.xlu0 %7077
  %7079 = vrot.lane.b32.xlu0 %v6191, 32
  %v7080 = vpop.permute.xlu0 %7079
  %7081 = vrot.lane.b32.xlu0 %v6194, 32
  %v7082 = vpop.permute.xlu0 %7081
  %7083 = vrot.lane.b32.xlu0 %v6196, 32
  %v7084 = vpop.permute.xlu0 %7083
  %7085 = vrot.lane.b32.xlu0 %v6199, 32
  %v7086 = vpop.permute.xlu0 %7085
  %7087 = vrot.lane.b32.xlu0 %v6201, 32
  %v7088 = vpop.permute.xlu0 %7087
  %7089 = vrot.lane.b32.xlu0 %v6204, 32
  %v7090 = vpop.permute.xlu0 %7089
  %7091 = vrot.lane.b32.xlu0 %v6206, 32
  %v7092 = vpop.permute.xlu0 %7091
  %7093 = vrot.lane.b32.xlu0 %v6209, 32
  %v7094 = vpop.permute.xlu0 %7093
  %7095 = vrot.lane.b32.xlu0 %v6211, 32
  %v7096 = vpop.permute.xlu0 %7095
  %7097 = vrot.lane.b32.xlu0 %v6214, 32
  %v7098 = vpop.permute.xlu0 %7097
  %7099 = vrot.lane.b32.xlu0 %v6216, 32
  %v7100 = vpop.permute.xlu0 %7099
  %7101 = vrot.lane.b32.xlu0 %v6219, 32
  %v7102 = vpop.permute.xlu0 %7101
  %7103 = vrot.lane.b32.xlu0 %v6221, 32
  %v7104 = vpop.permute.xlu0 %7103
  %7105 = vrot.lane.b32.xlu0 %v6224, 32
  %v7106 = vpop.permute.xlu0 %7105
  %7107 = vrot.lane.b32.xlu0 %v6226, 32
  %v7108 = vpop.permute.xlu0 %7107
  %7109 = vrot.lane.b32.xlu0 %v6229, 32
  %v7110 = vpop.permute.xlu0 %7109
  %7111 = vrot.lane.b32.xlu0 %v6231, 32
  %v7112 = vpop.permute.xlu0 %7111
  %7113 = vrot.lane.b32.xlu0 %v6234, 32
  %v7114 = vpop.permute.xlu0 %7113
  %7115 = vrot.lane.b32.xlu0 %v6236, 32
  %v7116 = vpop.permute.xlu0 %7115
  %7117 = vrot.lane.b32.xlu0 %v6239, 32
  %v7118 = vpop.permute.xlu0 %7117
  %7119 = vrot.lane.b32.xlu0 %v6241, 32
  %v7120 = vpop.permute.xlu0 %7119
  %7121 = vrot.lane.b32.xlu0 %v6244, 32
  %v7122 = vpop.permute.xlu0 %7121
  %7123 = vrot.lane.b32.xlu0 %v6246, 32
  %v7124 = vpop.permute.xlu0 %7123
  %7125 = vrot.lane.b32.xlu0 %v6249, 32
  %v7126 = vpop.permute.xlu0 %7125
  %7127 = vrot.lane.b32.xlu0 %v6251, 32
  %v7128 = vpop.permute.xlu0 %7127
  %7129 = vrot.lane.b32.xlu0 %v6254, 32
  %v7130 = vpop.permute.xlu0 %7129
  %7131 = vrot.lane.b32.xlu0 %v6256, 32
  %v7132 = vpop.permute.xlu0 %7131
  %7133 = vrot.lane.b32.xlu0 %v6491, 32
  %v7134 = vpop.permute.xlu0 %7133
  %7135 = vrot.lane.b32.xlu0 %v6493, 32
  %v7136 = vpop.permute.xlu0 %7135
  %7137 = vrot.lane.b32.xlu0 %v6259, 32
  %v7138 = vpop.permute.xlu0 %7137
  %7139 = vrot.lane.b32.xlu0 %v6261, 32
  %v7140 = vpop.permute.xlu0 %7139
  %7141 = vrot.lane.b32.xlu0 %v6264, 32
  %v7142 = vpop.permute.xlu0 %7141
  %7143 = vrot.lane.b32.xlu0 %v6266, 32
  %v7144 = vpop.permute.xlu0 %7143
  %7145 = vrot.lane.b32.xlu0 %v6269, 32
  %v7146 = vpop.permute.xlu0 %7145
  %7147 = vrot.lane.b32.xlu0 %v6271, 32
  %v7148 = vpop.permute.xlu0 %7147
  %7149 = vrot.lane.b32.xlu0 %v6274, 32
  %v7150 = vpop.permute.xlu0 %7149
  %7151 = vrot.lane.b32.xlu0 %v6276, 32
  %v7152 = vpop.permute.xlu0 %7151
  %7153 = vrot.lane.b32.xlu0 %v6279, 32
  %v7154 = vpop.permute.xlu0 %7153
  %7155 = vrot.lane.b32.xlu0 %v6281, 32
  %v7156 = vpop.permute.xlu0 %7155
  %7157 = vrot.lane.b32.xlu0 %v6284, 32
  %v7158 = vpop.permute.xlu0 %7157
  %7159 = vrot.lane.b32.xlu0 %v6286, 32
  %v7160 = vpop.permute.xlu0 %7159
  %7161 = vrot.lane.b32.xlu0 %v6289, 32
  %v7162 = vpop.permute.xlu0 %7161
  %7163 = vrot.lane.b32.xlu0 %v6291, 32
  %v7164 = vpop.permute.xlu0 %7163
  %7165 = vrot.lane.b32.xlu0 %v6294, 32
  %v7166 = vpop.permute.xlu0 %7165
  %7167 = vrot.lane.b32.xlu0 %v6296, 32
  %v7168 = vpop.permute.xlu0 %7167
  %7169 = vrot.lane.b32.xlu0 %v6299, 32
  %v7170 = vpop.permute.xlu0 %7169
  %7171 = vrot.lane.b32.xlu0 %v6301, 32
  %v7172 = vpop.permute.xlu0 %7171
  %7173 = vrot.lane.b32.xlu0 %v6304, 32
  %v7174 = vpop.permute.xlu0 %7173
  %7175 = vrot.lane.b32.xlu0 %v6306, 32
  %v7176 = vpop.permute.xlu0 %7175
  %7177 = vrot.lane.b32.xlu0 %v6309, 32
  %v7178 = vpop.permute.xlu0 %7177
  %7179 = vrot.lane.b32.xlu0 %v6311, 32
  %v7180 = vpop.permute.xlu0 %7179
  %7181 = vrot.lane.b32.xlu0 %v6314, 32
  %v7182 = vpop.permute.xlu0 %7181
  %7183 = vrot.lane.b32.xlu0 %v6316, 32
  %v7184 = vpop.permute.xlu0 %7183
  %7185 = vrot.lane.b32.xlu0 %v6319, 32
  %v7186 = vpop.permute.xlu0 %7185
  %7187 = vrot.lane.b32.xlu0 %v6321, 32
  %v7188 = vpop.permute.xlu0 %7187
  %7189 = vrot.lane.b32.xlu0 %v6324, 32
  %v7190 = vpop.permute.xlu0 %7189
  %7191 = vrot.lane.b32.xlu0 %v6326, 32
  %v7192 = vpop.permute.xlu0 %7191
  %7193 = vrot.lane.b32.xlu0 %v6329, 32
  %v7194 = vpop.permute.xlu0 %7193
  %7195 = vrot.lane.b32.xlu0 %v6331, 32
  %v7196 = vpop.permute.xlu0 %7195
  %7197 = vrot.lane.b32.xlu0 %v6496, 32
  %v7198 = vpop.permute.xlu0 %7197
  %7199 = vrot.lane.b32.xlu0 %v6498, 32
  %v7200 = vpop.permute.xlu0 %7199
  %7265 = vrot.lane.b32.xlu0 %v6337, 40
  %v7266 = vpop.permute.xlu0 %7265
  %7267 = vrot.lane.b32.xlu0 %v6339, 40
  %v7268 = vpop.permute.xlu0 %7267
  %7269 = vrot.lane.b32.xlu0 %v6342, 40
  %v7270 = vpop.permute.xlu0 %7269
  %7271 = vrot.lane.b32.xlu0 %v6344, 40
  %v7272 = vpop.permute.xlu0 %7271
  %7273 = vrot.lane.b32.xlu0 %v6347, 40
  %v7274 = vpop.permute.xlu0 %7273
  %7275 = vrot.lane.b32.xlu0 %v6349, 40
  %v7276 = vpop.permute.xlu0 %7275
  %7277 = vrot.lane.b32.xlu0 %v6352, 40
  %v7278 = vpop.permute.xlu0 %7277
  %7279 = vrot.lane.b32.xlu0 %v6354, 40
  %v7280 = vpop.permute.xlu0 %7279
  %7281 = vrot.lane.b32.xlu0 %v6357, 40
  %v7282 = vpop.permute.xlu0 %7281
  %7283 = vrot.lane.b32.xlu0 %v6359, 40
  %v7284 = vpop.permute.xlu0 %7283
  %7285 = vrot.lane.b32.xlu0 %v6362, 40
  %v7286 = vpop.permute.xlu0 %7285
  %7287 = vrot.lane.b32.xlu0 %v6364, 40
  %v7288 = vpop.permute.xlu0 %7287
  %7289 = vrot.lane.b32.xlu0 %v6367, 40
  %v7290 = vpop.permute.xlu0 %7289
  %7291 = vrot.lane.b32.xlu0 %v6369, 40
  %v7292 = vpop.permute.xlu0 %7291
  %7293 = vrot.lane.b32.xlu0 %v6372, 40
  %v7294 = vpop.permute.xlu0 %7293
  %7295 = vrot.lane.b32.xlu0 %v6374, 40
  %v7296 = vpop.permute.xlu0 %7295
  %7297 = vrot.lane.b32.xlu0 %v6377, 40
  %v7298 = vpop.permute.xlu0 %7297
  %7299 = vrot.lane.b32.xlu0 %v6379, 40
  %v7300 = vpop.permute.xlu0 %7299
  %7301 = vrot.lane.b32.xlu0 %v6382, 40
  %v7302 = vpop.permute.xlu0 %7301
  %7303 = vrot.lane.b32.xlu0 %v6384, 40
  %v7304 = vpop.permute.xlu0 %7303
  %7305 = vrot.lane.b32.xlu0 %v6387, 40
  %v7306 = vpop.permute.xlu0 %7305
  %7307 = vrot.lane.b32.xlu0 %v6389, 40
  %v7308 = vpop.permute.xlu0 %7307
  %7309 = vrot.lane.b32.xlu0 %v6392, 40
  %v7310 = vpop.permute.xlu0 %7309
  %7311 = vrot.lane.b32.xlu0 %v6394, 40
  %v7312 = vpop.permute.xlu0 %7311
  %7313 = vrot.lane.b32.xlu0 %v6397, 40
  %v7314 = vpop.permute.xlu0 %7313
  %7315 = vrot.lane.b32.xlu0 %v6399, 40
  %v7316 = vpop.permute.xlu0 %7315
  %7317 = vrot.lane.b32.xlu0 %v6402, 40
  %v7318 = vpop.permute.xlu0 %7317
  %7319 = vrot.lane.b32.xlu0 %v6404, 40
  %v7320 = vpop.permute.xlu0 %7319
  %7321 = vrot.lane.b32.xlu0 %v6407, 40
  %v7322 = vpop.permute.xlu0 %7321
  %7323 = vrot.lane.b32.xlu0 %v6409, 40
  %v7324 = vpop.permute.xlu0 %7323
  %7325 = vrot.lane.b32.xlu0 %v6501, 40
  %v7326 = vpop.permute.xlu0 %7325
  %7327 = vrot.lane.b32.xlu0 %v6503, 40
  %v7328 = vpop.permute.xlu0 %7327
  %7329 = vrot.lane.b32.xlu0 %v6412, 40
  %v7330 = vpop.permute.xlu0 %7329
  %7331 = vrot.lane.b32.xlu0 %v6414, 40
  %v7332 = vpop.permute.xlu0 %7331
  %7333 = vrot.lane.b32.xlu0 %v6417, 40
  %v7334 = vpop.permute.xlu0 %7333
  %7335 = vrot.lane.b32.xlu0 %v6419, 40
  %v7336 = vpop.permute.xlu0 %7335
  %7337 = vrot.lane.b32.xlu0 %v6422, 40
  %v7338 = vpop.permute.xlu0 %7337
  %7339 = vrot.lane.b32.xlu0 %v6424, 40
  %v7340 = vpop.permute.xlu0 %7339
  %7341 = vrot.lane.b32.xlu0 %v6427, 40
  %v7342 = vpop.permute.xlu0 %7341
  %7343 = vrot.lane.b32.xlu0 %v6429, 40
  %v7344 = vpop.permute.xlu0 %7343
  %7345 = vrot.lane.b32.xlu0 %v6432, 40
  %v7346 = vpop.permute.xlu0 %7345
  %7347 = vrot.lane.b32.xlu0 %v6434, 40
  %v7348 = vpop.permute.xlu0 %7347
  %7349 = vrot.lane.b32.xlu0 %v6437, 40
  %v7350 = vpop.permute.xlu0 %7349
  %7351 = vrot.lane.b32.xlu0 %v6439, 40
  %v7352 = vpop.permute.xlu0 %7351
  %7353 = vrot.lane.b32.xlu0 %v6442, 40
  %v7354 = vpop.permute.xlu0 %7353
  %7355 = vrot.lane.b32.xlu0 %v6444, 40
  %v7356 = vpop.permute.xlu0 %7355
  %7357 = vrot.lane.b32.xlu0 %v6447, 40
  %v7358 = vpop.permute.xlu0 %7357
  %7359 = vrot.lane.b32.xlu0 %v6449, 40
  %v7360 = vpop.permute.xlu0 %7359
  %7361 = vrot.lane.b32.xlu0 %v6452, 40
  %v7362 = vpop.permute.xlu0 %7361
  %7363 = vrot.lane.b32.xlu0 %v6454, 40
  %v7364 = vpop.permute.xlu0 %7363
  %7365 = vrot.lane.b32.xlu0 %v6457, 40
  %v7366 = vpop.permute.xlu0 %7365
  %7367 = vrot.lane.b32.xlu0 %v6459, 40
  %v7368 = vpop.permute.xlu0 %7367
  %7369 = vrot.lane.b32.xlu0 %v6462, 40
  %v7370 = vpop.permute.xlu0 %7369
  %7371 = vrot.lane.b32.xlu0 %v6464, 40
  %v7372 = vpop.permute.xlu0 %7371
  %7373 = vrot.lane.b32.xlu0 %v6467, 40
  %v7374 = vpop.permute.xlu0 %7373
  %7375 = vrot.lane.b32.xlu0 %v6469, 40
  %v7376 = vpop.permute.xlu0 %7375
  %7377 = vrot.lane.b32.xlu0 %v6472, 40
  %v7378 = vpop.permute.xlu0 %7377
  %7379 = vrot.lane.b32.xlu0 %v6474, 40
  %v7380 = vpop.permute.xlu0 %7379
  %7381 = vrot.lane.b32.xlu0 %v6477, 40
  %v7382 = vpop.permute.xlu0 %7381
  %7383 = vrot.lane.b32.xlu0 %v6479, 40
  %v7384 = vpop.permute.xlu0 %7383
  %7385 = vrot.lane.b32.xlu0 %v6482, 40
  %v7386 = vpop.permute.xlu0 %7385
  %7387 = vrot.lane.b32.xlu0 %v6484, 40
  %v7388 = vpop.permute.xlu0 %7387
  %7389 = vrot.lane.b32.xlu0 %v6506, 40
  %v7390 = vpop.permute.xlu0 %7389
  %7391 = vrot.lane.b32.xlu0 %v6508, 40
  %v7392 = vpop.permute.xlu0 %7391
  %7457 = vrot.lane.b32.xlu0 %v6056, 48
  %v7458 = vpop.permute.xlu0 %7457
  %7459 = vrot.lane.b32.xlu0 %v5869, 48
  %v7460 = vpop.permute.xlu0 %7459
  %7461 = vrot.lane.b32.xlu0 %v6057, 48
  %v7462 = vpop.permute.xlu0 %7461
  %7463 = vrot.lane.b32.xlu0 %v5872, 48
  %v7464 = vpop.permute.xlu0 %7463
  %7465 = vrot.lane.b32.xlu0 %v6058, 48
  %v7466 = vpop.permute.xlu0 %7465
  %7467 = vrot.lane.b32.xlu0 %v5875, 48
  %v7468 = vpop.permute.xlu0 %7467
  %7469 = vrot.lane.b32.xlu0 %v6059, 48
  %v7470 = vpop.permute.xlu0 %7469
  %7471 = vrot.lane.b32.xlu0 %v5878, 48
  %v7472 = vpop.permute.xlu0 %7471
  %7473 = vrot.lane.b32.xlu0 %v6060, 48
  %v7474 = vpop.permute.xlu0 %7473
  %7475 = vrot.lane.b32.xlu0 %v5881, 48
  %v7476 = vpop.permute.xlu0 %7475
  %7477 = vrot.lane.b32.xlu0 %v6061, 48
  %v7478 = vpop.permute.xlu0 %7477
  %7479 = vrot.lane.b32.xlu0 %v5884, 48
  %v7480 = vpop.permute.xlu0 %7479
  %7481 = vrot.lane.b32.xlu0 %v6062, 48
  %v7482 = vpop.permute.xlu0 %7481
  %7483 = vrot.lane.b32.xlu0 %v5887, 48
  %v7484 = vpop.permute.xlu0 %7483
  %7485 = vrot.lane.b32.xlu0 %v6063, 48
  %v7486 = vpop.permute.xlu0 %7485
  %7487 = vrot.lane.b32.xlu0 %v5890, 48
  %v7488 = vpop.permute.xlu0 %7487
  %7489 = vrot.lane.b32.xlu0 %v6064, 48
  %v7490 = vpop.permute.xlu0 %7489
  %7491 = vrot.lane.b32.xlu0 %v5893, 48
  %v7492 = vpop.permute.xlu0 %7491
  %7493 = vrot.lane.b32.xlu0 %v6065, 48
  %v7494 = vpop.permute.xlu0 %7493
  %7495 = vrot.lane.b32.xlu0 %v5896, 48
  %v7496 = vpop.permute.xlu0 %7495
  %7497 = vrot.lane.b32.xlu0 %v6066, 48
  %v7498 = vpop.permute.xlu0 %7497
  %7499 = vrot.lane.b32.xlu0 %v5899, 48
  %v7500 = vpop.permute.xlu0 %7499
  %7501 = vrot.lane.b32.xlu0 %v6067, 48
  %v7502 = vpop.permute.xlu0 %7501
  %7503 = vrot.lane.b32.xlu0 %v5902, 48
  %v7504 = vpop.permute.xlu0 %7503
  %7505 = vrot.lane.b32.xlu0 %v6068, 48
  %v7506 = vpop.permute.xlu0 %7505
  %7507 = vrot.lane.b32.xlu0 %v5905, 48
  %v7508 = vpop.permute.xlu0 %7507
  %7509 = vrot.lane.b32.xlu0 %v6069, 48
  %v7510 = vpop.permute.xlu0 %7509
  %7511 = vrot.lane.b32.xlu0 %v5908, 48
  %v7512 = vpop.permute.xlu0 %7511
  %7513 = vrot.lane.b32.xlu0 %v6070, 48
  %v7514 = vpop.permute.xlu0 %7513
  %7515 = vrot.lane.b32.xlu0 %v5911, 48
  %v7516 = vpop.permute.xlu0 %7515
  %7517 = vrot.lane.b32.xlu0 %v303, 48
  %v7518 = vpop.permute.xlu0 %7517
  %7519 = vrot.lane.b32.xlu0 %v5863, 48
  %v7520 = vpop.permute.xlu0 %7519
  %7521 = vrot.lane.b32.xlu0 %v6072, 48
  %v7522 = vpop.permute.xlu0 %7521
  %7523 = vrot.lane.b32.xlu0 %v5917, 48
  %v7524 = vpop.permute.xlu0 %7523
  %7525 = vrot.lane.b32.xlu0 %v6073, 48
  %v7526 = vpop.permute.xlu0 %7525
  %7527 = vrot.lane.b32.xlu0 %v5920, 48
  %v7528 = vpop.permute.xlu0 %7527
  %7529 = vrot.lane.b32.xlu0 %v6074, 48
  %v7530 = vpop.permute.xlu0 %7529
  %7531 = vrot.lane.b32.xlu0 %v5923, 48
  %v7532 = vpop.permute.xlu0 %7531
  %7533 = vrot.lane.b32.xlu0 %v6075, 48
  %v7534 = vpop.permute.xlu0 %7533
  %7535 = vrot.lane.b32.xlu0 %v5926, 48
  %v7536 = vpop.permute.xlu0 %7535
  %7537 = vrot.lane.b32.xlu0 %v6076, 48
  %v7538 = vpop.permute.xlu0 %7537
  %7539 = vrot.lane.b32.xlu0 %v5929, 48
  %v7540 = vpop.permute.xlu0 %7539
  %7541 = vrot.lane.b32.xlu0 %v6077, 48
  %v7542 = vpop.permute.xlu0 %7541
  %7543 = vrot.lane.b32.xlu0 %v5932, 48
  %v7544 = vpop.permute.xlu0 %7543
  %7545 = vrot.lane.b32.xlu0 %v6078, 48
  %v7546 = vpop.permute.xlu0 %7545
  %7547 = vrot.lane.b32.xlu0 %v5935, 48
  %v7548 = vpop.permute.xlu0 %7547
  %7549 = vrot.lane.b32.xlu0 %v6079, 48
  %v7550 = vpop.permute.xlu0 %7549
  %7551 = vrot.lane.b32.xlu0 %v5938, 48
  %v7552 = vpop.permute.xlu0 %7551
  %7553 = vrot.lane.b32.xlu0 %v6080, 48
  %v7554 = vpop.permute.xlu0 %7553
  %7555 = vrot.lane.b32.xlu0 %v5941, 48
  %v7556 = vpop.permute.xlu0 %7555
  %7557 = vrot.lane.b32.xlu0 %v6081, 48
  %v7558 = vpop.permute.xlu0 %7557
  %7559 = vrot.lane.b32.xlu0 %v5944, 48
  %v7560 = vpop.permute.xlu0 %7559
  %7561 = vrot.lane.b32.xlu0 %v6082, 48
  %v7562 = vpop.permute.xlu0 %7561
  %7563 = vrot.lane.b32.xlu0 %v5947, 48
  %v7564 = vpop.permute.xlu0 %7563
  %7565 = vrot.lane.b32.xlu0 %v6083, 48
  %v7566 = vpop.permute.xlu0 %7565
  %7567 = vrot.lane.b32.xlu0 %v5950, 48
  %v7568 = vpop.permute.xlu0 %7567
  %7569 = vrot.lane.b32.xlu0 %v6084, 48
  %v7570 = vpop.permute.xlu0 %7569
  %7571 = vrot.lane.b32.xlu0 %v5953, 48
  %v7572 = vpop.permute.xlu0 %7571
  %7573 = vrot.lane.b32.xlu0 %v6085, 48
  %v7574 = vpop.permute.xlu0 %7573
  %7575 = vrot.lane.b32.xlu0 %v5956, 48
  %v7576 = vpop.permute.xlu0 %7575
  %7577 = vrot.lane.b32.xlu0 %v6086, 48
  %v7578 = vpop.permute.xlu0 %7577
  %7579 = vrot.lane.b32.xlu0 %v5959, 48
  %v7580 = vpop.permute.xlu0 %7579
  %7643 = vrot.lane.b32.xlu0 %v6189, 56
  %v7644 = vpop.permute.xlu0 %7643
  %7645 = vrot.lane.b32.xlu0 %v6191, 56
  %v7646 = vpop.permute.xlu0 %7645
  %7647 = vrot.lane.b32.xlu0 %v6194, 56
  %v7648 = vpop.permute.xlu0 %7647
  %7649 = vrot.lane.b32.xlu0 %v6196, 56
  %v7650 = vpop.permute.xlu0 %7649
  %7651 = vrot.lane.b32.xlu0 %v6199, 56
  %v7652 = vpop.permute.xlu0 %7651
  %7653 = vrot.lane.b32.xlu0 %v6201, 56
  %v7654 = vpop.permute.xlu0 %7653
  %7655 = vrot.lane.b32.xlu0 %v6204, 56
  %v7656 = vpop.permute.xlu0 %7655
  %7657 = vrot.lane.b32.xlu0 %v6206, 56
  %v7658 = vpop.permute.xlu0 %7657
  %7659 = vrot.lane.b32.xlu0 %v6209, 56
  %v7660 = vpop.permute.xlu0 %7659
  %7661 = vrot.lane.b32.xlu0 %v6211, 56
  %v7662 = vpop.permute.xlu0 %7661
  %7663 = vrot.lane.b32.xlu0 %v6214, 56
  %v7664 = vpop.permute.xlu0 %7663
  %7665 = vrot.lane.b32.xlu0 %v6216, 56
  %v7666 = vpop.permute.xlu0 %7665
  %7667 = vrot.lane.b32.xlu0 %v6219, 56
  %v7668 = vpop.permute.xlu0 %7667
  %7669 = vrot.lane.b32.xlu0 %v6221, 56
  %v7670 = vpop.permute.xlu0 %7669
  %7671 = vrot.lane.b32.xlu0 %v6224, 56
  %v7672 = vpop.permute.xlu0 %7671
  %7673 = vrot.lane.b32.xlu0 %v6226, 56
  %v7674 = vpop.permute.xlu0 %7673
  %7675 = vrot.lane.b32.xlu0 %v6229, 56
  %v7676 = vpop.permute.xlu0 %7675
  %7677 = vrot.lane.b32.xlu0 %v6231, 56
  %v7678 = vpop.permute.xlu0 %7677
  %7679 = vrot.lane.b32.xlu0 %v6234, 56
  %v7680 = vpop.permute.xlu0 %7679
  %7681 = vrot.lane.b32.xlu0 %v6236, 56
  %v7682 = vpop.permute.xlu0 %7681
  %7683 = vrot.lane.b32.xlu0 %v6239, 56
  %v7684 = vpop.permute.xlu0 %7683
  %7685 = vrot.lane.b32.xlu0 %v6241, 56
  %v7686 = vpop.permute.xlu0 %7685
  %7687 = vrot.lane.b32.xlu0 %v6244, 56
  %v7688 = vpop.permute.xlu0 %7687
  %7689 = vrot.lane.b32.xlu0 %v6246, 56
  %v7690 = vpop.permute.xlu0 %7689
  %7691 = vrot.lane.b32.xlu0 %v6249, 56
  %v7692 = vpop.permute.xlu0 %7691
  %7693 = vrot.lane.b32.xlu0 %v6251, 56
  %v7694 = vpop.permute.xlu0 %7693
  %7695 = vrot.lane.b32.xlu0 %v6254, 56
  %v7696 = vpop.permute.xlu0 %7695
  %7697 = vrot.lane.b32.xlu0 %v6256, 56
  %v7698 = vpop.permute.xlu0 %7697
  %7699 = vrot.lane.b32.xlu0 %v6491, 56
  %v7700 = vpop.permute.xlu0 %7699
  %7701 = vrot.lane.b32.xlu0 %v6493, 56
  %v7702 = vpop.permute.xlu0 %7701
  %7703 = vrot.lane.b32.xlu0 %v6180, 56
  %v7704 = vpop.permute.xlu0 %7703
  %7705 = vrot.lane.b32.xlu0 %v6181, 56
  %v7706 = vpop.permute.xlu0 %7705
  %7707 = vrot.lane.b32.xlu0 %v6264, 56
  %v7708 = vpop.permute.xlu0 %7707
  %7709 = vrot.lane.b32.xlu0 %v6266, 56
  %v7710 = vpop.permute.xlu0 %7709
  %7711 = vrot.lane.b32.xlu0 %v6269, 56
  %v7712 = vpop.permute.xlu0 %7711
  %7713 = vrot.lane.b32.xlu0 %v6271, 56
  %v7714 = vpop.permute.xlu0 %7713
  %7715 = vrot.lane.b32.xlu0 %v6274, 56
  %v7716 = vpop.permute.xlu0 %7715
  %7717 = vrot.lane.b32.xlu0 %v6276, 56
  %v7718 = vpop.permute.xlu0 %7717
  %7719 = vrot.lane.b32.xlu0 %v6279, 56
  %v7720 = vpop.permute.xlu0 %7719
  %7721 = vrot.lane.b32.xlu0 %v6281, 56
  %v7722 = vpop.permute.xlu0 %7721
  %7723 = vrot.lane.b32.xlu0 %v6284, 56
  %v7724 = vpop.permute.xlu0 %7723
  %7725 = vrot.lane.b32.xlu0 %v6286, 56
  %v7726 = vpop.permute.xlu0 %7725
  %7727 = vrot.lane.b32.xlu0 %v6289, 56
  %v7728 = vpop.permute.xlu0 %7727
  %7729 = vrot.lane.b32.xlu0 %v6291, 56
  %v7730 = vpop.permute.xlu0 %7729
  %7731 = vrot.lane.b32.xlu0 %v6294, 56
  %v7732 = vpop.permute.xlu0 %7731
  %7733 = vrot.lane.b32.xlu0 %v6296, 56
  %v7734 = vpop.permute.xlu0 %7733
  %7735 = vrot.lane.b32.xlu0 %v6299, 56
  %v7736 = vpop.permute.xlu0 %7735
  %7737 = vrot.lane.b32.xlu0 %v6301, 56
  %v7738 = vpop.permute.xlu0 %7737
  %7739 = vrot.lane.b32.xlu0 %v6304, 56
  %v7740 = vpop.permute.xlu0 %7739
  %7741 = vrot.lane.b32.xlu0 %v6306, 56
  %v7742 = vpop.permute.xlu0 %7741
  %7743 = vrot.lane.b32.xlu0 %v6309, 56
  %v7744 = vpop.permute.xlu0 %7743
  %7745 = vrot.lane.b32.xlu0 %v6311, 56
  %v7746 = vpop.permute.xlu0 %7745
  %7747 = vrot.lane.b32.xlu0 %v6314, 56
  %v7748 = vpop.permute.xlu0 %7747
  %7749 = vrot.lane.b32.xlu0 %v6316, 56
  %v7750 = vpop.permute.xlu0 %7749
  %7751 = vrot.lane.b32.xlu0 %v6319, 56
  %v7752 = vpop.permute.xlu0 %7751
  %7753 = vrot.lane.b32.xlu0 %v6321, 56
  %v7754 = vpop.permute.xlu0 %7753
  %7755 = vrot.lane.b32.xlu0 %v6324, 56
  %v7756 = vpop.permute.xlu0 %7755
  %7757 = vrot.lane.b32.xlu0 %v6326, 56
  %v7758 = vpop.permute.xlu0 %7757
  %7759 = vrot.lane.b32.xlu0 %v6329, 56
  %v7760 = vpop.permute.xlu0 %7759
  %7761 = vrot.lane.b32.xlu0 %v6331, 56
  %v7762 = vpop.permute.xlu0 %7761
  %7763 = vrot.lane.b32.xlu0 %v6496, 56
  %v7764 = vpop.permute.xlu0 %7763
  %7765 = vrot.lane.b32.xlu0 %v6498, 56
  %v7766 = vpop.permute.xlu0 %7765
  %7829 = vrot.lane.b32.xlu0 %v6342, 64
  %v7830 = vpop.permute.xlu0 %7829
  %7831 = vrot.lane.b32.xlu0 %v6344, 64
  %v7832 = vpop.permute.xlu0 %7831
  %7833 = vrot.lane.b32.xlu0 %v6347, 64
  %v7834 = vpop.permute.xlu0 %7833
  %7835 = vrot.lane.b32.xlu0 %v6349, 64
  %v7836 = vpop.permute.xlu0 %7835
  %7837 = vrot.lane.b32.xlu0 %v6352, 64
  %v7838 = vpop.permute.xlu0 %7837
  %7839 = vrot.lane.b32.xlu0 %v6354, 64
  %v7840 = vpop.permute.xlu0 %7839
  %7841 = vrot.lane.b32.xlu0 %v6357, 64
  %v7842 = vpop.permute.xlu0 %7841
  %7843 = vrot.lane.b32.xlu0 %v6359, 64
  %v7844 = vpop.permute.xlu0 %7843
  %7845 = vrot.lane.b32.xlu0 %v6362, 64
  %v7846 = vpop.permute.xlu0 %7845
  %7847 = vrot.lane.b32.xlu0 %v6364, 64
  %v7848 = vpop.permute.xlu0 %7847
  %7849 = vrot.lane.b32.xlu0 %v6367, 64
  %v7850 = vpop.permute.xlu0 %7849
  %7851 = vrot.lane.b32.xlu0 %v6369, 64
  %v7852 = vpop.permute.xlu0 %7851
  %7853 = vrot.lane.b32.xlu0 %v6372, 64
  %v7854 = vpop.permute.xlu0 %7853
  %7855 = vrot.lane.b32.xlu0 %v6374, 64
  %v7856 = vpop.permute.xlu0 %7855
  %7857 = vrot.lane.b32.xlu0 %v6377, 64
  %v7858 = vpop.permute.xlu0 %7857
  %7859 = vrot.lane.b32.xlu0 %v6379, 64
  %v7860 = vpop.permute.xlu0 %7859
  %7861 = vrot.lane.b32.xlu0 %v6382, 64
  %v7862 = vpop.permute.xlu0 %7861
  %7863 = vrot.lane.b32.xlu0 %v6384, 64
  %v7864 = vpop.permute.xlu0 %7863
  %7865 = vrot.lane.b32.xlu0 %v6387, 64
  %v7866 = vpop.permute.xlu0 %7865
  %7867 = vrot.lane.b32.xlu0 %v6389, 64
  %v7868 = vpop.permute.xlu0 %7867
  %7869 = vrot.lane.b32.xlu0 %v6392, 64
  %v7870 = vpop.permute.xlu0 %7869
  %7871 = vrot.lane.b32.xlu0 %v6394, 64
  %v7872 = vpop.permute.xlu0 %7871
  %7873 = vrot.lane.b32.xlu0 %v6397, 64
  %v7874 = vpop.permute.xlu0 %7873
  %7875 = vrot.lane.b32.xlu0 %v6399, 64
  %v7876 = vpop.permute.xlu0 %7875
  %7877 = vrot.lane.b32.xlu0 %v6402, 64
  %v7878 = vpop.permute.xlu0 %7877
  %7879 = vrot.lane.b32.xlu0 %v6404, 64
  %v7880 = vpop.permute.xlu0 %7879
  %7881 = vrot.lane.b32.xlu0 %v6407, 64
  %v7882 = vpop.permute.xlu0 %7881
  %7883 = vrot.lane.b32.xlu0 %v6409, 64
  %v7884 = vpop.permute.xlu0 %7883
  %7885 = vrot.lane.b32.xlu0 %v6501, 64
  %v7886 = vpop.permute.xlu0 %7885
  %7887 = vrot.lane.b32.xlu0 %v6503, 64
  %v7888 = vpop.permute.xlu0 %7887
  %7889 = vrot.lane.b32.xlu0 %v6333, 64
  %v7890 = vpop.permute.xlu0 %7889
  %7891 = vrot.lane.b32.xlu0 %v6334, 64
  %v7892 = vpop.permute.xlu0 %7891
  %7893 = vrot.lane.b32.xlu0 %v6417, 64
  %v7894 = vpop.permute.xlu0 %7893
  %7895 = vrot.lane.b32.xlu0 %v6419, 64
  %v7896 = vpop.permute.xlu0 %7895
  %7897 = vrot.lane.b32.xlu0 %v6422, 64
  %v7898 = vpop.permute.xlu0 %7897
  %7899 = vrot.lane.b32.xlu0 %v6424, 64
  %v7900 = vpop.permute.xlu0 %7899
  %7901 = vrot.lane.b32.xlu0 %v6427, 64
  %v7902 = vpop.permute.xlu0 %7901
  %7903 = vrot.lane.b32.xlu0 %v6429, 64
  %v7904 = vpop.permute.xlu0 %7903
  %7905 = vrot.lane.b32.xlu0 %v6432, 64
  %v7906 = vpop.permute.xlu0 %7905
  %7907 = vrot.lane.b32.xlu0 %v6434, 64
  %v7908 = vpop.permute.xlu0 %7907
  %7909 = vrot.lane.b32.xlu0 %v6437, 64
  %v7910 = vpop.permute.xlu0 %7909
  %7911 = vrot.lane.b32.xlu0 %v6439, 64
  %v7912 = vpop.permute.xlu0 %7911
  %7913 = vrot.lane.b32.xlu0 %v6442, 64
  %v7914 = vpop.permute.xlu0 %7913
  %7915 = vrot.lane.b32.xlu0 %v6444, 64
  %v7916 = vpop.permute.xlu0 %7915
  %7917 = vrot.lane.b32.xlu0 %v6447, 64
  %v7918 = vpop.permute.xlu0 %7917
  %7919 = vrot.lane.b32.xlu0 %v6449, 64
  %v7920 = vpop.permute.xlu0 %7919
  %7921 = vrot.lane.b32.xlu0 %v6452, 64
  %v7922 = vpop.permute.xlu0 %7921
  %7923 = vrot.lane.b32.xlu0 %v6454, 64
  %v7924 = vpop.permute.xlu0 %7923
  %7925 = vrot.lane.b32.xlu0 %v6457, 64
  %v7926 = vpop.permute.xlu0 %7925
  %7927 = vrot.lane.b32.xlu0 %v6459, 64
  %v7928 = vpop.permute.xlu0 %7927
  %7929 = vrot.lane.b32.xlu0 %v6462, 64
  %v7930 = vpop.permute.xlu0 %7929
  %7931 = vrot.lane.b32.xlu0 %v6464, 64
  %v7932 = vpop.permute.xlu0 %7931
  %7933 = vrot.lane.b32.xlu0 %v6467, 64
  %v7934 = vpop.permute.xlu0 %7933
  %7935 = vrot.lane.b32.xlu0 %v6469, 64
  %v7936 = vpop.permute.xlu0 %7935
  %7937 = vrot.lane.b32.xlu0 %v6472, 64
  %v7938 = vpop.permute.xlu0 %7937
  %7939 = vrot.lane.b32.xlu0 %v6474, 64
  %v7940 = vpop.permute.xlu0 %7939
  %7941 = vrot.lane.b32.xlu0 %v6477, 64
  %v7942 = vpop.permute.xlu0 %7941
  %7943 = vrot.lane.b32.xlu0 %v6479, 64
  %v7944 = vpop.permute.xlu0 %7943
  %7945 = vrot.lane.b32.xlu0 %v6482, 64
  %v7946 = vpop.permute.xlu0 %7945
  %7947 = vrot.lane.b32.xlu0 %v6484, 64
  %v7948 = vpop.permute.xlu0 %7947
  %7949 = vrot.lane.b32.xlu0 %v6506, 64
  %v7950 = vpop.permute.xlu0 %7949
  %7951 = vrot.lane.b32.xlu0 %v6508, 64
  %v7952 = vpop.permute.xlu0 %7951
  %v8015 = vsel %vm5183, %v303, %v6510
  %v8016 = vsel %vm5183, %v5863, %v6512
  %v8017 = vsel %vm5183, %v6055, %v6514
  %v8018 = vsel %vm5183, %v5866, %v6516
  %v8019 = vsel %vm5183, %v6056, %v6518
  %v8020 = vsel %vm5183, %v5869, %v6520
  %v8021 = vsel %vm5183, %v6057, %v6522
  %v8022 = vsel %vm5183, %v5872, %v6524
  %v8023 = vsel %vm5183, %v6058, %v6526
  %v8024 = vsel %vm5183, %v5875, %v6528
  %v8025 = vsel %vm5183, %v6059, %v6530
  %v8026 = vsel %vm5183, %v5878, %v6532
  %v8027 = vsel %vm5183, %v6060, %v6534
  %v8028 = vsel %vm5183, %v5881, %v6536
  %v8029 = vsel %vm5183, %v6061, %v6538
  %v8030 = vsel %vm5183, %v5884, %v6540
  %v8031 = vsel %vm5183, %v6062, %v6542
  %v8032 = vsel %vm5183, %v5887, %v6544
  %v8033 = vsel %vm5183, %v6063, %v6546
  %v8034 = vsel %vm5183, %v5890, %v6548
  %v8035 = vsel %vm5183, %v6064, %v6550
  %v8036 = vsel %vm5183, %v5893, %v6552
  %v8037 = vsel %vm5183, %v6065, %v6554
  %v8038 = vsel %vm5183, %v5896, %v6556
  %v8039 = vsel %vm5183, %v6066, %v6558
  %v8040 = vsel %vm5183, %v5899, %v6560
  %v8041 = vsel %vm5183, %v6067, %v6562
  %v8042 = vsel %vm5183, %v5902, %v6564
  %v8043 = vsel %vm5183, %v6068, %v6566
  %v8044 = vsel %vm5183, %v5905, %v6568
  %v8045 = vsel %vm5183, %v6069, %v6570
  %v8046 = vsel %vm5183, %v5908, %v6572
  %v8047 = vsel %vm5183, %v6071, %v6574
  %v8048 = vsel %vm5183, %v5914, %v6576
  %v8049 = vsel %vm5183, %v6072, %v6578
  %v8050 = vsel %vm5183, %v5917, %v6580
  %v8051 = vsel %vm5183, %v6073, %v6582
  %v8052 = vsel %vm5183, %v5920, %v6584
  %v8053 = vsel %vm5183, %v6074, %v6586
  %v8054 = vsel %vm5183, %v5923, %v6588
  %v8055 = vsel %vm5183, %v6075, %v6590
  %v8056 = vsel %vm5183, %v5926, %v6592
  %v8057 = vsel %vm5183, %v6076, %v6594
  %v8058 = vsel %vm5183, %v5929, %v6596
  %v8059 = vsel %vm5183, %v6077, %v6598
  %v8060 = vsel %vm5183, %v5932, %v6600
  %v8061 = vsel %vm5183, %v6078, %v6602
  %v8062 = vsel %vm5183, %v5935, %v6604
  %v8063 = vsel %vm5183, %v6079, %v6606
  %v8064 = vsel %vm5183, %v5938, %v6608
  %v8065 = vsel %vm5183, %v6080, %v6610
  %v8066 = vsel %vm5183, %v5941, %v6612
  %v8067 = vsel %vm5183, %v6081, %v6614
  %v8068 = vsel %vm5183, %v5944, %v6616
  %v8069 = vsel %vm5183, %v6082, %v6618
  %v8070 = vsel %vm5183, %v5947, %v6620
  %v8071 = vsel %vm5183, %v6083, %v6622
  %v8072 = vsel %vm5183, %v5950, %v6624
  %v8073 = vsel %vm5183, %v6084, %v6626
  %v8074 = vsel %vm5183, %v5953, %v6628
  %v8075 = vsel %vm5183, %v6085, %v6630
  %v8076 = vsel %vm5183, %v5956, %v6632
  %v8077 = vsel %vm495, %v8015, %v6696
  %v8078 = vsel %vm495, %v8016, %v6698
  %v8079 = vsel %vm495, %v8017, %v6700
  %v8080 = vsel %vm495, %v8018, %v6702
  %v8081 = vsel %vm495, %v8019, %v6704
  %v8082 = vsel %vm495, %v8020, %v6706
  %v8083 = vsel %vm495, %v8021, %v6708
  %v8084 = vsel %vm495, %v8022, %v6710
  %v8085 = vsel %vm495, %v8023, %v6712
  %v8086 = vsel %vm495, %v8024, %v6714
  %v8087 = vsel %vm495, %v8025, %v6716
  %v8088 = vsel %vm495, %v8026, %v6718
  %v8089 = vsel %vm495, %v8027, %v6720
  %v8090 = vsel %vm495, %v8028, %v6722
  %v8091 = vsel %vm495, %v8029, %v6724
  %v8092 = vsel %vm495, %v8030, %v6726
  %v8093 = vsel %vm495, %v8031, %v6728
  %v8094 = vsel %vm495, %v8032, %v6730
  %v8095 = vsel %vm495, %v8033, %v6732
  %v8096 = vsel %vm495, %v8034, %v6734
  %v8097 = vsel %vm495, %v8035, %v6736
  %v8098 = vsel %vm495, %v8036, %v6738
  %v8099 = vsel %vm495, %v8037, %v6740
  %v8100 = vsel %vm495, %v8038, %v6742
  %v8101 = vsel %vm495, %v8039, %v6744
  %v8102 = vsel %vm495, %v8040, %v6746
  %v8103 = vsel %vm495, %v8041, %v6748
  %v8104 = vsel %vm495, %v8042, %v6750
  %v8105 = vsel %vm495, %v8043, %v6752
  %v8106 = vsel %vm495, %v8044, %v6754
  %v8107 = vsel %vm495, %v8045, %v6756
  %v8108 = vsel %vm495, %v8046, %v6758
  %v8109 = vsel %vm495, %v8047, %v6760
  %v8110 = vsel %vm495, %v8048, %v6762
  %v8111 = vsel %vm495, %v8049, %v6764
  %v8112 = vsel %vm495, %v8050, %v6766
  %v8113 = vsel %vm495, %v8051, %v6768
  %v8114 = vsel %vm495, %v8052, %v6770
  %v8115 = vsel %vm495, %v8053, %v6772
  %v8116 = vsel %vm495, %v8054, %v6774
  %v8117 = vsel %vm495, %v8055, %v6776
  %v8118 = vsel %vm495, %v8056, %v6778
  %v8119 = vsel %vm495, %v8057, %v6780
  %v8120 = vsel %vm495, %v8058, %v6782
  %v8121 = vsel %vm495, %v8059, %v6784
  %v8122 = vsel %vm495, %v8060, %v6786
  %v8123 = vsel %vm495, %v8061, %v6788
  %v8124 = vsel %vm495, %v8062, %v6790
  %v8125 = vsel %vm495, %v8063, %v6792
  %v8126 = vsel %vm495, %v8064, %v6794
  %v8127 = vsel %vm495, %v8065, %v6796
  %v8128 = vsel %vm495, %v8066, %v6798
  %v8129 = vsel %vm495, %v8067, %v6800
  %v8130 = vsel %vm495, %v8068, %v6802
  %v8131 = vsel %vm495, %v8069, %v6804
  %v8132 = vsel %vm495, %v8070, %v6806
  %v8133 = vsel %vm495, %v8071, %v6808
  %v8134 = vsel %vm495, %v8072, %v6810
  %v8135 = vsel %vm495, %v8073, %v6812
  %v8136 = vsel %vm495, %v8074, %v6814
  %v8137 = vsel %vm495, %v8075, %v6816
  %v8138 = vsel %vm495, %v8076, %v6818
  %vm8139 = vcmask 195584
  %v8140 = vsel %vm8139, %v8077, %v6882
  %v8141 = vsel %vm8139, %v8078, %v6884
  %v8142 = vsel %vm8139, %v8079, %v6886
  %v8143 = vsel %vm8139, %v8080, %v6888
  %v8144 = vsel %vm8139, %v8081, %v6890
  %v8145 = vsel %vm8139, %v8082, %v6892
  %v8146 = vsel %vm8139, %v8083, %v6894
  %v8147 = vsel %vm8139, %v8084, %v6896
  %v8148 = vsel %vm8139, %v8085, %v6898
  %v8149 = vsel %vm8139, %v8086, %v6900
  %v8150 = vsel %vm8139, %v8087, %v6902
  %v8151 = vsel %vm8139, %v8088, %v6904
  %v8152 = vsel %vm8139, %v8089, %v6906
  %v8153 = vsel %vm8139, %v8090, %v6908
  %v8154 = vsel %vm8139, %v8091, %v6910
  %v8155 = vsel %vm8139, %v8092, %v6912
  %v8156 = vsel %vm8139, %v8093, %v6914
  %v8157 = vsel %vm8139, %v8094, %v6916
  %v8158 = vsel %vm8139, %v8095, %v6918
  %v8159 = vsel %vm8139, %v8096, %v6920
  %v8160 = vsel %vm8139, %v8097, %v6922
  %v8161 = vsel %vm8139, %v8098, %v6924
  %v8162 = vsel %vm8139, %v8099, %v6926
  %v8163 = vsel %vm8139, %v8100, %v6928
  %v8164 = vsel %vm8139, %v8101, %v6930
  %v8165 = vsel %vm8139, %v8102, %v6932
  %v8166 = vsel %vm8139, %v8103, %v6934
  %v8167 = vsel %vm8139, %v8104, %v6936
  %v8168 = vsel %vm8139, %v8105, %v6938
  %v8169 = vsel %vm8139, %v8106, %v6940
  %v8170 = vsel %vm8139, %v8107, %v6942
  %v8171 = vsel %vm8139, %v8108, %v6944
  %v8172 = vsel %vm8139, %v8077, %v6946
  %v8173 = vsel %vm8139, %v8078, %v6948
  %v8174 = vsel %vm8139, %v8109, %v6950
  %v8175 = vsel %vm8139, %v8110, %v6952
  %v8176 = vsel %vm8139, %v8111, %v6954
  %v8177 = vsel %vm8139, %v8112, %v6956
  %v8178 = vsel %vm8139, %v8113, %v6958
  %v8179 = vsel %vm8139, %v8114, %v6960
  %v8180 = vsel %vm8139, %v8115, %v6962
  %v8181 = vsel %vm8139, %v8116, %v6964
  %v8182 = vsel %vm8139, %v8117, %v6966
  %v8183 = vsel %vm8139, %v8118, %v6968
  %v8184 = vsel %vm8139, %v8119, %v6970
  %v8185 = vsel %vm8139, %v8120, %v6972
  %v8186 = vsel %vm8139, %v8121, %v6974
  %v8187 = vsel %vm8139, %v8122, %v6976
  %v8188 = vsel %vm8139, %v8123, %v6978
  %v8189 = vsel %vm8139, %v8124, %v6980
  %v8190 = vsel %vm8139, %v8125, %v6982
  %v8191 = vsel %vm8139, %v8126, %v6984
  %v8192 = vsel %vm8139, %v8127, %v6986
  %v8193 = vsel %vm8139, %v8128, %v6988
  %v8194 = vsel %vm8139, %v8129, %v6990
  %v8195 = vsel %vm8139, %v8130, %v6992
  %v8196 = vsel %vm8139, %v8131, %v6994
  %v8197 = vsel %vm8139, %v8132, %v6996
  %v8198 = vsel %vm8139, %v8133, %v6998
  %v8199 = vsel %vm8139, %v8134, %v7000
  %v8200 = vsel %vm8139, %v8135, %v7002
  %v8201 = vsel %vm8139, %v8136, %v7004
  %v8202 = vsel %vm8139, %v8137, %v7006
  %v8203 = vsel %vm8139, %v8138, %v7008
  %v8204 = vsel %vm98, %v8140, %v7074
  %v8205 = vsel %vm98, %v8141, %v7076
  %v8206 = vsel %vm98, %v8142, %v7078
  %v8207 = vsel %vm98, %v8143, %v7080
  %v8208 = vsel %vm98, %v8144, %v7082
  %v8209 = vsel %vm98, %v8145, %v7084
  %v8210 = vsel %vm98, %v8146, %v7086
  %v8211 = vsel %vm98, %v8147, %v7088
  %v8212 = vsel %vm98, %v8148, %v7090
  %v8213 = vsel %vm98, %v8149, %v7092
  %v8214 = vsel %vm98, %v8150, %v7094
  %v8215 = vsel %vm98, %v8151, %v7096
  %v8216 = vsel %vm98, %v8152, %v7098
  %v8217 = vsel %vm98, %v8153, %v7100
  %v8218 = vsel %vm98, %v8154, %v7102
  %v8219 = vsel %vm98, %v8155, %v7104
  %v8220 = vsel %vm98, %v8156, %v7106
  %v8221 = vsel %vm98, %v8157, %v7108
  %v8222 = vsel %vm98, %v8158, %v7110
  %v8223 = vsel %vm98, %v8159, %v7112
  %v8224 = vsel %vm98, %v8160, %v7114
  %v8225 = vsel %vm98, %v8161, %v7116
  %v8226 = vsel %vm98, %v8162, %v7118
  %v8227 = vsel %vm98, %v8163, %v7120
  %v8228 = vsel %vm98, %v8164, %v7122
  %v8229 = vsel %vm98, %v8165, %v7124
  %v8230 = vsel %vm98, %v8166, %v7126
  %v8231 = vsel %vm98, %v8167, %v7128
  %v8232 = vsel %vm98, %v8168, %v7130
  %v8233 = vsel %vm98, %v8169, %v7132
  %v8234 = vsel %vm98, %v8170, %v7134
  %v8235 = vsel %vm98, %v8171, %v7136
  %v8236 = vsel %vm98, %v8172, %v7138
  %v8237 = vsel %vm98, %v8173, %v7140
  %v8238 = vsel %vm98, %v8174, %v7142
  %v8239 = vsel %vm98, %v8175, %v7144
  %v8240 = vsel %vm98, %v8176, %v7146
  %v8241 = vsel %vm98, %v8177, %v7148
  %v8242 = vsel %vm98, %v8178, %v7150
  %v8243 = vsel %vm98, %v8179, %v7152
  %v8244 = vsel %vm98, %v8180, %v7154
  %v8245 = vsel %vm98, %v8181, %v7156
  %v8246 = vsel %vm98, %v8182, %v7158
  %v8247 = vsel %vm98, %v8183, %v7160
  %v8248 = vsel %vm98, %v8184, %v7162
  %v8249 = vsel %vm98, %v8185, %v7164
  %v8250 = vsel %vm98, %v8186, %v7166
  %v8251 = vsel %vm98, %v8187, %v7168
  %v8252 = vsel %vm98, %v8188, %v7170
  %v8253 = vsel %vm98, %v8189, %v7172
  %v8254 = vsel %vm98, %v8190, %v7174
  %v8255 = vsel %vm98, %v8191, %v7176
  %v8256 = vsel %vm98, %v8192, %v7178
  %v8257 = vsel %vm98, %v8193, %v7180
  %v8258 = vsel %vm98, %v8194, %v7182
  %v8259 = vsel %vm98, %v8195, %v7184
  %v8260 = vsel %vm98, %v8196, %v7186
  %v8261 = vsel %vm98, %v8197, %v7188
  %v8262 = vsel %vm98, %v8198, %v7190
  %v8263 = vsel %vm98, %v8199, %v7192
  %v8264 = vsel %vm98, %v8200, %v7194
  %v8265 = vsel %vm98, %v8201, %v7196
  %v8266 = vsel %vm98, %v8202, %v7198
  %v8267 = vsel %vm98, %v8203, %v7200
  %vm8268 = vcmask 326656
  %v8269 = vsel %vm8268, %v8204, %v7266
  %v8270 = vsel %vm8268, %v8205, %v7268
  %v8271 = vsel %vm8268, %v8206, %v7270
  %v8272 = vsel %vm8268, %v8207, %v7272
  %v8273 = vsel %vm8268, %v8208, %v7274
  %v8274 = vsel %vm8268, %v8209, %v7276
  %v8275 = vsel %vm8268, %v8210, %v7278
  %v8276 = vsel %vm8268, %v8211, %v7280
  %v8277 = vsel %vm8268, %v8212, %v7282
  %v8278 = vsel %vm8268, %v8213, %v7284
  %v8279 = vsel %vm8268, %v8214, %v7286
  %v8280 = vsel %vm8268, %v8215, %v7288
  %v8281 = vsel %vm8268, %v8216, %v7290
  %v8282 = vsel %vm8268, %v8217, %v7292
  %v8283 = vsel %vm8268, %v8218, %v7294
  %v8284 = vsel %vm8268, %v8219, %v7296
  %v8285 = vsel %vm8268, %v8220, %v7298
  %v8286 = vsel %vm8268, %v8221, %v7300
  %v8287 = vsel %vm8268, %v8222, %v7302
  %v8288 = vsel %vm8268, %v8223, %v7304
  %v8289 = vsel %vm8268, %v8224, %v7306
  %v8290 = vsel %vm8268, %v8225, %v7308
  %v8291 = vsel %vm8268, %v8226, %v7310
  %v8292 = vsel %vm8268, %v8227, %v7312
  %v8293 = vsel %vm8268, %v8228, %v7314
  %v8294 = vsel %vm8268, %v8229, %v7316
  %v8295 = vsel %vm8268, %v8230, %v7318
  %v8296 = vsel %vm8268, %v8231, %v7320
  %v8297 = vsel %vm8268, %v8232, %v7322
  %v8298 = vsel %vm8268, %v8233, %v7324
  %v8299 = vsel %vm8268, %v8234, %v7326
  %v8300 = vsel %vm8268, %v8235, %v7328
  %v8301 = vsel %vm8268, %v8236, %v7330
  %v8302 = vsel %vm8268, %v8237, %v7332
  %v8303 = vsel %vm8268, %v8238, %v7334
  %v8304 = vsel %vm8268, %v8239, %v7336
  %v8305 = vsel %vm8268, %v8240, %v7338
  %v8306 = vsel %vm8268, %v8241, %v7340
  %v8307 = vsel %vm8268, %v8242, %v7342
  %v8308 = vsel %vm8268, %v8243, %v7344
  %v8309 = vsel %vm8268, %v8244, %v7346
  %v8310 = vsel %vm8268, %v8245, %v7348
  %v8311 = vsel %vm8268, %v8246, %v7350
  %v8312 = vsel %vm8268, %v8247, %v7352
  %v8313 = vsel %vm8268, %v8248, %v7354
  %v8314 = vsel %vm8268, %v8249, %v7356
  %v8315 = vsel %vm8268, %v8250, %v7358
  %v8316 = vsel %vm8268, %v8251, %v7360
  %v8317 = vsel %vm8268, %v8252, %v7362
  %v8318 = vsel %vm8268, %v8253, %v7364
  %v8319 = vsel %vm8268, %v8254, %v7366
  %v8320 = vsel %vm8268, %v8255, %v7368
  %v8321 = vsel %vm8268, %v8256, %v7370
  %v8322 = vsel %vm8268, %v8257, %v7372
  %v8323 = vsel %vm8268, %v8258, %v7374
  %v8324 = vsel %vm8268, %v8259, %v7376
  %v8325 = vsel %vm8268, %v8260, %v7378
  %v8326 = vsel %vm8268, %v8261, %v7380
  %v8327 = vsel %vm8268, %v8262, %v7382
  %v8328 = vsel %vm8268, %v8263, %v7384
  %v8329 = vsel %vm8268, %v8264, %v7386
  %v8330 = vsel %vm8268, %v8265, %v7388
  %v8331 = vsel %vm8268, %v8266, %v7390
  %v8332 = vsel %vm8268, %v8267, %v7392
  %v8333 = vsel %vm504, %v8269, %v7458
  %v8334 = vsel %vm504, %v8270, %v7460
  %v8335 = vsel %vm504, %v8271, %v7462
  %v8336 = vsel %vm504, %v8272, %v7464
  %v8337 = vsel %vm504, %v8273, %v7466
  %v8338 = vsel %vm504, %v8274, %v7468
  %v8339 = vsel %vm504, %v8275, %v7470
  %v8340 = vsel %vm504, %v8276, %v7472
  %v8341 = vsel %vm504, %v8277, %v7474
  %v8342 = vsel %vm504, %v8278, %v7476
  %v8343 = vsel %vm504, %v8279, %v7478
  %v8344 = vsel %vm504, %v8280, %v7480
  %v8345 = vsel %vm504, %v8281, %v7482
  %v8346 = vsel %vm504, %v8282, %v7484
  %v8347 = vsel %vm504, %v8283, %v7486
  %v8348 = vsel %vm504, %v8284, %v7488
  %v8349 = vsel %vm504, %v8285, %v7490
  %v8350 = vsel %vm504, %v8286, %v7492
  %v8351 = vsel %vm504, %v8287, %v7494
  %v8352 = vsel %vm504, %v8288, %v7496
  %v8353 = vsel %vm504, %v8289, %v7498
  %v8354 = vsel %vm504, %v8290, %v7500
  %v8355 = vsel %vm504, %v8291, %v7502
  %v8356 = vsel %vm504, %v8292, %v7504
  %v8357 = vsel %vm504, %v8293, %v7506
  %v8358 = vsel %vm504, %v8294, %v7508
  %v8359 = vsel %vm504, %v8295, %v7510
  %v8360 = vsel %vm504, %v8296, %v7512
  %v8361 = vsel %vm504, %v8297, %v7514
  %v8362 = vsel %vm504, %v8298, %v7516
  %v8363 = vsel %vm504, %v8299, %v7518
  %v8364 = vsel %vm504, %v8300, %v7520
  %v8365 = vsel %vm504, %v8301, %v7522
  %v8366 = vsel %vm504, %v8302, %v7524
  %v8367 = vsel %vm504, %v8303, %v7526
  %v8368 = vsel %vm504, %v8304, %v7528
  %v8369 = vsel %vm504, %v8305, %v7530
  %v8370 = vsel %vm504, %v8306, %v7532
  %v8371 = vsel %vm504, %v8307, %v7534
  %v8372 = vsel %vm504, %v8308, %v7536
  %v8373 = vsel %vm504, %v8309, %v7538
  %v8374 = vsel %vm504, %v8310, %v7540
  %v8375 = vsel %vm504, %v8311, %v7542
  %v8376 = vsel %vm504, %v8312, %v7544
  %v8377 = vsel %vm504, %v8313, %v7546
  %v8378 = vsel %vm504, %v8314, %v7548
  %v8379 = vsel %vm504, %v8315, %v7550
  %v8380 = vsel %vm504, %v8316, %v7552
  %v8381 = vsel %vm504, %v8317, %v7554
  %v8382 = vsel %vm504, %v8318, %v7556
  %v8383 = vsel %vm504, %v8319, %v7558
  %v8384 = vsel %vm504, %v8320, %v7560
  %v8385 = vsel %vm504, %v8321, %v7562
  %v8386 = vsel %vm504, %v8322, %v7564
  %v8387 = vsel %vm504, %v8323, %v7566
  %v8388 = vsel %vm504, %v8324, %v7568
  %v8389 = vsel %vm504, %v8325, %v7570
  %v8390 = vsel %vm504, %v8326, %v7572
  %v8391 = vsel %vm504, %v8327, %v7574
  %v8392 = vsel %vm504, %v8328, %v7576
  %v8393 = vsel %vm504, %v8329, %v7578
  %v8394 = vsel %vm504, %v8330, %v7580
  %v8395 = vsel %vm504, %v8331, %v7518
  %v8396 = vsel %vm504, %v8332, %v7520
  %vm8397 = vcmask 457728
  %v8398 = vsel %vm8397, %v8333, %v7644
  %v8399 = vsel %vm8397, %v8334, %v7646
  %v8400 = vsel %vm8397, %v8335, %v7648
  %v8401 = vsel %vm8397, %v8336, %v7650
  %v8402 = vsel %vm8397, %v8337, %v7652
  %v8403 = vsel %vm8397, %v8338, %v7654
  %v8404 = vsel %vm8397, %v8339, %v7656
  %v8405 = vsel %vm8397, %v8340, %v7658
  %v8406 = vsel %vm8397, %v8341, %v7660
  %v8407 = vsel %vm8397, %v8342, %v7662
  %v8408 = vsel %vm8397, %v8343, %v7664
  %v8409 = vsel %vm8397, %v8344, %v7666
  %v8410 = vsel %vm8397, %v8345, %v7668
  %v8411 = vsel %vm8397, %v8346, %v7670
  %v8412 = vsel %vm8397, %v8347, %v7672
  %v8413 = vsel %vm8397, %v8348, %v7674
  %v8414 = vsel %vm8397, %v8349, %v7676
  %v8415 = vsel %vm8397, %v8350, %v7678
  %v8416 = vsel %vm8397, %v8351, %v7680
  %v8417 = vsel %vm8397, %v8352, %v7682
  %v8418 = vsel %vm8397, %v8353, %v7684
  %v8419 = vsel %vm8397, %v8354, %v7686
  %v8420 = vsel %vm8397, %v8355, %v7688
  %v8421 = vsel %vm8397, %v8356, %v7690
  %v8422 = vsel %vm8397, %v8357, %v7692
  %v8423 = vsel %vm8397, %v8358, %v7694
  %v8424 = vsel %vm8397, %v8359, %v7696
  %v8425 = vsel %vm8397, %v8360, %v7698
  %v8426 = vsel %vm8397, %v8361, %v7700
  %v8427 = vsel %vm8397, %v8362, %v7702
  %v8428 = vsel %vm8397, %v8363, %v7704
  %v8429 = vsel %vm8397, %v8364, %v7706
  %v8430 = vsel %vm8397, %v8365, %v7708
  %v8431 = vsel %vm8397, %v8366, %v7710
  %v8432 = vsel %vm8397, %v8367, %v7712
  %v8433 = vsel %vm8397, %v8368, %v7714
  %v8434 = vsel %vm8397, %v8369, %v7716
  %v8435 = vsel %vm8397, %v8370, %v7718
  %v8436 = vsel %vm8397, %v8371, %v7720
  %v8437 = vsel %vm8397, %v8372, %v7722
  %v8438 = vsel %vm8397, %v8373, %v7724
  %v8439 = vsel %vm8397, %v8374, %v7726
  %v8440 = vsel %vm8397, %v8375, %v7728
  %v8441 = vsel %vm8397, %v8376, %v7730
  %v8442 = vsel %vm8397, %v8377, %v7732
  %v8443 = vsel %vm8397, %v8378, %v7734
  %v8444 = vsel %vm8397, %v8379, %v7736
  %v8445 = vsel %vm8397, %v8380, %v7738
  %v8446 = vsel %vm8397, %v8381, %v7740
  %v8447 = vsel %vm8397, %v8382, %v7742
  %v8448 = vsel %vm8397, %v8383, %v7744
  %v8449 = vsel %vm8397, %v8384, %v7746
  %v8450 = vsel %vm8397, %v8385, %v7748
  %v8451 = vsel %vm8397, %v8386, %v7750
  %v8452 = vsel %vm8397, %v8387, %v7752
  %v8453 = vsel %vm8397, %v8388, %v7754
  %v8454 = vsel %vm8397, %v8389, %v7756
  %v8455 = vsel %vm8397, %v8390, %v7758
  %v8456 = vsel %vm8397, %v8391, %v7760
  %v8457 = vsel %vm8397, %v8392, %v7762
  %v8458 = vsel %vm8397, %v8393, %v7764
  %v8459 = vsel %vm8397, %v8394, %v7766
  %v8460 = vsel %vm8397, %v8395, %v7704
  %v8461 = vsel %vm8397, %v8396, %v7706
  %v8462 = vsel %vm509, %v8398, %v7830
  %v8463 = vsel %vm509, %v8399, %v7832
  %v8464 = vsel %vm509, %v8400, %v7834
  %v8465 = vsel %vm509, %v8401, %v7836
  %v8466 = vsel %vm509, %v8402, %v7838
  %v8467 = vsel %vm509, %v8403, %v7840
  %v8468 = vsel %vm509, %v8404, %v7842
  %v8469 = vsel %vm509, %v8405, %v7844
  %v8470 = vsel %vm509, %v8406, %v7846
  %v8471 = vsel %vm509, %v8407, %v7848
  %v8472 = vsel %vm509, %v8408, %v7850
  %v8473 = vsel %vm509, %v8409, %v7852
  %v8474 = vsel %vm509, %v8410, %v7854
  %v8475 = vsel %vm509, %v8411, %v7856
  %v8476 = vsel %vm509, %v8412, %v7858
  %v8477 = vsel %vm509, %v8413, %v7860
  %v8478 = vsel %vm509, %v8414, %v7862
  %v8479 = vsel %vm509, %v8415, %v7864
  %v8480 = vsel %vm509, %v8416, %v7866
  %v8481 = vsel %vm509, %v8417, %v7868
  %v8482 = vsel %vm509, %v8418, %v7870
  %v8483 = vsel %vm509, %v8419, %v7872
  %v8484 = vsel %vm509, %v8420, %v7874
  %v8485 = vsel %vm509, %v8421, %v7876
  %v8486 = vsel %vm509, %v8422, %v7878
  %v8487 = vsel %vm509, %v8423, %v7880
  %v8488 = vsel %vm509, %v8424, %v7882
  %v8489 = vsel %vm509, %v8425, %v7884
  %v8490 = vsel %vm509, %v8426, %v7886
  %v8491 = vsel %vm509, %v8427, %v7888
  %v8492 = vsel %vm509, %v8428, %v7890
  %v8493 = vsel %vm509, %v8429, %v7892
  %v8494 = vsel %vm509, %v8430, %v7894
  %v8495 = vsel %vm509, %v8431, %v7896
  %v8496 = vsel %vm509, %v8432, %v7898
  %v8497 = vsel %vm509, %v8433, %v7900
  %v8498 = vsel %vm509, %v8434, %v7902
  %v8499 = vsel %vm509, %v8435, %v7904
  %v8500 = vsel %vm509, %v8436, %v7906
  %v8501 = vsel %vm509, %v8437, %v7908
  %v8502 = vsel %vm509, %v8438, %v7910
  %v8503 = vsel %vm509, %v8439, %v7912
  %v8504 = vsel %vm509, %v8440, %v7914
  %v8505 = vsel %vm509, %v8441, %v7916
  %v8506 = vsel %vm509, %v8442, %v7918
  %v8507 = vsel %vm509, %v8443, %v7920
  %v8508 = vsel %vm509, %v8444, %v7922
  %v8509 = vsel %vm509, %v8445, %v7924
  %v8510 = vsel %vm509, %v8446, %v7926
  %v8511 = vsel %vm509, %v8447, %v7928
  %v8512 = vsel %vm509, %v8448, %v7930
  %v8513 = vsel %vm509, %v8449, %v7932
  %v8514 = vsel %vm509, %v8450, %v7934
  %v8515 = vsel %vm509, %v8451, %v7936
  %v8516 = vsel %vm509, %v8452, %v7938
  %v8517 = vsel %vm509, %v8453, %v7940
  %v8518 = vsel %vm509, %v8454, %v7942
  %v8519 = vsel %vm509, %v8455, %v7944
  %v8520 = vsel %vm509, %v8456, %v7946
  %v8521 = vsel %vm509, %v8457, %v7948
  %v8522 = vsel %vm509, %v8458, %v7950
  %v8523 = vsel %vm509, %v8459, %v7952
  %v8524 = vsel %vm509, %v8460, %v7890
  %v8525 = vsel %vm509, %v8461, %v7892
  %v8527 = vlaneseq
  %v8528 = vshrl.u32 %v8527, 7
  %v8529 = vsub.s32 0, %v8528
  %v8530 = vrot.slane %v5798, %v8529
  %vm8532 = vcmask 588800
  %v8534 = vsel %vm8532, %v8462, 0
  %v8537 = vsel %vm8532, %v8463, 0
  %v8540 = vsel %vm8532, %v8464, 0
  %v8543 = vsel %vm8532, %v8465, 0
  %v8546 = vsel %vm8532, %v8466, 0
  %v8549 = vsel %vm8532, %v8467, 0
  %v8552 = vsel %vm8532, %v8468, 0
  %v8555 = vsel %vm8532, %v8469, 0
  %v8558 = vsel %vm8532, %v8470, 0
  %v8561 = vsel %vm8532, %v8471, 0
  %v8564 = vsel %vm8532, %v8472, 0
  %v8567 = vsel %vm8532, %v8473, 0
  %v8570 = vsel %vm8532, %v8474, 0
  %v8573 = vsel %vm8532, %v8475, 0
  %v8576 = vsel %vm8532, %v8476, 0
  %v8579 = vsel %vm8532, %v8477, 0
  %v8582 = vsel %vm8532, %v8478, 0
  %v8585 = vsel %vm8532, %v8479, 0
  %v8588 = vsel %vm8532, %v8480, 0
  %v8591 = vsel %vm8532, %v8481, 0
  %v8594 = vsel %vm8532, %v8482, 0
  %v8597 = vsel %vm8532, %v8483, 0
  %v8600 = vsel %vm8532, %v8484, 0
  %v8603 = vsel %vm8532, %v8485, 0
  %v8606 = vsel %vm8532, %v8486, 0
  %v8609 = vsel %vm8532, %v8487, 0
  %v8612 = vsel %vm8532, %v8488, 0
  %v8615 = vsel %vm8532, %v8489, 0
  %v8618 = vsel %vm8532, %v8490, 0
  %v8621 = vsel %vm8532, %v8491, 0
  %v8624 = vsel %vm8532, %v8492, 0
  %v8627 = vsel %vm8532, %v8493, 0
  %v8630 = vsel %vm8532, %v8494, 0
  %v8633 = vsel %vm8532, %v8495, 0
  %v8636 = vsel %vm8532, %v8496, 0
  %v8639 = vsel %vm8532, %v8497, 0
  %v8642 = vsel %vm8532, %v8498, 0
  %v8645 = vsel %vm8532, %v8499, 0
  %v8648 = vsel %vm8532, %v8500, 0
  %v8651 = vsel %vm8532, %v8501, 0
  %v8654 = vsel %vm8532, %v8502, 0
  %v8657 = vsel %vm8532, %v8503, 0
  %v8660 = vsel %vm8532, %v8504, 0
  %v8663 = vsel %vm8532, %v8505, 0
  %v8666 = vsel %vm8532, %v8506, 0
  %v8669 = vsel %vm8532, %v8507, 0
  %v8672 = vsel %vm8532, %v8508, 0
  %v8675 = vsel %vm8532, %v8509, 0
  %v8678 = vsel %vm8532, %v8510, 0
  %v8681 = vsel %vm8532, %v8511, 0
  %v8684 = vsel %vm8532, %v8512, 0
  %v8687 = vsel %vm8532, %v8513, 0
  %v8690 = vsel %vm8532, %v8514, 0
  %v8693 = vsel %vm8532, %v8515, 0
  %v8696 = vsel %vm8532, %v8516, 0
  %v8699 = vsel %vm8532, %v8517, 0
  %v8702 = vsel %vm8532, %v8518, 0
  %v8705 = vsel %vm8532, %v8519, 0
  %v8708 = vsel %vm8532, %v8520, 0
  %v8711 = vsel %vm8532, %v8521, 0
  %v8714 = vsel %vm8532, %v8522, 0
  %v8717 = vsel %vm8532, %v8523, 0
  %v8720 = vsel %vm8532, %v8524, 0
  %v8723 = vsel %vm8532, %v8525, 0
  %8725 = vmatprep.subr.mxu0 0.0
  %8726 = vmatpush1.msra.mxu0 %v5789
  %8727 = vmatprep.subr.mxu0 0.0
  %8728 = vmatpush1.msra.mxu0 %v5790
  %8729 = vmatprep.subr.mxu0 0.0
  %8730 = vmatpush1.msra.mxu0 %v5791
  %8731 = vmatprep.subr.mxu0 0.0
  %8732 = vmatpush1.msra.mxu0 %v5792
  %8733 = vmatprep.subr.mxu0 0.0
  %8734 = vmatpush1.msra.mxu0 %v5793
  %8735 = vmatprep.subr.mxu0 0.0
  %8736 = vmatpush1.msra.mxu0 %v5794
  %8737 = vmatprep.subr.mxu0 0.0
  %8738 = vmatpush1.msra.mxu0 %v5795
  %8739 = vmatprep.subr.mxu0 0.0
  %8740 = vmatpush1.msra.mxu0 %v5796
  %8741 = vmatprep.subr.mxu0 0.0
  %8742 = vmatpush1.msra.mxu0 %v5797
  %8743 = vmatprep.subr.mxu0 0.0
  %8744 = vmatpush1.msra.mxu0 0.0
  %8745 = vmatprep.subr.mxu0 0.0
  %8746 = vmatpush1.msra.mxu0 0.0
  %8747 = vmatprep.subr.mxu0 0.0
  %8748 = vmatpush1.msra.mxu0 0.0
  %8749 = vmatprep.subr.mxu0 0.0
  %8750 = vmatpush1.msra.mxu0 0.0
  %8751 = vmatprep.subr.mxu0 0.0
  %8752 = vmatpush1.msra.mxu0 0.0
  %8753 = vmatprep.subr.mxu0 0.0
  %8754 = vmatpush1.msra.mxu0 0.0
  %8755 = vmatprep.subr.mxu0 0.0
  %8756 = vmatpush1.msra.mxu0 0.0
  %8757 = vmatprep.subr.mxu0 0.0
  %8758 = vmatpush1.msra.mxu0 0.0
  %8759 = vmatprep.subr.mxu0 0.0
  %8760 = vmatpush1.msra.mxu0 0.0
  %8761 = vmatprep.subr.mxu0 0.0
  %8762 = vmatpush1.msra.mxu0 0.0
  %8763 = vmatprep.subr.mxu0 0.0
  %8764 = vmatpush1.msra.mxu0 0.0
  %8765 = vmatprep.subr.mxu0 0.0
  %8766 = vmatpush1.msra.mxu0 0.0
  %8767 = vmatprep.subr.mxu0 0.0
  %8768 = vmatpush1.msra.mxu0 0.0
  %8769 = vmatprep.subr.mxu0 0.0
  %8770 = vmatpush1.msra.mxu0 0.0
  %8771 = vmatprep.subr.mxu0 0.0
  %8772 = vmatpush1.msra.mxu0 0.0
  %8773 = vmatprep.subr.mxu0 0.0
  %8774 = vmatpush1.msra.mxu0 0.0
  %8775 = vmatprep.subr.mxu0 0.0
  %8776 = vmatpush1.msra.mxu0 0.0
  %8777 = vmatprep.subr.mxu0 0.0
  %8778 = vmatpush1.msra.mxu0 0.0
  %8779 = vmatprep.subr.mxu0 0.0
  %8780 = vmatpush1.msra.mxu0 0.0
  %8781 = vmatprep.subr.mxu0 0.0
  %8782 = vmatpush1.msra.mxu0 0.0
  %8783 = vmatprep.subr.mxu0 0.0
  %8784 = vmatpush1.msra.mxu0 0.0
  %8785 = vmatprep.subr.mxu0 0.0
  %8786 = vmatpush1.msra.mxu0 0.0
  %8787 = vmatprep.subr.mxu0 0.0
  %8788 = vmatpush1.msra.mxu0 0.0
  %8789 = vmatprep.mubr.f32.mxu0 0.0
  %8790 = vmatmul.mubr.f32.gmra.mrb[0].mxu0 %v8534
  %v8791 = vpop.f32.mrb[0].mxu0
  %v8792 = vadd.f32 %v8530, %v8791
  %v8793 = vpop.f32.mrb[0].mxu0
  %8794 = vmatprep.mubr.f32.mxu0 0.0
  %8795 = vmatmul.mubr.f32.gmra.mrb[0].mxu0 %v8537
  %v8796 = vpop.f32.mrb[0].mxu0
  %v8797 = vadd.f32 %v8530, %v8796
  %v8798 = vpop.f32.mrb[0].mxu0
  %8799 = vmatprep.mubr.f32.mxu0 0.0
  %8800 = vmatmul.mubr.f32.gmra.mrb[0].mxu0 %v8540
  %v8801 = vpop.f32.mrb[0].mxu0
  %v8802 = vadd.f32 %v8530, %v8801
  %v8803 = vpop.f32.mrb[0].mxu0
  %8804 = vmatprep.mubr.f32.mxu0 0.0
  %8805 = vmatmul.mubr.f32.gmra.mrb[0].mxu0 %v8543
  %v8806 = vpop.f32.mrb[0].mxu0
  %v8807 = vadd.f32 %v8530, %v8806
  %v8808 = vpop.f32.mrb[0].mxu0
  %8809 = vmatprep.mubr.f32.mxu0 0.0
  %8810 = vmatmul.mubr.f32.gmra.mrb[0].mxu0 %v8546
  %v8811 = vpop.f32.mrb[0].mxu0
  %v8812 = vadd.f32 %v8530, %v8811
  %v8813 = vpop.f32.mrb[0].mxu0
  %8814 = vmatprep.mubr.f32.mxu0 0.0
  %8815 = vmatmul.mubr.f32.gmra.mrb[0].mxu0 %v8549
  %v8816 = vpop.f32.mrb[0].mxu0
  %v8817 = vadd.f32 %v8530, %v8816
  %v8818 = vpop.f32.mrb[0].mxu0
  %8819 = vmatprep.mubr.f32.mxu0 0.0
  %8820 = vmatmul.mubr.f32.gmra.mrb[0].mxu0 %v8552
  %v8821 = vpop.f32.mrb[0].mxu0
  %v8822 = vadd.f32 %v8530, %v8821
  %v8823 = vpop.f32.mrb[0].mxu0
  %8824 = vmatprep.mubr.f32.mxu0 0.0
  %8825 = vmatmul.mubr.f32.gmra.mrb[0].mxu0 %v8555
  %v8826 = vpop.f32.mrb[0].mxu0
  %v8827 = vadd.f32 %v8530, %v8826
  %v8828 = vpop.f32.mrb[0].mxu0
  %8829 = vmatprep.mubr.f32.mxu0 0.0
  %8830 = vmatmul.mubr.f32.gmra.mrb[0].mxu0 %v8558
  %v8831 = vpop.f32.mrb[0].mxu0
  %v8832 = vadd.f32 %v8530, %v8831
  %v8833 = vpop.f32.mrb[0].mxu0
  %8834 = vmatprep.mubr.f32.mxu0 0.0
  %8835 = vmatmul.mubr.f32.gmra.mrb[0].mxu0 %v8561
  %v8836 = vpop.f32.mrb[0].mxu0
  %v8837 = vadd.f32 %v8530, %v8836
  %v8838 = vpop.f32.mrb[0].mxu0
  %8839 = vmatprep.mubr.f32.mxu0 0.0
  %8840 = vmatmul.mubr.f32.gmra.mrb[0].mxu0 %v8564
  %v8841 = vpop.f32.mrb[0].mxu0
  %v8842 = vadd.f32 %v8530, %v8841
  %v8843 = vpop.f32.mrb[0].mxu0
  %8844 = vmatprep.mubr.f32.mxu0 0.0
  %8845 = vmatmul.mubr.f32.gmra.mrb[0].mxu0 %v8567
  %v8846 = vpop.f32.mrb[0].mxu0
  %v8847 = vadd.f32 %v8530, %v8846
  %v8848 = vpop.f32.mrb[0].mxu0
  %8849 = vmatprep.mubr.f32.mxu0 0.0
  %8850 = vmatmul.mubr.f32.gmra.mrb[0].mxu0 %v8570
  %v8851 = vpop.f32.mrb[0].mxu0
  %v8852 = vadd.f32 %v8530, %v8851
  %v8853 = vpop.f32.mrb[0].mxu0
  %8854 = vmatprep.mubr.f32.mxu0 0.0
  %8855 = vmatmul.mubr.f32.gmra.mrb[0].mxu0 %v8573
  %v8856 = vpop.f32.mrb[0].mxu0
  %v8857 = vadd.f32 %v8530, %v8856
  %v8858 = vpop.f32.mrb[0].mxu0
  %8859 = vmatprep.mubr.f32.mxu0 0.0
  %8860 = vmatmul.mubr.f32.gmra.mrb[0].mxu0 %v8576
  %v8861 = vpop.f32.mrb[0].mxu0
  %v8862 = vadd.f32 %v8530, %v8861
  %v8863 = vpop.f32.mrb[0].mxu0
  %8864 = vmatprep.mubr.f32.mxu0 0.0
  %8865 = vmatmul.mubr.f32.gmra.mrb[0].mxu0 %v8579
  %v8866 = vpop.f32.mrb[0].mxu0
  %v8867 = vadd.f32 %v8530, %v8866
  %v8868 = vpop.f32.mrb[0].mxu0
  %8869 = vmatprep.mubr.f32.mxu0 0.0
  %8870 = vmatmul.mubr.f32.gmra.mrb[0].mxu0 %v8582
  %v8871 = vpop.f32.mrb[0].mxu0
  %v8872 = vadd.f32 %v8530, %v8871
  %v8873 = vpop.f32.mrb[0].mxu0
  %8874 = vmatprep.mubr.f32.mxu0 0.0
  %8875 = vmatmul.mubr.f32.gmra.mrb[0].mxu0 %v8585
  %v8876 = vpop.f32.mrb[0].mxu0
  %v8877 = vadd.f32 %v8530, %v8876
  %v8878 = vpop.f32.mrb[0].mxu0
  %8879 = vmatprep.mubr.f32.mxu0 0.0
  %8880 = vmatmul.mubr.f32.gmra.mrb[0].mxu0 %v8588
  %v8881 = vpop.f32.mrb[0].mxu0
  %v8882 = vadd.f32 %v8530, %v8881
  %v8883 = vpop.f32.mrb[0].mxu0
  %8884 = vmatprep.mubr.f32.mxu0 0.0
  %8885 = vmatmul.mubr.f32.gmra.mrb[0].mxu0 %v8591
  %v8886 = vpop.f32.mrb[0].mxu0
  %v8887 = vadd.f32 %v8530, %v8886
  %v8888 = vpop.f32.mrb[0].mxu0
  %8889 = vmatprep.mubr.f32.mxu0 0.0
  %8890 = vmatmul.mubr.f32.gmra.mrb[0].mxu0 %v8594
  %v8891 = vpop.f32.mrb[0].mxu0
  %v8892 = vadd.f32 %v8530, %v8891
  %v8893 = vpop.f32.mrb[0].mxu0
  %8894 = vmatprep.mubr.f32.mxu0 0.0
  %8895 = vmatmul.mubr.f32.gmra.mrb[0].mxu0 %v8597
  %v8896 = vpop.f32.mrb[0].mxu0
  %v8897 = vadd.f32 %v8530, %v8896
  %v8898 = vpop.f32.mrb[0].mxu0
  %8899 = vmatprep.mubr.f32.mxu0 0.0
  %8900 = vmatmul.mubr.f32.gmra.mrb[0].mxu0 %v8600
  %v8901 = vpop.f32.mrb[0].mxu0
  %v8902 = vadd.f32 %v8530, %v8901
  %v8903 = vpop.f32.mrb[0].mxu0
  %8904 = vmatprep.mubr.f32.mxu0 0.0
  %8905 = vmatmul.mubr.f32.gmra.mrb[0].mxu0 %v8603
  %v8906 = vpop.f32.mrb[0].mxu0
  %v8907 = vadd.f32 %v8530, %v8906
  %v8908 = vpop.f32.mrb[0].mxu0
  %8909 = vmatprep.mubr.f32.mxu0 0.0
  %8910 = vmatmul.mubr.f32.gmra.mrb[0].mxu0 %v8606
  %v8911 = vpop.f32.mrb[0].mxu0
  %v8912 = vadd.f32 %v8530, %v8911
  %v8913 = vpop.f32.mrb[0].mxu0
  %8914 = vmatprep.mubr.f32.mxu0 0.0
  %8915 = vmatmul.mubr.f32.gmra.mrb[0].mxu0 %v8609
  %v8916 = vpop.f32.mrb[0].mxu0
  %v8917 = vadd.f32 %v8530, %v8916
  %v8918 = vpop.f32.mrb[0].mxu0
  %8919 = vmatprep.mubr.f32.mxu0 0.0
  %8920 = vmatmul.mubr.f32.gmra.mrb[0].mxu0 %v8612
  %v8921 = vpop.f32.mrb[0].mxu0
  %v8922 = vadd.f32 %v8530, %v8921
  %v8923 = vpop.f32.mrb[0].mxu0
  %8924 = vmatprep.mubr.f32.mxu0 0.0
  %8925 = vmatmul.mubr.f32.gmra.mrb[0].mxu0 %v8615
  %v8926 = vpop.f32.mrb[0].mxu0
  %v8927 = vadd.f32 %v8530, %v8926
  %v8928 = vpop.f32.mrb[0].mxu0
  %8929 = vmatprep.mubr.f32.mxu0 0.0
  %8930 = vmatmul.mubr.f32.gmra.mrb[0].mxu0 %v8618
  %v8931 = vpop.f32.mrb[0].mxu0
  %v8932 = vadd.f32 %v8530, %v8931
  %v8933 = vpop.f32.mrb[0].mxu0
  %8934 = vmatprep.mubr.f32.mxu0 0.0
  %8935 = vmatmul.mubr.f32.gmra.mrb[0].mxu0 %v8621
  %v8936 = vpop.f32.mrb[0].mxu0
  %v8937 = vadd.f32 %v8530, %v8936
  %v8938 = vpop.f32.mrb[0].mxu0
  %8939 = vmatprep.mubr.f32.mxu0 0.0
  %8940 = vmatmul.mubr.f32.gmra.mrb[0].mxu0 %v8624
  %v8941 = vpop.f32.mrb[0].mxu0
  %v8942 = vadd.f32 %v8530, %v8941
  %v8943 = vpop.f32.mrb[0].mxu0
  %8944 = vmatprep.mubr.f32.mxu0 0.0
  %8945 = vmatmul.mubr.f32.gmra.mrb[0].mxu0 %v8627
  %v8946 = vpop.f32.mrb[0].mxu0
  %v8947 = vadd.f32 %v8530, %v8946
  %v8948 = vpop.f32.mrb[0].mxu0
  %8949 = vmatprep.mubr.f32.mxu0 0.0
  %8950 = vmatmul.mubr.f32.gmra.mrb[0].mxu0 %v8630
  %v8951 = vpop.f32.mrb[0].mxu0
  %v8952 = vadd.f32 %v8530, %v8951
  %v8953 = vpop.f32.mrb[0].mxu0
  %8954 = vmatprep.mubr.f32.mxu0 0.0
  %8955 = vmatmul.mubr.f32.gmra.mrb[0].mxu0 %v8633
  %v8956 = vpop.f32.mrb[0].mxu0
  %v8957 = vadd.f32 %v8530, %v8956
  %v8958 = vpop.f32.mrb[0].mxu0
  %8959 = vmatprep.mubr.f32.mxu0 0.0
  %8960 = vmatmul.mubr.f32.gmra.mrb[0].mxu0 %v8636
  %v8961 = vpop.f32.mrb[0].mxu0
  %v8962 = vadd.f32 %v8530, %v8961
  %v8963 = vpop.f32.mrb[0].mxu0
  %8964 = vmatprep.mubr.f32.mxu0 0.0
  %8965 = vmatmul.mubr.f32.gmra.mrb[0].mxu0 %v8639
  %v8966 = vpop.f32.mrb[0].mxu0
  %v8967 = vadd.f32 %v8530, %v8966
  %v8968 = vpop.f32.mrb[0].mxu0
  %8969 = vmatprep.mubr.f32.mxu0 0.0
  %8970 = vmatmul.mubr.f32.gmra.mrb[0].mxu0 %v8642
  %v8971 = vpop.f32.mrb[0].mxu0
  %v8972 = vadd.f32 %v8530, %v8971
  %v8973 = vpop.f32.mrb[0].mxu0
  %8974 = vmatprep.mubr.f32.mxu0 0.0
  %8975 = vmatmul.mubr.f32.gmra.mrb[0].mxu0 %v8645
  %v8976 = vpop.f32.mrb[0].mxu0
  %v8977 = vadd.f32 %v8530, %v8976
  %v8978 = vpop.f32.mrb[0].mxu0
  %8979 = vmatprep.mubr.f32.mxu0 0.0
  %8980 = vmatmul.mubr.f32.gmra.mrb[0].mxu0 %v8648
  %v8981 = vpop.f32.mrb[0].mxu0
  %v8982 = vadd.f32 %v8530, %v8981
  %v8983 = vpop.f32.mrb[0].mxu0
  %8984 = vmatprep.mubr.f32.mxu0 0.0
  %8985 = vmatmul.mubr.f32.gmra.mrb[0].mxu0 %v8651
  %v8986 = vpop.f32.mrb[0].mxu0
  %v8987 = vadd.f32 %v8530, %v8986
  %v8988 = vpop.f32.mrb[0].mxu0
  %8989 = vmatprep.mubr.f32.mxu0 0.0
  %8990 = vmatmul.mubr.f32.gmra.mrb[0].mxu0 %v8654
  %v8991 = vpop.f32.mrb[0].mxu0
  %v8992 = vadd.f32 %v8530, %v8991
  %v8993 = vpop.f32.mrb[0].mxu0
  %8994 = vmatprep.mubr.f32.mxu0 0.0
  %8995 = vmatmul.mubr.f32.gmra.mrb[0].mxu0 %v8657
  %v8996 = vpop.f32.mrb[0].mxu0
  %v8997 = vadd.f32 %v8530, %v8996
  %v8998 = vpop.f32.mrb[0].mxu0
  %8999 = vmatprep.mubr.f32.mxu0 0.0
  %9000 = vmatmul.mubr.f32.gmra.mrb[0].mxu0 %v8660
  %v9001 = vpop.f32.mrb[0].mxu0
  %v9002 = vadd.f32 %v8530, %v9001
  %v9003 = vpop.f32.mrb[0].mxu0
  %9004 = vmatprep.mubr.f32.mxu0 0.0
  %9005 = vmatmul.mubr.f32.gmra.mrb[0].mxu0 %v8663
  %v9006 = vpop.f32.mrb[0].mxu0
  %v9007 = vadd.f32 %v8530, %v9006
  %v9008 = vpop.f32.mrb[0].mxu0
  %9009 = vmatprep.mubr.f32.mxu0 0.0
  %9010 = vmatmul.mubr.f32.gmra.mrb[0].mxu0 %v8666
  %v9011 = vpop.f32.mrb[0].mxu0
  %v9012 = vadd.f32 %v8530, %v9011
  %v9013 = vpop.f32.mrb[0].mxu0
  %9014 = vmatprep.mubr.f32.mxu0 0.0
  %9015 = vmatmul.mubr.f32.gmra.mrb[0].mxu0 %v8669
  %v9016 = vpop.f32.mrb[0].mxu0
  %v9017 = vadd.f32 %v8530, %v9016
  %v9018 = vpop.f32.mrb[0].mxu0
  %9019 = vmatprep.mubr.f32.mxu0 0.0
  %9020 = vmatmul.mubr.f32.gmra.mrb[0].mxu0 %v8672
  %v9021 = vpop.f32.mrb[0].mxu0
  %v9022 = vadd.f32 %v8530, %v9021
  %v9023 = vpop.f32.mrb[0].mxu0
  %9024 = vmatprep.mubr.f32.mxu0 0.0
  %9025 = vmatmul.mubr.f32.gmra.mrb[0].mxu0 %v8675
  %v9026 = vpop.f32.mrb[0].mxu0
  %v9027 = vadd.f32 %v8530, %v9026
  %v9028 = vpop.f32.mrb[0].mxu0
  %9029 = vmatprep.mubr.f32.mxu0 0.0
  %9030 = vmatmul.mubr.f32.gmra.mrb[0].mxu0 %v8678
  %v9031 = vpop.f32.mrb[0].mxu0
  %v9032 = vadd.f32 %v8530, %v9031
  %v9033 = vpop.f32.mrb[0].mxu0
  %9034 = vmatprep.mubr.f32.mxu0 0.0
  %9035 = vmatmul.mubr.f32.gmra.mrb[0].mxu0 %v8681
  %v9036 = vpop.f32.mrb[0].mxu0
  %v9037 = vadd.f32 %v8530, %v9036
  %v9038 = vpop.f32.mrb[0].mxu0
  %9039 = vmatprep.mubr.f32.mxu0 0.0
  %9040 = vmatmul.mubr.f32.gmra.mrb[0].mxu0 %v8684
  %v9041 = vpop.f32.mrb[0].mxu0
  %v9042 = vadd.f32 %v8530, %v9041
  %v9043 = vpop.f32.mrb[0].mxu0
  %9044 = vmatprep.mubr.f32.mxu0 0.0
  %9045 = vmatmul.mubr.f32.gmra.mrb[0].mxu0 %v8687
  %v9046 = vpop.f32.mrb[0].mxu0
  %v9047 = vadd.f32 %v8530, %v9046
  %v9048 = vpop.f32.mrb[0].mxu0
  %9049 = vmatprep.mubr.f32.mxu0 0.0
  %9050 = vmatmul.mubr.f32.gmra.mrb[0].mxu0 %v8690
  %v9051 = vpop.f32.mrb[0].mxu0
  %v9052 = vadd.f32 %v8530, %v9051
  %v9053 = vpop.f32.mrb[0].mxu0
  %9054 = vmatprep.mubr.f32.mxu0 0.0
  %9055 = vmatmul.mubr.f32.gmra.mrb[0].mxu0 %v8693
  %v9056 = vpop.f32.mrb[0].mxu0
  %v9057 = vadd.f32 %v8530, %v9056
  %v9058 = vpop.f32.mrb[0].mxu0
  %9059 = vmatprep.mubr.f32.mxu0 0.0
  %9060 = vmatmul.mubr.f32.gmra.mrb[0].mxu0 %v8696
  %v9061 = vpop.f32.mrb[0].mxu0
  %v9062 = vadd.f32 %v8530, %v9061
  %v9063 = vpop.f32.mrb[0].mxu0
  %9064 = vmatprep.mubr.f32.mxu0 0.0
  %9065 = vmatmul.mubr.f32.gmra.mrb[0].mxu0 %v8699
  %v9066 = vpop.f32.mrb[0].mxu0
  %v9067 = vadd.f32 %v8530, %v9066
  %v9068 = vpop.f32.mrb[0].mxu0
  %9069 = vmatprep.mubr.f32.mxu0 0.0
  %9070 = vmatmul.mubr.f32.gmra.mrb[0].mxu0 %v8702
  %v9071 = vpop.f32.mrb[0].mxu0
  %v9072 = vadd.f32 %v8530, %v9071
  %v9073 = vpop.f32.mrb[0].mxu0
  %9074 = vmatprep.mubr.f32.mxu0 0.0
  %9075 = vmatmul.mubr.f32.gmra.mrb[0].mxu0 %v8705
  %v9076 = vpop.f32.mrb[0].mxu0
  %v9077 = vadd.f32 %v8530, %v9076
  %v9078 = vpop.f32.mrb[0].mxu0
  %9079 = vmatprep.mubr.f32.mxu0 0.0
  %9080 = vmatmul.mubr.f32.gmra.mrb[0].mxu0 %v8708
  %v9081 = vpop.f32.mrb[0].mxu0
  %v9082 = vadd.f32 %v8530, %v9081
  %v9083 = vpop.f32.mrb[0].mxu0
  %9084 = vmatprep.mubr.f32.mxu0 0.0
  %9085 = vmatmul.mubr.f32.gmra.mrb[0].mxu0 %v8711
  %v9086 = vpop.f32.mrb[0].mxu0
  %v9087 = vadd.f32 %v8530, %v9086
  %v9088 = vpop.f32.mrb[0].mxu0
  %9089 = vmatprep.mubr.f32.mxu0 0.0
  %9090 = vmatmul.mubr.f32.gmra.mrb[0].mxu0 %v8714
  %v9091 = vpop.f32.mrb[0].mxu0
  %v9092 = vadd.f32 %v8530, %v9091
  %v9093 = vpop.f32.mrb[0].mxu0
  %9094 = vmatprep.mubr.f32.mxu0 0.0
  %9095 = vmatmul.mubr.f32.gmra.mrb[0].mxu0 %v8717
  %v9096 = vpop.f32.mrb[0].mxu0
  %v9097 = vadd.f32 %v8530, %v9096
  %v9098 = vpop.f32.mrb[0].mxu0
  %9099 = vmatprep.mubr.f32.mxu0 0.0
  %9100 = vmatmul.mubr.f32.gmra.mrb[0].mxu0 %v8720
  %v9101 = vpop.f32.mrb[0].mxu0
  %v9102 = vadd.f32 %v8530, %v9101
  %v9103 = vpop.f32.mrb[0].mxu0
  %9104 = vmatprep.mubr.f32.mxu0 0.0
  %9105 = vmatmul.mubr.f32.gmra.mrb[0].mxu0 %v8723
  %v9106 = vpop.f32.mrb[0].mxu0
  %v9107 = vadd.f32 %v8530, %v9106
  %v9108 = vpop.f32.mrb[0].mxu0
  %9109 = vdwg.mxu0
  %v9110 = vtanh.pop %v8792
  %v9111 = vtanh.pop %v8797
  %v9112 = vtanh.pop %v8802
  %v9113 = vtanh.pop %v8807
  %v9114 = vtanh.pop %v8812
  %v9115 = vtanh.pop %v8817
  %v9116 = vtanh.pop %v8822
  %v9117 = vtanh.pop %v8827
  %v9118 = vtanh.pop %v8832
  %v9119 = vtanh.pop %v8837
  %v9120 = vtanh.pop %v8842
  %v9121 = vtanh.pop %v8847
  %v9122 = vtanh.pop %v8852
  %v9123 = vtanh.pop %v8857
  %v9124 = vtanh.pop %v8862
  %v9125 = vtanh.pop %v8867
  %v9126 = vtanh.pop %v8872
  %v9127 = vtanh.pop %v8877
  %v9128 = vtanh.pop %v8882
  %v9129 = vtanh.pop %v8887
  %v9130 = vtanh.pop %v8892
  %v9131 = vtanh.pop %v8897
  %v9132 = vtanh.pop %v8902
  %v9133 = vtanh.pop %v8907
  %v9134 = vtanh.pop %v8912
  %v9135 = vtanh.pop %v8917
  %v9136 = vtanh.pop %v8922
  %v9137 = vtanh.pop %v8927
  %v9138 = vtanh.pop %v8932
  %v9139 = vtanh.pop %v8937
  %v9140 = vtanh.pop %v8942
  %v9141 = vtanh.pop %v8947
  %v9142 = vtanh.pop %v8952
  %v9143 = vtanh.pop %v8957
  %v9144 = vtanh.pop %v8962
  %v9145 = vtanh.pop %v8967
  %v9146 = vtanh.pop %v8972
  %v9147 = vtanh.pop %v8977
  %v9148 = vtanh.pop %v8982
  %v9149 = vtanh.pop %v8987
  %v9150 = vtanh.pop %v8992
  %v9151 = vtanh.pop %v8997
  %v9152 = vtanh.pop %v9002
  %v9153 = vtanh.pop %v9007
  %v9154 = vtanh.pop %v9012
  %v9155 = vtanh.pop %v9017
  %v9156 = vtanh.pop %v9022
  %v9157 = vtanh.pop %v9027
  %v9158 = vtanh.pop %v9032
  %v9159 = vtanh.pop %v9037
  %v9160 = vtanh.pop %v9042
  %v9161 = vtanh.pop %v9047
  %v9162 = vtanh.pop %v9052
  %v9163 = vtanh.pop %v9057
  %v9164 = vtanh.pop %v9062
  %v9165 = vtanh.pop %v9067
  %v9166 = vtanh.pop %v9072
  %v9167 = vtanh.pop %v9077
  %v9168 = vtanh.pop %v9082
  %v9169 = vtanh.pop %v9087
  %v9170 = vtanh.pop %v9092
  %v9171 = vtanh.pop %v9097
  %v9172 = vtanh.pop %v9102
  %v9173 = vtanh.pop %v9107
  %vm9174 = vcmask 23552
  %v9175 = vsel %vm9174, %v9110, 0.0
  %v9176 = vsel %vm9174, %v9111, 0.0
  %v9177 = vsel %vm9174, %v9112, 0.0
  %v9178 = vsel %vm9174, %v9113, 0.0
  %v9179 = vsel %vm9174, %v9114, 0.0
  %v9180 = vsel %vm9174, %v9115, 0.0
  %v9181 = vsel %vm9174, %v9116, 0.0
  %v9182 = vsel %vm9174, %v9117, 0.0
  %v9183 = vsel %vm9174, %v9118, 0.0
  %v9184 = vsel %vm9174, %v9119, 0.0
  %v9185 = vsel %vm9174, %v9120, 0.0
  %v9186 = vsel %vm9174, %v9121, 0.0
  %v9187 = vsel %vm9174, %v9122, 0.0
  %v9188 = vsel %vm9174, %v9123, 0.0
  %v9189 = vsel %vm9174, %v9124, 0.0
  %v9190 = vsel %vm9174, %v9125, 0.0
  %v9191 = vsel %vm9174, %v9126, 0.0
  %v9192 = vsel %vm9174, %v9127, 0.0
  %v9193 = vsel %vm9174, %v9128, 0.0
  %v9194 = vsel %vm9174, %v9129, 0.0
  %v9195 = vsel %vm9174, %v9130, 0.0
  %v9196 = vsel %vm9174, %v9131, 0.0
  %v9197 = vsel %vm9174, %v9132, 0.0
  %v9198 = vsel %vm9174, %v9133, 0.0
  %v9199 = vsel %vm9174, %v9134, 0.0
  %v9200 = vsel %vm9174, %v9135, 0.0
  %v9201 = vsel %vm9174, %v9136, 0.0
  %v9202 = vsel %vm9174, %v9137, 0.0
  %v9203 = vsel %vm9174, %v9138, 0.0
  %v9204 = vsel %vm9174, %v9139, 0.0
  %v9205 = vsel %vm9174, %v9140, 0.0
  %v9206 = vsel %vm9174, %v9141, 0.0
  %v9207 = vsel %vm9174, %v9142, 0.0
  %v9208 = vsel %vm9174, %v9143, 0.0
  %v9209 = vsel %vm9174, %v9144, 0.0
  %v9210 = vsel %vm9174, %v9145, 0.0
  %v9211 = vsel %vm9174, %v9146, 0.0
  %v9212 = vsel %vm9174, %v9147, 0.0
  %v9213 = vsel %vm9174, %v9148, 0.0
  %v9214 = vsel %vm9174, %v9149, 0.0
  %v9215 = vsel %vm9174, %v9150, 0.0
  %v9216 = vsel %vm9174, %v9151, 0.0
  %v9217 = vsel %vm9174, %v9152, 0.0
  %v9218 = vsel %vm9174, %v9153, 0.0
  %v9219 = vsel %vm9174, %v9154, 0.0
  %v9220 = vsel %vm9174, %v9155, 0.0
  %v9221 = vsel %vm9174, %v9156, 0.0
  %v9222 = vsel %vm9174, %v9157, 0.0
  %v9223 = vsel %vm9174, %v9158, 0.0
  %v9224 = vsel %vm9174, %v9159, 0.0
  %v9225 = vsel %vm9174, %v9160, 0.0
  %v9226 = vsel %vm9174, %v9161, 0.0
  %v9227 = vsel %vm9174, %v9162, 0.0
  %v9228 = vsel %vm9174, %v9163, 0.0
  %v9229 = vsel %vm9174, %v9164, 0.0
  %v9230 = vsel %vm9174, %v9165, 0.0
  %v9231 = vsel %vm9174, %v9166, 0.0
  %v9232 = vsel %vm9174, %v9167, 0.0
  %v9233 = vsel %vm9174, %v9168, 0.0
  %v9234 = vsel %vm9174, %v9169, 0.0
  %v9235 = vsel %vm9174, %v9170, 0.0
  %v9236 = vsel %vm9174, %v9171, 0.0
  %v9237 = vsel %vm9174, %v9172, 0.0
  %v9238 = vsel %vm9174, %v9173, 0.0
  %9239 = vxpose.xlu0.b32.start [1/16] %v9175, 128
  %9240 = vxpose.xlu0.b32.cont [2/16] %v9176, 128
  %9241 = vxpose.xlu0.b32.cont [3/16] %v9177, 128
  %9242 = vxpose.xlu0.b32.cont [4/16] %v9178, 128
  %9243 = vxpose.xlu0.b32.cont [5/16] %v9179, 128
  %9244 = vxpose.xlu0.b32.cont [6/16] %v9180, 128
  %9245 = vxpose.xlu0.b32.cont [7/16] %v9181, 128
  %9246 = vxpose.xlu0.b32.cont [8/16] %v9182, 128
  %9247 = vxpose.xlu0.b32.cont [9/16] %v9183, 128
  %9248 = vxpose.xlu0.b32.cont [10/16] %v9184, 128
  %9249 = vxpose.xlu0.b32.cont [11/16] %v9185, 128
  %9250 = vxpose.xlu0.b32.cont [12/16] %v9186, 128
  %9251 = vxpose.xlu0.b32.cont [13/16] %v9187, 128
  %9252 = vxpose.xlu0.b32.cont [14/16] %v9188, 128
  %9253 = vxpose.xlu0.b32.cont [15/16] %v9189, 128
  %9254 = vxpose.xlu0.b32.end [16/16] %v9190, 128
  %v9255 = vpop.trf.xlu0
  %v9256 = vpop.trf.xlu0
  %v9257 = vpop.trf.xlu0
  %v9258 = vpop.trf.xlu0
  %v9259 = vpop.trf.xlu0
  %v9260 = vpop.trf.xlu0
  %v9261 = vpop.trf.xlu0
  %v9262 = vpop.trf.xlu0
  %v9263 = vpop.trf.xlu0
  %v9264 = vpop.trf.xlu0
  %v9265 = vpop.trf.xlu0
  %v9266 = vpop.trf.xlu0
  %v9267 = vpop.trf.xlu0
  %v9268 = vpop.trf.xlu0
  %v9269 = vpop.trf.xlu0
  %v9270 = vpop.trf.xlu0
  %9271 = vxpose.xlu0.b32.start [1/16] %v9191, 128
  %9272 = vxpose.xlu0.b32.cont [2/16] %v9192, 128
  %9273 = vxpose.xlu0.b32.cont [3/16] %v9193, 128
  %9274 = vxpose.xlu0.b32.cont [4/16] %v9194, 128
  %9275 = vxpose.xlu0.b32.cont [5/16] %v9195, 128
  %9276 = vxpose.xlu0.b32.cont [6/16] %v9196, 128
  %9277 = vxpose.xlu0.b32.cont [7/16] %v9197, 128
  %9278 = vxpose.xlu0.b32.cont [8/16] %v9198, 128
  %9279 = vxpose.xlu0.b32.cont [9/16] %v9199, 128
  %9280 = vxpose.xlu0.b32.cont [10/16] %v9200, 128
  %9281 = vxpose.xlu0.b32.cont [11/16] %v9201, 128
  %9282 = vxpose.xlu0.b32.cont [12/16] %v9202, 128
  %9283 = vxpose.xlu0.b32.cont [13/16] %v9203, 128
  %9284 = vxpose.xlu0.b32.cont [14/16] %v9204, 128
  %9285 = vxpose.xlu0.b32.cont [15/16] %v9205, 128
  %9286 = vxpose.xlu0.b32.end [16/16] %v9206, 128
  %v9287 = vpop.trf.xlu0
  %v9288 = vpop.trf.xlu0
  %v9289 = vpop.trf.xlu0
  %v9290 = vpop.trf.xlu0
  %v9291 = vpop.trf.xlu0
  %v9292 = vpop.trf.xlu0
  %v9293 = vpop.trf.xlu0
  %v9294 = vpop.trf.xlu0
  %v9295 = vpop.trf.xlu0
  %v9296 = vpop.trf.xlu0
  %v9297 = vpop.trf.xlu0
  %v9298 = vpop.trf.xlu0
  %v9299 = vpop.trf.xlu0
  %v9300 = vpop.trf.xlu0
  %v9301 = vpop.trf.xlu0
  %v9302 = vpop.trf.xlu0
  %9303 = vxpose.xlu0.b32.start [1/16] %v9207, 128
  %9304 = vxpose.xlu0.b32.cont [2/16] %v9208, 128
  %9305 = vxpose.xlu0.b32.cont [3/16] %v9209, 128
  %9306 = vxpose.xlu0.b32.cont [4/16] %v9210, 128
  %9307 = vxpose.xlu0.b32.cont [5/16] %v9211, 128
  %9308 = vxpose.xlu0.b32.cont [6/16] %v9212, 128
  %9309 = vxpose.xlu0.b32.cont [7/16] %v9213, 128
  %9310 = vxpose.xlu0.b32.cont [8/16] %v9214, 128
  %9311 = vxpose.xlu0.b32.cont [9/16] %v9215, 128
  %9312 = vxpose.xlu0.b32.cont [10/16] %v9216, 128
  %9313 = vxpose.xlu0.b32.cont [11/16] %v9217, 128
  %9314 = vxpose.xlu0.b32.cont [12/16] %v9218, 128
  %9315 = vxpose.xlu0.b32.cont [13/16] %v9219, 128
  %9316 = vxpose.xlu0.b32.cont [14/16] %v9220, 128
  %9317 = vxpose.xlu0.b32.cont [15/16] %v9221, 128
  %9318 = vxpose.xlu0.b32.end [16/16] %v9222, 128
  %v9319 = vpop.trf.xlu0
  %v9320 = vpop.trf.xlu0
  %v9321 = vpop.trf.xlu0
  %v9322 = vpop.trf.xlu0
  %v9323 = vpop.trf.xlu0
  %v9324 = vpop.trf.xlu0
  %v9325 = vpop.trf.xlu0
  %v9326 = vpop.trf.xlu0
  %v9327 = vpop.trf.xlu0
  %v9328 = vpop.trf.xlu0
  %v9329 = vpop.trf.xlu0
  %v9330 = vpop.trf.xlu0
  %v9331 = vpop.trf.xlu0
  %v9332 = vpop.trf.xlu0
  %v9333 = vpop.trf.xlu0
  %v9334 = vpop.trf.xlu0
  %9335 = vxpose.xlu0.b32.start [1/16] %v9223, 128
  %9336 = vxpose.xlu0.b32.cont [2/16] %v9224, 128
  %9337 = vxpose.xlu0.b32.cont [3/16] %v9225, 128
  %9338 = vxpose.xlu0.b32.cont [4/16] %v9226, 128
  %9339 = vxpose.xlu0.b32.cont [5/16] %v9227, 128
  %9340 = vxpose.xlu0.b32.cont [6/16] %v9228, 128
  %9341 = vxpose.xlu0.b32.cont [7/16] %v9229, 128
  %9342 = vxpose.xlu0.b32.cont [8/16] %v9230, 128
  %9343 = vxpose.xlu0.b32.cont [9/16] %v9231, 128
  %9344 = vxpose.xlu0.b32.cont [10/16] %v9232, 128
  %9345 = vxpose.xlu0.b32.cont [11/16] %v9233, 128
  %9346 = vxpose.xlu0.b32.cont [12/16] %v9234, 128
  %9347 = vxpose.xlu0.b32.cont [13/16] %v9235, 128
  %9348 = vxpose.xlu0.b32.cont [14/16] %v9236, 128
  %9349 = vxpose.xlu0.b32.cont [15/16] %v9237, 128
  %9350 = vxpose.xlu0.b32.end [16/16] %v9238, 128
  %v9351 = vpop.trf.xlu0
  %v9352 = vpop.trf.xlu0
  %v9353 = vpop.trf.xlu0
  %v9354 = vpop.trf.xlu0
  %v9355 = vpop.trf.xlu0
  %v9356 = vpop.trf.xlu0
  %v9357 = vpop.trf.xlu0
  %v9358 = vpop.trf.xlu0
  %v9359 = vpop.trf.xlu0
  %v9360 = vpop.trf.xlu0
  %v9361 = vpop.trf.xlu0
  %v9362 = vpop.trf.xlu0
  %v9363 = vpop.trf.xlu0
  %v9364 = vpop.trf.xlu0
  %v9365 = vpop.trf.xlu0
  %v9366 = vpop.trf.xlu0
  %v9369 = vcombine.low %v9255, %v9287
  %9371 = vst [vmem:[%s27] sm:$0x77] %v9369
  %v9374 = vcombine.low %v9319, %v9351
  %s9376 = scalar_lea.vmem %s27, 8
  %9377 = vst [vmem:[%s9376] sm:$0x77] %v9374
  // Predicated region
  $region110: #{generator_forward.1} parent=0 // pred_check
    _
  $region111: #{generator_forward.1} parent=0 // pred_check_branch
    %9379 = sbr.rel (0) target = $region113
  $region112: #{generator_forward.1} parent=0 // pred_region
    _
  $region113: #{generator_forward.1} parent=0 // pred_fallthru
    _
  // Predicated region
  $region114: #{generator_forward.1} parent=0 // pred_check
    _
  $region115: #{generator_forward.1} parent=0 // pred_check_branch
    %9381 = sbr.rel (0) target = $region117
  $region116: #{generator_forward.1} parent=0 // pred_region
    _
  $region117: #{generator_forward.1} parent=0 // pred_fallthru
    _

</llo_original>
